<compile_context>
chip_gen: v7x
topology: tpu7x:2x2x1
jax: 0.10.0
libtpu: 0.0.40
codegen_flags: <defaults>
</compile_context>

<pallas_src>
import functools

import jax
import jax.numpy as jnp
from jax import lax
from jax.experimental import pallas as pl
from jax.experimental.pallas import tpu as pltpu

NEG_SLOPE = 0.2   # LeakyReLU slope
BN_EPS = 1e-5     # BatchNorm3d eps


def _leaky_relu(x):
    return jnp.where(x >= 0, x, NEG_SLOPE * x)


def _hidden(x_ref, w1_ref, b1_ref, w2_ref):
    """conv1 -> LeakyReLU -> conv2 on one (c_in, T) voxel tile -> f32 (c2, T)."""
    x = x_ref[0].astype(jnp.bfloat16)                          # (c_in, T)
    h1 = jnp.dot(w1_ref[...], x, preferred_element_type=jnp.float32)
    h1 = _leaky_relu(h1 + b1_ref[...])                         # f32 (c1, T)
    return jnp.dot(w2_ref[...], h1.astype(jnp.bfloat16),
                   preferred_element_type=jnp.float32)         # f32 (c2, T)


def _stats_kernel(x_ref, w1_ref, b1_ref, w2_ref, sum_ref, sq_ref):
    """Stage A: per-tile partial batch-norm statistics of the conv2 output."""
    h2 = _hidden(x_ref, w1_ref, b1_ref, w2_ref)
    sum_ref[0, 0] = jnp.sum(h2, axis=1, keepdims=True)         # (c2, 1)
    sq_ref[0, 0] = jnp.sum(h2 * h2, axis=1, keepdims=True)


def _output_kernel(x_ref, w1_ref, b1_ref, w2s_ref, shift_ref, w3_ref, o_ref,
                   *, use_sigmoid):
    """Stage B: recompute hidden with BN-scale-folded conv2, add shift,
    LeakyReLU, final 1x1x1 conv (+ optional sigmoid)."""
    h2 = _hidden(x_ref, w1_ref, b1_ref, w2s_ref) + shift_ref[...]
    h3 = _leaky_relu(h2)                                       # f32 (c2, T)
    out = jnp.dot(w3_ref[...], h3.astype(jnp.bfloat16),
                  preferred_element_type=jnp.float32)          # f32 (1, T)
    if use_sigmoid:                                            # static flag
        out = jax.nn.sigmoid(out)
    o_ref[0] = out


def pixel_discriminator_forward(x, w1, b1, w2, w3, gamma, beta,
                                *, use_sigmoid=False, tile_m=2048):
    """x: (N, input_nc, D, H, W)
       w1: (ndf, input_nc, 1,1,1), b1: (ndf,)
       w2: (2*ndf, ndf, 1,1,1),    w3: (1, 2*ndf, 1,1,1)
       gamma/beta: (2*ndf,) BatchNorm3d affine parameters."""
    n, c_in, d, h, w = x.shape
    c1 = w1.shape[0]            # ndf
    c2 = w2.shape[0]            # 2 * ndf
    dhw = d * h * w
    m = n * dhw                 # voxels contributing to BN statistics

    tile_m = min(tile_m, pl.cdiv(dhw, 128) * 128)
    assert tile_m % 128 == 0
    mt = pl.cdiv(dhw, tile_m)
    dhw_pad = mt * tile_m

    # (N, C, D*H*W): contiguous reshape -> no HBM copy, no transpose.  The
    # per-voxel axis stays on lanes for every load and for the output store.
    x3 = x.reshape(n, c_in, dhw)
    if dhw_pad != dhw:
        x3 = jnp.pad(x3, ((0, 0), (0, 0), (0, dhw_pad - dhw)))

    w1f = w1.reshape(c1, c_in).astype(jnp.bfloat16)
    b1f = b1.reshape(c1, 1).astype(jnp.float32)
    w2f32 = w2.reshape(c2, c1).astype(jnp.float32)
    w2f = w2f32.astype(jnp.bfloat16)
    w3f = w3.reshape(1, c2).astype(jnp.bfloat16)

    x_spec = pl.BlockSpec((1, c_in, tile_m), lambda ni, ti: (ni, 0, ti))
    w1_spec = pl.BlockSpec((c1, c_in), lambda ni, ti: (0, 0))
    b1_spec = pl.BlockSpec((c1, 1), lambda ni, ti: (0, 0))
    w2_spec = pl.BlockSpec((c2, c1), lambda ni, ti: (0, 0))

    # ---- stage A: batch-norm statistics (per-tile partials, parallel grid) ----
    stat_spec = pl.BlockSpec((1, 1, c2, 1), lambda ni, ti: (ni, ti, 0, 0))
    psum, psq = pl.pallas_call(
        _stats_kernel,
        out_shape=(jax.ShapeDtypeStruct((n, mt, c2, 1), jnp.float32),
                   jax.ShapeDtypeStruct((n, mt, c2, 1), jnp.float32)),
        grid_spec=pltpu.PrefetchScalarGridSpec(
            num_scalar_prefetch=0,
            grid=(n, mt),
            in_specs=[x_spec, w1_spec, b1_spec, w2_spec],
            out_specs=[stat_spec, stat_spec]),
        compiler_params=pltpu.CompilerParams(
            dimension_semantics=("parallel", "parallel")),
    )(x3, w1f, b1f, w2f)

    ssum = jnp.sum(psum[..., 0], axis=(0, 1))                  # (c2,)
    ssq = jnp.sum(psq[..., 0], axis=(0, 1))
    n_pad = n * (dhw_pad - dhw)
    if n_pad:
        # Zero-padded voxels still leak conv1's bias through the hidden
        # layers; their (constant per-voxel) contribution is removed here
        # instead of masking every tile inside the kernel.
        h1p = _leaky_relu(b1f)                                  # (c1, 1) f32
        h2p = (w2f.astype(jnp.float32) @ h1p)[:, 0]             # (c2,)
        ssum = ssum - n_pad * h2p
        ssq = ssq - n_pad * h2p * h2p

    mean = ssum / m
    var = jnp.maximum(ssq / m - mean * mean, 0.0)               # biased variance
    inv_std = lax.rsqrt(var + BN_EPS)
    g = gamma.astype(jnp.float32)
    scale = g * inv_std                                         # (c2,)
    shift = (beta.astype(jnp.float32) - mean * scale).reshape(c2, 1)
    # Fold the BN scale into conv2's weights; the shift stays as an explicit
    # per-channel bias because LeakyReLU sits between BN and conv3.
    w2s = (w2f32 * scale[:, None]).astype(jnp.bfloat16)

    # ---- stage B: hidden (scale-folded) + shift + lrelu + conv3, fused ----
    out3 = pl.pallas_call(
        functools.partial(_output_kernel, use_sigmoid=use_sigmoid),
        out_shape=jax.ShapeDtypeStruct((n, 1, dhw_pad), jnp.float32),
        grid_spec=pltpu.PrefetchScalarGridSpec(
            num_scalar_prefetch=0,
            grid=(n, mt),
            in_specs=[x_spec, w1_spec, b1_spec, w2_spec,
                      pl.BlockSpec((c2, 1), lambda ni, ti: (0, 0)),
                      pl.BlockSpec((1, c2), lambda ni, ti: (0, 0))],
            out_specs=pl.BlockSpec((1, 1, tile_m), lambda ni, ti: (ni, 0, ti))),
        compiler_params=pltpu.CompilerParams(
            dimension_semantics=("parallel", "parallel")),
    )(x3, w1f, b1f, w2s, shift, w3f)

    if dhw_pad != dhw:
        out3 = out3[:, :, :dhw]
    return out3.reshape(n, 1, d, h, w)                          # (N, 1, D, H, W)


# ---------------------------------------------------------------------------
# pure-JAX reference for a sanity check
# ---------------------------------------------------------------------------
def _reference_forward(x, w1, b1, w2, w3, gamma, beta, use_sigmoid=False):
    w1m = w1.reshape(w1.shape[0], -1)
    w2m = w2.reshape(w2.shape[0], -1)
    w3m = w3.reshape(w3.shape[0], -1)
    h1 = jnp.einsum('oc,ncdhw->nodhw', w1m, x) + b1[None, :, None, None, None]
    h1 = jnp.where(h1 >= 0, h1, NEG_SLOPE * h1)
    h2 = jnp.einsum('oc,ncdhw->nodhw', w2m, h1)
    mean = h2.mean(axis=(0, 2, 3, 4), keepdims=True)
    var = jnp.mean(jnp.square(h2 - mean), axis=(0, 2, 3, 4), keepdims=True)
    hn = (h2 - mean) * lax.rsqrt(var + BN_EPS)
    hn = hn * gamma[None, :, None, None, None] + beta[None, :, None, None, None]
    h3 = jnp.where(hn >= 0, hn, NEG_SLOPE * hn)
    out = jnp.einsum('oc,ncdhw->nodhw', w3m, h3)
    if use_sigmoid:
        out = jax.nn.sigmoid(out)
    return out


if __name__ == "__main__":
    N, input_nc, ndf = 2, 4, 64
    D = H = W = 16

    key = jax.random.PRNGKey(0)
    kx, k1, kb, k2, k3, kg, kbt = jax.random.split(key, 7)
    x = jax.random.normal(kx, (N, input_nc, D, H, W), jnp.float32)
    # CycleGAN-style init: conv weights ~ N(0, 0.02); BN gamma ~ N(1, 0.02).
    w1 = 0.02 * jax.random.normal(k1, (ndf, input_nc, 1, 1, 1), jnp.float32)
    b1 = 0.02 * jax.random.normal(kb, (ndf,), jnp.float32)
    w2 = 0.02 * jax.random.normal(k2, (2 * ndf, ndf, 1, 1, 1), jnp.float32)
    w3 = 0.02 * jax.random.normal(k3, (1, 2 * ndf, 1, 1, 1), jnp.float32)
    gamma = 1.0 + 0.02 * jax.random.normal(kg, (2 * ndf,), jnp.float32)
    beta = 0.02 * jax.random.normal(kbt, (2 * ndf,), jnp.float32)

    out = jax.jit(pixel_discriminator_forward)(x, w1, b1, w2, w3, gamma, beta)
    out = jax.block_until_ready(out)

    assert out.shape == (N, 1, D, H, W), out.shape

    ref = _reference_forward(x, w1, b1, w2, w3, gamma, beta)
    max_err = float(jnp.max(jnp.abs(out - ref)))
    assert jnp.allclose(out, ref, atol=2e-2, rtol=2e-2), max_err

    print("KERNEL_OK")
</pallas_src>

<mosaic_0001>
module attributes {stable_mosaic.version = 11 : i64} {
  func.func @_stats_kernel(%arg0: i32, %arg1: i32, %arg2: memref<1x4x2048xf32, #tpu.memory_space<vmem>>, %arg3: memref<64x4xbf16, #tpu.memory_space<vmem>>, %arg4: memref<64x1xf32, #tpu.memory_space<vmem>>, %arg5: memref<128x64xbf16, #tpu.memory_space<vmem>>, %arg6: memref<1x1x128x1xf32, #tpu.memory_space<vmem>>, %arg7: memref<1x1x128x1xf32, #tpu.memory_space<vmem>>) attributes {dimension_semantics = [#tpu.dimension_semantics<parallel>, #tpu.dimension_semantics<parallel>], iteration_bounds = array<i64: 2, 2>, scalar_prefetch = 0 : i64, scratch_operands = 0 : i64, tpu.core_type = #tpu.core_type<tc>, window_params = [{transform_indices = @transform_0, window_bounds = array<i64: 1, 4, 2048>}, {pipeline_mode = #tpu.pipeline_mode<synchronous>, transform_indices = @transform_1, window_bounds = array<i64: 64, 4>}, {pipeline_mode = #tpu.pipeline_mode<synchronous>, transform_indices = @transform_2, window_bounds = array<i64: 64, 1>}, {pipeline_mode = #tpu.pipeline_mode<synchronous>, transform_indices = @transform_3, window_bounds = array<i64: 128, 64>}, {transform_indices = @transform_4, window_bounds = array<i64: 1, 1, 128, 1>}, {transform_indices = @transform_5, window_bounds = array<i64: 1, 1, 128, 1>}]} {
    %c0 = arith.constant 0 : index
    %c0_0 = arith.constant 0 : index
    %c0_1 = arith.constant 0 : index
    %0 = vector.load %arg2[%c0, %c0_0, %c0_1] : memref<1x4x2048xf32, #tpu.memory_space<vmem>>, vector<1x4x2048xf32>
    %1 = vector.shape_cast %0 : vector<1x4x2048xf32> to vector<4x2048xf32>
    %2 = arith.truncf %1 : vector<4x2048xf32> to vector<4x2048xbf16>
    %c0_2 = arith.constant 0 : index
    %c0_3 = arith.constant 0 : index
    %3 = vector.load %arg3[%c0_2, %c0_3] : memref<64x4xbf16, #tpu.memory_space<vmem>>, vector<64x4xbf16>
    %cst = arith.constant dense<0.000000e+00> : vector<64x2048xf32>
    %4 = tpu.matmul %3, %2, %cst {dimension_numbers = #tpu.dot_dimension_numbers<[1], [0], [0], [1], [0, 0, 1, 1], [], []>} : vector<64x4xbf16>, vector<4x2048xbf16>, vector<64x2048xf32> -> vector<64x2048xf32>
    %c0_4 = arith.constant 0 : index
    %c0_5 = arith.constant 0 : index
    %5 = vector.load %arg4[%c0_4, %c0_5] : memref<64x1xf32, #tpu.memory_space<vmem>>, vector<64x1xf32>
    %6 = vector.broadcast %5 : vector<64x1xf32> to vector<64x2048xf32>
    %7 = arith.addf %4, %6 : vector<64x2048xf32>
    %cst_6 = arith.constant 0.000000e+00 : f32
    %8 = vector.broadcast %cst_6 : f32 to vector<64x2048xf32>
    %9 = arith.cmpf oge, %7, %8 : vector<64x2048xf32>
    %cst_7 = arith.constant 2.000000e-01 : f32
    %10 = vector.broadcast %cst_7 : f32 to vector<64x2048xf32>
    %11 = arith.mulf %10, %7 : vector<64x2048xf32>
    %12 = arith.select %9, %7, %11 : vector<64x2048xi1>, vector<64x2048xf32>
    %c0_8 = arith.constant 0 : index
    %c0_9 = arith.constant 0 : index
    %13 = vector.load %arg5[%c0_8, %c0_9] : memref<128x64xbf16, #tpu.memory_space<vmem>>, vector<128x64xbf16>
    %14 = arith.truncf %12 : vector<64x2048xf32> to vector<64x2048xbf16>
    %cst_10 = arith.constant dense<0.000000e+00> : vector<128x2048xf32>
    %15 = tpu.matmul %13, %14, %cst_10 {dimension_numbers = #tpu.dot_dimension_numbers<[1], [0], [0], [1], [0, 0, 1, 1], [], []>} : vector<128x64xbf16>, vector<64x2048xbf16>, vector<128x2048xf32> -> vector<128x2048xf32>
    %cst_11 = arith.constant dense<0.000000e+00> : vector<128xf32>
    %16 = vector.multi_reduction <add>, %15, %cst_11 [1] : vector<128x2048xf32> to vector<128xf32>
    %17 = vector.shape_cast %16 : vector<128xf32> to vector<128x1xf32>
    %c0_12 = arith.constant 0 : index
    %c0_13 = arith.constant 0 : index
    %c0_14 = arith.constant 0 : index
    %c0_15 = arith.constant 0 : index
    %18 = vector.load %arg6[%c0_12, %c0_13, %c0_14, %c0_15] : memref<1x1x128x1xf32, #tpu.memory_space<vmem>>, vector<1x1x128x1xf32>
    %19 = vector.shape_cast %18 : vector<1x1x128x1xf32> to vector<128x1xf32>
    %20 = vector.shape_cast %17 : vector<128x1xf32> to vector<1x1x128x1xf32>
    tpu.vector_store %arg6[%c0_12, %c0_13, %c0_14, %c0_15], %20 {strides = array<i32>} : memref<1x1x128x1xf32, #tpu.memory_space<vmem>>, vector<1x1x128x1xf32>,
    %21 = arith.mulf %15, %15 : vector<128x2048xf32>
    %cst_16 = arith.constant dense<0.000000e+00> : vector<128xf32>
    %22 = vector.multi_reduction <add>, %21, %cst_16 [1] : vector<128x2048xf32> to vector<128xf32>
    %23 = vector.shape_cast %22 : vector<128xf32> to vector<128x1xf32>
    %c0_17 = arith.constant 0 : index
    %c0_18 = arith.constant 0 : index
    %c0_19 = arith.constant 0 : index
    %c0_20 = arith.constant 0 : index
    %24 = vector.load %arg7[%c0_17, %c0_18, %c0_19, %c0_20] : memref<1x1x128x1xf32, #tpu.memory_space<vmem>>, vector<1x1x128x1xf32>
    %25 = vector.shape_cast %24 : vector<1x1x128x1xf32> to vector<128x1xf32>
    %26 = vector.shape_cast %23 : vector<128x1xf32> to vector<1x1x128x1xf32>
    tpu.vector_store %arg7[%c0_17, %c0_18, %c0_19, %c0_20], %26 {strides = array<i32>} : memref<1x1x128x1xf32, #tpu.memory_space<vmem>>, vector<1x1x128x1xf32>,
    return
  }
  func.func @transform_0(%arg0: i32, %arg1: i32) -> (i32, i32, i32) {
    %c0_i32 = arith.constant 0 : i32
    %c0_i32_0 = arith.constant 0 : i32
    return %arg0, %c0_i32, %arg1 : i32, i32, i32
  }
  func.func @transform_1(%arg0: i32, %arg1: i32) -> (i32, i32) {
    %c0_i32 = arith.constant 0 : i32
    %c0_i32_0 = arith.constant 0 : i32
    %c0_i32_1 = arith.constant 0 : i32
    return %c0_i32, %c0_i32_0 : i32, i32
  }
  func.func @transform_2(%arg0: i32, %arg1: i32) -> (i32, i32) {
    %c0_i32 = arith.constant 0 : i32
    %c0_i32_0 = arith.constant 0 : i32
    %c0_i32_1 = arith.constant 0 : i32
    return %c0_i32, %c0_i32_0 : i32, i32
  }
  func.func @transform_3(%arg0: i32, %arg1: i32) -> (i32, i32) {
    %c0_i32 = arith.constant 0 : i32
    %c0_i32_0 = arith.constant 0 : i32
    %c0_i32_1 = arith.constant 0 : i32
    return %c0_i32, %c0_i32_0 : i32, i32
  }
  func.func @transform_4(%arg0: i32, %arg1: i32) -> (i32, i32, i32, i32) {
    %c0_i32 = arith.constant 0 : i32
    %c0_i32_0 = arith.constant 0 : i32
    %c0_i32_1 = arith.constant 0 : i32
    return %arg0, %arg1, %c0_i32, %c0_i32_0 : i32, i32, i32, i32
  }
  func.func @transform_5(%arg0: i32, %arg1: i32) -> (i32, i32, i32, i32) {
    %c0_i32 = arith.constant 0 : i32
    %c0_i32_0 = arith.constant 0 : i32
    %c0_i32_1 = arith.constant 0 : i32
    return %arg0, %arg1, %c0_i32, %c0_i32_0 : i32, i32, i32, i32
  }
}

module attributes {stable_mosaic.version = 11 : i64} {
  func.func @_output_kernel(%arg0: i32, %arg1: i32, %arg2: memref<1x4x2048xf32, #tpu.memory_space<vmem>>, %arg3: memref<64x4xbf16, #tpu.memory_space<vmem>>, %arg4: memref<64x1xf32, #tpu.memory_space<vmem>>, %arg5: memref<128x64xbf16, #tpu.memory_space<vmem>>, %arg6: memref<128x1xf32, #tpu.memory_space<vmem>>, %arg7: memref<1x128xbf16, #tpu.memory_space<vmem>>, %arg8: memref<1x1x2048xf32, #tpu.memory_space<vmem>>) attributes {dimension_semantics = [#tpu.dimension_semantics<parallel>, #tpu.dimension_semantics<parallel>], iteration_bounds = array<i64: 2, 2>, scalar_prefetch = 0 : i64, scratch_operands = 0 : i64, tpu.core_type = #tpu.core_type<tc>, window_params = [{transform_indices = @transform_0, window_bounds = array<i64: 1, 4, 2048>}, {pipeline_mode = #tpu.pipeline_mode<synchronous>, transform_indices = @transform_1, window_bounds = array<i64: 64, 4>}, {pipeline_mode = #tpu.pipeline_mode<synchronous>, transform_indices = @transform_2, window_bounds = array<i64: 64, 1>}, {pipeline_mode = #tpu.pipeline_mode<synchronous>, transform_indices = @transform_3, window_bounds = array<i64: 128, 64>}, {pipeline_mode = #tpu.pipeline_mode<synchronous>, transform_indices = @transform_4, window_bounds = array<i64: 128, 1>}, {pipeline_mode = #tpu.pipeline_mode<synchronous>, transform_indices = @transform_5, window_bounds = array<i64: 1, 128>}, {transform_indices = @transform_6, window_bounds = array<i64: 1, 1, 2048>}]} {
    %c0 = arith.constant 0 : index
    %c0_0 = arith.constant 0 : index
    %c0_1 = arith.constant 0 : index
    %0 = vector.load %arg2[%c0, %c0_0, %c0_1] : memref<1x4x2048xf32, #tpu.memory_space<vmem>>, vector<1x4x2048xf32>
    %1 = vector.shape_cast %0 : vector<1x4x2048xf32> to vector<4x2048xf32>
    %2 = arith.truncf %1 : vector<4x2048xf32> to vector<4x2048xbf16>
    %c0_2 = arith.constant 0 : index
    %c0_3 = arith.constant 0 : index
    %3 = vector.load %arg3[%c0_2, %c0_3] : memref<64x4xbf16, #tpu.memory_space<vmem>>, vector<64x4xbf16>
    %cst = arith.constant dense<0.000000e+00> : vector<64x2048xf32>
    %4 = tpu.matmul %3, %2, %cst {dimension_numbers = #tpu.dot_dimension_numbers<[1], [0], [0], [1], [0, 0, 1, 1], [], []>} : vector<64x4xbf16>, vector<4x2048xbf16>, vector<64x2048xf32> -> vector<64x2048xf32>
    %c0_4 = arith.constant 0 : index
    %c0_5 = arith.constant 0 : index
    %5 = vector.load %arg4[%c0_4, %c0_5] : memref<64x1xf32, #tpu.memory_space<vmem>>, vector<64x1xf32>
    %6 = vector.broadcast %5 : vector<64x1xf32> to vector<64x2048xf32>
    %7 = arith.addf %4, %6 : vector<64x2048xf32>
    %cst_6 = arith.constant 0.000000e+00 : f32
    %8 = vector.broadcast %cst_6 : f32 to vector<64x2048xf32>
    %9 = arith.cmpf oge, %7, %8 : vector<64x2048xf32>
    %cst_7 = arith.constant 2.000000e-01 : f32
    %10 = vector.broadcast %cst_7 : f32 to vector<64x2048xf32>
    %11 = arith.mulf %10, %7 : vector<64x2048xf32>
    %12 = arith.select %9, %7, %11 : vector<64x2048xi1>, vector<64x2048xf32>
    %c0_8 = arith.constant 0 : index
    %c0_9 = arith.constant 0 : index
    %13 = vector.load %arg5[%c0_8, %c0_9] : memref<128x64xbf16, #tpu.memory_space<vmem>>, vector<128x64xbf16>
    %14 = arith.truncf %12 : vector<64x2048xf32> to vector<64x2048xbf16>
    %cst_10 = arith.constant dense<0.000000e+00> : vector<128x2048xf32>
    %15 = tpu.matmul %13, %14, %cst_10 {dimension_numbers = #tpu.dot_dimension_numbers<[1], [0], [0], [1], [0, 0, 1, 1], [], []>} : vector<128x64xbf16>, vector<64x2048xbf16>, vector<128x2048xf32> -> vector<128x2048xf32>
    %c0_11 = arith.constant 0 : index
    %c0_12 = arith.constant 0 : index
    %16 = vector.load %arg6[%c0_11, %c0_12] : memref<128x1xf32, #tpu.memory_space<vmem>>, vector<128x1xf32>
    %17 = vector.broadcast %16 : vector<128x1xf32> to vector<128x2048xf32>
    %18 = arith.addf %15, %17 : vector<128x2048xf32>
    %cst_13 = arith.constant 0.000000e+00 : f32
    %19 = vector.broadcast %cst_13 : f32 to vector<128x2048xf32>
    %20 = arith.cmpf oge, %18, %19 : vector<128x2048xf32>
    %cst_14 = arith.constant 2.000000e-01 : f32
    %21 = vector.broadcast %cst_14 : f32 to vector<128x2048xf32>
    %22 = arith.mulf %21, %18 : vector<128x2048xf32>
    %23 = arith.select %20, %18, %22 : vector<128x2048xi1>, vector<128x2048xf32>
    %c0_15 = arith.constant 0 : index
    %c0_16 = arith.constant 0 : index
    %24 = vector.load %arg7[%c0_15, %c0_16] : memref<1x128xbf16, #tpu.memory_space<vmem>>, vector<1x128xbf16>
    %25 = arith.truncf %23 : vector<128x2048xf32> to vector<128x2048xbf16>
    %cst_17 = arith.constant dense<0.000000e+00> : vector<1x2048xf32>
    %26 = tpu.matmul %24, %25, %cst_17 {dimension_numbers = #tpu.dot_dimension_numbers<[1], [0], [0], [1], [0, 0, 1, 1], [], []>} : vector<1x128xbf16>, vector<128x2048xbf16>, vector<1x2048xf32> -> vector<1x2048xf32>
    %c0_18 = arith.constant 0 : index
    %c0_19 = arith.constant 0 : index
    %c0_20 = arith.constant 0 : index
    %27 = vector.load %arg8[%c0_18, %c0_19, %c0_20] : memref<1x1x2048xf32, #tpu.memory_space<vmem>>, vector<1x1x2048xf32>
    %28 = vector.shape_cast %27 : vector<1x1x2048xf32> to vector<1x2048xf32>
    %29 = vector.shape_cast %26 : vector<1x2048xf32> to vector<1x1x2048xf32>
    tpu.vector_store %arg8[%c0_18, %c0_19, %c0_20], %29 {strides = array<i32>} : memref<1x1x2048xf32, #tpu.memory_space<vmem>>, vector<1x1x2048xf32>,
    return
  }
  func.func @transform_0(%arg0: i32, %arg1: i32) -> (i32, i32, i32) {
    %c0_i32 = arith.constant 0 : i32
    %c0_i32_0 = arith.constant 0 : i32
    return %arg0, %c0_i32, %arg1 : i32, i32, i32
  }
  func.func @transform_1(%arg0: i32, %arg1: i32) -> (i32, i32) {
    %c0_i32 = arith.constant 0 : i32
    %c0_i32_0 = arith.constant 0 : i32
    %c0_i32_1 = arith.constant 0 : i32
    return %c0_i32, %c0_i32_0 : i32, i32
  }
  func.func @transform_2(%arg0: i32, %arg1: i32) -> (i32, i32) {
    %c0_i32 = arith.constant 0 : i32
    %c0_i32_0 = arith.constant 0 : i32
    %c0_i32_1 = arith.constant 0 : i32
    return %c0_i32, %c0_i32_0 : i32, i32
  }
  func.func @transform_3(%arg0: i32, %arg1: i32) -> (i32, i32) {
    %c0_i32 = arith.constant 0 : i32
    %c0_i32_0 = arith.constant 0 : i32
    %c0_i32_1 = arith.constant 0 : i32
    return %c0_i32, %c0_i32_0 : i32, i32
  }
  func.func @transform_4(%arg0: i32, %arg1: i32) -> (i32, i32) {
    %c0_i32 = arith.constant 0 : i32
    %c0_i32_0 = arith.constant 0 : i32
    %c0_i32_1 = arith.constant 0 : i32
    return %c0_i32, %c0_i32_0 : i32, i32
  }
  func.func @transform_5(%arg0: i32, %arg1: i32) -> (i32, i32) {
    %c0_i32 = arith.constant 0 : i32
    %c0_i32_0 = arith.constant 0 : i32
    %c0_i32_1 = arith.constant 0 : i32
    return %c0_i32, %c0_i32_0 : i32, i32
  }
  func.func @transform_6(%arg0: i32, %arg1: i32) -> (i32, i32, i32) {
    %c0_i32 = arith.constant 0 : i32
    %c0_i32_0 = arith.constant 0 : i32
    return %arg0, %c0_i32, %arg1 : i32, i32, i32
  }
}

</mosaic_0001>

<llo_original>
// kernel: pixel_discriminator_forward.2
$region0: #{pixel_discriminator_forward.2}
  #allocation0 [shape = 'u32[]', space=smem, size = 0x4, offset = 0x4, fixed_abs, tag = 'smem constant byte address 0x4 - core index']
  #allocation1 [shape = 'u32[144,128]{1,0:T(1,128)}', space=vmem, size = 0x12000, scoped, tag = 'internal scratch']
  %s0 = inlined_call_operand.vmem [shape: f32[2,4,4096], index: 0, kind: input, shape index: {}]
  %s1 = inlined_call_operand.vmem [shape: bf16[64,4], index: 1, kind: input, shape index: {}]
  %s2 = inlined_call_operand.vmem [shape: f32[64,1], index: 2, kind: input, shape index: {}]
  %s3 = inlined_call_operand.vmem [shape: bf16[128,64], index: 3, kind: input, shape index: {}]
  %s4 = inlined_call_operand.vmem [shape: f32[2,2,128,1], index: 4, kind: output, shape index: {0}]
  %s5 = inlined_call_operand.vmem [shape: f32[2,2,128,1], index: 5, kind: output, shape index: {1}]
  %6 = xla_tuple %s4, %s5
  %s7 = sld [smem:[#allocation0]]
  $region57: #{pixel_discriminator_forward.2} parent=0
    _
  %s9 = ssub.s32 1, %s7
  %s10 = scalar_select 0, %s9, %s7
  loop: start=0, step=1, limit=6
  $region2: #{pixel_discriminator_forward.2} parent=0 // loop_pre_header
    _
  $region3: #{pixel_discriminator_forward.2} parent=0 // loop_header
    %s12 = sphi 0, %s16
    %p13 = scmp.ge.s32.totalorder %s12, 6
    %s19 = sphi 0, %s31
    %s20 = sphi 0, %s27
    %s21 = sphi 0, %s19
    %s22 = sphi 0, %s20
    %s23 = sphi 0, %s21
    %s24 = sphi 0, %s22
    %s36 = sphi 0, %s38
    %s39 = sphi 0, %s36
    %s40 = sphi 0, %s39
    %s56 = sphi 0, %s40
    %s60 = sphi 0, %s60
    %s62 = sphi 0, %s60
    %s63 = sphi 0, %s62
    %s77 = sphi 0, %s63
    %s81 = sphi 0, %s81
    %s83 = sphi 0, %s81
    %s84 = sphi 0, %s83
    %s98 = sphi 0, %s84
    %s102 = sphi 0, %s102
    %s104 = sphi 0, %s102
    %s105 = sphi 0, %s104
    %s119 = sphi 0, %s105
    %s127 = sphi 0, %s129
    %s130 = sphi 0, %s127
    %s131 = sphi 0, %s130
    %s147 = sphi 0, %s131
    %s155 = sphi 0, %s157
    %s158 = sphi 0, %s155
    %s159 = sphi 0, %s158
    %s175 = sphi 0, %s159
  $region4: #{pixel_discriminator_forward.2} parent=0 // loop_header_branch
    %15 = sbr.rel (%p13) target = $region8
  $region5: #{pixel_discriminator_forward.2} parent=0 // loop_body
    %s17 = ssub.s32 %s12, 1
    %s18 = ssub.s32 %s12, 2
    %s25 = sadd.s32 1, %s20
    %p26 = scmp.ge.s32.totalorder %s25, 2
    %s27 = scalar_select %p26, 0, %s25
    %s28 = sadd.s32 1, %s19
    %s29 = scalar_select %p26, %s28, %s19
    %p30 = scmp.ge.s32.totalorder %s29, 2
    %s31 = scalar_select %p30, 0, %s29
    %s32 = ssub.s32 %s19, %s31
    %s33 = ssub.s32 %s20, %s27
    %s34 = sor.u32 %s32, %s33
    %p35 = scmp.eq.s32.totalorder %s34, 0
    %s37 = sadd.s32 %s36, 1
    %s38 = scalar_select %p35, %s36, %s37
    %p41 = pneg %p35
    %p42 = scmp.eq.s32.totalorder %s12, 3
    %p43 = por %p41, %p42
    %p44 = scmp.ne.s32.totalorder %s36, %s39
    %p45 = scmp.eq.s32.totalorder %s12, 0
    %p46 = por %p44, %p45
    %p47 = scmp.ne.s32.totalorder %s36, %s39
    %p48 = scmp.eq.s32.totalorder %s17, 3
    %p49 = por %p47, %p48
    %p50 = scmp.ne.s32.totalorder %s39, %s40
    %p51 = scmp.eq.s32.totalorder %s17, 0
    %p52 = por %p50, %p51
    %p53 = scmp.ne.s32.totalorder %s39, %s40
    %p54 = scmp.eq.s32.totalorder %s18, 3
    %p55 = por %p53, %p54
    %p57 = scmp.ne.s32.totalorder %s40, %s56
    %p58 = scmp.eq.s32.totalorder %s18, 0
    %p59 = por %p57, %p58
    %s61 = sadd.s32 %s60, 1
    %p64 = scmp.eq.s32.totalorder %s12, 3
    %p65 = scmp.ne.s32.totalorder %s60, %s62
    %p66 = scmp.eq.s32.totalorder %s12, 0
    %p67 = por %p65, %p66
    %p68 = scmp.ne.s32.totalorder %s60, %s62
    %p69 = scmp.eq.s32.totalorder %s17, 3
    %p70 = por %p68, %p69
    %p71 = scmp.ne.s32.totalorder %s62, %s63
    %p72 = scmp.eq.s32.totalorder %s17, 0
    %p73 = por %p71, %p72
    %p74 = scmp.ne.s32.totalorder %s62, %s63
    %p75 = scmp.eq.s32.totalorder %s18, 3
    %p76 = por %p74, %p75
    %p78 = scmp.ne.s32.totalorder %s63, %s77
    %p79 = scmp.eq.s32.totalorder %s18, 0
    %p80 = por %p78, %p79
    %s82 = sadd.s32 %s81, 1
    %p85 = scmp.eq.s32.totalorder %s12, 3
    %p86 = scmp.ne.s32.totalorder %s81, %s83
    %p87 = scmp.eq.s32.totalorder %s12, 0
    %p88 = por %p86, %p87
    %p89 = scmp.ne.s32.totalorder %s81, %s83
    %p90 = scmp.eq.s32.totalorder %s17, 3
    %p91 = por %p89, %p90
    %p92 = scmp.ne.s32.totalorder %s83, %s84
    %p93 = scmp.eq.s32.totalorder %s17, 0
    %p94 = por %p92, %p93
    %p95 = scmp.ne.s32.totalorder %s83, %s84
    %p96 = scmp.eq.s32.totalorder %s18, 3
    %p97 = por %p95, %p96
    %p99 = scmp.ne.s32.totalorder %s84, %s98
    %p100 = scmp.eq.s32.totalorder %s18, 0
    %p101 = por %p99, %p100
    %s103 = sadd.s32 %s102, 1
    %p106 = scmp.eq.s32.totalorder %s12, 3
    %p107 = scmp.ne.s32.totalorder %s102, %s104
    %p108 = scmp.eq.s32.totalorder %s12, 0
    %p109 = por %p107, %p108
    %p110 = scmp.ne.s32.totalorder %s102, %s104
    %p111 = scmp.eq.s32.totalorder %s17, 3
    %p112 = por %p110, %p111
    %p113 = scmp.ne.s32.totalorder %s104, %s105
    %p114 = scmp.eq.s32.totalorder %s17, 0
    %p115 = por %p113, %p114
    %p116 = scmp.ne.s32.totalorder %s104, %s105
    %p117 = scmp.eq.s32.totalorder %s18, 3
    %p118 = por %p116, %p117
    %p120 = scmp.ne.s32.totalorder %s105, %s119
    %p121 = scmp.eq.s32.totalorder %s18, 0
    %p122 = por %p120, %p121
    %s123 = ssub.s32 %s19, %s31
    %s124 = ssub.s32 %s20, %s27
    %s125 = sor.u32 %s123, %s124
    %p126 = scmp.eq.s32.totalorder %s125, 0
    %s128 = sadd.s32 %s127, 1
    %s129 = scalar_select %p126, %s127, %s128
    %p132 = pneg %p126
    %p133 = scmp.eq.s32.totalorder %s12, 3
    %p134 = por %p132, %p133
    %p135 = scmp.ne.s32.totalorder %s127, %s130
    %p136 = scmp.eq.s32.totalorder %s12, 0
    %p137 = por %p135, %p136
    %p138 = scmp.ne.s32.totalorder %s127, %s130
    %p139 = scmp.eq.s32.totalorder %s17, 3
    %p140 = por %p138, %p139
    %p141 = scmp.ne.s32.totalorder %s130, %s131
    %p142 = scmp.eq.s32.totalorder %s17, 0
    %p143 = por %p141, %p142
    %p144 = scmp.ne.s32.totalorder %s130, %s131
    %p145 = scmp.eq.s32.totalorder %s18, 3
    %p146 = por %p144, %p145
    %p148 = scmp.ne.s32.totalorder %s131, %s147
    %p149 = scmp.eq.s32.totalorder %s18, 0
    %p150 = por %p148, %p149
    %s151 = ssub.s32 %s19, %s31
    %s152 = ssub.s32 %s20, %s27
    %s153 = sor.u32 %s151, %s152
    %p154 = scmp.eq.s32.totalorder %s153, 0
    %s156 = sadd.s32 %s155, 1
    %s157 = scalar_select %p154, %s155, %s156
    %p160 = pneg %p154
    %p161 = scmp.eq.s32.totalorder %s12, 3
    %p162 = por %p160, %p161
    %p163 = scmp.ne.s32.totalorder %s155, %s158
    %p164 = scmp.eq.s32.totalorder %s12, 0
    %p165 = por %p163, %p164
    %p166 = scmp.ne.s32.totalorder %s155, %s158
    %p167 = scmp.eq.s32.totalorder %s17, 3
    %p168 = por %p166, %p167
    %p169 = scmp.ne.s32.totalorder %s158, %s159
    %p170 = scmp.eq.s32.totalorder %s17, 0
    %p171 = por %p169, %p170
    %p172 = scmp.ne.s32.totalorder %s158, %s159
    %p173 = scmp.eq.s32.totalorder %s18, 3
    %p174 = por %p172, %p173
    %p176 = scmp.ne.s32.totalorder %s159, %s175
    %p177 = scmp.eq.s32.totalorder %s18, 0
    %p178 = por %p176, %p177
    %p179 = scmp.le.s32.totalorder 1, %s12
    %p180 = scmp.lt.s32.totalorder %s12, 5
    %p181 = pnand %p179, %p180
    %p182 = pneg %p181
    // Predicated region
    $region9: #{pixel_discriminator_forward.2} parent=5 // pred_check
      _
    $region10: #{pixel_discriminator_forward.2} parent=5 // pred_check_branch
      %184 = sbr.rel (%p181) target = $region12
    $region11: #{pixel_discriminator_forward.2} parent=5 // pred_region
      %s185 = ssub.s32 %s12, 1
      // Predicated region
      $region13: #{pixel_discriminator_forward.2} parent=11 // pred_check
        %p186 = pneg %p73
      $region14: #{pixel_discriminator_forward.2} parent=11 // pred_check_branch
        %188 = sbr.rel (%p186) target = $region16
      $region15: #{pixel_discriminator_forward.2} parent=11 // pred_region
        _
      $region16: #{pixel_discriminator_forward.2} parent=11 // pred_fallthru
        _
      // Predicated region
      $region17: #{pixel_discriminator_forward.2} parent=11 // pred_check
        %p189 = pneg %p94
      $region18: #{pixel_discriminator_forward.2} parent=11 // pred_check_branch
        %191 = sbr.rel (%p189) target = $region20
      $region19: #{pixel_discriminator_forward.2} parent=11 // pred_region
        _
      $region20: #{pixel_discriminator_forward.2} parent=11 // pred_fallthru
        _
      // Predicated region
      $region21: #{pixel_discriminator_forward.2} parent=11 // pred_check
        %p192 = pneg %p115
      $region22: #{pixel_discriminator_forward.2} parent=11 // pred_check_branch
        %194 = sbr.rel (%p192) target = $region24
      $region23: #{pixel_discriminator_forward.2} parent=11 // pred_region
        _
      $region24: #{pixel_discriminator_forward.2} parent=11 // pred_fallthru
        _
    $region12: #{pixel_discriminator_forward.2} parent=5 // pred_fallthru
      _
    %p195 = scmp.lt.s32.totalorder %s12, 4
    // Predicated region
    $region25: #{pixel_discriminator_forward.2} parent=5 // pred_check
      %p196 = pneg %p195
    $region26: #{pixel_discriminator_forward.2} parent=5 // pred_check_branch
      %198 = sbr.rel (%p196) target = $region28
    $region27: #{pixel_discriminator_forward.2} parent=5 // pred_region
      // Predicated region
      $region29: #{pixel_discriminator_forward.2} parent=27 // pred_check
        %p199 = pneg %p46
      $region30: #{pixel_discriminator_forward.2} parent=27 // pred_check_branch
        %201 = sbr.rel (%p199) target = $region32
      $region31: #{pixel_discriminator_forward.2} parent=27 // pred_region
        %s202 = smul.u32 16, %s20
        %p203 = scmp.lt.s32.totalorder %s19, 1
        %s204 = scalar_select %p203, %s19, 1
        %p205 = scmp.lt.s32.totalorder %s202, 31
        %s206 = scalar_select %p205, %s202, 31
        %s207 = smul.addr %s204, 32
        %s208 = sadd.s32 %s206, %s207
        %s209 = smul.addr %s208, 4
        %s210 = scalar_lea.vmem %s0, %s209
        %s211 = smul.u32 16, %s20
      $region32: #{pixel_discriminator_forward.2} parent=27 // pred_fallthru
        _
    $region28: #{pixel_discriminator_forward.2} parent=5 // pred_fallthru
      _
    %p212 = scmp.le.s32.totalorder 1, %s12
    %p213 = scmp.lt.s32.totalorder %s12, 5
    %p214 = pnand %p212, %p213
    %p215 = pneg %p214
    // Predicated region
    $region33: #{pixel_discriminator_forward.2} parent=5 // pred_check
      _
    $region34: #{pixel_discriminator_forward.2} parent=5 // pred_check_branch
      %217 = sbr.rel (%p214) target = $region36
    $region35: #{pixel_discriminator_forward.2} parent=5 // pred_region
      %s218 = ssub.s32 %s12, 1
      %s219 = smul.u32 16, %s22
      %p220 = scmp.lt.s32.totalorder %s21, 1
      %s221 = scalar_select %p220, %s21, 1
      %p222 = scmp.lt.s32.totalorder %s219, 31
      %s223 = scalar_select %p222, %s219, 31
      %s224 = smul.addr %s221, 32
      %s225 = sadd.s32 %s223, %s224
      %s226 = smul.addr %s225, 4
      %s227 = scalar_lea.vmem %s0, %s226
      %p228 = pneg %p52
      %p229 = pneg %p49
      %p230 = pneg %p73
      %p231 = pneg %p70
      %p232 = pneg %p94
      %p233 = pneg %p91
      %p234 = pneg %p115
      %p235 = pneg %p112
      %p236 = pneg %p143
      %p237 = pneg %p140
      %p238 = scmp.lt.s32.totalorder %s21, 1
      %s239 = scalar_select %p238, %s21, 1
      %p240 = scmp.lt.s32.totalorder %s22, 1
      %s241 = scalar_select %p240, %s22, 1
      %s242 = smul.addr %s241, 16
      %s243 = smul.addr %s239, 32
      %s244 = sadd.s32 %s242, %s243
      %s245 = smul.addr %s244, 8
      %s246 = scalar_lea.vmem %s4, %s245
      %p247 = pneg %p171
      %p248 = pneg %p168
      %p249 = scmp.lt.s32.totalorder %s21, 1
      %s250 = scalar_select %p249, %s21, 1
      %p251 = scmp.lt.s32.totalorder %s22, 1
      %s252 = scalar_select %p251, %s22, 1
      %s253 = smul.addr %s252, 16
      %s254 = smul.addr %s250, 32
      %s255 = sadd.s32 %s253, %s254
      %s256 = smul.addr %s255, 8
      %s257 = scalar_lea.vmem %s5, %s256
      %s258 = smul.u32 16, %s22
      %p259 = scmp.lt.s32.totalorder %s21, 1
      %s260 = scalar_select %p259, %s21, 1
      %p261 = scmp.lt.s32.totalorder %s258, 31
      %s262 = scalar_select %p261, %s258, 31
      %s263 = smul.addr %s260, 32
      %s264 = sadd.s32 %s262, %s263
      %s265 = smul.addr %s264, 4
      %s266 = scalar_lea.vmem %s0, %s265
      %s267 = smul.u32 16, %s22
      %p268 = scmp.lt.s32.totalorder %s21, 1
      %s269 = scalar_select %p268, %s21, 1
      %p270 = scmp.lt.s32.totalorder %s22, 1
      %s271 = scalar_select %p270, %s22, 1
      %s272 = smul.addr %s271, 16
      %s273 = smul.addr %s269, 32
      %s274 = sadd.s32 %s272, %s273
      %s275 = smul.addr %s274, 8
      %s276 = scalar_lea.vmem %s4, %s275
      %p277 = scmp.lt.s32.totalorder %s21, 1
      %s278 = scalar_select %p277, %s21, 1
      %p279 = scmp.lt.s32.totalorder %s22, 1
      %s280 = scalar_select %p279, %s22, 1
      %s281 = smul.addr %s280, 16
      %s282 = smul.addr %s278, 32
      %s283 = sadd.s32 %s281, %s282
      %s284 = smul.addr %s283, 8
      %s285 = scalar_lea.vmem %s5, %s284
      %v287 = vld [vmem:[%s266] sm:$0xff]
      %v288 = vld [vmem:[%s266 + $0x8] sm:$0xff]
      %v289 = vld [vmem:[%s266 + $0x10] sm:$0xff]
      %v290 = vld [vmem:[%s266 + $0x18] sm:$0xff]
      %v291 = vld [vmem:[%s266 + $0x20] sm:$0xff]
      %v292 = vld [vmem:[%s266 + $0x28] sm:$0xff]
      %v293 = vld [vmem:[%s266 + $0x30] sm:$0xff]
      %v294 = vld [vmem:[%s266 + $0x38] sm:$0xff]
      %v303 = vcombine.high %v287, %v287
      %v304 = vcombine.high %v288, %v288
      %v305 = vcombine.high %v289, %v289
      %v306 = vcombine.high %v290, %v290
      %v307 = vcombine.high %v291, %v291
      %v308 = vcombine.high %v292, %v292
      %v309 = vcombine.high %v293, %v293
      %v310 = vcombine.high %v294, %v294
      %v319 = vpack.c.bf16 %v287, %v287
      %v320 = vpack.c.bf16 %v303, %v303
      %v321 = vpack.c.bf16 %v288, %v288
      %v322 = vpack.c.bf16 %v304, %v304
      %v323 = vpack.c.bf16 %v289, %v289
      %v324 = vpack.c.bf16 %v305, %v305
      %v325 = vpack.c.bf16 %v290, %v290
      %v326 = vpack.c.bf16 %v306, %v306
      %v327 = vpack.c.bf16 %v291, %v291
      %v328 = vpack.c.bf16 %v307, %v307
      %v329 = vpack.c.bf16 %v292, %v292
      %v330 = vpack.c.bf16 %v308, %v308
      %v331 = vpack.c.bf16 %v293, %v293
      %v332 = vpack.c.bf16 %v309, %v309
      %v333 = vpack.c.bf16 %v294, %v294
      %v334 = vpack.c.bf16 %v310, %v310
      %v335 = vld [vmem:[%s1] sm:$0xf]
      %v336 = vld [vmem:[%s1 + $0x4] sm:$0xf]
      %v337 = vld [vmem:[%s1 + $0x8] sm:$0xf]
      %v338 = vld [vmem:[%s1 + $0xc] sm:$0xf]
      %v339 = vld [vmem:[%s1 + $0x10] sm:$0xf]
      %v340 = vld [vmem:[%s1 + $0x14] sm:$0xf]
      %v341 = vld [vmem:[%s1 + $0x18] sm:$0xf]
      %v342 = vld [vmem:[%s1 + $0x1c] sm:$0xf]
      %v343 = vld [vmem:[%s2] sm:$0xff]
      %v344 = vld [vmem:[%s2 + $0x8] sm:$0xff]
      %v345 = vld [vmem:[%s2 + $0x10] sm:$0xff]
      %v346 = vld [vmem:[%s2 + $0x18] sm:$0xff]
      %v347 = vld [vmem:[%s2 + $0x20] sm:$0xff]
      %v348 = vld [vmem:[%s2 + $0x28] sm:$0xff]
      %v349 = vld [vmem:[%s2 + $0x30] sm:$0xff]
      %v350 = vld [vmem:[%s2 + $0x38] sm:$0xff]
      %352 = vset.pattern.permute.xlu0 0
      %353 = vperm.xlu0 %352, %v343
      %v354 = vpop.permute.xlu0 %353
      %357 = vset.pattern.permute.xlu0 0
      %358 = vperm.xlu0 %357, %v344
      %v359 = vpop.permute.xlu0 %358
      %362 = vset.pattern.permute.xlu0 0
      %363 = vperm.xlu0 %362, %v345
      %v364 = vpop.permute.xlu0 %363
      %367 = vset.pattern.permute.xlu0 0
      %368 = vperm.xlu0 %367, %v346
      %v369 = vpop.permute.xlu0 %368
      %372 = vset.pattern.permute.xlu0 0
      %373 = vperm.xlu0 %372, %v347
      %v374 = vpop.permute.xlu0 %373
      %377 = vset.pattern.permute.xlu0 0
      %378 = vperm.xlu0 %377, %v348
      %v379 = vpop.permute.xlu0 %378
      %382 = vset.pattern.permute.xlu0 0
      %383 = vperm.xlu0 %382, %v349
      %v384 = vpop.permute.xlu0 %383
      %387 = vset.pattern.permute.xlu0 0
      %388 = vperm.xlu0 %387, %v350
      %v389 = vpop.permute.xlu0 %388
      %v399 = vunpack.c.l.b16 %v335
      %v400 = vunpack.c.l.b16 %v336
      %v401 = vunpack.c.l.b16 %v337
      %v402 = vunpack.c.l.b16 %v338
      %v403 = vunpack.c.l.b16 %v339
      %v404 = vunpack.c.l.b16 %v340
      %v405 = vunpack.c.l.b16 %v341
      %v406 = vunpack.c.l.b16 %v342
      %v407 = vpack.c.b16 %v400, %v399
      %v408 = vpack.c.b16 %v402, %v401
      %v409 = vpack.c.b16 %v404, %v403
      %v410 = vpack.c.b16 %v406, %v405
      %vm411 = vcmask 31744
      %v413 = vsel %vm411, %v407, 0
      %v416 = vsel %vm411, %v408, 0
      %v419 = vsel %vm411, %v409, 0
      %v422 = vsel %vm411, %v410, 0
      %vm424 = vcmask 1041408
      %v426 = vsel %vm424, %v319, 0
      %v429 = vsel %vm424, %v320, 0
      %v432 = vsel %vm424, %v321, 0
      %v435 = vsel %vm424, %v322, 0
      %v438 = vsel %vm424, %v323, 0
      %v441 = vsel %vm424, %v324, 0
      %v444 = vsel %vm424, %v325, 0
      %v447 = vsel %vm424, %v326, 0
      %v450 = vsel %vm424, %v327, 0
      %v453 = vsel %vm424, %v328, 0
      %v456 = vsel %vm424, %v329, 0
      %v459 = vsel %vm424, %v330, 0
      %v462 = vsel %vm424, %v331, 0
      %v465 = vsel %vm424, %v332, 0
      %v468 = vsel %vm424, %v333, 0
      %v471 = vsel %vm424, %v334, 0
      %473 = vmatprep.subr.bf16.mxu0 %v429
      %474 = vmatpush1.bf16.msra.mxu0 %v426
      %475 = vmatprep.subr.bf16.mxu0 0
      %476 = vmatpush1.bf16.msra.mxu0 0
      %477 = vmatprep.subr.bf16.mxu0 0
      %478 = vmatpush1.bf16.msra.mxu0 0
      %479 = vmatprep.subr.bf16.mxu0 0
      %480 = vmatpush1.bf16.msra.mxu0 0
      %481 = vmatprep.subr.bf16.mxu0 0
      %482 = vmatpush1.bf16.msra.mxu0 0
      %483 = vmatprep.subr.bf16.mxu0 0
      %484 = vmatpush1.bf16.msra.mxu0 0
      %485 = vmatprep.subr.bf16.mxu0 0
      %486 = vmatpush1.bf16.msra.mxu0 0
      %487 = vmatprep.subr.bf16.mxu0 0
      %488 = vmatpush1.bf16.msra.mxu0 0
      %489 = vmatprep.subr.bf16.mxu0 0
      %490 = vmatpush1.bf16.msra.mxu0 0
      %491 = vmatprep.subr.bf16.mxu0 0
      %492 = vmatpush1.bf16.msra.mxu0 0
      %493 = vmatprep.subr.bf16.mxu0 0
      %494 = vmatpush1.bf16.msra.mxu0 0
      %495 = vmatprep.subr.bf16.mxu0 0
      %496 = vmatpush1.bf16.msra.mxu0 0
      %497 = vmatprep.subr.bf16.mxu0 0
      %498 = vmatpush1.bf16.msra.mxu0 0
      %499 = vmatprep.subr.bf16.mxu0 0
      %500 = vmatpush1.bf16.msra.mxu0 0
      %501 = vmatprep.subr.bf16.mxu0 0
      %502 = vmatpush1.bf16.msra.mxu0 0
      %503 = vmatprep.subr.bf16.mxu0 0
      %504 = vmatpush1.bf16.msra.mxu0 0
      %505 = vmatprep.mubr.bf16.mxu0 0
      %506 = vmatmul.mubr.bf16.gmra.mrb[0].mxu0 %v413
      %v507 = vpop.f32.mrb[0].mxu0
      %v508 = vadd.f32 %v354, %v507
      %v509 = vpop.f32.mrb[0].mxu0
      %v510 = vadd.f32 %v354, %v509
      %v511 = vpop.f32.mrb[0].mxu0
      %v512 = vadd.f32 %v359, %v511
      %v513 = vpop.f32.mrb[0].mxu0
      %v514 = vadd.f32 %v359, %v513
      %515 = vmatprep.mubr.bf16.mxu0 0
      %516 = vmatmul.mubr.bf16.gmra.mrb[0].mxu0 %v416
      %v517 = vpop.f32.mrb[0].mxu0
      %v518 = vadd.f32 %v364, %v517
      %v519 = vpop.f32.mrb[0].mxu0
      %v520 = vadd.f32 %v364, %v519
      %v521 = vpop.f32.mrb[0].mxu0
      %v522 = vadd.f32 %v369, %v521
      %v523 = vpop.f32.mrb[0].mxu0
      %v524 = vadd.f32 %v369, %v523
      %525 = vmatprep.mubr.bf16.mxu0 0
      %526 = vmatmul.mubr.bf16.gmra.mrb[0].mxu0 %v419
      %v527 = vpop.f32.mrb[0].mxu0
      %v528 = vadd.f32 %v374, %v527
      %v529 = vpop.f32.mrb[0].mxu0
      %v530 = vadd.f32 %v374, %v529
      %v531 = vpop.f32.mrb[0].mxu0
      %v532 = vadd.f32 %v379, %v531
      %v533 = vpop.f32.mrb[0].mxu0
      %v534 = vadd.f32 %v379, %v533
      %535 = vmatprep.mubr.bf16.mxu0 0
      %536 = vmatmul.mubr.bf16.gmra.mrb[0].mxu0 %v422
      %v537 = vpop.f32.mrb[0].mxu0
      %v538 = vadd.f32 %v384, %v537
      %v539 = vpop.f32.mrb[0].mxu0
      %v540 = vadd.f32 %v384, %v539
      %v541 = vpop.f32.mrb[0].mxu0
      %v542 = vadd.f32 %v389, %v541
      %v543 = vpop.f32.mrb[0].mxu0
      %v544 = vadd.f32 %v389, %v543
      %545 = vdwg.mxu0
      %546 = vmatprep.subr.bf16.mxu0 %v435
      %547 = vmatpush1.bf16.msra.mxu0 %v432
      %548 = vmatprep.subr.bf16.mxu0 0
      %549 = vmatpush1.bf16.msra.mxu0 0
      %550 = vmatprep.subr.bf16.mxu0 0
      %551 = vmatpush1.bf16.msra.mxu0 0
      %552 = vmatprep.subr.bf16.mxu0 0
      %553 = vmatpush1.bf16.msra.mxu0 0
      %554 = vmatprep.subr.bf16.mxu0 0
      %555 = vmatpush1.bf16.msra.mxu0 0
      %556 = vmatprep.subr.bf16.mxu0 0
      %557 = vmatpush1.bf16.msra.mxu0 0
      %558 = vmatprep.subr.bf16.mxu0 0
      %559 = vmatpush1.bf16.msra.mxu0 0
      %560 = vmatprep.subr.bf16.mxu0 0
      %561 = vmatpush1.bf16.msra.mxu0 0
      %562 = vmatprep.subr.bf16.mxu0 0
      %563 = vmatpush1.bf16.msra.mxu0 0
      %564 = vmatprep.subr.bf16.mxu0 0
      %565 = vmatpush1.bf16.msra.mxu0 0
      %566 = vmatprep.subr.bf16.mxu0 0
      %567 = vmatpush1.bf16.msra.mxu0 0
      %568 = vmatprep.subr.bf16.mxu0 0
      %569 = vmatpush1.bf16.msra.mxu0 0
      %570 = vmatprep.subr.bf16.mxu0 0
      %571 = vmatpush1.bf16.msra.mxu0 0
      %572 = vmatprep.subr.bf16.mxu0 0
      %573 = vmatpush1.bf16.msra.mxu0 0
      %574 = vmatprep.subr.bf16.mxu0 0
      %575 = vmatpush1.bf16.msra.mxu0 0
      %576 = vmatprep.subr.bf16.mxu0 0
      %577 = vmatpush1.bf16.msra.mxu0 0
      %578 = vmatprep.mubr.bf16.mxu0 0
      %579 = vmatmul.mubr.bf16.gmra.mrb[0].mxu0 %v413
      %v580 = vpop.f32.mrb[0].mxu0
      %v581 = vadd.f32 %v354, %v580
      %v582 = vpop.f32.mrb[0].mxu0
      %v583 = vadd.f32 %v354, %v582
      %v584 = vpop.f32.mrb[0].mxu0
      %v585 = vadd.f32 %v359, %v584
      %v586 = vpop.f32.mrb[0].mxu0
      %v587 = vadd.f32 %v359, %v586
      %588 = vmatprep.mubr.bf16.mxu0 0
      %589 = vmatmul.mubr.bf16.gmra.mrb[0].mxu0 %v416
      %v590 = vpop.f32.mrb[0].mxu0
      %v591 = vadd.f32 %v364, %v590
      %v592 = vpop.f32.mrb[0].mxu0
      %v593 = vadd.f32 %v364, %v592
      %v594 = vpop.f32.mrb[0].mxu0
      %v595 = vadd.f32 %v369, %v594
      %v596 = vpop.f32.mrb[0].mxu0
      %v597 = vadd.f32 %v369, %v596
      %598 = vmatprep.mubr.bf16.mxu0 0
      %599 = vmatmul.mubr.bf16.gmra.mrb[0].mxu0 %v419
      %v600 = vpop.f32.mrb[0].mxu0
      %v601 = vadd.f32 %v374, %v600
      %v602 = vpop.f32.mrb[0].mxu0
      %v603 = vadd.f32 %v374, %v602
      %v604 = vpop.f32.mrb[0].mxu0
      %v605 = vadd.f32 %v379, %v604
      %v606 = vpop.f32.mrb[0].mxu0
      %v607 = vadd.f32 %v379, %v606
      %608 = vmatprep.mubr.bf16.mxu0 0
      %609 = vmatmul.mubr.bf16.gmra.mrb[0].mxu0 %v422
      %v610 = vpop.f32.mrb[0].mxu0
      %v611 = vadd.f32 %v384, %v610
      %v612 = vpop.f32.mrb[0].mxu0
      %v613 = vadd.f32 %v384, %v612
      %v614 = vpop.f32.mrb[0].mxu0
      %v615 = vadd.f32 %v389, %v614
      %v616 = vpop.f32.mrb[0].mxu0
      %v617 = vadd.f32 %v389, %v616
      %618 = vdwg.mxu0
      %619 = vmatprep.subr.bf16.mxu0 %v441
      %620 = vmatpush1.bf16.msra.mxu0 %v438
      %621 = vmatprep.subr.bf16.mxu0 0
      %622 = vmatpush1.bf16.msra.mxu0 0
      %623 = vmatprep.subr.bf16.mxu0 0
      %624 = vmatpush1.bf16.msra.mxu0 0
      %625 = vmatprep.subr.bf16.mxu0 0
      %626 = vmatpush1.bf16.msra.mxu0 0
      %627 = vmatprep.subr.bf16.mxu0 0
      %628 = vmatpush1.bf16.msra.mxu0 0
      %629 = vmatprep.subr.bf16.mxu0 0
      %630 = vmatpush1.bf16.msra.mxu0 0
      %631 = vmatprep.subr.bf16.mxu0 0
      %632 = vmatpush1.bf16.msra.mxu0 0
      %633 = vmatprep.subr.bf16.mxu0 0
      %634 = vmatpush1.bf16.msra.mxu0 0
      %635 = vmatprep.subr.bf16.mxu0 0
      %636 = vmatpush1.bf16.msra.mxu0 0
      %637 = vmatprep.subr.bf16.mxu0 0
      %638 = vmatpush1.bf16.msra.mxu0 0
      %639 = vmatprep.subr.bf16.mxu0 0
      %640 = vmatpush1.bf16.msra.mxu0 0
      %641 = vmatprep.subr.bf16.mxu0 0
      %642 = vmatpush1.bf16.msra.mxu0 0
      %643 = vmatprep.subr.bf16.mxu0 0
      %644 = vmatpush1.bf16.msra.mxu0 0
      %645 = vmatprep.subr.bf16.mxu0 0
      %646 = vmatpush1.bf16.msra.mxu0 0
      %647 = vmatprep.subr.bf16.mxu0 0
      %648 = vmatpush1.bf16.msra.mxu0 0
      %649 = vmatprep.subr.bf16.mxu0 0
      %650 = vmatpush1.bf16.msra.mxu0 0
      %651 = vmatprep.mubr.bf16.mxu0 0
      %652 = vmatmul.mubr.bf16.gmra.mrb[0].mxu0 %v413
      %v653 = vpop.f32.mrb[0].mxu0
      %v654 = vadd.f32 %v354, %v653
      %v655 = vpop.f32.mrb[0].mxu0
      %v656 = vadd.f32 %v354, %v655
      %v657 = vpop.f32.mrb[0].mxu0
      %v658 = vadd.f32 %v359, %v657
      %v659 = vpop.f32.mrb[0].mxu0
      %v660 = vadd.f32 %v359, %v659
      %661 = vmatprep.mubr.bf16.mxu0 0
      %662 = vmatmul.mubr.bf16.gmra.mrb[0].mxu0 %v416
      %v663 = vpop.f32.mrb[0].mxu0
      %v664 = vadd.f32 %v364, %v663
      %v665 = vpop.f32.mrb[0].mxu0
      %v666 = vadd.f32 %v364, %v665
      %v667 = vpop.f32.mrb[0].mxu0
      %v668 = vadd.f32 %v369, %v667
      %v669 = vpop.f32.mrb[0].mxu0
      %v670 = vadd.f32 %v369, %v669
      %671 = vmatprep.mubr.bf16.mxu0 0
      %672 = vmatmul.mubr.bf16.gmra.mrb[0].mxu0 %v419
      %v673 = vpop.f32.mrb[0].mxu0
      %v674 = vadd.f32 %v374, %v673
      %v675 = vpop.f32.mrb[0].mxu0
      %v676 = vadd.f32 %v374, %v675
      %v677 = vpop.f32.mrb[0].mxu0
      %v678 = vadd.f32 %v379, %v677
      %v679 = vpop.f32.mrb[0].mxu0
      %v680 = vadd.f32 %v379, %v679
      %681 = vmatprep.mubr.bf16.mxu0 0
      %682 = vmatmul.mubr.bf16.gmra.mrb[0].mxu0 %v422
      %v683 = vpop.f32.mrb[0].mxu0
      %v684 = vadd.f32 %v384, %v683
      %v685 = vpop.f32.mrb[0].mxu0
      %v686 = vadd.f32 %v384, %v685
      %v687 = vpop.f32.mrb[0].mxu0
      %v688 = vadd.f32 %v389, %v687
      %v689 = vpop.f32.mrb[0].mxu0
      %v690 = vadd.f32 %v389, %v689
      %691 = vdwg.mxu0
      %692 = vmatprep.subr.bf16.mxu0 %v447
      %693 = vmatpush1.bf16.msra.mxu0 %v444
      %694 = vmatprep.subr.bf16.mxu0 0
      %695 = vmatpush1.bf16.msra.mxu0 0
      %696 = vmatprep.subr.bf16.mxu0 0
      %697 = vmatpush1.bf16.msra.mxu0 0
      %698 = vmatprep.subr.bf16.mxu0 0
      %699 = vmatpush1.bf16.msra.mxu0 0
      %700 = vmatprep.subr.bf16.mxu0 0
      %701 = vmatpush1.bf16.msra.mxu0 0
      %702 = vmatprep.subr.bf16.mxu0 0
      %703 = vmatpush1.bf16.msra.mxu0 0
      %704 = vmatprep.subr.bf16.mxu0 0
      %705 = vmatpush1.bf16.msra.mxu0 0
      %706 = vmatprep.subr.bf16.mxu0 0
      %707 = vmatpush1.bf16.msra.mxu0 0
      %708 = vmatprep.subr.bf16.mxu0 0
      %709 = vmatpush1.bf16.msra.mxu0 0
      %710 = vmatprep.subr.bf16.mxu0 0
      %711 = vmatpush1.bf16.msra.mxu0 0
      %712 = vmatprep.subr.bf16.mxu0 0
      %713 = vmatpush1.bf16.msra.mxu0 0
      %714 = vmatprep.subr.bf16.mxu0 0
      %715 = vmatpush1.bf16.msra.mxu0 0
      %716 = vmatprep.subr.bf16.mxu0 0
      %717 = vmatpush1.bf16.msra.mxu0 0
      %718 = vmatprep.subr.bf16.mxu0 0
      %719 = vmatpush1.bf16.msra.mxu0 0
      %720 = vmatprep.subr.bf16.mxu0 0
      %721 = vmatpush1.bf16.msra.mxu0 0
      %722 = vmatprep.subr.bf16.mxu0 0
      %723 = vmatpush1.bf16.msra.mxu0 0
      %724 = vmatprep.mubr.bf16.mxu0 0
      %725 = vmatmul.mubr.bf16.gmra.mrb[0].mxu0 %v413
      %v726 = vpop.f32.mrb[0].mxu0
      %v727 = vadd.f32 %v354, %v726
      %v728 = vpop.f32.mrb[0].mxu0
      %v729 = vadd.f32 %v354, %v728
      %v730 = vpop.f32.mrb[0].mxu0
      %v731 = vadd.f32 %v359, %v730
      %v732 = vpop.f32.mrb[0].mxu0
      %v733 = vadd.f32 %v359, %v732
      %734 = vmatprep.mubr.bf16.mxu0 0
      %735 = vmatmul.mubr.bf16.gmra.mrb[0].mxu0 %v416
      %v736 = vpop.f32.mrb[0].mxu0
      %v737 = vadd.f32 %v364, %v736
      %v738 = vpop.f32.mrb[0].mxu0
      %v739 = vadd.f32 %v364, %v738
      %v740 = vpop.f32.mrb[0].mxu0
      %v741 = vadd.f32 %v369, %v740
      %v742 = vpop.f32.mrb[0].mxu0
      %v743 = vadd.f32 %v369, %v742
      %744 = vmatprep.mubr.bf16.mxu0 0
      %745 = vmatmul.mubr.bf16.gmra.mrb[0].mxu0 %v419
      %v746 = vpop.f32.mrb[0].mxu0
      %v747 = vadd.f32 %v374, %v746
      %v748 = vpop.f32.mrb[0].mxu0
      %v749 = vadd.f32 %v374, %v748
      %v750 = vpop.f32.mrb[0].mxu0
      %v751 = vadd.f32 %v379, %v750
      %v752 = vpop.f32.mrb[0].mxu0
      %v753 = vadd.f32 %v379, %v752
      %754 = vmatprep.mubr.bf16.mxu0 0
      %755 = vmatmul.mubr.bf16.gmra.mrb[0].mxu0 %v422
      %v756 = vpop.f32.mrb[0].mxu0
      %v757 = vadd.f32 %v384, %v756
      %v758 = vpop.f32.mrb[0].mxu0
      %v759 = vadd.f32 %v384, %v758
      %v760 = vpop.f32.mrb[0].mxu0
      %v761 = vadd.f32 %v389, %v760
      %v762 = vpop.f32.mrb[0].mxu0
      %v763 = vadd.f32 %v389, %v762
      %764 = vdwg.mxu0
      %765 = vmatprep.subr.bf16.mxu0 %v453
      %766 = vmatpush1.bf16.msra.mxu0 %v450
      %767 = vmatprep.subr.bf16.mxu0 0
      %768 = vmatpush1.bf16.msra.mxu0 0
      %769 = vmatprep.subr.bf16.mxu0 0
      %770 = vmatpush1.bf16.msra.mxu0 0
      %771 = vmatprep.subr.bf16.mxu0 0
      %772 = vmatpush1.bf16.msra.mxu0 0
      %773 = vmatprep.subr.bf16.mxu0 0
      %774 = vmatpush1.bf16.msra.mxu0 0
      %775 = vmatprep.subr.bf16.mxu0 0
      %776 = vmatpush1.bf16.msra.mxu0 0
      %777 = vmatprep.subr.bf16.mxu0 0
      %778 = vmatpush1.bf16.msra.mxu0 0
      %779 = vmatprep.subr.bf16.mxu0 0
      %780 = vmatpush1.bf16.msra.mxu0 0
      %781 = vmatprep.subr.bf16.mxu0 0
      %782 = vmatpush1.bf16.msra.mxu0 0
      %783 = vmatprep.subr.bf16.mxu0 0
      %784 = vmatpush1.bf16.msra.mxu0 0
      %785 = vmatprep.subr.bf16.mxu0 0
      %786 = vmatpush1.bf16.msra.mxu0 0
      %787 = vmatprep.subr.bf16.mxu0 0
      %788 = vmatpush1.bf16.msra.mxu0 0
      %789 = vmatprep.subr.bf16.mxu0 0
      %790 = vmatpush1.bf16.msra.mxu0 0
      %791 = vmatprep.subr.bf16.mxu0 0
      %792 = vmatpush1.bf16.msra.mxu0 0
      %793 = vmatprep.subr.bf16.mxu0 0
      %794 = vmatpush1.bf16.msra.mxu0 0
      %795 = vmatprep.subr.bf16.mxu0 0
      %796 = vmatpush1.bf16.msra.mxu0 0
      %797 = vmatprep.mubr.bf16.mxu0 0
      %798 = vmatmul.mubr.bf16.gmra.mrb[0].mxu0 %v413
      %v799 = vpop.f32.mrb[0].mxu0
      %v800 = vadd.f32 %v354, %v799
      %v801 = vpop.f32.mrb[0].mxu0
      %v802 = vadd.f32 %v354, %v801
      %v803 = vpop.f32.mrb[0].mxu0
      %v804 = vadd.f32 %v359, %v803
      %v805 = vpop.f32.mrb[0].mxu0
      %v806 = vadd.f32 %v359, %v805
      %807 = vmatprep.mubr.bf16.mxu0 0
      %808 = vmatmul.mubr.bf16.gmra.mrb[0].mxu0 %v416
      %v809 = vpop.f32.mrb[0].mxu0
      %v810 = vadd.f32 %v364, %v809
      %v811 = vpop.f32.mrb[0].mxu0
      %v812 = vadd.f32 %v364, %v811
      %v813 = vpop.f32.mrb[0].mxu0
      %v814 = vadd.f32 %v369, %v813
      %v815 = vpop.f32.mrb[0].mxu0
      %v816 = vadd.f32 %v369, %v815
      %817 = vmatprep.mubr.bf16.mxu0 0
      %818 = vmatmul.mubr.bf16.gmra.mrb[0].mxu0 %v419
      %v819 = vpop.f32.mrb[0].mxu0
      %v820 = vadd.f32 %v374, %v819
      %v821 = vpop.f32.mrb[0].mxu0
      %v822 = vadd.f32 %v374, %v821
      %v823 = vpop.f32.mrb[0].mxu0
      %v824 = vadd.f32 %v379, %v823
      %v825 = vpop.f32.mrb[0].mxu0
      %v826 = vadd.f32 %v379, %v825
      %827 = vmatprep.mubr.bf16.mxu0 0
      %828 = vmatmul.mubr.bf16.gmra.mrb[0].mxu0 %v422
      %v829 = vpop.f32.mrb[0].mxu0
      %v830 = vadd.f32 %v384, %v829
      %v831 = vpop.f32.mrb[0].mxu0
      %v832 = vadd.f32 %v384, %v831
      %v833 = vpop.f32.mrb[0].mxu0
      %v834 = vadd.f32 %v389, %v833
      %v835 = vpop.f32.mrb[0].mxu0
      %v836 = vadd.f32 %v389, %v835
      %837 = vdwg.mxu0
      %838 = vmatprep.subr.bf16.mxu0 %v459
      %839 = vmatpush1.bf16.msra.mxu0 %v456
      %840 = vmatprep.subr.bf16.mxu0 0
      %841 = vmatpush1.bf16.msra.mxu0 0
      %842 = vmatprep.subr.bf16.mxu0 0
      %843 = vmatpush1.bf16.msra.mxu0 0
      %844 = vmatprep.subr.bf16.mxu0 0
      %845 = vmatpush1.bf16.msra.mxu0 0
      %846 = vmatprep.subr.bf16.mxu0 0
      %847 = vmatpush1.bf16.msra.mxu0 0
      %848 = vmatprep.subr.bf16.mxu0 0
      %849 = vmatpush1.bf16.msra.mxu0 0
      %850 = vmatprep.subr.bf16.mxu0 0
      %851 = vmatpush1.bf16.msra.mxu0 0
      %852 = vmatprep.subr.bf16.mxu0 0
      %853 = vmatpush1.bf16.msra.mxu0 0
      %854 = vmatprep.subr.bf16.mxu0 0
      %855 = vmatpush1.bf16.msra.mxu0 0
      %856 = vmatprep.subr.bf16.mxu0 0
      %857 = vmatpush1.bf16.msra.mxu0 0
      %858 = vmatprep.subr.bf16.mxu0 0
      %859 = vmatpush1.bf16.msra.mxu0 0
      %860 = vmatprep.subr.bf16.mxu0 0
      %861 = vmatpush1.bf16.msra.mxu0 0
      %862 = vmatprep.subr.bf16.mxu0 0
      %863 = vmatpush1.bf16.msra.mxu0 0
      %864 = vmatprep.subr.bf16.mxu0 0
      %865 = vmatpush1.bf16.msra.mxu0 0
      %866 = vmatprep.subr.bf16.mxu0 0
      %867 = vmatpush1.bf16.msra.mxu0 0
      %868 = vmatprep.subr.bf16.mxu0 0
      %869 = vmatpush1.bf16.msra.mxu0 0
      %870 = vmatprep.mubr.bf16.mxu0 0
      %871 = vmatmul.mubr.bf16.gmra.mrb[0].mxu0 %v413
      %v872 = vpop.f32.mrb[0].mxu0
      %v873 = vadd.f32 %v354, %v872
      %v874 = vpop.f32.mrb[0].mxu0
      %v875 = vadd.f32 %v354, %v874
      %v876 = vpop.f32.mrb[0].mxu0
      %v877 = vadd.f32 %v359, %v876
      %v878 = vpop.f32.mrb[0].mxu0
      %v879 = vadd.f32 %v359, %v878
      %880 = vmatprep.mubr.bf16.mxu0 0
      %881 = vmatmul.mubr.bf16.gmra.mrb[0].mxu0 %v416
      %v882 = vpop.f32.mrb[0].mxu0
      %v883 = vadd.f32 %v364, %v882
      %v884 = vpop.f32.mrb[0].mxu0
      %v885 = vadd.f32 %v364, %v884
      %v886 = vpop.f32.mrb[0].mxu0
      %v887 = vadd.f32 %v369, %v886
      %v888 = vpop.f32.mrb[0].mxu0
      %v889 = vadd.f32 %v369, %v888
      %890 = vmatprep.mubr.bf16.mxu0 0
      %891 = vmatmul.mubr.bf16.gmra.mrb[0].mxu0 %v419
      %v892 = vpop.f32.mrb[0].mxu0
      %v893 = vadd.f32 %v374, %v892
      %v894 = vpop.f32.mrb[0].mxu0
      %v895 = vadd.f32 %v374, %v894
      %v896 = vpop.f32.mrb[0].mxu0
      %v897 = vadd.f32 %v379, %v896
      %v898 = vpop.f32.mrb[0].mxu0
      %v899 = vadd.f32 %v379, %v898
      %900 = vmatprep.mubr.bf16.mxu0 0
      %901 = vmatmul.mubr.bf16.gmra.mrb[0].mxu0 %v422
      %v902 = vpop.f32.mrb[0].mxu0
      %v903 = vadd.f32 %v384, %v902
      %v904 = vpop.f32.mrb[0].mxu0
      %v905 = vadd.f32 %v384, %v904
      %v906 = vpop.f32.mrb[0].mxu0
      %v907 = vadd.f32 %v389, %v906
      %v908 = vpop.f32.mrb[0].mxu0
      %v909 = vadd.f32 %v389, %v908
      %910 = vdwg.mxu0
      %911 = vmatprep.subr.bf16.mxu0 %v465
      %912 = vmatpush1.bf16.msra.mxu0 %v462
      %913 = vmatprep.subr.bf16.mxu0 0
      %914 = vmatpush1.bf16.msra.mxu0 0
      %915 = vmatprep.subr.bf16.mxu0 0
      %916 = vmatpush1.bf16.msra.mxu0 0
      %917 = vmatprep.subr.bf16.mxu0 0
      %918 = vmatpush1.bf16.msra.mxu0 0
      %919 = vmatprep.subr.bf16.mxu0 0
      %920 = vmatpush1.bf16.msra.mxu0 0
      %921 = vmatprep.subr.bf16.mxu0 0
      %922 = vmatpush1.bf16.msra.mxu0 0
      %923 = vmatprep.subr.bf16.mxu0 0
      %924 = vmatpush1.bf16.msra.mxu0 0
      %925 = vmatprep.subr.bf16.mxu0 0
      %926 = vmatpush1.bf16.msra.mxu0 0
      %927 = vmatprep.subr.bf16.mxu0 0
      %928 = vmatpush1.bf16.msra.mxu0 0
      %929 = vmatprep.subr.bf16.mxu0 0
      %930 = vmatpush1.bf16.msra.mxu0 0
      %931 = vmatprep.subr.bf16.mxu0 0
      %932 = vmatpush1.bf16.msra.mxu0 0
      %933 = vmatprep.subr.bf16.mxu0 0
      %934 = vmatpush1.bf16.msra.mxu0 0
      %935 = vmatprep.subr.bf16.mxu0 0
      %936 = vmatpush1.bf16.msra.mxu0 0
      %937 = vmatprep.subr.bf16.mxu0 0
      %938 = vmatpush1.bf16.msra.mxu0 0
      %939 = vmatprep.subr.bf16.mxu0 0
      %940 = vmatpush1.bf16.msra.mxu0 0
      %941 = vmatprep.subr.bf16.mxu0 0
      %942 = vmatpush1.bf16.msra.mxu0 0
      %943 = vmatprep.mubr.bf16.mxu0 0
      %944 = vmatmul.mubr.bf16.gmra.mrb[0].mxu0 %v413
      %v945 = vpop.f32.mrb[0].mxu0
      %v946 = vadd.f32 %v354, %v945
      %v947 = vpop.f32.mrb[0].mxu0
      %v948 = vadd.f32 %v354, %v947
      %v949 = vpop.f32.mrb[0].mxu0
      %v950 = vadd.f32 %v359, %v949
      %v951 = vpop.f32.mrb[0].mxu0
      %v952 = vadd.f32 %v359, %v951
      %953 = vmatprep.mubr.bf16.mxu0 0
      %954 = vmatmul.mubr.bf16.gmra.mrb[0].mxu0 %v416
      %v955 = vpop.f32.mrb[0].mxu0
      %v956 = vadd.f32 %v364, %v955
      %v957 = vpop.f32.mrb[0].mxu0
      %v958 = vadd.f32 %v364, %v957
      %v959 = vpop.f32.mrb[0].mxu0
      %v960 = vadd.f32 %v369, %v959
      %v961 = vpop.f32.mrb[0].mxu0
      %v962 = vadd.f32 %v369, %v961
      %963 = vmatprep.mubr.bf16.mxu0 0
      %964 = vmatmul.mubr.bf16.gmra.mrb[0].mxu0 %v419
      %v965 = vpop.f32.mrb[0].mxu0
      %v966 = vadd.f32 %v374, %v965
      %v967 = vpop.f32.mrb[0].mxu0
      %v968 = vadd.f32 %v374, %v967
      %v969 = vpop.f32.mrb[0].mxu0
      %v970 = vadd.f32 %v379, %v969
      %v971 = vpop.f32.mrb[0].mxu0
      %v972 = vadd.f32 %v379, %v971
      %973 = vmatprep.mubr.bf16.mxu0 0
      %974 = vmatmul.mubr.bf16.gmra.mrb[0].mxu0 %v422
      %v975 = vpop.f32.mrb[0].mxu0
      %v976 = vadd.f32 %v384, %v975
      %v977 = vpop.f32.mrb[0].mxu0
      %v978 = vadd.f32 %v384, %v977
      %v979 = vpop.f32.mrb[0].mxu0
      %v980 = vadd.f32 %v389, %v979
      %v981 = vpop.f32.mrb[0].mxu0
      %v982 = vadd.f32 %v389, %v981
      %983 = vdwg.mxu0
      %984 = vmatprep.subr.bf16.mxu0 %v471
      %985 = vmatpush1.bf16.msra.mxu0 %v468
      %986 = vmatprep.subr.bf16.mxu0 0
      %987 = vmatpush1.bf16.msra.mxu0 0
      %988 = vmatprep.subr.bf16.mxu0 0
      %989 = vmatpush1.bf16.msra.mxu0 0
      %990 = vmatprep.subr.bf16.mxu0 0
      %991 = vmatpush1.bf16.msra.mxu0 0
      %992 = vmatprep.subr.bf16.mxu0 0
      %993 = vmatpush1.bf16.msra.mxu0 0
      %994 = vmatprep.subr.bf16.mxu0 0
      %995 = vmatpush1.bf16.msra.mxu0 0
      %996 = vmatprep.subr.bf16.mxu0 0
      %997 = vmatpush1.bf16.msra.mxu0 0
      %998 = vmatprep.subr.bf16.mxu0 0
      %999 = vmatpush1.bf16.msra.mxu0 0
      %1000 = vmatprep.subr.bf16.mxu0 0
      %1001 = vmatpush1.bf16.msra.mxu0 0
      %1002 = vmatprep.subr.bf16.mxu0 0
      %1003 = vmatpush1.bf16.msra.mxu0 0
      %1004 = vmatprep.subr.bf16.mxu0 0
      %1005 = vmatpush1.bf16.msra.mxu0 0
      %1006 = vmatprep.subr.bf16.mxu0 0
      %1007 = vmatpush1.bf16.msra.mxu0 0
      %1008 = vmatprep.subr.bf16.mxu0 0
      %1009 = vmatpush1.bf16.msra.mxu0 0
      %1010 = vmatprep.subr.bf16.mxu0 0
      %1011 = vmatpush1.bf16.msra.mxu0 0
      %1012 = vmatprep.subr.bf16.mxu0 0
      %1013 = vmatpush1.bf16.msra.mxu0 0
      %1014 = vmatprep.subr.bf16.mxu0 0
      %1015 = vmatpush1.bf16.msra.mxu0 0
      %1016 = vmatprep.mubr.bf16.mxu0 0
      %1017 = vmatmul.mubr.bf16.gmra.mrb[0].mxu0 %v413
      %v1018 = vpop.f32.mrb[0].mxu0
      %v1019 = vadd.f32 %v354, %v1018
      %v1020 = vpop.f32.mrb[0].mxu0
      %v1021 = vadd.f32 %v354, %v1020
      %v1022 = vpop.f32.mrb[0].mxu0
      %v1023 = vadd.f32 %v359, %v1022
      %v1024 = vpop.f32.mrb[0].mxu0
      %v1025 = vadd.f32 %v359, %v1024
      %1026 = vmatprep.mubr.bf16.mxu0 0
      %1027 = vmatmul.mubr.bf16.gmra.mrb[0].mxu0 %v416
      %v1028 = vpop.f32.mrb[0].mxu0
      %v1029 = vadd.f32 %v364, %v1028
      %v1030 = vpop.f32.mrb[0].mxu0
      %v1031 = vadd.f32 %v364, %v1030
      %v1032 = vpop.f32.mrb[0].mxu0
      %v1033 = vadd.f32 %v369, %v1032
      %v1034 = vpop.f32.mrb[0].mxu0
      %v1035 = vadd.f32 %v369, %v1034
      %1036 = vmatprep.mubr.bf16.mxu0 0
      %1037 = vmatmul.mubr.bf16.gmra.mrb[0].mxu0 %v419
      %v1038 = vpop.f32.mrb[0].mxu0
      %v1039 = vadd.f32 %v374, %v1038
      %v1040 = vpop.f32.mrb[0].mxu0
      %v1041 = vadd.f32 %v374, %v1040
      %v1042 = vpop.f32.mrb[0].mxu0
      %v1043 = vadd.f32 %v379, %v1042
      %v1044 = vpop.f32.mrb[0].mxu0
      %v1045 = vadd.f32 %v379, %v1044
      %1046 = vmatprep.mubr.bf16.mxu0 0
      %1047 = vmatmul.mubr.bf16.gmra.mrb[0].mxu0 %v422
      %v1048 = vpop.f32.mrb[0].mxu0
      %v1049 = vadd.f32 %v384, %v1048
      %v1050 = vpop.f32.mrb[0].mxu0
      %v1051 = vadd.f32 %v384, %v1050
      %v1052 = vpop.f32.mrb[0].mxu0
      %v1053 = vadd.f32 %v389, %v1052
      %v1054 = vpop.f32.mrb[0].mxu0
      %v1055 = vadd.f32 %v389, %v1054
      %1056 = vdwg.mxu0
      %vm1057 = vcmp.ge.f32.partialorder %v508, 0.0
      %vm1058 = vcmp.ge.f32.partialorder %v510, 0.0
      %vm1059 = vcmp.ge.f32.partialorder %v581, 0.0
      %vm1060 = vcmp.ge.f32.partialorder %v583, 0.0
      %vm1061 = vcmp.ge.f32.partialorder %v654, 0.0
      %vm1062 = vcmp.ge.f32.partialorder %v656, 0.0
      %vm1063 = vcmp.ge.f32.partialorder %v727, 0.0
      %vm1064 = vcmp.ge.f32.partialorder %v729, 0.0
      %vm1065 = vcmp.ge.f32.partialorder %v800, 0.0
      %vm1066 = vcmp.ge.f32.partialorder %v802, 0.0
      %vm1067 = vcmp.ge.f32.partialorder %v873, 0.0
      %vm1068 = vcmp.ge.f32.partialorder %v875, 0.0
      %vm1069 = vcmp.ge.f32.partialorder %v946, 0.0
      %vm1070 = vcmp.ge.f32.partialorder %v948, 0.0
      %vm1071 = vcmp.ge.f32.partialorder %v1019, 0.0
      %vm1072 = vcmp.ge.f32.partialorder %v1021, 0.0
      %vm1073 = vcmp.ge.f32.partialorder %v512, 0.0
      %vm1074 = vcmp.ge.f32.partialorder %v514, 0.0
      %vm1075 = vcmp.ge.f32.partialorder %v585, 0.0
      %vm1076 = vcmp.ge.f32.partialorder %v587, 0.0
      %vm1077 = vcmp.ge.f32.partialorder %v658, 0.0
      %vm1078 = vcmp.ge.f32.partialorder %v660, 0.0
      %vm1079 = vcmp.ge.f32.partialorder %v731, 0.0
      %vm1080 = vcmp.ge.f32.partialorder %v733, 0.0
      %vm1081 = vcmp.ge.f32.partialorder %v804, 0.0
      %vm1082 = vcmp.ge.f32.partialorder %v806, 0.0
      %vm1083 = vcmp.ge.f32.partialorder %v877, 0.0
      %vm1084 = vcmp.ge.f32.partialorder %v879, 0.0
      %vm1085 = vcmp.ge.f32.partialorder %v950, 0.0
      %vm1086 = vcmp.ge.f32.partialorder %v952, 0.0
      %vm1087 = vcmp.ge.f32.partialorder %v1023, 0.0
      %vm1088 = vcmp.ge.f32.partialorder %v1025, 0.0
      %vm1089 = vcmp.ge.f32.partialorder %v518, 0.0
      %vm1090 = vcmp.ge.f32.partialorder %v520, 0.0
      %vm1091 = vcmp.ge.f32.partialorder %v591, 0.0
      %vm1092 = vcmp.ge.f32.partialorder %v593, 0.0
      %vm1093 = vcmp.ge.f32.partialorder %v664, 0.0
      %vm1094 = vcmp.ge.f32.partialorder %v666, 0.0
      %vm1095 = vcmp.ge.f32.partialorder %v737, 0.0
      %vm1096 = vcmp.ge.f32.partialorder %v739, 0.0
      %vm1097 = vcmp.ge.f32.partialorder %v810, 0.0
      %vm1098 = vcmp.ge.f32.partialorder %v812, 0.0
      %vm1099 = vcmp.ge.f32.partialorder %v883, 0.0
      %vm1100 = vcmp.ge.f32.partialorder %v885, 0.0
      %vm1101 = vcmp.ge.f32.partialorder %v956, 0.0
      %vm1102 = vcmp.ge.f32.partialorder %v958, 0.0
      %vm1103 = vcmp.ge.f32.partialorder %v1029, 0.0
      %vm1104 = vcmp.ge.f32.partialorder %v1031, 0.0
      %vm1105 = vcmp.ge.f32.partialorder %v522, 0.0
      %vm1106 = vcmp.ge.f32.partialorder %v524, 0.0
      %vm1107 = vcmp.ge.f32.partialorder %v595, 0.0
      %vm1108 = vcmp.ge.f32.partialorder %v597, 0.0
      %vm1109 = vcmp.ge.f32.partialorder %v668, 0.0
      %vm1110 = vcmp.ge.f32.partialorder %v670, 0.0
      %vm1111 = vcmp.ge.f32.partialorder %v741, 0.0
      %vm1112 = vcmp.ge.f32.partialorder %v743, 0.0
      %vm1113 = vcmp.ge.f32.partialorder %v814, 0.0
      %vm1114 = vcmp.ge.f32.partialorder %v816, 0.0
      %vm1115 = vcmp.ge.f32.partialorder %v887, 0.0
      %vm1116 = vcmp.ge.f32.partialorder %v889, 0.0
      %vm1117 = vcmp.ge.f32.partialorder %v960, 0.0
      %vm1118 = vcmp.ge.f32.partialorder %v962, 0.0
      %vm1119 = vcmp.ge.f32.partialorder %v1033, 0.0
      %vm1120 = vcmp.ge.f32.partialorder %v1035, 0.0
      %vm1121 = vcmp.ge.f32.partialorder %v528, 0.0
      %vm1122 = vcmp.ge.f32.partialorder %v530, 0.0
      %vm1123 = vcmp.ge.f32.partialorder %v601, 0.0
      %vm1124 = vcmp.ge.f32.partialorder %v603, 0.0
      %vm1125 = vcmp.ge.f32.partialorder %v674, 0.0
      %vm1126 = vcmp.ge.f32.partialorder %v676, 0.0
      %vm1127 = vcmp.ge.f32.partialorder %v747, 0.0
      %vm1128 = vcmp.ge.f32.partialorder %v749, 0.0
      %vm1129 = vcmp.ge.f32.partialorder %v820, 0.0
      %vm1130 = vcmp.ge.f32.partialorder %v822, 0.0
      %vm1131 = vcmp.ge.f32.partialorder %v893, 0.0
      %vm1132 = vcmp.ge.f32.partialorder %v895, 0.0
      %vm1133 = vcmp.ge.f32.partialorder %v966, 0.0
      %vm1134 = vcmp.ge.f32.partialorder %v968, 0.0
      %vm1135 = vcmp.ge.f32.partialorder %v1039, 0.0
      %vm1136 = vcmp.ge.f32.partialorder %v1041, 0.0
      %vm1137 = vcmp.ge.f32.partialorder %v532, 0.0
      %vm1138 = vcmp.ge.f32.partialorder %v534, 0.0
      %vm1139 = vcmp.ge.f32.partialorder %v605, 0.0
      %vm1140 = vcmp.ge.f32.partialorder %v607, 0.0
      %vm1141 = vcmp.ge.f32.partialorder %v678, 0.0
      %vm1142 = vcmp.ge.f32.partialorder %v680, 0.0
      %vm1143 = vcmp.ge.f32.partialorder %v751, 0.0
      %vm1144 = vcmp.ge.f32.partialorder %v753, 0.0
      %vm1145 = vcmp.ge.f32.partialorder %v824, 0.0
      %vm1146 = vcmp.ge.f32.partialorder %v826, 0.0
      %vm1147 = vcmp.ge.f32.partialorder %v897, 0.0
      %vm1148 = vcmp.ge.f32.partialorder %v899, 0.0
      %vm1149 = vcmp.ge.f32.partialorder %v970, 0.0
      %vm1150 = vcmp.ge.f32.partialorder %v972, 0.0
      %vm1151 = vcmp.ge.f32.partialorder %v1043, 0.0
      %vm1152 = vcmp.ge.f32.partialorder %v1045, 0.0
      %vm1153 = vcmp.ge.f32.partialorder %v538, 0.0
      %vm1154 = vcmp.ge.f32.partialorder %v540, 0.0
      %vm1155 = vcmp.ge.f32.partialorder %v611, 0.0
      %vm1156 = vcmp.ge.f32.partialorder %v613, 0.0
      %vm1157 = vcmp.ge.f32.partialorder %v684, 0.0
      %vm1158 = vcmp.ge.f32.partialorder %v686, 0.0
      %vm1159 = vcmp.ge.f32.partialorder %v757, 0.0
      %vm1160 = vcmp.ge.f32.partialorder %v759, 0.0
      %vm1161 = vcmp.ge.f32.partialorder %v830, 0.0
      %vm1162 = vcmp.ge.f32.partialorder %v832, 0.0
      %vm1163 = vcmp.ge.f32.partialorder %v903, 0.0
      %vm1164 = vcmp.ge.f32.partialorder %v905, 0.0
      %vm1165 = vcmp.ge.f32.partialorder %v976, 0.0
      %vm1166 = vcmp.ge.f32.partialorder %v978, 0.0
      %vm1167 = vcmp.ge.f32.partialorder %v1049, 0.0
      %vm1168 = vcmp.ge.f32.partialorder %v1051, 0.0
      %vm1169 = vcmp.ge.f32.partialorder %v542, 0.0
      %vm1170 = vcmp.ge.f32.partialorder %v544, 0.0
      %vm1171 = vcmp.ge.f32.partialorder %v615, 0.0
      %vm1172 = vcmp.ge.f32.partialorder %v617, 0.0
      %vm1173 = vcmp.ge.f32.partialorder %v688, 0.0
      %vm1174 = vcmp.ge.f32.partialorder %v690, 0.0
      %vm1175 = vcmp.ge.f32.partialorder %v761, 0.0
      %vm1176 = vcmp.ge.f32.partialorder %v763, 0.0
      %vm1177 = vcmp.ge.f32.partialorder %v834, 0.0
      %vm1178 = vcmp.ge.f32.partialorder %v836, 0.0
      %vm1179 = vcmp.ge.f32.partialorder %v907, 0.0
      %vm1180 = vcmp.ge.f32.partialorder %v909, 0.0
      %vm1181 = vcmp.ge.f32.partialorder %v980, 0.0
      %vm1182 = vcmp.ge.f32.partialorder %v982, 0.0
      %vm1183 = vcmp.ge.f32.partialorder %v1053, 0.0
      %vm1184 = vcmp.ge.f32.partialorder %v1055, 0.0
      %v1185 = vmul.f32 %v508, 0.2
      %v1186 = vmul.f32 %v510, 0.2
      %v1187 = vmul.f32 %v581, 0.2
      %v1188 = vmul.f32 %v583, 0.2
      %v1189 = vmul.f32 %v654, 0.2
      %v1190 = vmul.f32 %v656, 0.2
      %v1191 = vmul.f32 %v727, 0.2
      %v1192 = vmul.f32 %v729, 0.2
      %v1193 = vmul.f32 %v800, 0.2
      %v1194 = vmul.f32 %v802, 0.2
      %v1195 = vmul.f32 %v873, 0.2
      %v1196 = vmul.f32 %v875, 0.2
      %v1197 = vmul.f32 %v946, 0.2
      %v1198 = vmul.f32 %v948, 0.2
      %v1199 = vmul.f32 %v1019, 0.2
      %v1200 = vmul.f32 %v1021, 0.2
      %v1201 = vmul.f32 %v512, 0.2
      %v1202 = vmul.f32 %v514, 0.2
      %v1203 = vmul.f32 %v585, 0.2
      %v1204 = vmul.f32 %v587, 0.2
      %v1205 = vmul.f32 %v658, 0.2
      %v1206 = vmul.f32 %v660, 0.2
      %v1207 = vmul.f32 %v731, 0.2
      %v1208 = vmul.f32 %v733, 0.2
      %v1209 = vmul.f32 %v804, 0.2
      %v1210 = vmul.f32 %v806, 0.2
      %v1211 = vmul.f32 %v877, 0.2
      %v1212 = vmul.f32 %v879, 0.2
      %v1213 = vmul.f32 %v950, 0.2
      %v1214 = vmul.f32 %v952, 0.2
      %v1215 = vmul.f32 %v1023, 0.2
      %v1216 = vmul.f32 %v1025, 0.2
      %v1217 = vmul.f32 %v518, 0.2
      %v1218 = vmul.f32 %v520, 0.2
      %v1219 = vmul.f32 %v591, 0.2
      %v1220 = vmul.f32 %v593, 0.2
      %v1221 = vmul.f32 %v664, 0.2
      %v1222 = vmul.f32 %v666, 0.2
      %v1223 = vmul.f32 %v737, 0.2
      %v1224 = vmul.f32 %v739, 0.2
      %v1225 = vmul.f32 %v810, 0.2
      %v1226 = vmul.f32 %v812, 0.2
      %v1227 = vmul.f32 %v883, 0.2
      %v1228 = vmul.f32 %v885, 0.2
      %v1229 = vmul.f32 %v956, 0.2
      %v1230 = vmul.f32 %v958, 0.2
      %v1231 = vmul.f32 %v1029, 0.2
      %v1232 = vmul.f32 %v1031, 0.2
      %v1233 = vmul.f32 %v522, 0.2
      %v1234 = vmul.f32 %v524, 0.2
      %v1235 = vmul.f32 %v595, 0.2
      %v1236 = vmul.f32 %v597, 0.2
      %v1237 = vmul.f32 %v668, 0.2
      %v1238 = vmul.f32 %v670, 0.2
      %v1239 = vmul.f32 %v741, 0.2
      %v1240 = vmul.f32 %v743, 0.2
      %v1241 = vmul.f32 %v814, 0.2
      %v1242 = vmul.f32 %v816, 0.2
      %v1243 = vmul.f32 %v887, 0.2
      %v1244 = vmul.f32 %v889, 0.2
      %v1245 = vmul.f32 %v960, 0.2
      %v1246 = vmul.f32 %v962, 0.2
      %v1247 = vmul.f32 %v1033, 0.2
      %v1248 = vmul.f32 %v1035, 0.2
      %v1249 = vmul.f32 %v528, 0.2
      %v1250 = vmul.f32 %v530, 0.2
      %v1251 = vmul.f32 %v601, 0.2
      %v1252 = vmul.f32 %v603, 0.2
      %v1253 = vmul.f32 %v674, 0.2
      %v1254 = vmul.f32 %v676, 0.2
      %v1255 = vmul.f32 %v747, 0.2
      %v1256 = vmul.f32 %v749, 0.2
      %v1257 = vmul.f32 %v820, 0.2
      %v1258 = vmul.f32 %v822, 0.2
      %v1259 = vmul.f32 %v893, 0.2
      %v1260 = vmul.f32 %v895, 0.2
      %v1261 = vmul.f32 %v966, 0.2
      %v1262 = vmul.f32 %v968, 0.2
      %v1263 = vmul.f32 %v1039, 0.2
      %v1264 = vmul.f32 %v1041, 0.2
      %v1265 = vmul.f32 %v532, 0.2
      %v1266 = vmul.f32 %v534, 0.2
      %v1267 = vmul.f32 %v605, 0.2
      %v1268 = vmul.f32 %v607, 0.2
      %v1269 = vmul.f32 %v678, 0.2
      %v1270 = vmul.f32 %v680, 0.2
      %v1271 = vmul.f32 %v751, 0.2
      %v1272 = vmul.f32 %v753, 0.2
      %v1273 = vmul.f32 %v824, 0.2
      %v1274 = vmul.f32 %v826, 0.2
      %v1275 = vmul.f32 %v897, 0.2
      %v1276 = vmul.f32 %v899, 0.2
      %v1277 = vmul.f32 %v970, 0.2
      %v1278 = vmul.f32 %v972, 0.2
      %v1279 = vmul.f32 %v1043, 0.2
      %v1280 = vmul.f32 %v1045, 0.2
      %v1281 = vmul.f32 %v538, 0.2
      %v1282 = vmul.f32 %v540, 0.2
      %v1283 = vmul.f32 %v611, 0.2
      %v1284 = vmul.f32 %v613, 0.2
      %v1285 = vmul.f32 %v684, 0.2
      %v1286 = vmul.f32 %v686, 0.2
      %v1287 = vmul.f32 %v757, 0.2
      %v1288 = vmul.f32 %v759, 0.2
      %v1289 = vmul.f32 %v830, 0.2
      %v1290 = vmul.f32 %v832, 0.2
      %v1291 = vmul.f32 %v903, 0.2
      %v1292 = vmul.f32 %v905, 0.2
      %v1293 = vmul.f32 %v976, 0.2
      %v1294 = vmul.f32 %v978, 0.2
      %v1295 = vmul.f32 %v1049, 0.2
      %v1296 = vmul.f32 %v1051, 0.2
      %v1297 = vmul.f32 %v542, 0.2
      %v1298 = vmul.f32 %v544, 0.2
      %v1299 = vmul.f32 %v615, 0.2
      %v1300 = vmul.f32 %v617, 0.2
      %v1301 = vmul.f32 %v688, 0.2
      %v1302 = vmul.f32 %v690, 0.2
      %v1303 = vmul.f32 %v761, 0.2
      %v1304 = vmul.f32 %v763, 0.2
      %v1305 = vmul.f32 %v834, 0.2
      %v1306 = vmul.f32 %v836, 0.2
      %v1307 = vmul.f32 %v907, 0.2
      %v1308 = vmul.f32 %v909, 0.2
      %v1309 = vmul.f32 %v980, 0.2
      %v1310 = vmul.f32 %v982, 0.2
      %v1311 = vmul.f32 %v1053, 0.2
      %v1312 = vmul.f32 %v1055, 0.2
      %v1313 = vsel %vm1057, %v508, %v1185
      %v1314 = vsel %vm1058, %v510, %v1186
      %v1315 = vsel %vm1059, %v581, %v1187
      %v1316 = vsel %vm1060, %v583, %v1188
      %v1317 = vsel %vm1061, %v654, %v1189
      %v1318 = vsel %vm1062, %v656, %v1190
      %v1319 = vsel %vm1063, %v727, %v1191
      %v1320 = vsel %vm1064, %v729, %v1192
      %v1321 = vsel %vm1065, %v800, %v1193
      %v1322 = vsel %vm1066, %v802, %v1194
      %v1323 = vsel %vm1067, %v873, %v1195
      %v1324 = vsel %vm1068, %v875, %v1196
      %v1325 = vsel %vm1069, %v946, %v1197
      %v1326 = vsel %vm1070, %v948, %v1198
      %v1327 = vsel %vm1071, %v1019, %v1199
      %v1328 = vsel %vm1072, %v1021, %v1200
      %v1329 = vsel %vm1073, %v512, %v1201
      %v1330 = vsel %vm1074, %v514, %v1202
      %v1331 = vsel %vm1075, %v585, %v1203
      %v1332 = vsel %vm1076, %v587, %v1204
      %v1333 = vsel %vm1077, %v658, %v1205
      %v1334 = vsel %vm1078, %v660, %v1206
      %v1335 = vsel %vm1079, %v731, %v1207
      %v1336 = vsel %vm1080, %v733, %v1208
      %v1337 = vsel %vm1081, %v804, %v1209
      %v1338 = vsel %vm1082, %v806, %v1210
      %v1339 = vsel %vm1083, %v877, %v1211
      %v1340 = vsel %vm1084, %v879, %v1212
      %v1341 = vsel %vm1085, %v950, %v1213
      %v1342 = vsel %vm1086, %v952, %v1214
      %v1343 = vsel %vm1087, %v1023, %v1215
      %v1344 = vsel %vm1088, %v1025, %v1216
      %v1345 = vsel %vm1089, %v518, %v1217
      %v1346 = vsel %vm1090, %v520, %v1218
      %v1347 = vsel %vm1091, %v591, %v1219
      %v1348 = vsel %vm1092, %v593, %v1220
      %v1349 = vsel %vm1093, %v664, %v1221
      %v1350 = vsel %vm1094, %v666, %v1222
      %v1351 = vsel %vm1095, %v737, %v1223
      %v1352 = vsel %vm1096, %v739, %v1224
      %v1353 = vsel %vm1097, %v810, %v1225
      %v1354 = vsel %vm1098, %v812, %v1226
      %v1355 = vsel %vm1099, %v883, %v1227
      %v1356 = vsel %vm1100, %v885, %v1228
      %v1357 = vsel %vm1101, %v956, %v1229
      %v1358 = vsel %vm1102, %v958, %v1230
      %v1359 = vsel %vm1103, %v1029, %v1231
      %v1360 = vsel %vm1104, %v1031, %v1232
      %v1361 = vsel %vm1105, %v522, %v1233
      %v1362 = vsel %vm1106, %v524, %v1234
      %v1363 = vsel %vm1107, %v595, %v1235
      %v1364 = vsel %vm1108, %v597, %v1236
      %v1365 = vsel %vm1109, %v668, %v1237
      %v1366 = vsel %vm1110, %v670, %v1238
      %v1367 = vsel %vm1111, %v741, %v1239
      %v1368 = vsel %vm1112, %v743, %v1240
      %v1369 = vsel %vm1113, %v814, %v1241
      %v1370 = vsel %vm1114, %v816, %v1242
      %v1371 = vsel %vm1115, %v887, %v1243
      %v1372 = vsel %vm1116, %v889, %v1244
      %v1373 = vsel %vm1117, %v960, %v1245
      %v1374 = vsel %vm1118, %v962, %v1246
      %v1375 = vsel %vm1119, %v1033, %v1247
      %v1376 = vsel %vm1120, %v1035, %v1248
      %v1377 = vsel %vm1121, %v528, %v1249
      %v1378 = vsel %vm1122, %v530, %v1250
      %v1379 = vsel %vm1123, %v601, %v1251
      %v1380 = vsel %vm1124, %v603, %v1252
      %v1381 = vsel %vm1125, %v674, %v1253
      %v1382 = vsel %vm1126, %v676, %v1254
      %v1383 = vsel %vm1127, %v747, %v1255
      %v1384 = vsel %vm1128, %v749, %v1256
      %v1385 = vsel %vm1129, %v820, %v1257
      %v1386 = vsel %vm1130, %v822, %v1258
      %v1387 = vsel %vm1131, %v893, %v1259
      %v1388 = vsel %vm1132, %v895, %v1260
      %v1389 = vsel %vm1133, %v966, %v1261
      %v1390 = vsel %vm1134, %v968, %v1262
      %v1391 = vsel %vm1135, %v1039, %v1263
      %v1392 = vsel %vm1136, %v1041, %v1264
      %v1393 = vsel %vm1137, %v532, %v1265
      %v1394 = vsel %vm1138, %v534, %v1266
      %v1395 = vsel %vm1139, %v605, %v1267
      %v1396 = vsel %vm1140, %v607, %v1268
      %v1397 = vsel %vm1141, %v678, %v1269
      %v1398 = vsel %vm1142, %v680, %v1270
      %v1399 = vsel %vm1143, %v751, %v1271
      %v1400 = vsel %vm1144, %v753, %v1272
      %v1401 = vsel %vm1145, %v824, %v1273
      %v1402 = vsel %vm1146, %v826, %v1274
      %v1403 = vsel %vm1147, %v897, %v1275
      %v1404 = vsel %vm1148, %v899, %v1276
      %v1405 = vsel %vm1149, %v970, %v1277
      %v1406 = vsel %vm1150, %v972, %v1278
      %v1407 = vsel %vm1151, %v1043, %v1279
      %v1408 = vsel %vm1152, %v1045, %v1280
      %v1409 = vsel %vm1153, %v538, %v1281
      %v1410 = vsel %vm1154, %v540, %v1282
      %v1411 = vsel %vm1155, %v611, %v1283
      %v1412 = vsel %vm1156, %v613, %v1284
      %v1413 = vsel %vm1157, %v684, %v1285
      %v1414 = vsel %vm1158, %v686, %v1286
      %v1415 = vsel %vm1159, %v757, %v1287
      %v1416 = vsel %vm1160, %v759, %v1288
      %v1417 = vsel %vm1161, %v830, %v1289
      %v1418 = vsel %vm1162, %v832, %v1290
      %v1419 = vsel %vm1163, %v903, %v1291
      %v1420 = vsel %vm1164, %v905, %v1292
      %v1421 = vsel %vm1165, %v976, %v1293
      %v1422 = vsel %vm1166, %v978, %v1294
      %v1423 = vsel %vm1167, %v1049, %v1295
      %v1424 = vsel %vm1168, %v1051, %v1296
      %v1425 = vsel %vm1169, %v542, %v1297
      %v1426 = vsel %vm1170, %v544, %v1298
      %v1427 = vsel %vm1171, %v615, %v1299
      %v1428 = vsel %vm1172, %v617, %v1300
      %v1429 = vsel %vm1173, %v688, %v1301
      %v1430 = vsel %vm1174, %v690, %v1302
      %v1431 = vsel %vm1175, %v761, %v1303
      %v1432 = vsel %vm1176, %v763, %v1304
      %v1433 = vsel %vm1177, %v834, %v1305
      %v1434 = vsel %vm1178, %v836, %v1306
      %v1435 = vsel %vm1179, %v907, %v1307
      %v1436 = vsel %vm1180, %v909, %v1308
      %v1437 = vsel %vm1181, %v980, %v1309
      %v1438 = vsel %vm1182, %v982, %v1310
      %v1439 = vsel %vm1183, %v1053, %v1311
      %v1440 = vsel %vm1184, %v1055, %v1312
      %v1441 = vld [vmem:[%s3] sm:$0xf]
      %v1442 = vld [vmem:[%s3 + $0x4] sm:$0xf]
      %v1443 = vld [vmem:[%s3 + $0x8] sm:$0xf]
      %v1444 = vld [vmem:[%s3 + $0xc] sm:$0xf]
      %v1445 = vld [vmem:[%s3 + $0x10] sm:$0xf]
      %v1446 = vld [vmem:[%s3 + $0x14] sm:$0xf]
      %v1447 = vld [vmem:[%s3 + $0x18] sm:$0xf]
      %v1448 = vld [vmem:[%s3 + $0x1c] sm:$0xf]
      %v1449 = vld [vmem:[%s3 + $0x20] sm:$0xf]
      %v1450 = vld [vmem:[%s3 + $0x24] sm:$0xf]
      %v1451 = vld [vmem:[%s3 + $0x28] sm:$0xf]
      %v1452 = vld [vmem:[%s3 + $0x2c] sm:$0xf]
      %v1453 = vld [vmem:[%s3 + $0x30] sm:$0xf]
      %v1454 = vld [vmem:[%s3 + $0x34] sm:$0xf]
      %v1455 = vld [vmem:[%s3 + $0x38] sm:$0xf]
      %v1456 = vld [vmem:[%s3 + $0x3c] sm:$0xf]
      %v1457 = vpack.c.bf16 %v1329, %v1313
      %v1458 = vpack.c.bf16 %v1330, %v1314
      %v1459 = vpack.c.bf16 %v1331, %v1315
      %v1460 = vpack.c.bf16 %v1332, %v1316
      %v1461 = vpack.c.bf16 %v1333, %v1317
      %v1462 = vpack.c.bf16 %v1334, %v1318
      %v1463 = vpack.c.bf16 %v1335, %v1319
      %v1464 = vpack.c.bf16 %v1336, %v1320
      %v1465 = vpack.c.bf16 %v1337, %v1321
      %v1466 = vpack.c.bf16 %v1338, %v1322
      %v1467 = vpack.c.bf16 %v1339, %v1323
      %v1468 = vpack.c.bf16 %v1340, %v1324
      %v1469 = vpack.c.bf16 %v1341, %v1325
      %v1470 = vpack.c.bf16 %v1342, %v1326
      %v1471 = vpack.c.bf16 %v1343, %v1327
      %v1472 = vpack.c.bf16 %v1344, %v1328
      %v1473 = vpack.c.bf16 %v1361, %v1345
      %v1474 = vpack.c.bf16 %v1362, %v1346
      %v1475 = vpack.c.bf16 %v1363, %v1347
      %v1476 = vpack.c.bf16 %v1364, %v1348
      %v1477 = vpack.c.bf16 %v1365, %v1349
      %v1478 = vpack.c.bf16 %v1366, %v1350
      %v1479 = vpack.c.bf16 %v1367, %v1351
      %v1480 = vpack.c.bf16 %v1368, %v1352
      %v1481 = vpack.c.bf16 %v1369, %v1353
      %v1482 = vpack.c.bf16 %v1370, %v1354
      %v1483 = vpack.c.bf16 %v1371, %v1355
      %v1484 = vpack.c.bf16 %v1372, %v1356
      %v1485 = vpack.c.bf16 %v1373, %v1357
      %v1486 = vpack.c.bf16 %v1374, %v1358
      %v1487 = vpack.c.bf16 %v1375, %v1359
      %v1488 = vpack.c.bf16 %v1376, %v1360
      %v1489 = vpack.c.bf16 %v1393, %v1377
      %v1490 = vpack.c.bf16 %v1394, %v1378
      %v1491 = vpack.c.bf16 %v1395, %v1379
      %v1492 = vpack.c.bf16 %v1396, %v1380
      %v1493 = vpack.c.bf16 %v1397, %v1381
      %v1494 = vpack.c.bf16 %v1398, %v1382
      %v1495 = vpack.c.bf16 %v1399, %v1383
      %v1496 = vpack.c.bf16 %v1400, %v1384
      %v1497 = vpack.c.bf16 %v1401, %v1385
      %v1498 = vpack.c.bf16 %v1402, %v1386
      %v1499 = vpack.c.bf16 %v1403, %v1387
      %v1500 = vpack.c.bf16 %v1404, %v1388
      %v1501 = vpack.c.bf16 %v1405, %v1389
      %v1502 = vpack.c.bf16 %v1406, %v1390
      %v1503 = vpack.c.bf16 %v1407, %v1391
      %v1504 = vpack.c.bf16 %v1408, %v1392
      %v1505 = vpack.c.bf16 %v1425, %v1409
      %v1506 = vpack.c.bf16 %v1426, %v1410
      %v1507 = vpack.c.bf16 %v1427, %v1411
      %v1508 = vpack.c.bf16 %v1428, %v1412
      %v1509 = vpack.c.bf16 %v1429, %v1413
      %v1510 = vpack.c.bf16 %v1430, %v1414
      %v1511 = vpack.c.bf16 %v1431, %v1415
      %v1512 = vpack.c.bf16 %v1432, %v1416
      %v1513 = vpack.c.bf16 %v1433, %v1417
      %v1514 = vpack.c.bf16 %v1434, %v1418
      %v1515 = vpack.c.bf16 %v1435, %v1419
      %v1516 = vpack.c.bf16 %v1436, %v1420
      %v1517 = vpack.c.bf16 %v1437, %v1421
      %v1518 = vpack.c.bf16 %v1438, %v1422
      %v1519 = vpack.c.bf16 %v1439, %v1423
      %v1520 = vpack.c.bf16 %v1440, %v1424
      %v1537 = vunpack.c.l.b16 %v1441
      %v1538 = vunpack.c.l.b16 %v1442
      %v1539 = vunpack.c.l.b16 %v1443
      %v1540 = vunpack.c.l.b16 %v1444
      %v1541 = vunpack.c.l.b16 %v1445
      %v1542 = vunpack.c.l.b16 %v1446
      %v1543 = vunpack.c.l.b16 %v1447
      %v1544 = vunpack.c.l.b16 %v1448
      %v1545 = vunpack.c.l.b16 %v1449
      %v1546 = vunpack.c.l.b16 %v1450
      %v1547 = vunpack.c.l.b16 %v1451
      %v1548 = vunpack.c.l.b16 %v1452
      %v1549 = vunpack.c.l.b16 %v1453
      %v1550 = vunpack.c.l.b16 %v1454
      %v1551 = vunpack.c.l.b16 %v1455
      %v1552 = vunpack.c.l.b16 %v1456
      %v1553 = vpack.c.b16 %v1538, %v1537
      %v1554 = vpack.c.b16 %v1540, %v1539
      %v1555 = vpack.c.b16 %v1542, %v1541
      %v1556 = vpack.c.b16 %v1544, %v1543
      %v1557 = vpack.c.b16 %v1546, %v1545
      %v1558 = vpack.c.b16 %v1548, %v1547
      %v1559 = vpack.c.b16 %v1550, %v1549
      %v1560 = vpack.c.b16 %v1552, %v1551
      %vm1561 = vcmask 523264
      %v1563 = vsel %vm1561, %v1553, 0
      %v1566 = vsel %vm1561, %v1554, 0
      %v1569 = vsel %vm1561, %v1555, 0
      %v1572 = vsel %vm1561, %v1556, 0
      %v1575 = vsel %vm1561, %v1557, 0
      %v1578 = vsel %vm1561, %v1558, 0
      %v1581 = vsel %vm1561, %v1559, 0
      %v1584 = vsel %vm1561, %v1560, 0
      %1586 = vmatprep.subr.bf16.mxu0 %v1458
      %1587 = vmatpush1.bf16.msra.mxu0 %v1457
      %1588 = vmatprep.subr.bf16.mxu0 %v1474
      %1589 = vmatpush1.bf16.msra.mxu0 %v1473
      %1590 = vmatprep.subr.bf16.mxu0 %v1490
      %1591 = vmatpush1.bf16.msra.mxu0 %v1489
      %1592 = vmatprep.subr.bf16.mxu0 %v1506
      %1593 = vmatpush1.bf16.msra.mxu0 %v1505
      %1594 = vmatprep.subr.bf16.mxu0 0
      %1595 = vmatpush1.bf16.msra.mxu0 0
      %1596 = vmatprep.subr.bf16.mxu0 0
      %1597 = vmatpush1.bf16.msra.mxu0 0
      %1598 = vmatprep.subr.bf16.mxu0 0
      %1599 = vmatpush1.bf16.msra.mxu0 0
      %1600 = vmatprep.subr.bf16.mxu0 0
      %1601 = vmatpush1.bf16.msra.mxu0 0
      %1602 = vmatprep.subr.bf16.mxu0 0
      %1603 = vmatpush1.bf16.msra.mxu0 0
      %1604 = vmatprep.subr.bf16.mxu0 0
      %1605 = vmatpush1.bf16.msra.mxu0 0
      %1606 = vmatprep.subr.bf16.mxu0 0
      %1607 = vmatpush1.bf16.msra.mxu0 0
      %1608 = vmatprep.subr.bf16.mxu0 0
      %1609 = vmatpush1.bf16.msra.mxu0 0
      %1610 = vmatprep.subr.bf16.mxu0 0
      %1611 = vmatpush1.bf16.msra.mxu0 0
      %1612 = vmatprep.subr.bf16.mxu0 0
      %1613 = vmatpush1.bf16.msra.mxu0 0
      %1614 = vmatprep.subr.bf16.mxu0 0
      %1615 = vmatpush1.bf16.msra.mxu0 0
      %1616 = vmatprep.subr.bf16.mxu0 0
      %1617 = vmatpush1.bf16.msra.mxu0 0
      %1618 = vmatprep.mubr.bf16.mxu0 0
      %1619 = vmatmul.mubr.bf16.gmra.mrb[0].mxu0 %v1563
      %v1620 = vpop.f32.mrb[0].mxu0
      %v1621 = vadd.f32 0.0, %v1620
      %v1622 = vpop.f32.mrb[0].mxu0
      %v1623 = vadd.f32 0.0, %v1622
      %v1624 = vpop.f32.mrb[0].mxu0
      %v1625 = vadd.f32 0.0, %v1624
      %v1626 = vpop.f32.mrb[0].mxu0
      %v1627 = vadd.f32 0.0, %v1626
      %1628 = vmatprep.mubr.bf16.mxu0 0
      %1629 = vmatmul.mubr.bf16.gmra.mrb[0].mxu0 %v1566
      %v1630 = vpop.f32.mrb[0].mxu0
      %v1631 = vadd.f32 0.0, %v1630
      %v1632 = vpop.f32.mrb[0].mxu0
      %v1633 = vadd.f32 0.0, %v1632
      %v1634 = vpop.f32.mrb[0].mxu0
      %v1635 = vadd.f32 0.0, %v1634
      %v1636 = vpop.f32.mrb[0].mxu0
      %v1637 = vadd.f32 0.0, %v1636
      %1638 = vmatprep.mubr.bf16.mxu0 0
      %1639 = vmatmul.mubr.bf16.gmra.mrb[0].mxu0 %v1569
      %v1640 = vpop.f32.mrb[0].mxu0
      %v1641 = vadd.f32 0.0, %v1640
      %v1642 = vpop.f32.mrb[0].mxu0
      %v1643 = vadd.f32 0.0, %v1642
      %v1644 = vpop.f32.mrb[0].mxu0
      %v1645 = vadd.f32 0.0, %v1644
      %v1646 = vpop.f32.mrb[0].mxu0
      %v1647 = vadd.f32 0.0, %v1646
      %1648 = vmatprep.mubr.bf16.mxu0 0
      %1649 = vmatmul.mubr.bf16.gmra.mrb[0].mxu0 %v1572
      %v1650 = vpop.f32.mrb[0].mxu0
      %v1651 = vadd.f32 0.0, %v1650
      %v1652 = vpop.f32.mrb[0].mxu0
      %v1653 = vadd.f32 0.0, %v1652
      %v1654 = vpop.f32.mrb[0].mxu0
      %v1655 = vadd.f32 0.0, %v1654
      %v1656 = vpop.f32.mrb[0].mxu0
      %v1657 = vadd.f32 0.0, %v1656
      %1658 = vmatprep.mubr.bf16.mxu0 0
      %1659 = vmatmul.mubr.bf16.gmra.mrb[0].mxu0 %v1575
      %v1660 = vpop.f32.mrb[0].mxu0
      %v1661 = vadd.f32 0.0, %v1660
      %v1662 = vpop.f32.mrb[0].mxu0
      %v1663 = vadd.f32 0.0, %v1662
      %v1664 = vpop.f32.mrb[0].mxu0
      %v1665 = vadd.f32 0.0, %v1664
      %v1666 = vpop.f32.mrb[0].mxu0
      %v1667 = vadd.f32 0.0, %v1666
      %1668 = vmatprep.mubr.bf16.mxu0 0
      %1669 = vmatmul.mubr.bf16.gmra.mrb[0].mxu0 %v1578
      %v1670 = vpop.f32.mrb[0].mxu0
      %v1671 = vadd.f32 0.0, %v1670
      %v1672 = vpop.f32.mrb[0].mxu0
      %v1673 = vadd.f32 0.0, %v1672
      %v1674 = vpop.f32.mrb[0].mxu0
      %v1675 = vadd.f32 0.0, %v1674
      %v1676 = vpop.f32.mrb[0].mxu0
      %v1677 = vadd.f32 0.0, %v1676
      %1678 = vmatprep.mubr.bf16.mxu0 0
      %1679 = vmatmul.mubr.bf16.gmra.mrb[0].mxu0 %v1581
      %v1680 = vpop.f32.mrb[0].mxu0
      %v1681 = vadd.f32 0.0, %v1680
      %v1682 = vpop.f32.mrb[0].mxu0
      %v1683 = vadd.f32 0.0, %v1682
      %v1684 = vpop.f32.mrb[0].mxu0
      %v1685 = vadd.f32 0.0, %v1684
      %v1686 = vpop.f32.mrb[0].mxu0
      %v1687 = vadd.f32 0.0, %v1686
      %1688 = vmatprep.mubr.bf16.mxu0 0
      %1689 = vmatmul.mubr.bf16.gmra.mrb[0].mxu0 %v1584
      %v1690 = vpop.f32.mrb[0].mxu0
      %v1691 = vadd.f32 0.0, %v1690
      %v1692 = vpop.f32.mrb[0].mxu0
      %v1693 = vadd.f32 0.0, %v1692
      %v1694 = vpop.f32.mrb[0].mxu0
      %v1695 = vadd.f32 0.0, %v1694
      %v1696 = vpop.f32.mrb[0].mxu0
      %v1697 = vadd.f32 0.0, %v1696
      %1698 = vdwg.mxu0
      %1699 = vmatprep.subr.bf16.mxu0 %v1460
      %1700 = vmatpush1.bf16.msra.mxu0 %v1459
      %1701 = vmatprep.subr.bf16.mxu0 %v1476
      %1702 = vmatpush1.bf16.msra.mxu0 %v1475
      %1703 = vmatprep.subr.bf16.mxu0 %v1492
      %1704 = vmatpush1.bf16.msra.mxu0 %v1491
      %1705 = vmatprep.subr.bf16.mxu0 %v1508
      %1706 = vmatpush1.bf16.msra.mxu0 %v1507
      %1707 = vmatprep.subr.bf16.mxu0 0
      %1708 = vmatpush1.bf16.msra.mxu0 0
      %1709 = vmatprep.subr.bf16.mxu0 0
      %1710 = vmatpush1.bf16.msra.mxu0 0
      %1711 = vmatprep.subr.bf16.mxu0 0
      %1712 = vmatpush1.bf16.msra.mxu0 0
      %1713 = vmatprep.subr.bf16.mxu0 0
      %1714 = vmatpush1.bf16.msra.mxu0 0
      %1715 = vmatprep.subr.bf16.mxu0 0
      %1716 = vmatpush1.bf16.msra.mxu0 0
      %1717 = vmatprep.subr.bf16.mxu0 0
      %1718 = vmatpush1.bf16.msra.mxu0 0
      %1719 = vmatprep.subr.bf16.mxu0 0
      %1720 = vmatpush1.bf16.msra.mxu0 0
      %1721 = vmatprep.subr.bf16.mxu0 0
      %1722 = vmatpush1.bf16.msra.mxu0 0
      %1723 = vmatprep.subr.bf16.mxu0 0
      %1724 = vmatpush1.bf16.msra.mxu0 0
      %1725 = vmatprep.subr.bf16.mxu0 0
      %1726 = vmatpush1.bf16.msra.mxu0 0
      %1727 = vmatprep.subr.bf16.mxu0 0
      %1728 = vmatpush1.bf16.msra.mxu0 0
      %1729 = vmatprep.subr.bf16.mxu0 0
      %1730 = vmatpush1.bf16.msra.mxu0 0
      %1731 = vmatprep.mubr.bf16.mxu0 0
      %1732 = vmatmul.mubr.bf16.gmra.mrb[0].mxu0 %v1563
      %v1733 = vpop.f32.mrb[0].mxu0
      %v1734 = vadd.f32 0.0, %v1733
      %v1735 = vpop.f32.mrb[0].mxu0
      %v1736 = vadd.f32 0.0, %v1735
      %v1737 = vpop.f32.mrb[0].mxu0
      %v1738 = vadd.f32 0.0, %v1737
      %v1739 = vpop.f32.mrb[0].mxu0
      %v1740 = vadd.f32 0.0, %v1739
      %1741 = vmatprep.mubr.bf16.mxu0 0
      %1742 = vmatmul.mubr.bf16.gmra.mrb[0].mxu0 %v1566
      %v1743 = vpop.f32.mrb[0].mxu0
      %v1744 = vadd.f32 0.0, %v1743
      %v1745 = vpop.f32.mrb[0].mxu0
      %v1746 = vadd.f32 0.0, %v1745
      %v1747 = vpop.f32.mrb[0].mxu0
      %v1748 = vadd.f32 0.0, %v1747
      %v1749 = vpop.f32.mrb[0].mxu0
      %v1750 = vadd.f32 0.0, %v1749
      %1751 = vmatprep.mubr.bf16.mxu0 0
      %1752 = vmatmul.mubr.bf16.gmra.mrb[0].mxu0 %v1569
      %v1753 = vpop.f32.mrb[0].mxu0
      %v1754 = vadd.f32 0.0, %v1753
      %v1755 = vpop.f32.mrb[0].mxu0
      %v1756 = vadd.f32 0.0, %v1755
      %v1757 = vpop.f32.mrb[0].mxu0
      %v1758 = vadd.f32 0.0, %v1757
      %v1759 = vpop.f32.mrb[0].mxu0
      %v1760 = vadd.f32 0.0, %v1759
      %1761 = vmatprep.mubr.bf16.mxu0 0
      %1762 = vmatmul.mubr.bf16.gmra.mrb[0].mxu0 %v1572
      %v1763 = vpop.f32.mrb[0].mxu0
      %v1764 = vadd.f32 0.0, %v1763
      %v1765 = vpop.f32.mrb[0].mxu0
      %v1766 = vadd.f32 0.0, %v1765
      %v1767 = vpop.f32.mrb[0].mxu0
      %v1768 = vadd.f32 0.0, %v1767
      %v1769 = vpop.f32.mrb[0].mxu0
      %v1770 = vadd.f32 0.0, %v1769
      %1771 = vmatprep.mubr.bf16.mxu0 0
      %1772 = vmatmul.mubr.bf16.gmra.mrb[0].mxu0 %v1575
      %v1773 = vpop.f32.mrb[0].mxu0
      %v1774 = vadd.f32 0.0, %v1773
      %v1775 = vpop.f32.mrb[0].mxu0
      %v1776 = vadd.f32 0.0, %v1775
      %v1777 = vpop.f32.mrb[0].mxu0
      %v1778 = vadd.f32 0.0, %v1777
      %v1779 = vpop.f32.mrb[0].mxu0
      %v1780 = vadd.f32 0.0, %v1779
      %1781 = vmatprep.mubr.bf16.mxu0 0
      %1782 = vmatmul.mubr.bf16.gmra.mrb[0].mxu0 %v1578
      %v1783 = vpop.f32.mrb[0].mxu0
      %v1784 = vadd.f32 0.0, %v1783
      %v1785 = vpop.f32.mrb[0].mxu0
      %v1786 = vadd.f32 0.0, %v1785
      %v1787 = vpop.f32.mrb[0].mxu0
      %v1788 = vadd.f32 0.0, %v1787
      %v1789 = vpop.f32.mrb[0].mxu0
      %v1790 = vadd.f32 0.0, %v1789
      %1791 = vmatprep.mubr.bf16.mxu0 0
      %1792 = vmatmul.mubr.bf16.gmra.mrb[0].mxu0 %v1581
      %v1793 = vpop.f32.mrb[0].mxu0
      %v1794 = vadd.f32 0.0, %v1793
      %v1795 = vpop.f32.mrb[0].mxu0
      %v1796 = vadd.f32 0.0, %v1795
      %v1797 = vpop.f32.mrb[0].mxu0
      %v1798 = vadd.f32 0.0, %v1797
      %v1799 = vpop.f32.mrb[0].mxu0
      %v1800 = vadd.f32 0.0, %v1799
      %1801 = vmatprep.mubr.bf16.mxu0 0
      %1802 = vmatmul.mubr.bf16.gmra.mrb[0].mxu0 %v1584
      %v1803 = vpop.f32.mrb[0].mxu0
      %v1804 = vadd.f32 0.0, %v1803
      %v1805 = vpop.f32.mrb[0].mxu0
      %v1806 = vadd.f32 0.0, %v1805
      %v1807 = vpop.f32.mrb[0].mxu0
      %v1808 = vadd.f32 0.0, %v1807
      %v1809 = vpop.f32.mrb[0].mxu0
      %v1810 = vadd.f32 0.0, %v1809
      %1811 = vdwg.mxu0
      %1812 = vmatprep.subr.bf16.mxu0 %v1462
      %1813 = vmatpush1.bf16.msra.mxu0 %v1461
      %1814 = vmatprep.subr.bf16.mxu0 %v1478
      %1815 = vmatpush1.bf16.msra.mxu0 %v1477
      %1816 = vmatprep.subr.bf16.mxu0 %v1494
      %1817 = vmatpush1.bf16.msra.mxu0 %v1493
      %1818 = vmatprep.subr.bf16.mxu0 %v1510
      %1819 = vmatpush1.bf16.msra.mxu0 %v1509
      %1820 = vmatprep.subr.bf16.mxu0 0
      %1821 = vmatpush1.bf16.msra.mxu0 0
      %1822 = vmatprep.subr.bf16.mxu0 0
      %1823 = vmatpush1.bf16.msra.mxu0 0
      %1824 = vmatprep.subr.bf16.mxu0 0
      %1825 = vmatpush1.bf16.msra.mxu0 0
      %1826 = vmatprep.subr.bf16.mxu0 0
      %1827 = vmatpush1.bf16.msra.mxu0 0
      %1828 = vmatprep.subr.bf16.mxu0 0
      %1829 = vmatpush1.bf16.msra.mxu0 0
      %1830 = vmatprep.subr.bf16.mxu0 0
      %1831 = vmatpush1.bf16.msra.mxu0 0
      %1832 = vmatprep.subr.bf16.mxu0 0
      %1833 = vmatpush1.bf16.msra.mxu0 0
      %1834 = vmatprep.subr.bf16.mxu0 0
      %1835 = vmatpush1.bf16.msra.mxu0 0
      %1836 = vmatprep.subr.bf16.mxu0 0
      %1837 = vmatpush1.bf16.msra.mxu0 0
      %1838 = vmatprep.subr.bf16.mxu0 0
      %1839 = vmatpush1.bf16.msra.mxu0 0
      %1840 = vmatprep.subr.bf16.mxu0 0
      %1841 = vmatpush1.bf16.msra.mxu0 0
      %1842 = vmatprep.subr.bf16.mxu0 0
      %1843 = vmatpush1.bf16.msra.mxu0 0
      %1844 = vmatprep.mubr.bf16.mxu0 0
      %1845 = vmatmul.mubr.bf16.gmra.mrb[0].mxu0 %v1563
      %v1846 = vpop.f32.mrb[0].mxu0
      %v1847 = vadd.f32 0.0, %v1846
      %v1848 = vpop.f32.mrb[0].mxu0
      %v1849 = vadd.f32 0.0, %v1848
      %v1850 = vpop.f32.mrb[0].mxu0
      %v1851 = vadd.f32 0.0, %v1850
      %v1852 = vpop.f32.mrb[0].mxu0
      %v1853 = vadd.f32 0.0, %v1852
      %1854 = vmatprep.mubr.bf16.mxu0 0
      %1855 = vmatmul.mubr.bf16.gmra.mrb[0].mxu0 %v1566
      %v1856 = vpop.f32.mrb[0].mxu0
      %v1857 = vadd.f32 0.0, %v1856
      %v1858 = vpop.f32.mrb[0].mxu0
      %v1859 = vadd.f32 0.0, %v1858
      %v1860 = vpop.f32.mrb[0].mxu0
      %v1861 = vadd.f32 0.0, %v1860
      %v1862 = vpop.f32.mrb[0].mxu0
      %v1863 = vadd.f32 0.0, %v1862
      %1864 = vmatprep.mubr.bf16.mxu0 0
      %1865 = vmatmul.mubr.bf16.gmra.mrb[0].mxu0 %v1569
      %v1866 = vpop.f32.mrb[0].mxu0
      %v1867 = vadd.f32 0.0, %v1866
      %v1868 = vpop.f32.mrb[0].mxu0
      %v1869 = vadd.f32 0.0, %v1868
      %v1870 = vpop.f32.mrb[0].mxu0
      %v1871 = vadd.f32 0.0, %v1870
      %v1872 = vpop.f32.mrb[0].mxu0
      %v1873 = vadd.f32 0.0, %v1872
      %1874 = vmatprep.mubr.bf16.mxu0 0
      %1875 = vmatmul.mubr.bf16.gmra.mrb[0].mxu0 %v1572
      %v1876 = vpop.f32.mrb[0].mxu0
      %v1877 = vadd.f32 0.0, %v1876
      %v1878 = vpop.f32.mrb[0].mxu0
      %v1879 = vadd.f32 0.0, %v1878
      %v1880 = vpop.f32.mrb[0].mxu0
      %v1881 = vadd.f32 0.0, %v1880
      %v1882 = vpop.f32.mrb[0].mxu0
      %v1883 = vadd.f32 0.0, %v1882
      %1884 = vmatprep.mubr.bf16.mxu0 0
      %1885 = vmatmul.mubr.bf16.gmra.mrb[0].mxu0 %v1575
      %v1886 = vpop.f32.mrb[0].mxu0
      %v1887 = vadd.f32 0.0, %v1886
      %v1888 = vpop.f32.mrb[0].mxu0
      %v1889 = vadd.f32 0.0, %v1888
      %v1890 = vpop.f32.mrb[0].mxu0
      %v1891 = vadd.f32 0.0, %v1890
      %v1892 = vpop.f32.mrb[0].mxu0
      %v1893 = vadd.f32 0.0, %v1892
      %1894 = vmatprep.mubr.bf16.mxu0 0
      %1895 = vmatmul.mubr.bf16.gmra.mrb[0].mxu0 %v1578
      %v1896 = vpop.f32.mrb[0].mxu0
      %v1897 = vadd.f32 0.0, %v1896
      %v1898 = vpop.f32.mrb[0].mxu0
      %v1899 = vadd.f32 0.0, %v1898
      %v1900 = vpop.f32.mrb[0].mxu0
      %v1901 = vadd.f32 0.0, %v1900
      %v1902 = vpop.f32.mrb[0].mxu0
      %v1903 = vadd.f32 0.0, %v1902
      %1904 = vmatprep.mubr.bf16.mxu0 0
      %1905 = vmatmul.mubr.bf16.gmra.mrb[0].mxu0 %v1581
      %v1906 = vpop.f32.mrb[0].mxu0
      %v1907 = vadd.f32 0.0, %v1906
      %v1908 = vpop.f32.mrb[0].mxu0
      %v1909 = vadd.f32 0.0, %v1908
      %v1910 = vpop.f32.mrb[0].mxu0
      %v1911 = vadd.f32 0.0, %v1910
      %v1912 = vpop.f32.mrb[0].mxu0
      %v1913 = vadd.f32 0.0, %v1912
      %1914 = vmatprep.mubr.bf16.mxu0 0
      %1915 = vmatmul.mubr.bf16.gmra.mrb[0].mxu0 %v1584
      %v1916 = vpop.f32.mrb[0].mxu0
      %v1917 = vadd.f32 0.0, %v1916
      %v1918 = vpop.f32.mrb[0].mxu0
      %v1919 = vadd.f32 0.0, %v1918
      %v1920 = vpop.f32.mrb[0].mxu0
      %v1921 = vadd.f32 0.0, %v1920
      %v1922 = vpop.f32.mrb[0].mxu0
      %v1923 = vadd.f32 0.0, %v1922
      %1924 = vdwg.mxu0
      %1925 = vmatprep.subr.bf16.mxu0 %v1464
      %1926 = vmatpush1.bf16.msra.mxu0 %v1463
      %1927 = vmatprep.subr.bf16.mxu0 %v1480
      %1928 = vmatpush1.bf16.msra.mxu0 %v1479
      %1929 = vmatprep.subr.bf16.mxu0 %v1496
      %1930 = vmatpush1.bf16.msra.mxu0 %v1495
      %1931 = vmatprep.subr.bf16.mxu0 %v1512
      %1932 = vmatpush1.bf16.msra.mxu0 %v1511
      %1933 = vmatprep.subr.bf16.mxu0 0
      %1934 = vmatpush1.bf16.msra.mxu0 0
      %1935 = vmatprep.subr.bf16.mxu0 0
      %1936 = vmatpush1.bf16.msra.mxu0 0
      %1937 = vmatprep.subr.bf16.mxu0 0
      %1938 = vmatpush1.bf16.msra.mxu0 0
      %1939 = vmatprep.subr.bf16.mxu0 0
      %1940 = vmatpush1.bf16.msra.mxu0 0
      %1941 = vmatprep.subr.bf16.mxu0 0
      %1942 = vmatpush1.bf16.msra.mxu0 0
      %1943 = vmatprep.subr.bf16.mxu0 0
      %1944 = vmatpush1.bf16.msra.mxu0 0
      %1945 = vmatprep.subr.bf16.mxu0 0
      %1946 = vmatpush1.bf16.msra.mxu0 0
      %1947 = vmatprep.subr.bf16.mxu0 0
      %1948 = vmatpush1.bf16.msra.mxu0 0
      %1949 = vmatprep.subr.bf16.mxu0 0
      %1950 = vmatpush1.bf16.msra.mxu0 0
      %1951 = vmatprep.subr.bf16.mxu0 0
      %1952 = vmatpush1.bf16.msra.mxu0 0
      %1953 = vmatprep.subr.bf16.mxu0 0
      %1954 = vmatpush1.bf16.msra.mxu0 0
      %1955 = vmatprep.subr.bf16.mxu0 0
      %1956 = vmatpush1.bf16.msra.mxu0 0
      %1957 = vmatprep.mubr.bf16.mxu0 0
      %1958 = vmatmul.mubr.bf16.gmra.mrb[0].mxu0 %v1563
      %v1959 = vpop.f32.mrb[0].mxu0
      %v1960 = vadd.f32 0.0, %v1959
      %v1961 = vpop.f32.mrb[0].mxu0
      %v1962 = vadd.f32 0.0, %v1961
      %v1963 = vpop.f32.mrb[0].mxu0
      %v1964 = vadd.f32 0.0, %v1963
      %v1965 = vpop.f32.mrb[0].mxu0
      %v1966 = vadd.f32 0.0, %v1965
      %1967 = vmatprep.mubr.bf16.mxu0 0
      %1968 = vmatmul.mubr.bf16.gmra.mrb[0].mxu0 %v1566
      %v1969 = vpop.f32.mrb[0].mxu0
      %v1970 = vadd.f32 0.0, %v1969
      %v1971 = vpop.f32.mrb[0].mxu0
      %v1972 = vadd.f32 0.0, %v1971
      %v1973 = vpop.f32.mrb[0].mxu0
      %v1974 = vadd.f32 0.0, %v1973
      %v1975 = vpop.f32.mrb[0].mxu0
      %v1976 = vadd.f32 0.0, %v1975
      %1977 = vmatprep.mubr.bf16.mxu0 0
      %1978 = vmatmul.mubr.bf16.gmra.mrb[0].mxu0 %v1569
      %v1979 = vpop.f32.mrb[0].mxu0
      %v1980 = vadd.f32 0.0, %v1979
      %v1981 = vpop.f32.mrb[0].mxu0
      %v1982 = vadd.f32 0.0, %v1981
      %v1983 = vpop.f32.mrb[0].mxu0
      %v1984 = vadd.f32 0.0, %v1983
      %v1985 = vpop.f32.mrb[0].mxu0
      %v1986 = vadd.f32 0.0, %v1985
      %1987 = vmatprep.mubr.bf16.mxu0 0
      %1988 = vmatmul.mubr.bf16.gmra.mrb[0].mxu0 %v1572
      %v1989 = vpop.f32.mrb[0].mxu0
      %v1990 = vadd.f32 0.0, %v1989
      %v1991 = vpop.f32.mrb[0].mxu0
      %v1992 = vadd.f32 0.0, %v1991
      %v1993 = vpop.f32.mrb[0].mxu0
      %v1994 = vadd.f32 0.0, %v1993
      %v1995 = vpop.f32.mrb[0].mxu0
      %v1996 = vadd.f32 0.0, %v1995
      %1997 = vmatprep.mubr.bf16.mxu0 0
      %1998 = vmatmul.mubr.bf16.gmra.mrb[0].mxu0 %v1575
      %v1999 = vpop.f32.mrb[0].mxu0
      %v2000 = vadd.f32 0.0, %v1999
      %v2001 = vpop.f32.mrb[0].mxu0
      %v2002 = vadd.f32 0.0, %v2001
      %v2003 = vpop.f32.mrb[0].mxu0
      %v2004 = vadd.f32 0.0, %v2003
      %v2005 = vpop.f32.mrb[0].mxu0
      %v2006 = vadd.f32 0.0, %v2005
      %2007 = vmatprep.mubr.bf16.mxu0 0
      %2008 = vmatmul.mubr.bf16.gmra.mrb[0].mxu0 %v1578
      %v2009 = vpop.f32.mrb[0].mxu0
      %v2010 = vadd.f32 0.0, %v2009
      %v2011 = vpop.f32.mrb[0].mxu0
      %v2012 = vadd.f32 0.0, %v2011
      %v2013 = vpop.f32.mrb[0].mxu0
      %v2014 = vadd.f32 0.0, %v2013
      %v2015 = vpop.f32.mrb[0].mxu0
      %v2016 = vadd.f32 0.0, %v2015
      %2017 = vmatprep.mubr.bf16.mxu0 0
      %2018 = vmatmul.mubr.bf16.gmra.mrb[0].mxu0 %v1581
      %v2019 = vpop.f32.mrb[0].mxu0
      %v2020 = vadd.f32 0.0, %v2019
      %v2021 = vpop.f32.mrb[0].mxu0
      %v2022 = vadd.f32 0.0, %v2021
      %v2023 = vpop.f32.mrb[0].mxu0
      %v2024 = vadd.f32 0.0, %v2023
      %v2025 = vpop.f32.mrb[0].mxu0
      %v2026 = vadd.f32 0.0, %v2025
      %2027 = vmatprep.mubr.bf16.mxu0 0
      %2028 = vmatmul.mubr.bf16.gmra.mrb[0].mxu0 %v1584
      %v2029 = vpop.f32.mrb[0].mxu0
      %v2030 = vadd.f32 0.0, %v2029
      %v2031 = vpop.f32.mrb[0].mxu0
      %v2032 = vadd.f32 0.0, %v2031
      %v2033 = vpop.f32.mrb[0].mxu0
      %v2034 = vadd.f32 0.0, %v2033
      %v2035 = vpop.f32.mrb[0].mxu0
      %v2036 = vadd.f32 0.0, %v2035
      %2037 = vdwg.mxu0
      %2038 = vmatprep.subr.bf16.mxu0 %v1466
      %2039 = vmatpush1.bf16.msra.mxu0 %v1465
      %2040 = vmatprep.subr.bf16.mxu0 %v1482
      %2041 = vmatpush1.bf16.msra.mxu0 %v1481
      %2042 = vmatprep.subr.bf16.mxu0 %v1498
      %2043 = vmatpush1.bf16.msra.mxu0 %v1497
      %2044 = vmatprep.subr.bf16.mxu0 %v1514
      %2045 = vmatpush1.bf16.msra.mxu0 %v1513
      %2046 = vmatprep.subr.bf16.mxu0 0
      %2047 = vmatpush1.bf16.msra.mxu0 0
      %2048 = vmatprep.subr.bf16.mxu0 0
      %2049 = vmatpush1.bf16.msra.mxu0 0
      %2050 = vmatprep.subr.bf16.mxu0 0
      %2051 = vmatpush1.bf16.msra.mxu0 0
      %2052 = vmatprep.subr.bf16.mxu0 0
      %2053 = vmatpush1.bf16.msra.mxu0 0
      %2054 = vmatprep.subr.bf16.mxu0 0
      %2055 = vmatpush1.bf16.msra.mxu0 0
      %2056 = vmatprep.subr.bf16.mxu0 0
      %2057 = vmatpush1.bf16.msra.mxu0 0
      %2058 = vmatprep.subr.bf16.mxu0 0
      %2059 = vmatpush1.bf16.msra.mxu0 0
      %2060 = vmatprep.subr.bf16.mxu0 0
      %2061 = vmatpush1.bf16.msra.mxu0 0
      %2062 = vmatprep.subr.bf16.mxu0 0
      %2063 = vmatpush1.bf16.msra.mxu0 0
      %2064 = vmatprep.subr.bf16.mxu0 0
      %2065 = vmatpush1.bf16.msra.mxu0 0
      %2066 = vmatprep.subr.bf16.mxu0 0
      %2067 = vmatpush1.bf16.msra.mxu0 0
      %2068 = vmatprep.subr.bf16.mxu0 0
      %2069 = vmatpush1.bf16.msra.mxu0 0
      %2070 = vmatprep.mubr.bf16.mxu0 0
      %2071 = vmatmul.mubr.bf16.gmra.mrb[0].mxu0 %v1563
      %v2072 = vpop.f32.mrb[0].mxu0
      %v2073 = vadd.f32 0.0, %v2072
      %v2074 = vpop.f32.mrb[0].mxu0
      %v2075 = vadd.f32 0.0, %v2074
      %v2076 = vpop.f32.mrb[0].mxu0
      %v2077 = vadd.f32 0.0, %v2076
      %v2078 = vpop.f32.mrb[0].mxu0
      %v2079 = vadd.f32 0.0, %v2078
      %2080 = vmatprep.mubr.bf16.mxu0 0
      %2081 = vmatmul.mubr.bf16.gmra.mrb[0].mxu0 %v1566
      %v2082 = vpop.f32.mrb[0].mxu0
      %v2083 = vadd.f32 0.0, %v2082
      %v2084 = vpop.f32.mrb[0].mxu0
      %v2085 = vadd.f32 0.0, %v2084
      %v2086 = vpop.f32.mrb[0].mxu0
      %v2087 = vadd.f32 0.0, %v2086
      %v2088 = vpop.f32.mrb[0].mxu0
      %v2089 = vadd.f32 0.0, %v2088
      %2090 = vmatprep.mubr.bf16.mxu0 0
      %2091 = vmatmul.mubr.bf16.gmra.mrb[0].mxu0 %v1569
      %v2092 = vpop.f32.mrb[0].mxu0
      %v2093 = vadd.f32 0.0, %v2092
      %v2094 = vpop.f32.mrb[0].mxu0
      %v2095 = vadd.f32 0.0, %v2094
      %v2096 = vpop.f32.mrb[0].mxu0
      %v2097 = vadd.f32 0.0, %v2096
      %v2098 = vpop.f32.mrb[0].mxu0
      %v2099 = vadd.f32 0.0, %v2098
      %2100 = vmatprep.mubr.bf16.mxu0 0
      %2101 = vmatmul.mubr.bf16.gmra.mrb[0].mxu0 %v1572
      %v2102 = vpop.f32.mrb[0].mxu0
      %v2103 = vadd.f32 0.0, %v2102
      %v2104 = vpop.f32.mrb[0].mxu0
      %v2105 = vadd.f32 0.0, %v2104
      %v2106 = vpop.f32.mrb[0].mxu0
      %v2107 = vadd.f32 0.0, %v2106
      %v2108 = vpop.f32.mrb[0].mxu0
      %v2109 = vadd.f32 0.0, %v2108
      %2110 = vmatprep.mubr.bf16.mxu0 0
      %2111 = vmatmul.mubr.bf16.gmra.mrb[0].mxu0 %v1575
      %v2112 = vpop.f32.mrb[0].mxu0
      %v2113 = vadd.f32 0.0, %v2112
      %v2114 = vpop.f32.mrb[0].mxu0
      %v2115 = vadd.f32 0.0, %v2114
      %v2116 = vpop.f32.mrb[0].mxu0
      %v2117 = vadd.f32 0.0, %v2116
      %v2118 = vpop.f32.mrb[0].mxu0
      %v2119 = vadd.f32 0.0, %v2118
      %2120 = vmatprep.mubr.bf16.mxu0 0
      %2121 = vmatmul.mubr.bf16.gmra.mrb[0].mxu0 %v1578
      %v2122 = vpop.f32.mrb[0].mxu0
      %v2123 = vadd.f32 0.0, %v2122
      %v2124 = vpop.f32.mrb[0].mxu0
      %v2125 = vadd.f32 0.0, %v2124
      %v2126 = vpop.f32.mrb[0].mxu0
      %v2127 = vadd.f32 0.0, %v2126
      %v2128 = vpop.f32.mrb[0].mxu0
      %v2129 = vadd.f32 0.0, %v2128
      %2130 = vmatprep.mubr.bf16.mxu0 0
      %2131 = vmatmul.mubr.bf16.gmra.mrb[0].mxu0 %v1581
      %v2132 = vpop.f32.mrb[0].mxu0
      %v2133 = vadd.f32 0.0, %v2132
      %v2134 = vpop.f32.mrb[0].mxu0
      %v2135 = vadd.f32 0.0, %v2134
      %v2136 = vpop.f32.mrb[0].mxu0
      %v2137 = vadd.f32 0.0, %v2136
      %v2138 = vpop.f32.mrb[0].mxu0
      %v2139 = vadd.f32 0.0, %v2138
      %2140 = vmatprep.mubr.bf16.mxu0 0
      %2141 = vmatmul.mubr.bf16.gmra.mrb[0].mxu0 %v1584
      %v2142 = vpop.f32.mrb[0].mxu0
      %v2143 = vadd.f32 0.0, %v2142
      %v2144 = vpop.f32.mrb[0].mxu0
      %v2145 = vadd.f32 0.0, %v2144
      %v2146 = vpop.f32.mrb[0].mxu0
      %v2147 = vadd.f32 0.0, %v2146
      %v2148 = vpop.f32.mrb[0].mxu0
      %v2149 = vadd.f32 0.0, %v2148
      %2150 = vdwg.mxu0
      %2151 = vmatprep.subr.bf16.mxu0 %v1468
      %2152 = vmatpush1.bf16.msra.mxu0 %v1467
      %2153 = vmatprep.subr.bf16.mxu0 %v1484
      %2154 = vmatpush1.bf16.msra.mxu0 %v1483
      %2155 = vmatprep.subr.bf16.mxu0 %v1500
      %2156 = vmatpush1.bf16.msra.mxu0 %v1499
      %2157 = vmatprep.subr.bf16.mxu0 %v1516
      %2158 = vmatpush1.bf16.msra.mxu0 %v1515
      %2159 = vmatprep.subr.bf16.mxu0 0
      %2160 = vmatpush1.bf16.msra.mxu0 0
      %2161 = vmatprep.subr.bf16.mxu0 0
      %2162 = vmatpush1.bf16.msra.mxu0 0
      %2163 = vmatprep.subr.bf16.mxu0 0
      %2164 = vmatpush1.bf16.msra.mxu0 0
      %2165 = vmatprep.subr.bf16.mxu0 0
      %2166 = vmatpush1.bf16.msra.mxu0 0
      %2167 = vmatprep.subr.bf16.mxu0 0
      %2168 = vmatpush1.bf16.msra.mxu0 0
      %2169 = vmatprep.subr.bf16.mxu0 0
      %2170 = vmatpush1.bf16.msra.mxu0 0
      %2171 = vmatprep.subr.bf16.mxu0 0
      %2172 = vmatpush1.bf16.msra.mxu0 0
      %2173 = vmatprep.subr.bf16.mxu0 0
      %2174 = vmatpush1.bf16.msra.mxu0 0
      %2175 = vmatprep.subr.bf16.mxu0 0
      %2176 = vmatpush1.bf16.msra.mxu0 0
      %2177 = vmatprep.subr.bf16.mxu0 0
      %2178 = vmatpush1.bf16.msra.mxu0 0
      %2179 = vmatprep.subr.bf16.mxu0 0
      %2180 = vmatpush1.bf16.msra.mxu0 0
      %2181 = vmatprep.subr.bf16.mxu0 0
      %2182 = vmatpush1.bf16.msra.mxu0 0
      %2183 = vmatprep.mubr.bf16.mxu0 0
      %2184 = vmatmul.mubr.bf16.gmra.mrb[0].mxu0 %v1563
      %v2185 = vpop.f32.mrb[0].mxu0
      %v2186 = vadd.f32 0.0, %v2185
      %v2187 = vpop.f32.mrb[0].mxu0
      %v2188 = vadd.f32 0.0, %v2187
      %v2189 = vpop.f32.mrb[0].mxu0
      %v2190 = vadd.f32 0.0, %v2189
      %v2191 = vpop.f32.mrb[0].mxu0
      %v2192 = vadd.f32 0.0, %v2191
      %2193 = vmatprep.mubr.bf16.mxu0 0
      %2194 = vmatmul.mubr.bf16.gmra.mrb[0].mxu0 %v1566
      %v2195 = vpop.f32.mrb[0].mxu0
      %v2196 = vadd.f32 0.0, %v2195
      %v2197 = vpop.f32.mrb[0].mxu0
      %v2198 = vadd.f32 0.0, %v2197
      %v2199 = vpop.f32.mrb[0].mxu0
      %v2200 = vadd.f32 0.0, %v2199
      %v2201 = vpop.f32.mrb[0].mxu0
      %v2202 = vadd.f32 0.0, %v2201
      %2203 = vmatprep.mubr.bf16.mxu0 0
      %2204 = vmatmul.mubr.bf16.gmra.mrb[0].mxu0 %v1569
      %v2205 = vpop.f32.mrb[0].mxu0
      %v2206 = vadd.f32 0.0, %v2205
      %v2207 = vpop.f32.mrb[0].mxu0
      %v2208 = vadd.f32 0.0, %v2207
      %v2209 = vpop.f32.mrb[0].mxu0
      %v2210 = vadd.f32 0.0, %v2209
      %v2211 = vpop.f32.mrb[0].mxu0
      %v2212 = vadd.f32 0.0, %v2211
      %2213 = vmatprep.mubr.bf16.mxu0 0
      %2214 = vmatmul.mubr.bf16.gmra.mrb[0].mxu0 %v1572
      %v2215 = vpop.f32.mrb[0].mxu0
      %v2216 = vadd.f32 0.0, %v2215
      %v2217 = vpop.f32.mrb[0].mxu0
      %v2218 = vadd.f32 0.0, %v2217
      %v2219 = vpop.f32.mrb[0].mxu0
      %v2220 = vadd.f32 0.0, %v2219
      %v2221 = vpop.f32.mrb[0].mxu0
      %v2222 = vadd.f32 0.0, %v2221
      %2223 = vmatprep.mubr.bf16.mxu0 0
      %2224 = vmatmul.mubr.bf16.gmra.mrb[0].mxu0 %v1575
      %v2225 = vpop.f32.mrb[0].mxu0
      %v2226 = vadd.f32 0.0, %v2225
      %v2227 = vpop.f32.mrb[0].mxu0
      %v2228 = vadd.f32 0.0, %v2227
      %v2229 = vpop.f32.mrb[0].mxu0
      %v2230 = vadd.f32 0.0, %v2229
      %v2231 = vpop.f32.mrb[0].mxu0
      %v2232 = vadd.f32 0.0, %v2231
      %2233 = vmatprep.mubr.bf16.mxu0 0
      %2234 = vmatmul.mubr.bf16.gmra.mrb[0].mxu0 %v1578
      %v2235 = vpop.f32.mrb[0].mxu0
      %v2236 = vadd.f32 0.0, %v2235
      %v2237 = vpop.f32.mrb[0].mxu0
      %v2238 = vadd.f32 0.0, %v2237
      %v2239 = vpop.f32.mrb[0].mxu0
      %v2240 = vadd.f32 0.0, %v2239
      %v2241 = vpop.f32.mrb[0].mxu0
      %v2242 = vadd.f32 0.0, %v2241
      %2243 = vmatprep.mubr.bf16.mxu0 0
      %2244 = vmatmul.mubr.bf16.gmra.mrb[0].mxu0 %v1581
      %v2245 = vpop.f32.mrb[0].mxu0
      %v2246 = vadd.f32 0.0, %v2245
      %v2247 = vpop.f32.mrb[0].mxu0
      %v2248 = vadd.f32 0.0, %v2247
      %v2249 = vpop.f32.mrb[0].mxu0
      %v2250 = vadd.f32 0.0, %v2249
      %v2251 = vpop.f32.mrb[0].mxu0
      %v2252 = vadd.f32 0.0, %v2251
      %2253 = vmatprep.mubr.bf16.mxu0 0
      %2254 = vmatmul.mubr.bf16.gmra.mrb[0].mxu0 %v1584
      %v2255 = vpop.f32.mrb[0].mxu0
      %v2256 = vadd.f32 0.0, %v2255
      %v2257 = vpop.f32.mrb[0].mxu0
      %v2258 = vadd.f32 0.0, %v2257
      %v2259 = vpop.f32.mrb[0].mxu0
      %v2260 = vadd.f32 0.0, %v2259
      %v2261 = vpop.f32.mrb[0].mxu0
      %v2262 = vadd.f32 0.0, %v2261
      %2263 = vdwg.mxu0
      %2264 = vmatprep.subr.bf16.mxu0 %v1470
      %2265 = vmatpush1.bf16.msra.mxu0 %v1469
      %2266 = vmatprep.subr.bf16.mxu0 %v1486
      %2267 = vmatpush1.bf16.msra.mxu0 %v1485
      %2268 = vmatprep.subr.bf16.mxu0 %v1502
      %2269 = vmatpush1.bf16.msra.mxu0 %v1501
      %2270 = vmatprep.subr.bf16.mxu0 %v1518
      %2271 = vmatpush1.bf16.msra.mxu0 %v1517
      %2272 = vmatprep.subr.bf16.mxu0 0
      %2273 = vmatpush1.bf16.msra.mxu0 0
      %2274 = vmatprep.subr.bf16.mxu0 0
      %2275 = vmatpush1.bf16.msra.mxu0 0
      %2276 = vmatprep.subr.bf16.mxu0 0
      %2277 = vmatpush1.bf16.msra.mxu0 0
      %2278 = vmatprep.subr.bf16.mxu0 0
      %2279 = vmatpush1.bf16.msra.mxu0 0
      %2280 = vmatprep.subr.bf16.mxu0 0
      %2281 = vmatpush1.bf16.msra.mxu0 0
      %2282 = vmatprep.subr.bf16.mxu0 0
      %2283 = vmatpush1.bf16.msra.mxu0 0
      %2284 = vmatprep.subr.bf16.mxu0 0
      %2285 = vmatpush1.bf16.msra.mxu0 0
      %2286 = vmatprep.subr.bf16.mxu0 0
      %2287 = vmatpush1.bf16.msra.mxu0 0
      %2288 = vmatprep.subr.bf16.mxu0 0
      %2289 = vmatpush1.bf16.msra.mxu0 0
      %2290 = vmatprep.subr.bf16.mxu0 0
      %2291 = vmatpush1.bf16.msra.mxu0 0
      %2292 = vmatprep.subr.bf16.mxu0 0
      %2293 = vmatpush1.bf16.msra.mxu0 0
      %2294 = vmatprep.subr.bf16.mxu0 0
      %2295 = vmatpush1.bf16.msra.mxu0 0
      %2296 = vmatprep.mubr.bf16.mxu0 0
      %2297 = vmatmul.mubr.bf16.gmra.mrb[0].mxu0 %v1563
      %v2298 = vpop.f32.mrb[0].mxu0
      %v2299 = vadd.f32 0.0, %v2298
      %v2300 = vpop.f32.mrb[0].mxu0
      %v2301 = vadd.f32 0.0, %v2300
      %v2302 = vpop.f32.mrb[0].mxu0
      %v2303 = vadd.f32 0.0, %v2302
      %v2304 = vpop.f32.mrb[0].mxu0
      %v2305 = vadd.f32 0.0, %v2304
      %2306 = vmatprep.mubr.bf16.mxu0 0
      %2307 = vmatmul.mubr.bf16.gmra.mrb[0].mxu0 %v1566
      %v2308 = vpop.f32.mrb[0].mxu0
      %v2309 = vadd.f32 0.0, %v2308
      %v2310 = vpop.f32.mrb[0].mxu0
      %v2311 = vadd.f32 0.0, %v2310
      %v2312 = vpop.f32.mrb[0].mxu0
      %v2313 = vadd.f32 0.0, %v2312
      %v2314 = vpop.f32.mrb[0].mxu0
      %v2315 = vadd.f32 0.0, %v2314
      %2316 = vmatprep.mubr.bf16.mxu0 0
      %2317 = vmatmul.mubr.bf16.gmra.mrb[0].mxu0 %v1569
      %v2318 = vpop.f32.mrb[0].mxu0
      %v2319 = vadd.f32 0.0, %v2318
      %v2320 = vpop.f32.mrb[0].mxu0
      %v2321 = vadd.f32 0.0, %v2320
      %v2322 = vpop.f32.mrb[0].mxu0
      %v2323 = vadd.f32 0.0, %v2322
      %v2324 = vpop.f32.mrb[0].mxu0
      %v2325 = vadd.f32 0.0, %v2324
      %2326 = vmatprep.mubr.bf16.mxu0 0
      %2327 = vmatmul.mubr.bf16.gmra.mrb[0].mxu0 %v1572
      %v2328 = vpop.f32.mrb[0].mxu0
      %v2329 = vadd.f32 0.0, %v2328
      %v2330 = vpop.f32.mrb[0].mxu0
      %v2331 = vadd.f32 0.0, %v2330
      %v2332 = vpop.f32.mrb[0].mxu0
      %v2333 = vadd.f32 0.0, %v2332
      %v2334 = vpop.f32.mrb[0].mxu0
      %v2335 = vadd.f32 0.0, %v2334
      %2336 = vmatprep.mubr.bf16.mxu0 0
      %2337 = vmatmul.mubr.bf16.gmra.mrb[0].mxu0 %v1575
      %v2338 = vpop.f32.mrb[0].mxu0
      %v2339 = vadd.f32 0.0, %v2338
      %v2340 = vpop.f32.mrb[0].mxu0
      %v2341 = vadd.f32 0.0, %v2340
      %v2342 = vpop.f32.mrb[0].mxu0
      %v2343 = vadd.f32 0.0, %v2342
      %v2344 = vpop.f32.mrb[0].mxu0
      %v2345 = vadd.f32 0.0, %v2344
      %2346 = vmatprep.mubr.bf16.mxu0 0
      %2347 = vmatmul.mubr.bf16.gmra.mrb[0].mxu0 %v1578
      %v2348 = vpop.f32.mrb[0].mxu0
      %v2349 = vadd.f32 0.0, %v2348
      %v2350 = vpop.f32.mrb[0].mxu0
      %v2351 = vadd.f32 0.0, %v2350
      %v2352 = vpop.f32.mrb[0].mxu0
      %v2353 = vadd.f32 0.0, %v2352
      %v2354 = vpop.f32.mrb[0].mxu0
      %v2355 = vadd.f32 0.0, %v2354
      %2356 = vmatprep.mubr.bf16.mxu0 0
      %2357 = vmatmul.mubr.bf16.gmra.mrb[0].mxu0 %v1581
      %v2358 = vpop.f32.mrb[0].mxu0
      %v2359 = vadd.f32 0.0, %v2358
      %v2360 = vpop.f32.mrb[0].mxu0
      %v2361 = vadd.f32 0.0, %v2360
      %v2362 = vpop.f32.mrb[0].mxu0
      %v2363 = vadd.f32 0.0, %v2362
      %v2364 = vpop.f32.mrb[0].mxu0
      %v2365 = vadd.f32 0.0, %v2364
      %2366 = vmatprep.mubr.bf16.mxu0 0
      %2367 = vmatmul.mubr.bf16.gmra.mrb[0].mxu0 %v1584
      %v2368 = vpop.f32.mrb[0].mxu0
      %v2369 = vadd.f32 0.0, %v2368
      %v2370 = vpop.f32.mrb[0].mxu0
      %v2371 = vadd.f32 0.0, %v2370
      %v2372 = vpop.f32.mrb[0].mxu0
      %v2373 = vadd.f32 0.0, %v2372
      %v2374 = vpop.f32.mrb[0].mxu0
      %v2375 = vadd.f32 0.0, %v2374
      %2376 = vdwg.mxu0
      %2377 = vmatprep.subr.bf16.mxu0 %v1472
      %2378 = vmatpush1.bf16.msra.mxu0 %v1471
      %2379 = vmatprep.subr.bf16.mxu0 %v1488
      %2380 = vmatpush1.bf16.msra.mxu0 %v1487
      %2381 = vmatprep.subr.bf16.mxu0 %v1504
      %2382 = vmatpush1.bf16.msra.mxu0 %v1503
      %2383 = vmatprep.subr.bf16.mxu0 %v1520
      %2384 = vmatpush1.bf16.msra.mxu0 %v1519
      %2385 = vmatprep.subr.bf16.mxu0 0
      %2386 = vmatpush1.bf16.msra.mxu0 0
      %2387 = vmatprep.subr.bf16.mxu0 0
      %2388 = vmatpush1.bf16.msra.mxu0 0
      %2389 = vmatprep.subr.bf16.mxu0 0
      %2390 = vmatpush1.bf16.msra.mxu0 0
      %2391 = vmatprep.subr.bf16.mxu0 0
      %2392 = vmatpush1.bf16.msra.mxu0 0
      %2393 = vmatprep.subr.bf16.mxu0 0
      %2394 = vmatpush1.bf16.msra.mxu0 0
      %2395 = vmatprep.subr.bf16.mxu0 0
      %2396 = vmatpush1.bf16.msra.mxu0 0
      %2397 = vmatprep.subr.bf16.mxu0 0
      %2398 = vmatpush1.bf16.msra.mxu0 0
      %2399 = vmatprep.subr.bf16.mxu0 0
      %2400 = vmatpush1.bf16.msra.mxu0 0
      %2401 = vmatprep.subr.bf16.mxu0 0
      %2402 = vmatpush1.bf16.msra.mxu0 0
      %2403 = vmatprep.subr.bf16.mxu0 0
      %2404 = vmatpush1.bf16.msra.mxu0 0
      %2405 = vmatprep.subr.bf16.mxu0 0
      %2406 = vmatpush1.bf16.msra.mxu0 0
      %2407 = vmatprep.subr.bf16.mxu0 0
      %2408 = vmatpush1.bf16.msra.mxu0 0
      %2409 = vmatprep.mubr.bf16.mxu0 0
      %2410 = vmatmul.mubr.bf16.gmra.mrb[0].mxu0 %v1563
      %v2411 = vpop.f32.mrb[0].mxu0
      %v2412 = vadd.f32 0.0, %v2411
      %v2413 = vpop.f32.mrb[0].mxu0
      %v2414 = vadd.f32 0.0, %v2413
      %v2415 = vpop.f32.mrb[0].mxu0
      %v2416 = vadd.f32 0.0, %v2415
      %v2417 = vpop.f32.mrb[0].mxu0
      %v2418 = vadd.f32 0.0, %v2417
      %2419 = vmatprep.mubr.bf16.mxu0 0
      %2420 = vmatmul.mubr.bf16.gmra.mrb[0].mxu0 %v1566
      %v2421 = vpop.f32.mrb[0].mxu0
      %v2422 = vadd.f32 0.0, %v2421
      %v2423 = vpop.f32.mrb[0].mxu0
      %v2424 = vadd.f32 0.0, %v2423
      %v2425 = vpop.f32.mrb[0].mxu0
      %v2426 = vadd.f32 0.0, %v2425
      %v2427 = vpop.f32.mrb[0].mxu0
      %v2428 = vadd.f32 0.0, %v2427
      %2429 = vmatprep.mubr.bf16.mxu0 0
      %2430 = vmatmul.mubr.bf16.gmra.mrb[0].mxu0 %v1569
      %v2431 = vpop.f32.mrb[0].mxu0
      %v2432 = vadd.f32 0.0, %v2431
      %v2433 = vpop.f32.mrb[0].mxu0
      %v2434 = vadd.f32 0.0, %v2433
      %v2435 = vpop.f32.mrb[0].mxu0
      %v2436 = vadd.f32 0.0, %v2435
      %v2437 = vpop.f32.mrb[0].mxu0
      %v2438 = vadd.f32 0.0, %v2437
      %2439 = vmatprep.mubr.bf16.mxu0 0
      %2440 = vmatmul.mubr.bf16.gmra.mrb[0].mxu0 %v1572
      %v2441 = vpop.f32.mrb[0].mxu0
      %v2442 = vadd.f32 0.0, %v2441
      %v2443 = vpop.f32.mrb[0].mxu0
      %v2444 = vadd.f32 0.0, %v2443
      %v2445 = vpop.f32.mrb[0].mxu0
      %v2446 = vadd.f32 0.0, %v2445
      %v2447 = vpop.f32.mrb[0].mxu0
      %v2448 = vadd.f32 0.0, %v2447
      %2449 = vmatprep.mubr.bf16.mxu0 0
      %2450 = vmatmul.mubr.bf16.gmra.mrb[0].mxu0 %v1575
      %v2451 = vpop.f32.mrb[0].mxu0
      %v2452 = vadd.f32 0.0, %v2451
      %v2453 = vpop.f32.mrb[0].mxu0
      %v2454 = vadd.f32 0.0, %v2453
      %v2455 = vpop.f32.mrb[0].mxu0
      %v2456 = vadd.f32 0.0, %v2455
      %v2457 = vpop.f32.mrb[0].mxu0
      %v2458 = vadd.f32 0.0, %v2457
      %2459 = vmatprep.mubr.bf16.mxu0 0
      %2460 = vmatmul.mubr.bf16.gmra.mrb[0].mxu0 %v1578
      %v2461 = vpop.f32.mrb[0].mxu0
      %v2462 = vadd.f32 0.0, %v2461
      %v2463 = vpop.f32.mrb[0].mxu0
      %v2464 = vadd.f32 0.0, %v2463
      %v2465 = vpop.f32.mrb[0].mxu0
      %v2466 = vadd.f32 0.0, %v2465
      %v2467 = vpop.f32.mrb[0].mxu0
      %v2468 = vadd.f32 0.0, %v2467
      %2469 = vmatprep.mubr.bf16.mxu0 0
      %2470 = vmatmul.mubr.bf16.gmra.mrb[0].mxu0 %v1581
      %v2471 = vpop.f32.mrb[0].mxu0
      %v2472 = vadd.f32 0.0, %v2471
      %v2473 = vpop.f32.mrb[0].mxu0
      %v2474 = vadd.f32 0.0, %v2473
      %v2475 = vpop.f32.mrb[0].mxu0
      %v2476 = vadd.f32 0.0, %v2475
      %v2477 = vpop.f32.mrb[0].mxu0
      %v2478 = vadd.f32 0.0, %v2477
      %2479 = vmatprep.mubr.bf16.mxu0 0
      %2480 = vmatmul.mubr.bf16.gmra.mrb[0].mxu0 %v1584
      %v2481 = vpop.f32.mrb[0].mxu0
      %v2482 = vadd.f32 0.0, %v2481
      %v2483 = vpop.f32.mrb[0].mxu0
      %v2484 = vadd.f32 0.0, %v2483
      %v2485 = vpop.f32.mrb[0].mxu0
      %v2486 = vadd.f32 0.0, %v2485
      %v2487 = vpop.f32.mrb[0].mxu0
      %v2488 = vadd.f32 0.0, %v2487
      %2489 = vdwg.mxu0
      %v2490 = vadd.f32 %v1621, %v1623
      %v2491 = vadd.f32 %v2490, %v1734
      %v2492 = vadd.f32 %v2491, %v1736
      %v2493 = vadd.f32 %v2492, %v1847
      %v2494 = vadd.f32 %v2493, %v1849
      %v2495 = vadd.f32 %v2494, %v1960
      %v2496 = vadd.f32 %v2495, %v1962
      %v2497 = vadd.f32 %v2496, %v2073
      %v2498 = vadd.f32 %v2497, %v2075
      %v2499 = vadd.f32 %v2498, %v2186
      %v2500 = vadd.f32 %v2499, %v2188
      %v2501 = vadd.f32 %v2500, %v2299
      %v2502 = vadd.f32 %v2501, %v2301
      %v2503 = vadd.f32 %v2502, %v2412
      %v2504 = vadd.f32 %v2503, %v2414
      %2505 = vadd.xlane.f32.xlu0 %v2504
      %v2506 = vpop.xlane.xlu0 %2505
      %v2507 = vadd.f32 %v1625, %v1627
      %v2508 = vadd.f32 %v2507, %v1738
      %v2509 = vadd.f32 %v2508, %v1740
      %v2510 = vadd.f32 %v2509, %v1851
      %v2511 = vadd.f32 %v2510, %v1853
      %v2512 = vadd.f32 %v2511, %v1964
      %v2513 = vadd.f32 %v2512, %v1966
      %v2514 = vadd.f32 %v2513, %v2077
      %v2515 = vadd.f32 %v2514, %v2079
      %v2516 = vadd.f32 %v2515, %v2190
      %v2517 = vadd.f32 %v2516, %v2192
      %v2518 = vadd.f32 %v2517, %v2303
      %v2519 = vadd.f32 %v2518, %v2305
      %v2520 = vadd.f32 %v2519, %v2416
      %v2521 = vadd.f32 %v2520, %v2418
      %2522 = vadd.xlane.f32.xlu0 %v2521
      %v2523 = vpop.xlane.xlu0 %2522
      %v2524 = vadd.f32 %v1631, %v1633
      %v2525 = vadd.f32 %v2524, %v1744
      %v2526 = vadd.f32 %v2525, %v1746
      %v2527 = vadd.f32 %v2526, %v1857
      %v2528 = vadd.f32 %v2527, %v1859
      %v2529 = vadd.f32 %v2528, %v1970
      %v2530 = vadd.f32 %v2529, %v1972
      %v2531 = vadd.f32 %v2530, %v2083
      %v2532 = vadd.f32 %v2531, %v2085
      %v2533 = vadd.f32 %v2532, %v2196
      %v2534 = vadd.f32 %v2533, %v2198
      %v2535 = vadd.f32 %v2534, %v2309
      %v2536 = vadd.f32 %v2535, %v2311
      %v2537 = vadd.f32 %v2536, %v2422
      %v2538 = vadd.f32 %v2537, %v2424
      %2539 = vadd.xlane.f32.xlu0 %v2538
      %v2540 = vpop.xlane.xlu0 %2539
      %v2541 = vadd.f32 %v1635, %v1637
      %v2542 = vadd.f32 %v2541, %v1748
      %v2543 = vadd.f32 %v2542, %v1750
      %v2544 = vadd.f32 %v2543, %v1861
      %v2545 = vadd.f32 %v2544, %v1863
      %v2546 = vadd.f32 %v2545, %v1974
      %v2547 = vadd.f32 %v2546, %v1976
      %v2548 = vadd.f32 %v2547, %v2087
      %v2549 = vadd.f32 %v2548, %v2089
      %v2550 = vadd.f32 %v2549, %v2200
      %v2551 = vadd.f32 %v2550, %v2202
      %v2552 = vadd.f32 %v2551, %v2313
      %v2553 = vadd.f32 %v2552, %v2315
      %v2554 = vadd.f32 %v2553, %v2426
      %v2555 = vadd.f32 %v2554, %v2428
      %2556 = vadd.xlane.f32.xlu0 %v2555
      %v2557 = vpop.xlane.xlu0 %2556
      %v2558 = vadd.f32 %v1641, %v1643
      %v2559 = vadd.f32 %v2558, %v1754
      %v2560 = vadd.f32 %v2559, %v1756
      %v2561 = vadd.f32 %v2560, %v1867
      %v2562 = vadd.f32 %v2561, %v1869
      %v2563 = vadd.f32 %v2562, %v1980
      %v2564 = vadd.f32 %v2563, %v1982
      %v2565 = vadd.f32 %v2564, %v2093
      %v2566 = vadd.f32 %v2565, %v2095
      %v2567 = vadd.f32 %v2566, %v2206
      %v2568 = vadd.f32 %v2567, %v2208
      %v2569 = vadd.f32 %v2568, %v2319
      %v2570 = vadd.f32 %v2569, %v2321
      %v2571 = vadd.f32 %v2570, %v2432
      %v2572 = vadd.f32 %v2571, %v2434
      %2573 = vadd.xlane.f32.xlu0 %v2572
      %v2574 = vpop.xlane.xlu0 %2573
      %v2575 = vadd.f32 %v1645, %v1647
      %v2576 = vadd.f32 %v2575, %v1758
      %v2577 = vadd.f32 %v2576, %v1760
      %v2578 = vadd.f32 %v2577, %v1871
      %v2579 = vadd.f32 %v2578, %v1873
      %v2580 = vadd.f32 %v2579, %v1984
      %v2581 = vadd.f32 %v2580, %v1986
      %v2582 = vadd.f32 %v2581, %v2097
      %v2583 = vadd.f32 %v2582, %v2099
      %v2584 = vadd.f32 %v2583, %v2210
      %v2585 = vadd.f32 %v2584, %v2212
      %v2586 = vadd.f32 %v2585, %v2323
      %v2587 = vadd.f32 %v2586, %v2325
      %v2588 = vadd.f32 %v2587, %v2436
      %v2589 = vadd.f32 %v2588, %v2438
      %2590 = vadd.xlane.f32.xlu0 %v2589
      %v2591 = vpop.xlane.xlu0 %2590
      %v2592 = vadd.f32 %v1651, %v1653
      %v2593 = vadd.f32 %v2592, %v1764
      %v2594 = vadd.f32 %v2593, %v1766
      %v2595 = vadd.f32 %v2594, %v1877
      %v2596 = vadd.f32 %v2595, %v1879
      %v2597 = vadd.f32 %v2596, %v1990
      %v2598 = vadd.f32 %v2597, %v1992
      %v2599 = vadd.f32 %v2598, %v2103
      %v2600 = vadd.f32 %v2599, %v2105
      %v2601 = vadd.f32 %v2600, %v2216
      %v2602 = vadd.f32 %v2601, %v2218
      %v2603 = vadd.f32 %v2602, %v2329
      %v2604 = vadd.f32 %v2603, %v2331
      %v2605 = vadd.f32 %v2604, %v2442
      %v2606 = vadd.f32 %v2605, %v2444
      %2607 = vadd.xlane.f32.xlu0 %v2606
      %v2608 = vpop.xlane.xlu0 %2607
      %v2609 = vadd.f32 %v1655, %v1657
      %v2610 = vadd.f32 %v2609, %v1768
      %v2611 = vadd.f32 %v2610, %v1770
      %v2612 = vadd.f32 %v2611, %v1881
      %v2613 = vadd.f32 %v2612, %v1883
      %v2614 = vadd.f32 %v2613, %v1994
      %v2615 = vadd.f32 %v2614, %v1996
      %v2616 = vadd.f32 %v2615, %v2107
      %v2617 = vadd.f32 %v2616, %v2109
      %v2618 = vadd.f32 %v2617, %v2220
      %v2619 = vadd.f32 %v2618, %v2222
      %v2620 = vadd.f32 %v2619, %v2333
      %v2621 = vadd.f32 %v2620, %v2335
      %v2622 = vadd.f32 %v2621, %v2446
      %v2623 = vadd.f32 %v2622, %v2448
      %2624 = vadd.xlane.f32.xlu0 %v2623
      %v2625 = vpop.xlane.xlu0 %2624
      %v2626 = vadd.f32 %v1661, %v1663
      %v2627 = vadd.f32 %v2626, %v1774
      %v2628 = vadd.f32 %v2627, %v1776
      %v2629 = vadd.f32 %v2628, %v1887
      %v2630 = vadd.f32 %v2629, %v1889
      %v2631 = vadd.f32 %v2630, %v2000
      %v2632 = vadd.f32 %v2631, %v2002
      %v2633 = vadd.f32 %v2632, %v2113
      %v2634 = vadd.f32 %v2633, %v2115
      %v2635 = vadd.f32 %v2634, %v2226
      %v2636 = vadd.f32 %v2635, %v2228
      %v2637 = vadd.f32 %v2636, %v2339
      %v2638 = vadd.f32 %v2637, %v2341
      %v2639 = vadd.f32 %v2638, %v2452
      %v2640 = vadd.f32 %v2639, %v2454
      %2641 = vadd.xlane.f32.xlu0 %v2640
      %v2642 = vpop.xlane.xlu0 %2641
      %v2643 = vadd.f32 %v1665, %v1667
      %v2644 = vadd.f32 %v2643, %v1778
      %v2645 = vadd.f32 %v2644, %v1780
      %v2646 = vadd.f32 %v2645, %v1891
      %v2647 = vadd.f32 %v2646, %v1893
      %v2648 = vadd.f32 %v2647, %v2004
      %v2649 = vadd.f32 %v2648, %v2006
      %v2650 = vadd.f32 %v2649, %v2117
      %v2651 = vadd.f32 %v2650, %v2119
      %v2652 = vadd.f32 %v2651, %v2230
      %v2653 = vadd.f32 %v2652, %v2232
      %v2654 = vadd.f32 %v2653, %v2343
      %v2655 = vadd.f32 %v2654, %v2345
      %v2656 = vadd.f32 %v2655, %v2456
      %v2657 = vadd.f32 %v2656, %v2458
      %2658 = vadd.xlane.f32.xlu0 %v2657
      %v2659 = vpop.xlane.xlu0 %2658
      %v2660 = vadd.f32 %v1671, %v1673
      %v2661 = vadd.f32 %v2660, %v1784
      %v2662 = vadd.f32 %v2661, %v1786
      %v2663 = vadd.f32 %v2662, %v1897
      %v2664 = vadd.f32 %v2663, %v1899
      %v2665 = vadd.f32 %v2664, %v2010
      %v2666 = vadd.f32 %v2665, %v2012
      %v2667 = vadd.f32 %v2666, %v2123
      %v2668 = vadd.f32 %v2667, %v2125
      %v2669 = vadd.f32 %v2668, %v2236
      %v2670 = vadd.f32 %v2669, %v2238
      %v2671 = vadd.f32 %v2670, %v2349
      %v2672 = vadd.f32 %v2671, %v2351
      %v2673 = vadd.f32 %v2672, %v2462
      %v2674 = vadd.f32 %v2673, %v2464
      %2675 = vadd.xlane.f32.xlu0 %v2674
      %v2676 = vpop.xlane.xlu0 %2675
      %v2677 = vadd.f32 %v1675, %v1677
      %v2678 = vadd.f32 %v2677, %v1788
      %v2679 = vadd.f32 %v2678, %v1790
      %v2680 = vadd.f32 %v2679, %v1901
      %v2681 = vadd.f32 %v2680, %v1903
      %v2682 = vadd.f32 %v2681, %v2014
      %v2683 = vadd.f32 %v2682, %v2016
      %v2684 = vadd.f32 %v2683, %v2127
      %v2685 = vadd.f32 %v2684, %v2129
      %v2686 = vadd.f32 %v2685, %v2240
      %v2687 = vadd.f32 %v2686, %v2242
      %v2688 = vadd.f32 %v2687, %v2353
      %v2689 = vadd.f32 %v2688, %v2355
      %v2690 = vadd.f32 %v2689, %v2466
      %v2691 = vadd.f32 %v2690, %v2468
      %2692 = vadd.xlane.f32.xlu0 %v2691
      %v2693 = vpop.xlane.xlu0 %2692
      %v2694 = vadd.f32 %v1681, %v1683
      %v2695 = vadd.f32 %v2694, %v1794
      %v2696 = vadd.f32 %v2695, %v1796
      %v2697 = vadd.f32 %v2696, %v1907
      %v2698 = vadd.f32 %v2697, %v1909
      %v2699 = vadd.f32 %v2698, %v2020
      %v2700 = vadd.f32 %v2699, %v2022
      %v2701 = vadd.f32 %v2700, %v2133
      %v2702 = vadd.f32 %v2701, %v2135
      %v2703 = vadd.f32 %v2702, %v2246
      %v2704 = vadd.f32 %v2703, %v2248
      %v2705 = vadd.f32 %v2704, %v2359
      %v2706 = vadd.f32 %v2705, %v2361
      %v2707 = vadd.f32 %v2706, %v2472
      %v2708 = vadd.f32 %v2707, %v2474
      %2709 = vadd.xlane.f32.xlu0 %v2708
      %v2710 = vpop.xlane.xlu0 %2709
      %v2711 = vadd.f32 %v1685, %v1687
      %v2712 = vadd.f32 %v2711, %v1798
      %v2713 = vadd.f32 %v2712, %v1800
      %v2714 = vadd.f32 %v2713, %v1911
      %v2715 = vadd.f32 %v2714, %v1913
      %v2716 = vadd.f32 %v2715, %v2024
      %v2717 = vadd.f32 %v2716, %v2026
      %v2718 = vadd.f32 %v2717, %v2137
      %v2719 = vadd.f32 %v2718, %v2139
      %v2720 = vadd.f32 %v2719, %v2250
      %v2721 = vadd.f32 %v2720, %v2252
      %v2722 = vadd.f32 %v2721, %v2363
      %v2723 = vadd.f32 %v2722, %v2365
      %v2724 = vadd.f32 %v2723, %v2476
      %v2725 = vadd.f32 %v2724, %v2478
      %2726 = vadd.xlane.f32.xlu0 %v2725
      %v2727 = vpop.xlane.xlu0 %2726
      %v2728 = vadd.f32 %v1691, %v1693
      %v2729 = vadd.f32 %v2728, %v1804
      %v2730 = vadd.f32 %v2729, %v1806
      %v2731 = vadd.f32 %v2730, %v1917
      %v2732 = vadd.f32 %v2731, %v1919
      %v2733 = vadd.f32 %v2732, %v2030
      %v2734 = vadd.f32 %v2733, %v2032
      %v2735 = vadd.f32 %v2734, %v2143
      %v2736 = vadd.f32 %v2735, %v2145
      %v2737 = vadd.f32 %v2736, %v2256
      %v2738 = vadd.f32 %v2737, %v2258
      %v2739 = vadd.f32 %v2738, %v2369
      %v2740 = vadd.f32 %v2739, %v2371
      %v2741 = vadd.f32 %v2740, %v2482
      %v2742 = vadd.f32 %v2741, %v2484
      %2743 = vadd.xlane.f32.xlu0 %v2742
      %v2744 = vpop.xlane.xlu0 %2743
      %v2745 = vadd.f32 %v1695, %v1697
      %v2746 = vadd.f32 %v2745, %v1808
      %v2747 = vadd.f32 %v2746, %v1810
      %v2748 = vadd.f32 %v2747, %v1921
      %v2749 = vadd.f32 %v2748, %v1923
      %v2750 = vadd.f32 %v2749, %v2034
      %v2751 = vadd.f32 %v2750, %v2036
      %v2752 = vadd.f32 %v2751, %v2147
      %v2753 = vadd.f32 %v2752, %v2149
      %v2754 = vadd.f32 %v2753, %v2260
      %v2755 = vadd.f32 %v2754, %v2262
      %v2756 = vadd.f32 %v2755, %v2373
      %v2757 = vadd.f32 %v2756, %v2375
      %v2758 = vadd.f32 %v2757, %v2486
      %v2759 = vadd.f32 %v2758, %v2488
      %2760 = vadd.xlane.f32.xlu0 %v2759
      %v2761 = vpop.xlane.xlu0 %2760
      %vm2762 = vcmask 7168
      %2763 = vst.msk [vmem:[%s276] sm:$0xff] %vm2762, %v2506
      %2764 = vst.msk [vmem:[%s276 + $0x8] sm:$0xff] %vm2762, %v2523
      %2765 = vst.msk [vmem:[%s276 + $0x10] sm:$0xff] %vm2762, %v2540
      %2766 = vst.msk [vmem:[%s276 + $0x18] sm:$0xff] %vm2762, %v2557
      %2767 = vst.msk [vmem:[%s276 + $0x20] sm:$0xff] %vm2762, %v2574
      %2768 = vst.msk [vmem:[%s276 + $0x28] sm:$0xff] %vm2762, %v2591
      %2769 = vst.msk [vmem:[%s276 + $0x30] sm:$0xff] %vm2762, %v2608
      %2770 = vst.msk [vmem:[%s276 + $0x38] sm:$0xff] %vm2762, %v2625
      %2771 = vst.msk [vmem:[%s276 + $0x40] sm:$0xff] %vm2762, %v2642
      %2772 = vst.msk [vmem:[%s276 + $0x48] sm:$0xff] %vm2762, %v2659
      %2773 = vst.msk [vmem:[%s276 + $0x50] sm:$0xff] %vm2762, %v2676
      %2774 = vst.msk [vmem:[%s276 + $0x58] sm:$0xff] %vm2762, %v2693
      %2775 = vst.msk [vmem:[%s276 + $0x60] sm:$0xff] %vm2762, %v2710
      %2776 = vst.msk [vmem:[%s276 + $0x68] sm:$0xff] %vm2762, %v2727
      %2777 = vst.msk [vmem:[%s276 + $0x70] sm:$0xff] %vm2762, %v2744
      %2778 = vst.msk [vmem:[%s276 + $0x78] sm:$0xff] %vm2762, %v2761
      %v2779 = vmul.f32 %v1621, %v1621
      %v2780 = vmul.f32 %v1623, %v1623
      %v2781 = vmul.f32 %v1734, %v1734
      %v2782 = vmul.f32 %v1736, %v1736
      %v2783 = vmul.f32 %v1847, %v1847
      %v2784 = vmul.f32 %v1849, %v1849
      %v2785 = vmul.f32 %v1960, %v1960
      %v2786 = vmul.f32 %v1962, %v1962
      %v2787 = vmul.f32 %v2073, %v2073
      %v2788 = vmul.f32 %v2075, %v2075
      %v2789 = vmul.f32 %v2186, %v2186
      %v2790 = vmul.f32 %v2188, %v2188
      %v2791 = vmul.f32 %v2299, %v2299
      %v2792 = vmul.f32 %v2301, %v2301
      %v2793 = vmul.f32 %v2412, %v2412
      %v2794 = vmul.f32 %v2414, %v2414
      %v2795 = vmul.f32 %v1625, %v1625
      %v2796 = vmul.f32 %v1627, %v1627
      %v2797 = vmul.f32 %v1738, %v1738
      %v2798 = vmul.f32 %v1740, %v1740
      %v2799 = vmul.f32 %v1851, %v1851
      %v2800 = vmul.f32 %v1853, %v1853
      %v2801 = vmul.f32 %v1964, %v1964
      %v2802 = vmul.f32 %v1966, %v1966
      %v2803 = vmul.f32 %v2077, %v2077
      %v2804 = vmul.f32 %v2079, %v2079
      %v2805 = vmul.f32 %v2190, %v2190
      %v2806 = vmul.f32 %v2192, %v2192
      %v2807 = vmul.f32 %v2303, %v2303
      %v2808 = vmul.f32 %v2305, %v2305
      %v2809 = vmul.f32 %v2416, %v2416
      %v2810 = vmul.f32 %v2418, %v2418
      %v2811 = vmul.f32 %v1631, %v1631
      %v2812 = vmul.f32 %v1633, %v1633
      %v2813 = vmul.f32 %v1744, %v1744
      %v2814 = vmul.f32 %v1746, %v1746
      %v2815 = vmul.f32 %v1857, %v1857
      %v2816 = vmul.f32 %v1859, %v1859
      %v2817 = vmul.f32 %v1970, %v1970
      %v2818 = vmul.f32 %v1972, %v1972
      %v2819 = vmul.f32 %v2083, %v2083
      %v2820 = vmul.f32 %v2085, %v2085
      %v2821 = vmul.f32 %v2196, %v2196
      %v2822 = vmul.f32 %v2198, %v2198
      %v2823 = vmul.f32 %v2309, %v2309
      %v2824 = vmul.f32 %v2311, %v2311
      %v2825 = vmul.f32 %v2422, %v2422
      %v2826 = vmul.f32 %v2424, %v2424
      %v2827 = vmul.f32 %v1635, %v1635
      %v2828 = vmul.f32 %v1637, %v1637
      %v2829 = vmul.f32 %v1748, %v1748
      %v2830 = vmul.f32 %v1750, %v1750
      %v2831 = vmul.f32 %v1861, %v1861
      %v2832 = vmul.f32 %v1863, %v1863
      %v2833 = vmul.f32 %v1974, %v1974
      %v2834 = vmul.f32 %v1976, %v1976
      %v2835 = vmul.f32 %v2087, %v2087
      %v2836 = vmul.f32 %v2089, %v2089
      %v2837 = vmul.f32 %v2200, %v2200
      %v2838 = vmul.f32 %v2202, %v2202
      %v2839 = vmul.f32 %v2313, %v2313
      %v2840 = vmul.f32 %v2315, %v2315
      %v2841 = vmul.f32 %v2426, %v2426
      %v2842 = vmul.f32 %v2428, %v2428
      %v2843 = vmul.f32 %v1641, %v1641
      %v2844 = vmul.f32 %v1643, %v1643
      %v2845 = vmul.f32 %v1754, %v1754
      %v2846 = vmul.f32 %v1756, %v1756
      %v2847 = vmul.f32 %v1867, %v1867
      %v2848 = vmul.f32 %v1869, %v1869
      %v2849 = vmul.f32 %v1980, %v1980
      %v2850 = vmul.f32 %v1982, %v1982
      %v2851 = vmul.f32 %v2093, %v2093
      %v2852 = vmul.f32 %v2095, %v2095
      %v2853 = vmul.f32 %v2206, %v2206
      %v2854 = vmul.f32 %v2208, %v2208
      %v2855 = vmul.f32 %v2319, %v2319
      %v2856 = vmul.f32 %v2321, %v2321
      %v2857 = vmul.f32 %v2432, %v2432
      %v2858 = vmul.f32 %v2434, %v2434
      %v2859 = vmul.f32 %v1645, %v1645
      %v2860 = vmul.f32 %v1647, %v1647
      %v2861 = vmul.f32 %v1758, %v1758
      %v2862 = vmul.f32 %v1760, %v1760
      %v2863 = vmul.f32 %v1871, %v1871
      %v2864 = vmul.f32 %v1873, %v1873
      %v2865 = vmul.f32 %v1984, %v1984
      %v2866 = vmul.f32 %v1986, %v1986
      %v2867 = vmul.f32 %v2097, %v2097
      %v2868 = vmul.f32 %v2099, %v2099
      %v2869 = vmul.f32 %v2210, %v2210
      %v2870 = vmul.f32 %v2212, %v2212
      %v2871 = vmul.f32 %v2323, %v2323
      %v2872 = vmul.f32 %v2325, %v2325
      %v2873 = vmul.f32 %v2436, %v2436
      %v2874 = vmul.f32 %v2438, %v2438
      %v2875 = vmul.f32 %v1651, %v1651
      %v2876 = vmul.f32 %v1653, %v1653
      %v2877 = vmul.f32 %v1764, %v1764
      %v2878 = vmul.f32 %v1766, %v1766
      %v2879 = vmul.f32 %v1877, %v1877
      %v2880 = vmul.f32 %v1879, %v1879
      %v2881 = vmul.f32 %v1990, %v1990
      %v2882 = vmul.f32 %v1992, %v1992
      %v2883 = vmul.f32 %v2103, %v2103
      %v2884 = vmul.f32 %v2105, %v2105
      %v2885 = vmul.f32 %v2216, %v2216
      %v2886 = vmul.f32 %v2218, %v2218
      %v2887 = vmul.f32 %v2329, %v2329
      %v2888 = vmul.f32 %v2331, %v2331
      %v2889 = vmul.f32 %v2442, %v2442
      %v2890 = vmul.f32 %v2444, %v2444
      %v2891 = vmul.f32 %v1655, %v1655
      %v2892 = vmul.f32 %v1657, %v1657
      %v2893 = vmul.f32 %v1768, %v1768
      %v2894 = vmul.f32 %v1770, %v1770
      %v2895 = vmul.f32 %v1881, %v1881
      %v2896 = vmul.f32 %v1883, %v1883
      %v2897 = vmul.f32 %v1994, %v1994
      %v2898 = vmul.f32 %v1996, %v1996
      %v2899 = vmul.f32 %v2107, %v2107
      %v2900 = vmul.f32 %v2109, %v2109
      %v2901 = vmul.f32 %v2220, %v2220
      %v2902 = vmul.f32 %v2222, %v2222
      %v2903 = vmul.f32 %v2333, %v2333
      %v2904 = vmul.f32 %v2335, %v2335
      %v2905 = vmul.f32 %v2446, %v2446
      %v2906 = vmul.f32 %v2448, %v2448
      %v2907 = vmul.f32 %v1661, %v1661
      %v2908 = vmul.f32 %v1663, %v1663
      %v2909 = vmul.f32 %v1774, %v1774
      %v2910 = vmul.f32 %v1776, %v1776
      %v2911 = vmul.f32 %v1887, %v1887
      %v2912 = vmul.f32 %v1889, %v1889
      %v2913 = vmul.f32 %v2000, %v2000
      %v2914 = vmul.f32 %v2002, %v2002
      %v2915 = vmul.f32 %v2113, %v2113
      %v2916 = vmul.f32 %v2115, %v2115
      %v2917 = vmul.f32 %v2226, %v2226
      %v2918 = vmul.f32 %v2228, %v2228
      %v2919 = vmul.f32 %v2339, %v2339
      %v2920 = vmul.f32 %v2341, %v2341
      %v2921 = vmul.f32 %v2452, %v2452
      %v2922 = vmul.f32 %v2454, %v2454
      %v2923 = vmul.f32 %v1665, %v1665
      %v2924 = vmul.f32 %v1667, %v1667
      %v2925 = vmul.f32 %v1778, %v1778
      %v2926 = vmul.f32 %v1780, %v1780
      %v2927 = vmul.f32 %v1891, %v1891
      %v2928 = vmul.f32 %v1893, %v1893
      %v2929 = vmul.f32 %v2004, %v2004
      %v2930 = vmul.f32 %v2006, %v2006
      %v2931 = vmul.f32 %v2117, %v2117
      %v2932 = vmul.f32 %v2119, %v2119
      %v2933 = vmul.f32 %v2230, %v2230
      %v2934 = vmul.f32 %v2232, %v2232
      %v2935 = vmul.f32 %v2343, %v2343
      %v2936 = vmul.f32 %v2345, %v2345
      %v2937 = vmul.f32 %v2456, %v2456
      %v2938 = vmul.f32 %v2458, %v2458
      %v2939 = vmul.f32 %v1671, %v1671
      %v2940 = vmul.f32 %v1673, %v1673
      %v2941 = vmul.f32 %v1784, %v1784
      %v2942 = vmul.f32 %v1786, %v1786
      %v2943 = vmul.f32 %v1897, %v1897
      %v2944 = vmul.f32 %v1899, %v1899
      %v2945 = vmul.f32 %v2010, %v2010
      %v2946 = vmul.f32 %v2012, %v2012
      %v2947 = vmul.f32 %v2123, %v2123
      %v2948 = vmul.f32 %v2125, %v2125
      %v2949 = vmul.f32 %v2236, %v2236
      %v2950 = vmul.f32 %v2238, %v2238
      %v2951 = vmul.f32 %v2349, %v2349
      %v2952 = vmul.f32 %v2351, %v2351
      %v2953 = vmul.f32 %v2462, %v2462
      %v2954 = vmul.f32 %v2464, %v2464
      %v2955 = vmul.f32 %v1675, %v1675
      %v2956 = vmul.f32 %v1677, %v1677
      %v2957 = vmul.f32 %v1788, %v1788
      %v2958 = vmul.f32 %v1790, %v1790
      %v2959 = vmul.f32 %v1901, %v1901
      %v2960 = vmul.f32 %v1903, %v1903
      %v2961 = vmul.f32 %v2014, %v2014
      %v2962 = vmul.f32 %v2016, %v2016
      %v2963 = vmul.f32 %v2127, %v2127
      %v2964 = vmul.f32 %v2129, %v2129
      %v2965 = vmul.f32 %v2240, %v2240
      %v2966 = vmul.f32 %v2242, %v2242
      %v2967 = vmul.f32 %v2353, %v2353
      %v2968 = vmul.f32 %v2355, %v2355
      %v2969 = vmul.f32 %v2466, %v2466
      %v2970 = vmul.f32 %v2468, %v2468
      %v2971 = vmul.f32 %v1681, %v1681
      %v2972 = vmul.f32 %v1683, %v1683
      %v2973 = vmul.f32 %v1794, %v1794
      %v2974 = vmul.f32 %v1796, %v1796
      %v2975 = vmul.f32 %v1907, %v1907
      %v2976 = vmul.f32 %v1909, %v1909
      %v2977 = vmul.f32 %v2020, %v2020
      %v2978 = vmul.f32 %v2022, %v2022
      %v2979 = vmul.f32 %v2133, %v2133
      %v2980 = vmul.f32 %v2135, %v2135
      %v2981 = vmul.f32 %v2246, %v2246
      %v2982 = vmul.f32 %v2248, %v2248
      %v2983 = vmul.f32 %v2359, %v2359
      %v2984 = vmul.f32 %v2361, %v2361
      %v2985 = vmul.f32 %v2472, %v2472
      %v2986 = vmul.f32 %v2474, %v2474
      %v2987 = vmul.f32 %v1685, %v1685
      %v2988 = vmul.f32 %v1687, %v1687
      %v2989 = vmul.f32 %v1798, %v1798
      %v2990 = vmul.f32 %v1800, %v1800
      %v2991 = vmul.f32 %v1911, %v1911
      %v2992 = vmul.f32 %v1913, %v1913
      %v2993 = vmul.f32 %v2024, %v2024
      %v2994 = vmul.f32 %v2026, %v2026
      %v2995 = vmul.f32 %v2137, %v2137
      %v2996 = vmul.f32 %v2139, %v2139
      %v2997 = vmul.f32 %v2250, %v2250
      %v2998 = vmul.f32 %v2252, %v2252
      %v2999 = vmul.f32 %v2363, %v2363
      %v3000 = vmul.f32 %v2365, %v2365
      %v3001 = vmul.f32 %v2476, %v2476
      %v3002 = vmul.f32 %v2478, %v2478
      %v3003 = vmul.f32 %v1691, %v1691
      %v3004 = vmul.f32 %v1693, %v1693
      %v3005 = vmul.f32 %v1804, %v1804
      %v3006 = vmul.f32 %v1806, %v1806
      %v3007 = vmul.f32 %v1917, %v1917
      %v3008 = vmul.f32 %v1919, %v1919
      %v3009 = vmul.f32 %v2030, %v2030
      %v3010 = vmul.f32 %v2032, %v2032
      %v3011 = vmul.f32 %v2143, %v2143
      %v3012 = vmul.f32 %v2145, %v2145
      %v3013 = vmul.f32 %v2256, %v2256
      %v3014 = vmul.f32 %v2258, %v2258
      %v3015 = vmul.f32 %v2369, %v2369
      %v3016 = vmul.f32 %v2371, %v2371
      %v3017 = vmul.f32 %v2482, %v2482
      %v3018 = vmul.f32 %v2484, %v2484
      %v3019 = vmul.f32 %v1695, %v1695
      %v3020 = vmul.f32 %v1697, %v1697
      %v3021 = vmul.f32 %v1808, %v1808
      %v3022 = vmul.f32 %v1810, %v1810
      %v3023 = vmul.f32 %v1921, %v1921
      %v3024 = vmul.f32 %v1923, %v1923
      %v3025 = vmul.f32 %v2034, %v2034
      %v3026 = vmul.f32 %v2036, %v2036
      %v3027 = vmul.f32 %v2147, %v2147
      %v3028 = vmul.f32 %v2149, %v2149
      %v3029 = vmul.f32 %v2260, %v2260
      %v3030 = vmul.f32 %v2262, %v2262
      %v3031 = vmul.f32 %v2373, %v2373
      %v3032 = vmul.f32 %v2375, %v2375
      %v3033 = vmul.f32 %v2486, %v2486
      %v3034 = vmul.f32 %v2488, %v2488
      %v3035 = vadd.f32 %v2779, %v2780
      %v3036 = vadd.f32 %v3035, %v2781
      %v3037 = vadd.f32 %v3036, %v2782
      %v3038 = vadd.f32 %v3037, %v2783
      %v3039 = vadd.f32 %v3038, %v2784
      %v3040 = vadd.f32 %v3039, %v2785
      %v3041 = vadd.f32 %v3040, %v2786
      %v3042 = vadd.f32 %v3041, %v2787
      %v3043 = vadd.f32 %v3042, %v2788
      %v3044 = vadd.f32 %v3043, %v2789
      %v3045 = vadd.f32 %v3044, %v2790
      %v3046 = vadd.f32 %v3045, %v2791
      %v3047 = vadd.f32 %v3046, %v2792
      %v3048 = vadd.f32 %v3047, %v2793
      %v3049 = vadd.f32 %v3048, %v2794
      %3050 = vadd.xlane.f32.xlu0 %v3049
      %v3051 = vpop.xlane.xlu0 %3050
      %v3052 = vadd.f32 %v2795, %v2796
      %v3053 = vadd.f32 %v3052, %v2797
      %v3054 = vadd.f32 %v3053, %v2798
      %v3055 = vadd.f32 %v3054, %v2799
      %v3056 = vadd.f32 %v3055, %v2800
      %v3057 = vadd.f32 %v3056, %v2801
      %v3058 = vadd.f32 %v3057, %v2802
      %v3059 = vadd.f32 %v3058, %v2803
      %v3060 = vadd.f32 %v3059, %v2804
      %v3061 = vadd.f32 %v3060, %v2805
      %v3062 = vadd.f32 %v3061, %v2806
      %v3063 = vadd.f32 %v3062, %v2807
      %v3064 = vadd.f32 %v3063, %v2808
      %v3065 = vadd.f32 %v3064, %v2809
      %v3066 = vadd.f32 %v3065, %v2810
      %3067 = vadd.xlane.f32.xlu0 %v3066
      %v3068 = vpop.xlane.xlu0 %3067
      %v3069 = vadd.f32 %v2811, %v2812
      %v3070 = vadd.f32 %v3069, %v2813
      %v3071 = vadd.f32 %v3070, %v2814
      %v3072 = vadd.f32 %v3071, %v2815
      %v3073 = vadd.f32 %v3072, %v2816
      %v3074 = vadd.f32 %v3073, %v2817
      %v3075 = vadd.f32 %v3074, %v2818
      %v3076 = vadd.f32 %v3075, %v2819
      %v3077 = vadd.f32 %v3076, %v2820
      %v3078 = vadd.f32 %v3077, %v2821
      %v3079 = vadd.f32 %v3078, %v2822
      %v3080 = vadd.f32 %v3079, %v2823
      %v3081 = vadd.f32 %v3080, %v2824
      %v3082 = vadd.f32 %v3081, %v2825
      %v3083 = vadd.f32 %v3082, %v2826
      %3084 = vadd.xlane.f32.xlu0 %v3083
      %v3085 = vpop.xlane.xlu0 %3084
      %v3086 = vadd.f32 %v2827, %v2828
      %v3087 = vadd.f32 %v3086, %v2829
      %v3088 = vadd.f32 %v3087, %v2830
      %v3089 = vadd.f32 %v3088, %v2831
      %v3090 = vadd.f32 %v3089, %v2832
      %v3091 = vadd.f32 %v3090, %v2833
      %v3092 = vadd.f32 %v3091, %v2834
      %v3093 = vadd.f32 %v3092, %v2835
      %v3094 = vadd.f32 %v3093, %v2836
      %v3095 = vadd.f32 %v3094, %v2837
      %v3096 = vadd.f32 %v3095, %v2838
      %v3097 = vadd.f32 %v3096, %v2839
      %v3098 = vadd.f32 %v3097, %v2840
      %v3099 = vadd.f32 %v3098, %v2841
      %v3100 = vadd.f32 %v3099, %v2842
      %3101 = vadd.xlane.f32.xlu0 %v3100
      %v3102 = vpop.xlane.xlu0 %3101
      %v3103 = vadd.f32 %v2843, %v2844
      %v3104 = vadd.f32 %v3103, %v2845
      %v3105 = vadd.f32 %v3104, %v2846
      %v3106 = vadd.f32 %v3105, %v2847
      %v3107 = vadd.f32 %v3106, %v2848
      %v3108 = vadd.f32 %v3107, %v2849
      %v3109 = vadd.f32 %v3108, %v2850
      %v3110 = vadd.f32 %v3109, %v2851
      %v3111 = vadd.f32 %v3110, %v2852
      %v3112 = vadd.f32 %v3111, %v2853
      %v3113 = vadd.f32 %v3112, %v2854
      %v3114 = vadd.f32 %v3113, %v2855
      %v3115 = vadd.f32 %v3114, %v2856
      %v3116 = vadd.f32 %v3115, %v2857
      %v3117 = vadd.f32 %v3116, %v2858
      %3118 = vadd.xlane.f32.xlu0 %v3117
      %v3119 = vpop.xlane.xlu0 %3118
      %v3120 = vadd.f32 %v2859, %v2860
      %v3121 = vadd.f32 %v3120, %v2861
      %v3122 = vadd.f32 %v3121, %v2862
      %v3123 = vadd.f32 %v3122, %v2863
      %v3124 = vadd.f32 %v3123, %v2864
      %v3125 = vadd.f32 %v3124, %v2865
      %v3126 = vadd.f32 %v3125, %v2866
      %v3127 = vadd.f32 %v3126, %v2867
      %v3128 = vadd.f32 %v3127, %v2868
      %v3129 = vadd.f32 %v3128, %v2869
      %v3130 = vadd.f32 %v3129, %v2870
      %v3131 = vadd.f32 %v3130, %v2871
      %v3132 = vadd.f32 %v3131, %v2872
      %v3133 = vadd.f32 %v3132, %v2873
      %v3134 = vadd.f32 %v3133, %v2874
      %3135 = vadd.xlane.f32.xlu0 %v3134
      %v3136 = vpop.xlane.xlu0 %3135
      %v3137 = vadd.f32 %v2875, %v2876
      %v3138 = vadd.f32 %v3137, %v2877
      %v3139 = vadd.f32 %v3138, %v2878
      %v3140 = vadd.f32 %v3139, %v2879
      %v3141 = vadd.f32 %v3140, %v2880
      %v3142 = vadd.f32 %v3141, %v2881
      %v3143 = vadd.f32 %v3142, %v2882
      %v3144 = vadd.f32 %v3143, %v2883
      %v3145 = vadd.f32 %v3144, %v2884
      %v3146 = vadd.f32 %v3145, %v2885
      %v3147 = vadd.f32 %v3146, %v2886
      %v3148 = vadd.f32 %v3147, %v2887
      %v3149 = vadd.f32 %v3148, %v2888
      %v3150 = vadd.f32 %v3149, %v2889
      %v3151 = vadd.f32 %v3150, %v2890
      %3152 = vadd.xlane.f32.xlu0 %v3151
      %v3153 = vpop.xlane.xlu0 %3152
      %v3154 = vadd.f32 %v2891, %v2892
      %v3155 = vadd.f32 %v3154, %v2893
      %v3156 = vadd.f32 %v3155, %v2894
      %v3157 = vadd.f32 %v3156, %v2895
      %v3158 = vadd.f32 %v3157, %v2896
      %v3159 = vadd.f32 %v3158, %v2897
      %v3160 = vadd.f32 %v3159, %v2898
      %v3161 = vadd.f32 %v3160, %v2899
      %v3162 = vadd.f32 %v3161, %v2900
      %v3163 = vadd.f32 %v3162, %v2901
      %v3164 = vadd.f32 %v3163, %v2902
      %v3165 = vadd.f32 %v3164, %v2903
      %v3166 = vadd.f32 %v3165, %v2904
      %v3167 = vadd.f32 %v3166, %v2905
      %v3168 = vadd.f32 %v3167, %v2906
      %3169 = vadd.xlane.f32.xlu0 %v3168
      %v3170 = vpop.xlane.xlu0 %3169
      %v3171 = vadd.f32 %v2907, %v2908
      %v3172 = vadd.f32 %v3171, %v2909
      %v3173 = vadd.f32 %v3172, %v2910
      %v3174 = vadd.f32 %v3173, %v2911
      %v3175 = vadd.f32 %v3174, %v2912
      %v3176 = vadd.f32 %v3175, %v2913
      %v3177 = vadd.f32 %v3176, %v2914
      %v3178 = vadd.f32 %v3177, %v2915
      %v3179 = vadd.f32 %v3178, %v2916
      %v3180 = vadd.f32 %v3179, %v2917
      %v3181 = vadd.f32 %v3180, %v2918
      %v3182 = vadd.f32 %v3181, %v2919
      %v3183 = vadd.f32 %v3182, %v2920
      %v3184 = vadd.f32 %v3183, %v2921
      %v3185 = vadd.f32 %v3184, %v2922
      %3186 = vadd.xlane.f32.xlu0 %v3185
      %v3187 = vpop.xlane.xlu0 %3186
      %v3188 = vadd.f32 %v2923, %v2924
      %v3189 = vadd.f32 %v3188, %v2925
      %v3190 = vadd.f32 %v3189, %v2926
      %v3191 = vadd.f32 %v3190, %v2927
      %v3192 = vadd.f32 %v3191, %v2928
      %v3193 = vadd.f32 %v3192, %v2929
      %v3194 = vadd.f32 %v3193, %v2930
      %v3195 = vadd.f32 %v3194, %v2931
      %v3196 = vadd.f32 %v3195, %v2932
      %v3197 = vadd.f32 %v3196, %v2933
      %v3198 = vadd.f32 %v3197, %v2934
      %v3199 = vadd.f32 %v3198, %v2935
      %v3200 = vadd.f32 %v3199, %v2936
      %v3201 = vadd.f32 %v3200, %v2937
      %v3202 = vadd.f32 %v3201, %v2938
      %3203 = vadd.xlane.f32.xlu0 %v3202
      %v3204 = vpop.xlane.xlu0 %3203
      %v3205 = vadd.f32 %v2939, %v2940
      %v3206 = vadd.f32 %v3205, %v2941
      %v3207 = vadd.f32 %v3206, %v2942
      %v3208 = vadd.f32 %v3207, %v2943
      %v3209 = vadd.f32 %v3208, %v2944
      %v3210 = vadd.f32 %v3209, %v2945
      %v3211 = vadd.f32 %v3210, %v2946
      %v3212 = vadd.f32 %v3211, %v2947
      %v3213 = vadd.f32 %v3212, %v2948
      %v3214 = vadd.f32 %v3213, %v2949
      %v3215 = vadd.f32 %v3214, %v2950
      %v3216 = vadd.f32 %v3215, %v2951
      %v3217 = vadd.f32 %v3216, %v2952
      %v3218 = vadd.f32 %v3217, %v2953
      %v3219 = vadd.f32 %v3218, %v2954
      %3220 = vadd.xlane.f32.xlu0 %v3219
      %v3221 = vpop.xlane.xlu0 %3220
      %v3222 = vadd.f32 %v2955, %v2956
      %v3223 = vadd.f32 %v3222, %v2957
      %v3224 = vadd.f32 %v3223, %v2958
      %v3225 = vadd.f32 %v3224, %v2959
      %v3226 = vadd.f32 %v3225, %v2960
      %v3227 = vadd.f32 %v3226, %v2961
      %v3228 = vadd.f32 %v3227, %v2962
      %v3229 = vadd.f32 %v3228, %v2963
      %v3230 = vadd.f32 %v3229, %v2964
      %v3231 = vadd.f32 %v3230, %v2965
      %v3232 = vadd.f32 %v3231, %v2966
      %v3233 = vadd.f32 %v3232, %v2967
      %v3234 = vadd.f32 %v3233, %v2968
      %v3235 = vadd.f32 %v3234, %v2969
      %v3236 = vadd.f32 %v3235, %v2970
      %3237 = vadd.xlane.f32.xlu0 %v3236
      %v3238 = vpop.xlane.xlu0 %3237
      %v3239 = vadd.f32 %v2971, %v2972
      %v3240 = vadd.f32 %v3239, %v2973
      %v3241 = vadd.f32 %v3240, %v2974
      %v3242 = vadd.f32 %v3241, %v2975
      %v3243 = vadd.f32 %v3242, %v2976
      %v3244 = vadd.f32 %v3243, %v2977
      %v3245 = vadd.f32 %v3244, %v2978
      %v3246 = vadd.f32 %v3245, %v2979
      %v3247 = vadd.f32 %v3246, %v2980
      %v3248 = vadd.f32 %v3247, %v2981
      %v3249 = vadd.f32 %v3248, %v2982
      %v3250 = vadd.f32 %v3249, %v2983
      %v3251 = vadd.f32 %v3250, %v2984
      %v3252 = vadd.f32 %v3251, %v2985
      %v3253 = vadd.f32 %v3252, %v2986
      %3254 = vadd.xlane.f32.xlu0 %v3253
      %v3255 = vpop.xlane.xlu0 %3254
      %v3256 = vadd.f32 %v2987, %v2988
      %v3257 = vadd.f32 %v3256, %v2989
      %v3258 = vadd.f32 %v3257, %v2990
      %v3259 = vadd.f32 %v3258, %v2991
      %v3260 = vadd.f32 %v3259, %v2992
      %v3261 = vadd.f32 %v3260, %v2993
      %v3262 = vadd.f32 %v3261, %v2994
      %v3263 = vadd.f32 %v3262, %v2995
      %v3264 = vadd.f32 %v3263, %v2996
      %v3265 = vadd.f32 %v3264, %v2997
      %v3266 = vadd.f32 %v3265, %v2998
      %v3267 = vadd.f32 %v3266, %v2999
      %v3268 = vadd.f32 %v3267, %v3000
      %v3269 = vadd.f32 %v3268, %v3001
      %v3270 = vadd.f32 %v3269, %v3002
      %3271 = vadd.xlane.f32.xlu0 %v3270
      %v3272 = vpop.xlane.xlu0 %3271
      %v3273 = vadd.f32 %v3003, %v3004
      %v3274 = vadd.f32 %v3273, %v3005
      %v3275 = vadd.f32 %v3274, %v3006
      %v3276 = vadd.f32 %v3275, %v3007
      %v3277 = vadd.f32 %v3276, %v3008
      %v3278 = vadd.f32 %v3277, %v3009
      %v3279 = vadd.f32 %v3278, %v3010
      %v3280 = vadd.f32 %v3279, %v3011
      %v3281 = vadd.f32 %v3280, %v3012
      %v3282 = vadd.f32 %v3281, %v3013
      %v3283 = vadd.f32 %v3282, %v3014
      %v3284 = vadd.f32 %v3283, %v3015
      %v3285 = vadd.f32 %v3284, %v3016
      %v3286 = vadd.f32 %v3285, %v3017
      %v3287 = vadd.f32 %v3286, %v3018
      %3288 = vadd.xlane.f32.xlu0 %v3287
      %v3289 = vpop.xlane.xlu0 %3288
      %v3290 = vadd.f32 %v3019, %v3020
      %v3291 = vadd.f32 %v3290, %v3021
      %v3292 = vadd.f32 %v3291, %v3022
      %v3293 = vadd.f32 %v3292, %v3023
      %v3294 = vadd.f32 %v3293, %v3024
      %v3295 = vadd.f32 %v3294, %v3025
      %v3296 = vadd.f32 %v3295, %v3026
      %v3297 = vadd.f32 %v3296, %v3027
      %v3298 = vadd.f32 %v3297, %v3028
      %v3299 = vadd.f32 %v3298, %v3029
      %v3300 = vadd.f32 %v3299, %v3030
      %v3301 = vadd.f32 %v3300, %v3031
      %v3302 = vadd.f32 %v3301, %v3032
      %v3303 = vadd.f32 %v3302, %v3033
      %v3304 = vadd.f32 %v3303, %v3034
      %3305 = vadd.xlane.f32.xlu0 %v3304
      %v3306 = vpop.xlane.xlu0 %3305
      %3307 = vst.msk [vmem:[%s285] sm:$0xff] %vm2762, %v3051
      %3308 = vst.msk [vmem:[%s285 + $0x8] sm:$0xff] %vm2762, %v3068
      %3309 = vst.msk [vmem:[%s285 + $0x10] sm:$0xff] %vm2762, %v3085
      %3310 = vst.msk [vmem:[%s285 + $0x18] sm:$0xff] %vm2762, %v3102
      %3311 = vst.msk [vmem:[%s285 + $0x20] sm:$0xff] %vm2762, %v3119
      %3312 = vst.msk [vmem:[%s285 + $0x28] sm:$0xff] %vm2762, %v3136
      %3313 = vst.msk [vmem:[%s285 + $0x30] sm:$0xff] %vm2762, %v3153
      %3314 = vst.msk [vmem:[%s285 + $0x38] sm:$0xff] %vm2762, %v3170
      %3315 = vst.msk [vmem:[%s285 + $0x40] sm:$0xff] %vm2762, %v3187
      %3316 = vst.msk [vmem:[%s285 + $0x48] sm:$0xff] %vm2762, %v3204
      %3317 = vst.msk [vmem:[%s285 + $0x50] sm:$0xff] %vm2762, %v3221
      %3318 = vst.msk [vmem:[%s285 + $0x58] sm:$0xff] %vm2762, %v3238
      %3319 = vst.msk [vmem:[%s285 + $0x60] sm:$0xff] %vm2762, %v3255
      %3320 = vst.msk [vmem:[%s285 + $0x68] sm:$0xff] %vm2762, %v3272
      %3321 = vst.msk [vmem:[%s285 + $0x70] sm:$0xff] %vm2762, %v3289
      %3322 = vst.msk [vmem:[%s285 + $0x78] sm:$0xff] %vm2762, %v3306
      %p3323 = scmp.lt.s32.totalorder %s21, 1
      %s3324 = scalar_select %p3323, %s21, 1
      %p3325 = scmp.lt.s32.totalorder %s22, 1
      %s3326 = scalar_select %p3325, %s22, 1
      %s3327 = smul.addr %s3326, 16
      %s3328 = smul.addr %s3324, 32
      %s3329 = sadd.s32 %s3327, %s3328
      %s3330 = smul.addr %s3329, 8
      %s3331 = scalar_lea.vmem %s4, %s3330
      %p3332 = scmp.lt.s32.totalorder %s21, 1
      %s3333 = scalar_select %p3332, %s21, 1
      %p3334 = scmp.lt.s32.totalorder %s22, 1
      %s3335 = scalar_select %p3334, %s22, 1
      %s3336 = smul.addr %s3335, 16
      %s3337 = smul.addr %s3333, 32
      %s3338 = sadd.s32 %s3336, %s3337
      %s3339 = smul.addr %s3338, 8
      %s3340 = scalar_lea.vmem %s5, %s3339
      // Predicated region
      $region37: #{pixel_discriminator_forward.2} parent=35 // pred_check
        %p3341 = pneg %p140
      $region38: #{pixel_discriminator_forward.2} parent=35 // pred_check_branch
        %3343 = sbr.rel (%p3341) target = $region40
      $region39: #{pixel_discriminator_forward.2} parent=35 // pred_region
        _
      $region40: #{pixel_discriminator_forward.2} parent=35 // pred_fallthru
        _
      // Predicated region
      $region41: #{pixel_discriminator_forward.2} parent=35 // pred_check
        %p3344 = pneg %p168
      $region42: #{pixel_discriminator_forward.2} parent=35 // pred_check_branch
        %3346 = sbr.rel (%p3344) target = $region44
      $region43: #{pixel_discriminator_forward.2} parent=35 // pred_region
        _
      $region44: #{pixel_discriminator_forward.2} parent=35 // pred_fallthru
        _
    $region36: #{pixel_discriminator_forward.2} parent=5 // pred_fallthru
      _
    %p3347 = scmp.le.s32.totalorder 2, %s12
    // Predicated region
    $region45: #{pixel_discriminator_forward.2} parent=5 // pred_check
      %p3348 = pneg %p3347
    $region46: #{pixel_discriminator_forward.2} parent=5 // pred_check_branch
      %3350 = sbr.rel (%p3348) target = $region48
    $region47: #{pixel_discriminator_forward.2} parent=5 // pred_region
      %s3351 = ssub.s32 %s12, 2
      // Predicated region
      $region49: #{pixel_discriminator_forward.2} parent=47 // pred_check
        %p3352 = pneg %p146
      $region50: #{pixel_discriminator_forward.2} parent=47 // pred_check_branch
        %3354 = sbr.rel (%p3352) target = $region52
      $region51: #{pixel_discriminator_forward.2} parent=47 // pred_region
        %p3355 = scmp.lt.s32.totalorder %s23, 1
        %s3356 = scalar_select %p3355, %s23, 1
        %p3357 = scmp.lt.s32.totalorder %s24, 1
        %s3358 = scalar_select %p3357, %s24, 1
        %s3359 = smul.addr %s3358, 16
        %s3360 = smul.addr %s3356, 32
        %s3361 = sadd.s32 %s3359, %s3360
        %s3362 = smul.addr %s3361, 8
        %s3363 = scalar_lea.vmem %s4, %s3362
      $region52: #{pixel_discriminator_forward.2} parent=47 // pred_fallthru
        _
      // Predicated region
      $region53: #{pixel_discriminator_forward.2} parent=47 // pred_check
        %p3364 = pneg %p174
      $region54: #{pixel_discriminator_forward.2} parent=47 // pred_check_branch
        %3366 = sbr.rel (%p3364) target = $region56
      $region55: #{pixel_discriminator_forward.2} parent=47 // pred_region
        %p3367 = scmp.lt.s32.totalorder %s23, 1
        %s3368 = scalar_select %p3367, %s23, 1
        %p3369 = scmp.lt.s32.totalorder %s24, 1
        %s3370 = scalar_select %p3369, %s24, 1
        %s3371 = smul.addr %s3370, 16
        %s3372 = smul.addr %s3368, 32
        %s3373 = sadd.s32 %s3371, %s3372
        %s3374 = smul.addr %s3373, 8
        %s3375 = scalar_lea.vmem %s5, %s3374
      $region56: #{pixel_discriminator_forward.2} parent=47 // pred_fallthru
        _
    $region48: #{pixel_discriminator_forward.2} parent=5 // pred_fallthru
      _
  $region6: #{pixel_discriminator_forward.2} parent=0 // loop_footer
    %s16 = sadd.s32 1, %s12
  $region7: #{pixel_discriminator_forward.2} parent=0 // loop_footer_branch
    %11 = sbr.rel target = $region3
  $region8: #{pixel_discriminator_forward.2} parent=0 // loop_exit
    _

// kernel: pixel_discriminator_forward.3
$region0: #{pixel_discriminator_forward.3}
  #allocation0 [shape = 'u32[]', space=smem, size = 0x4, offset = 0x4, fixed_abs, tag = 'smem constant byte address 0x4 - core index']
  #allocation1 [shape = 'u32[144,128]{1,0:T(1,128)}', space=vmem, size = 0x12000, scoped, tag = 'internal scratch']
  %s0 = inlined_call_operand.vmem [shape: f32[2,4,4096], index: 0, kind: input, shape index: {}]
  %s1 = inlined_call_operand.vmem [shape: bf16[64,4], index: 1, kind: input, shape index: {}]
  %s2 = inlined_call_operand.vmem [shape: f32[64,1], index: 2, kind: input, shape index: {}]
  %s3 = inlined_call_operand.vmem [shape: bf16[128,64], index: 3, kind: input, shape index: {}]
  %s4 = inlined_call_operand.vmem [shape: f32[128,1], index: 4, kind: input, shape index: {}]
  %s5 = inlined_call_operand.vmem [shape: bf16[1,128], index: 5, kind: input, shape index: {}]
  %s6 = inlined_call_operand.vmem [shape: f32[2,1,4096], index: 6, kind: output, shape index: {}]
  %s7 = sld [smem:[#allocation0]]
  $region57: #{pixel_discriminator_forward.3} parent=0
    _
  %s9 = ssub.s32 1, %s7
  %s10 = scalar_select 0, %s9, %s7
  loop: start=0, step=1, limit=6
  $region2: #{pixel_discriminator_forward.3} parent=0 // loop_pre_header
    _
  $region3: #{pixel_discriminator_forward.3} parent=0 // loop_header
    %s12 = sphi 0, %s16
    %p13 = scmp.ge.s32.totalorder %s12, 6
    %s19 = sphi 0, %s31
    %s20 = sphi 0, %s27
    %s21 = sphi 0, %s19
    %s22 = sphi 0, %s20
    %s23 = sphi 0, %s21
    %s24 = sphi 0, %s22
    %s36 = sphi 0, %s38
    %s39 = sphi 0, %s36
    %s40 = sphi 0, %s39
    %s56 = sphi 0, %s40
    %s60 = sphi 0, %s60
    %s62 = sphi 0, %s60
    %s63 = sphi 0, %s62
    %s77 = sphi 0, %s63
    %s81 = sphi 0, %s81
    %s83 = sphi 0, %s81
    %s84 = sphi 0, %s83
    %s98 = sphi 0, %s84
    %s102 = sphi 0, %s102
    %s104 = sphi 0, %s102
    %s105 = sphi 0, %s104
    %s119 = sphi 0, %s105
    %s123 = sphi 0, %s123
    %s125 = sphi 0, %s123
    %s126 = sphi 0, %s125
    %s140 = sphi 0, %s126
    %s144 = sphi 0, %s144
    %s146 = sphi 0, %s144
    %s147 = sphi 0, %s146
    %s161 = sphi 0, %s147
    %s169 = sphi 0, %s171
    %s172 = sphi 0, %s169
    %s173 = sphi 0, %s172
    %s189 = sphi 0, %s173
  $region4: #{pixel_discriminator_forward.3} parent=0 // loop_header_branch
    %15 = sbr.rel (%p13) target = $region8
  $region5: #{pixel_discriminator_forward.3} parent=0 // loop_body
    %s17 = ssub.s32 %s12, 1
    %s18 = ssub.s32 %s12, 2
    %s25 = sadd.s32 1, %s20
    %p26 = scmp.ge.s32.totalorder %s25, 2
    %s27 = scalar_select %p26, 0, %s25
    %s28 = sadd.s32 1, %s19
    %s29 = scalar_select %p26, %s28, %s19
    %p30 = scmp.ge.s32.totalorder %s29, 2
    %s31 = scalar_select %p30, 0, %s29
    %s32 = ssub.s32 %s19, %s31
    %s33 = ssub.s32 %s20, %s27
    %s34 = sor.u32 %s32, %s33
    %p35 = scmp.eq.s32.totalorder %s34, 0
    %s37 = sadd.s32 %s36, 1
    %s38 = scalar_select %p35, %s36, %s37
    %p41 = pneg %p35
    %p42 = scmp.eq.s32.totalorder %s12, 3
    %p43 = por %p41, %p42
    %p44 = scmp.ne.s32.totalorder %s36, %s39
    %p45 = scmp.eq.s32.totalorder %s12, 0
    %p46 = por %p44, %p45
    %p47 = scmp.ne.s32.totalorder %s36, %s39
    %p48 = scmp.eq.s32.totalorder %s17, 3
    %p49 = por %p47, %p48
    %p50 = scmp.ne.s32.totalorder %s39, %s40
    %p51 = scmp.eq.s32.totalorder %s17, 0
    %p52 = por %p50, %p51
    %p53 = scmp.ne.s32.totalorder %s39, %s40
    %p54 = scmp.eq.s32.totalorder %s18, 3
    %p55 = por %p53, %p54
    %p57 = scmp.ne.s32.totalorder %s40, %s56
    %p58 = scmp.eq.s32.totalorder %s18, 0
    %p59 = por %p57, %p58
    %s61 = sadd.s32 %s60, 1
    %p64 = scmp.eq.s32.totalorder %s12, 3
    %p65 = scmp.ne.s32.totalorder %s60, %s62
    %p66 = scmp.eq.s32.totalorder %s12, 0
    %p67 = por %p65, %p66
    %p68 = scmp.ne.s32.totalorder %s60, %s62
    %p69 = scmp.eq.s32.totalorder %s17, 3
    %p70 = por %p68, %p69
    %p71 = scmp.ne.s32.totalorder %s62, %s63
    %p72 = scmp.eq.s32.totalorder %s17, 0
    %p73 = por %p71, %p72
    %p74 = scmp.ne.s32.totalorder %s62, %s63
    %p75 = scmp.eq.s32.totalorder %s18, 3
    %p76 = por %p74, %p75
    %p78 = scmp.ne.s32.totalorder %s63, %s77
    %p79 = scmp.eq.s32.totalorder %s18, 0
    %p80 = por %p78, %p79
    %s82 = sadd.s32 %s81, 1
    %p85 = scmp.eq.s32.totalorder %s12, 3
    %p86 = scmp.ne.s32.totalorder %s81, %s83
    %p87 = scmp.eq.s32.totalorder %s12, 0
    %p88 = por %p86, %p87
    %p89 = scmp.ne.s32.totalorder %s81, %s83
    %p90 = scmp.eq.s32.totalorder %s17, 3
    %p91 = por %p89, %p90
    %p92 = scmp.ne.s32.totalorder %s83, %s84
    %p93 = scmp.eq.s32.totalorder %s17, 0
    %p94 = por %p92, %p93
    %p95 = scmp.ne.s32.totalorder %s83, %s84
    %p96 = scmp.eq.s32.totalorder %s18, 3
    %p97 = por %p95, %p96
    %p99 = scmp.ne.s32.totalorder %s84, %s98
    %p100 = scmp.eq.s32.totalorder %s18, 0
    %p101 = por %p99, %p100
    %s103 = sadd.s32 %s102, 1
    %p106 = scmp.eq.s32.totalorder %s12, 3
    %p107 = scmp.ne.s32.totalorder %s102, %s104
    %p108 = scmp.eq.s32.totalorder %s12, 0
    %p109 = por %p107, %p108
    %p110 = scmp.ne.s32.totalorder %s102, %s104
    %p111 = scmp.eq.s32.totalorder %s17, 3
    %p112 = por %p110, %p111
    %p113 = scmp.ne.s32.totalorder %s104, %s105
    %p114 = scmp.eq.s32.totalorder %s17, 0
    %p115 = por %p113, %p114
    %p116 = scmp.ne.s32.totalorder %s104, %s105
    %p117 = scmp.eq.s32.totalorder %s18, 3
    %p118 = por %p116, %p117
    %p120 = scmp.ne.s32.totalorder %s105, %s119
    %p121 = scmp.eq.s32.totalorder %s18, 0
    %p122 = por %p120, %p121
    %s124 = sadd.s32 %s123, 1
    %p127 = scmp.eq.s32.totalorder %s12, 3
    %p128 = scmp.ne.s32.totalorder %s123, %s125
    %p129 = scmp.eq.s32.totalorder %s12, 0
    %p130 = por %p128, %p129
    %p131 = scmp.ne.s32.totalorder %s123, %s125
    %p132 = scmp.eq.s32.totalorder %s17, 3
    %p133 = por %p131, %p132
    %p134 = scmp.ne.s32.totalorder %s125, %s126
    %p135 = scmp.eq.s32.totalorder %s17, 0
    %p136 = por %p134, %p135
    %p137 = scmp.ne.s32.totalorder %s125, %s126
    %p138 = scmp.eq.s32.totalorder %s18, 3
    %p139 = por %p137, %p138
    %p141 = scmp.ne.s32.totalorder %s126, %s140
    %p142 = scmp.eq.s32.totalorder %s18, 0
    %p143 = por %p141, %p142
    %s145 = sadd.s32 %s144, 1
    %p148 = scmp.eq.s32.totalorder %s12, 3
    %p149 = scmp.ne.s32.totalorder %s144, %s146
    %p150 = scmp.eq.s32.totalorder %s12, 0
    %p151 = por %p149, %p150
    %p152 = scmp.ne.s32.totalorder %s144, %s146
    %p153 = scmp.eq.s32.totalorder %s17, 3
    %p154 = por %p152, %p153
    %p155 = scmp.ne.s32.totalorder %s146, %s147
    %p156 = scmp.eq.s32.totalorder %s17, 0
    %p157 = por %p155, %p156
    %p158 = scmp.ne.s32.totalorder %s146, %s147
    %p159 = scmp.eq.s32.totalorder %s18, 3
    %p160 = por %p158, %p159
    %p162 = scmp.ne.s32.totalorder %s147, %s161
    %p163 = scmp.eq.s32.totalorder %s18, 0
    %p164 = por %p162, %p163
    %s165 = ssub.s32 %s19, %s31
    %s166 = ssub.s32 %s20, %s27
    %s167 = sor.u32 %s165, %s166
    %p168 = scmp.eq.s32.totalorder %s167, 0
    %s170 = sadd.s32 %s169, 1
    %s171 = scalar_select %p168, %s169, %s170
    %p174 = pneg %p168
    %p175 = scmp.eq.s32.totalorder %s12, 3
    %p176 = por %p174, %p175
    %p177 = scmp.ne.s32.totalorder %s169, %s172
    %p178 = scmp.eq.s32.totalorder %s12, 0
    %p179 = por %p177, %p178
    %p180 = scmp.ne.s32.totalorder %s169, %s172
    %p181 = scmp.eq.s32.totalorder %s17, 3
    %p182 = por %p180, %p181
    %p183 = scmp.ne.s32.totalorder %s172, %s173
    %p184 = scmp.eq.s32.totalorder %s17, 0
    %p185 = por %p183, %p184
    %p186 = scmp.ne.s32.totalorder %s172, %s173
    %p187 = scmp.eq.s32.totalorder %s18, 3
    %p188 = por %p186, %p187
    %p190 = scmp.ne.s32.totalorder %s173, %s189
    %p191 = scmp.eq.s32.totalorder %s18, 0
    %p192 = por %p190, %p191
    %p193 = scmp.le.s32.totalorder 1, %s12
    %p194 = scmp.lt.s32.totalorder %s12, 5
    %p195 = pnand %p193, %p194
    %p196 = pneg %p195
    // Predicated region
    $region9: #{pixel_discriminator_forward.3} parent=5 // pred_check
      _
    $region10: #{pixel_discriminator_forward.3} parent=5 // pred_check_branch
      %198 = sbr.rel (%p195) target = $region12
    $region11: #{pixel_discriminator_forward.3} parent=5 // pred_region
      %s199 = ssub.s32 %s12, 1
      // Predicated region
      $region13: #{pixel_discriminator_forward.3} parent=11 // pred_check
        %p200 = pneg %p73
      $region14: #{pixel_discriminator_forward.3} parent=11 // pred_check_branch
        %202 = sbr.rel (%p200) target = $region16
      $region15: #{pixel_discriminator_forward.3} parent=11 // pred_region
        _
      $region16: #{pixel_discriminator_forward.3} parent=11 // pred_fallthru
        _
      // Predicated region
      $region17: #{pixel_discriminator_forward.3} parent=11 // pred_check
        %p203 = pneg %p94
      $region18: #{pixel_discriminator_forward.3} parent=11 // pred_check_branch
        %205 = sbr.rel (%p203) target = $region20
      $region19: #{pixel_discriminator_forward.3} parent=11 // pred_region
        _
      $region20: #{pixel_discriminator_forward.3} parent=11 // pred_fallthru
        _
      // Predicated region
      $region21: #{pixel_discriminator_forward.3} parent=11 // pred_check
        %p206 = pneg %p115
      $region22: #{pixel_discriminator_forward.3} parent=11 // pred_check_branch
        %208 = sbr.rel (%p206) target = $region24
      $region23: #{pixel_discriminator_forward.3} parent=11 // pred_region
        _
      $region24: #{pixel_discriminator_forward.3} parent=11 // pred_fallthru
        _
      // Predicated region
      $region25: #{pixel_discriminator_forward.3} parent=11 // pred_check
        %p209 = pneg %p136
      $region26: #{pixel_discriminator_forward.3} parent=11 // pred_check_branch
        %211 = sbr.rel (%p209) target = $region28
      $region27: #{pixel_discriminator_forward.3} parent=11 // pred_region
        _
      $region28: #{pixel_discriminator_forward.3} parent=11 // pred_fallthru
        _
      // Predicated region
      $region29: #{pixel_discriminator_forward.3} parent=11 // pred_check
        %p212 = pneg %p157
      $region30: #{pixel_discriminator_forward.3} parent=11 // pred_check_branch
        %214 = sbr.rel (%p212) target = $region32
      $region31: #{pixel_discriminator_forward.3} parent=11 // pred_region
        _
      $region32: #{pixel_discriminator_forward.3} parent=11 // pred_fallthru
        _
    $region12: #{pixel_discriminator_forward.3} parent=5 // pred_fallthru
      _
    %p215 = scmp.lt.s32.totalorder %s12, 4
    // Predicated region
    $region33: #{pixel_discriminator_forward.3} parent=5 // pred_check
      %p216 = pneg %p215
    $region34: #{pixel_discriminator_forward.3} parent=5 // pred_check_branch
      %218 = sbr.rel (%p216) target = $region36
    $region35: #{pixel_discriminator_forward.3} parent=5 // pred_region
      // Predicated region
      $region37: #{pixel_discriminator_forward.3} parent=35 // pred_check
        %p219 = pneg %p46
      $region38: #{pixel_discriminator_forward.3} parent=35 // pred_check_branch
        %221 = sbr.rel (%p219) target = $region40
      $region39: #{pixel_discriminator_forward.3} parent=35 // pred_region
        %s222 = smul.u32 16, %s20
        %p223 = scmp.lt.s32.totalorder %s19, 1
        %s224 = scalar_select %p223, %s19, 1
        %p225 = scmp.lt.s32.totalorder %s222, 31
        %s226 = scalar_select %p225, %s222, 31
        %s227 = smul.addr %s224, 32
        %s228 = sadd.s32 %s226, %s227
        %s229 = smul.addr %s228, 4
        %s230 = scalar_lea.vmem %s0, %s229
        %s231 = smul.u32 16, %s20
      $region40: #{pixel_discriminator_forward.3} parent=35 // pred_fallthru
        _
    $region36: #{pixel_discriminator_forward.3} parent=5 // pred_fallthru
      _
    %p232 = scmp.le.s32.totalorder 1, %s12
    %p233 = scmp.lt.s32.totalorder %s12, 5
    %p234 = pnand %p232, %p233
    %p235 = pneg %p234
    // Predicated region
    $region41: #{pixel_discriminator_forward.3} parent=5 // pred_check
      _
    $region42: #{pixel_discriminator_forward.3} parent=5 // pred_check_branch
      %237 = sbr.rel (%p234) target = $region44
    $region43: #{pixel_discriminator_forward.3} parent=5 // pred_region
      %s238 = ssub.s32 %s12, 1
      %s239 = smul.u32 16, %s22
      %p240 = scmp.lt.s32.totalorder %s21, 1
      %s241 = scalar_select %p240, %s21, 1
      %p242 = scmp.lt.s32.totalorder %s239, 31
      %s243 = scalar_select %p242, %s239, 31
      %s244 = smul.addr %s241, 32
      %s245 = sadd.s32 %s243, %s244
      %s246 = smul.addr %s245, 4
      %s247 = scalar_lea.vmem %s0, %s246
      %p248 = pneg %p52
      %p249 = pneg %p49
      %p250 = pneg %p73
      %p251 = pneg %p70
      %p252 = pneg %p94
      %p253 = pneg %p91
      %p254 = pneg %p115
      %p255 = pneg %p112
      %p256 = pneg %p136
      %p257 = pneg %p133
      %p258 = pneg %p157
      %p259 = pneg %p154
      %p260 = pneg %p185
      %p261 = pneg %p182
      %s262 = smul.u32 16, %s22
      %p263 = scmp.lt.s32.totalorder %s21, 1
      %s264 = scalar_select %p263, %s21, 1
      %p265 = scmp.lt.s32.totalorder %s262, 31
      %s266 = scalar_select %p265, %s262, 31
      %s267 = smul.addr %s264, 32
      %s268 = sadd.s32 %s266, %s267
      %s269 = scalar_lea.vmem %s6, %s268
      %s270 = smul.u32 16, %s22
      %p271 = scmp.lt.s32.totalorder %s21, 1
      %s272 = scalar_select %p271, %s21, 1
      %p273 = scmp.lt.s32.totalorder %s270, 31
      %s274 = scalar_select %p273, %s270, 31
      %s275 = smul.addr %s272, 32
      %s276 = sadd.s32 %s274, %s275
      %s277 = smul.addr %s276, 4
      %s278 = scalar_lea.vmem %s0, %s277
      %s279 = smul.u32 16, %s22
      %s280 = smul.u32 16, %s22
      %p281 = scmp.lt.s32.totalorder %s21, 1
      %s282 = scalar_select %p281, %s21, 1
      %p283 = scmp.lt.s32.totalorder %s280, 31
      %s284 = scalar_select %p283, %s280, 31
      %s285 = smul.addr %s282, 32
      %s286 = sadd.s32 %s284, %s285
      %s287 = scalar_lea.vmem %s6, %s286
      %s288 = smul.u32 16, %s22
      %v290 = vld [vmem:[%s278] sm:$0xff]
      %v291 = vld [vmem:[%s278 + $0x8] sm:$0xff]
      %v292 = vld [vmem:[%s278 + $0x10] sm:$0xff]
      %v293 = vld [vmem:[%s278 + $0x18] sm:$0xff]
      %v294 = vld [vmem:[%s278 + $0x20] sm:$0xff]
      %v295 = vld [vmem:[%s278 + $0x28] sm:$0xff]
      %v296 = vld [vmem:[%s278 + $0x30] sm:$0xff]
      %v297 = vld [vmem:[%s278 + $0x38] sm:$0xff]
      %v306 = vcombine.high %v290, %v290
      %v307 = vcombine.high %v291, %v291
      %v308 = vcombine.high %v292, %v292
      %v309 = vcombine.high %v293, %v293
      %v310 = vcombine.high %v294, %v294
      %v311 = vcombine.high %v295, %v295
      %v312 = vcombine.high %v296, %v296
      %v313 = vcombine.high %v297, %v297
      %v322 = vpack.c.bf16 %v290, %v290
      %v323 = vpack.c.bf16 %v306, %v306
      %v324 = vpack.c.bf16 %v291, %v291
      %v325 = vpack.c.bf16 %v307, %v307
      %v326 = vpack.c.bf16 %v292, %v292
      %v327 = vpack.c.bf16 %v308, %v308
      %v328 = vpack.c.bf16 %v293, %v293
      %v329 = vpack.c.bf16 %v309, %v309
      %v330 = vpack.c.bf16 %v294, %v294
      %v331 = vpack.c.bf16 %v310, %v310
      %v332 = vpack.c.bf16 %v295, %v295
      %v333 = vpack.c.bf16 %v311, %v311
      %v334 = vpack.c.bf16 %v296, %v296
      %v335 = vpack.c.bf16 %v312, %v312
      %v336 = vpack.c.bf16 %v297, %v297
      %v337 = vpack.c.bf16 %v313, %v313
      %v338 = vld [vmem:[%s1] sm:$0xf]
      %v339 = vld [vmem:[%s1 + $0x4] sm:$0xf]
      %v340 = vld [vmem:[%s1 + $0x8] sm:$0xf]
      %v341 = vld [vmem:[%s1 + $0xc] sm:$0xf]
      %v342 = vld [vmem:[%s1 + $0x10] sm:$0xf]
      %v343 = vld [vmem:[%s1 + $0x14] sm:$0xf]
      %v344 = vld [vmem:[%s1 + $0x18] sm:$0xf]
      %v345 = vld [vmem:[%s1 + $0x1c] sm:$0xf]
      %v346 = vld [vmem:[%s2] sm:$0xff]
      %v347 = vld [vmem:[%s2 + $0x8] sm:$0xff]
      %v348 = vld [vmem:[%s2 + $0x10] sm:$0xff]
      %v349 = vld [vmem:[%s2 + $0x18] sm:$0xff]
      %v350 = vld [vmem:[%s2 + $0x20] sm:$0xff]
      %v351 = vld [vmem:[%s2 + $0x28] sm:$0xff]
      %v352 = vld [vmem:[%s2 + $0x30] sm:$0xff]
      %v353 = vld [vmem:[%s2 + $0x38] sm:$0xff]
      %355 = vset.pattern.permute.xlu0 0
      %356 = vperm.xlu0 %355, %v346
      %v357 = vpop.permute.xlu0 %356
      %360 = vset.pattern.permute.xlu0 0
      %361 = vperm.xlu0 %360, %v347
      %v362 = vpop.permute.xlu0 %361
      %365 = vset.pattern.permute.xlu0 0
      %366 = vperm.xlu0 %365, %v348
      %v367 = vpop.permute.xlu0 %366
      %370 = vset.pattern.permute.xlu0 0
      %371 = vperm.xlu0 %370, %v349
      %v372 = vpop.permute.xlu0 %371
      %375 = vset.pattern.permute.xlu0 0
      %376 = vperm.xlu0 %375, %v350
      %v377 = vpop.permute.xlu0 %376
      %380 = vset.pattern.permute.xlu0 0
      %381 = vperm.xlu0 %380, %v351
      %v382 = vpop.permute.xlu0 %381
      %385 = vset.pattern.permute.xlu0 0
      %386 = vperm.xlu0 %385, %v352
      %v387 = vpop.permute.xlu0 %386
      %390 = vset.pattern.permute.xlu0 0
      %391 = vperm.xlu0 %390, %v353
      %v392 = vpop.permute.xlu0 %391
      %v402 = vunpack.c.l.b16 %v338
      %v403 = vunpack.c.l.b16 %v339
      %v404 = vunpack.c.l.b16 %v340
      %v405 = vunpack.c.l.b16 %v341
      %v406 = vunpack.c.l.b16 %v342
      %v407 = vunpack.c.l.b16 %v343
      %v408 = vunpack.c.l.b16 %v344
      %v409 = vunpack.c.l.b16 %v345
      %v410 = vpack.c.b16 %v403, %v402
      %v411 = vpack.c.b16 %v405, %v404
      %v412 = vpack.c.b16 %v407, %v406
      %v413 = vpack.c.b16 %v409, %v408
      %vm414 = vcmask 31744
      %v416 = vsel %vm414, %v410, 0
      %v419 = vsel %vm414, %v411, 0
      %v422 = vsel %vm414, %v412, 0
      %v425 = vsel %vm414, %v413, 0
      %vm427 = vcmask 1041408
      %v429 = vsel %vm427, %v322, 0
      %v432 = vsel %vm427, %v323, 0
      %v435 = vsel %vm427, %v324, 0
      %v438 = vsel %vm427, %v325, 0
      %v441 = vsel %vm427, %v326, 0
      %v444 = vsel %vm427, %v327, 0
      %v447 = vsel %vm427, %v328, 0
      %v450 = vsel %vm427, %v329, 0
      %v453 = vsel %vm427, %v330, 0
      %v456 = vsel %vm427, %v331, 0
      %v459 = vsel %vm427, %v332, 0
      %v462 = vsel %vm427, %v333, 0
      %v465 = vsel %vm427, %v334, 0
      %v468 = vsel %vm427, %v335, 0
      %v471 = vsel %vm427, %v336, 0
      %v474 = vsel %vm427, %v337, 0
      %476 = vmatprep.subr.bf16.mxu0 %v432
      %477 = vmatpush1.bf16.msra.mxu0 %v429
      %478 = vmatprep.subr.bf16.mxu0 0
      %479 = vmatpush1.bf16.msra.mxu0 0
      %480 = vmatprep.subr.bf16.mxu0 0
      %481 = vmatpush1.bf16.msra.mxu0 0
      %482 = vmatprep.subr.bf16.mxu0 0
      %483 = vmatpush1.bf16.msra.mxu0 0
      %484 = vmatprep.subr.bf16.mxu0 0
      %485 = vmatpush1.bf16.msra.mxu0 0
      %486 = vmatprep.subr.bf16.mxu0 0
      %487 = vmatpush1.bf16.msra.mxu0 0
      %488 = vmatprep.subr.bf16.mxu0 0
      %489 = vmatpush1.bf16.msra.mxu0 0
      %490 = vmatprep.subr.bf16.mxu0 0
      %491 = vmatpush1.bf16.msra.mxu0 0
      %492 = vmatprep.subr.bf16.mxu0 0
      %493 = vmatpush1.bf16.msra.mxu0 0
      %494 = vmatprep.subr.bf16.mxu0 0
      %495 = vmatpush1.bf16.msra.mxu0 0
      %496 = vmatprep.subr.bf16.mxu0 0
      %497 = vmatpush1.bf16.msra.mxu0 0
      %498 = vmatprep.subr.bf16.mxu0 0
      %499 = vmatpush1.bf16.msra.mxu0 0
      %500 = vmatprep.subr.bf16.mxu0 0
      %501 = vmatpush1.bf16.msra.mxu0 0
      %502 = vmatprep.subr.bf16.mxu0 0
      %503 = vmatpush1.bf16.msra.mxu0 0
      %504 = vmatprep.subr.bf16.mxu0 0
      %505 = vmatpush1.bf16.msra.mxu0 0
      %506 = vmatprep.subr.bf16.mxu0 0
      %507 = vmatpush1.bf16.msra.mxu0 0
      %508 = vmatprep.mubr.bf16.mxu0 0
      %509 = vmatmul.mubr.bf16.gmra.mrb[0].mxu0 %v416
      %v510 = vpop.f32.mrb[0].mxu0
      %v511 = vadd.f32 %v357, %v510
      %v512 = vpop.f32.mrb[0].mxu0
      %v513 = vadd.f32 %v357, %v512
      %v514 = vpop.f32.mrb[0].mxu0
      %v515 = vadd.f32 %v362, %v514
      %v516 = vpop.f32.mrb[0].mxu0
      %v517 = vadd.f32 %v362, %v516
      %518 = vmatprep.mubr.bf16.mxu0 0
      %519 = vmatmul.mubr.bf16.gmra.mrb[0].mxu0 %v419
      %v520 = vpop.f32.mrb[0].mxu0
      %v521 = vadd.f32 %v367, %v520
      %v522 = vpop.f32.mrb[0].mxu0
      %v523 = vadd.f32 %v367, %v522
      %v524 = vpop.f32.mrb[0].mxu0
      %v525 = vadd.f32 %v372, %v524
      %v526 = vpop.f32.mrb[0].mxu0
      %v527 = vadd.f32 %v372, %v526
      %528 = vmatprep.mubr.bf16.mxu0 0
      %529 = vmatmul.mubr.bf16.gmra.mrb[0].mxu0 %v422
      %v530 = vpop.f32.mrb[0].mxu0
      %v531 = vadd.f32 %v377, %v530
      %v532 = vpop.f32.mrb[0].mxu0
      %v533 = vadd.f32 %v377, %v532
      %v534 = vpop.f32.mrb[0].mxu0
      %v535 = vadd.f32 %v382, %v534
      %v536 = vpop.f32.mrb[0].mxu0
      %v537 = vadd.f32 %v382, %v536
      %538 = vmatprep.mubr.bf16.mxu0 0
      %539 = vmatmul.mubr.bf16.gmra.mrb[0].mxu0 %v425
      %v540 = vpop.f32.mrb[0].mxu0
      %v541 = vadd.f32 %v387, %v540
      %v542 = vpop.f32.mrb[0].mxu0
      %v543 = vadd.f32 %v387, %v542
      %v544 = vpop.f32.mrb[0].mxu0
      %v545 = vadd.f32 %v392, %v544
      %v546 = vpop.f32.mrb[0].mxu0
      %v547 = vadd.f32 %v392, %v546
      %548 = vdwg.mxu0
      %549 = vmatprep.subr.bf16.mxu0 %v438
      %550 = vmatpush1.bf16.msra.mxu0 %v435
      %551 = vmatprep.subr.bf16.mxu0 0
      %552 = vmatpush1.bf16.msra.mxu0 0
      %553 = vmatprep.subr.bf16.mxu0 0
      %554 = vmatpush1.bf16.msra.mxu0 0
      %555 = vmatprep.subr.bf16.mxu0 0
      %556 = vmatpush1.bf16.msra.mxu0 0
      %557 = vmatprep.subr.bf16.mxu0 0
      %558 = vmatpush1.bf16.msra.mxu0 0
      %559 = vmatprep.subr.bf16.mxu0 0
      %560 = vmatpush1.bf16.msra.mxu0 0
      %561 = vmatprep.subr.bf16.mxu0 0
      %562 = vmatpush1.bf16.msra.mxu0 0
      %563 = vmatprep.subr.bf16.mxu0 0
      %564 = vmatpush1.bf16.msra.mxu0 0
      %565 = vmatprep.subr.bf16.mxu0 0
      %566 = vmatpush1.bf16.msra.mxu0 0
      %567 = vmatprep.subr.bf16.mxu0 0
      %568 = vmatpush1.bf16.msra.mxu0 0
      %569 = vmatprep.subr.bf16.mxu0 0
      %570 = vmatpush1.bf16.msra.mxu0 0
      %571 = vmatprep.subr.bf16.mxu0 0
      %572 = vmatpush1.bf16.msra.mxu0 0
      %573 = vmatprep.subr.bf16.mxu0 0
      %574 = vmatpush1.bf16.msra.mxu0 0
      %575 = vmatprep.subr.bf16.mxu0 0
      %576 = vmatpush1.bf16.msra.mxu0 0
      %577 = vmatprep.subr.bf16.mxu0 0
      %578 = vmatpush1.bf16.msra.mxu0 0
      %579 = vmatprep.subr.bf16.mxu0 0
      %580 = vmatpush1.bf16.msra.mxu0 0
      %581 = vmatprep.mubr.bf16.mxu0 0
      %582 = vmatmul.mubr.bf16.gmra.mrb[0].mxu0 %v416
      %v583 = vpop.f32.mrb[0].mxu0
      %v584 = vadd.f32 %v357, %v583
      %v585 = vpop.f32.mrb[0].mxu0
      %v586 = vadd.f32 %v357, %v585
      %v587 = vpop.f32.mrb[0].mxu0
      %v588 = vadd.f32 %v362, %v587
      %v589 = vpop.f32.mrb[0].mxu0
      %v590 = vadd.f32 %v362, %v589
      %591 = vmatprep.mubr.bf16.mxu0 0
      %592 = vmatmul.mubr.bf16.gmra.mrb[0].mxu0 %v419
      %v593 = vpop.f32.mrb[0].mxu0
      %v594 = vadd.f32 %v367, %v593
      %v595 = vpop.f32.mrb[0].mxu0
      %v596 = vadd.f32 %v367, %v595
      %v597 = vpop.f32.mrb[0].mxu0
      %v598 = vadd.f32 %v372, %v597
      %v599 = vpop.f32.mrb[0].mxu0
      %v600 = vadd.f32 %v372, %v599
      %601 = vmatprep.mubr.bf16.mxu0 0
      %602 = vmatmul.mubr.bf16.gmra.mrb[0].mxu0 %v422
      %v603 = vpop.f32.mrb[0].mxu0
      %v604 = vadd.f32 %v377, %v603
      %v605 = vpop.f32.mrb[0].mxu0
      %v606 = vadd.f32 %v377, %v605
      %v607 = vpop.f32.mrb[0].mxu0
      %v608 = vadd.f32 %v382, %v607
      %v609 = vpop.f32.mrb[0].mxu0
      %v610 = vadd.f32 %v382, %v609
      %611 = vmatprep.mubr.bf16.mxu0 0
      %612 = vmatmul.mubr.bf16.gmra.mrb[0].mxu0 %v425
      %v613 = vpop.f32.mrb[0].mxu0
      %v614 = vadd.f32 %v387, %v613
      %v615 = vpop.f32.mrb[0].mxu0
      %v616 = vadd.f32 %v387, %v615
      %v617 = vpop.f32.mrb[0].mxu0
      %v618 = vadd.f32 %v392, %v617
      %v619 = vpop.f32.mrb[0].mxu0
      %v620 = vadd.f32 %v392, %v619
      %621 = vdwg.mxu0
      %622 = vmatprep.subr.bf16.mxu0 %v444
      %623 = vmatpush1.bf16.msra.mxu0 %v441
      %624 = vmatprep.subr.bf16.mxu0 0
      %625 = vmatpush1.bf16.msra.mxu0 0
      %626 = vmatprep.subr.bf16.mxu0 0
      %627 = vmatpush1.bf16.msra.mxu0 0
      %628 = vmatprep.subr.bf16.mxu0 0
      %629 = vmatpush1.bf16.msra.mxu0 0
      %630 = vmatprep.subr.bf16.mxu0 0
      %631 = vmatpush1.bf16.msra.mxu0 0
      %632 = vmatprep.subr.bf16.mxu0 0
      %633 = vmatpush1.bf16.msra.mxu0 0
      %634 = vmatprep.subr.bf16.mxu0 0
      %635 = vmatpush1.bf16.msra.mxu0 0
      %636 = vmatprep.subr.bf16.mxu0 0
      %637 = vmatpush1.bf16.msra.mxu0 0
      %638 = vmatprep.subr.bf16.mxu0 0
      %639 = vmatpush1.bf16.msra.mxu0 0
      %640 = vmatprep.subr.bf16.mxu0 0
      %641 = vmatpush1.bf16.msra.mxu0 0
      %642 = vmatprep.subr.bf16.mxu0 0
      %643 = vmatpush1.bf16.msra.mxu0 0
      %644 = vmatprep.subr.bf16.mxu0 0
      %645 = vmatpush1.bf16.msra.mxu0 0
      %646 = vmatprep.subr.bf16.mxu0 0
      %647 = vmatpush1.bf16.msra.mxu0 0
      %648 = vmatprep.subr.bf16.mxu0 0
      %649 = vmatpush1.bf16.msra.mxu0 0
      %650 = vmatprep.subr.bf16.mxu0 0
      %651 = vmatpush1.bf16.msra.mxu0 0
      %652 = vmatprep.subr.bf16.mxu0 0
      %653 = vmatpush1.bf16.msra.mxu0 0
      %654 = vmatprep.mubr.bf16.mxu0 0
      %655 = vmatmul.mubr.bf16.gmra.mrb[0].mxu0 %v416
      %v656 = vpop.f32.mrb[0].mxu0
      %v657 = vadd.f32 %v357, %v656
      %v658 = vpop.f32.mrb[0].mxu0
      %v659 = vadd.f32 %v357, %v658
      %v660 = vpop.f32.mrb[0].mxu0
      %v661 = vadd.f32 %v362, %v660
      %v662 = vpop.f32.mrb[0].mxu0
      %v663 = vadd.f32 %v362, %v662
      %664 = vmatprep.mubr.bf16.mxu0 0
      %665 = vmatmul.mubr.bf16.gmra.mrb[0].mxu0 %v419
      %v666 = vpop.f32.mrb[0].mxu0
      %v667 = vadd.f32 %v367, %v666
      %v668 = vpop.f32.mrb[0].mxu0
      %v669 = vadd.f32 %v367, %v668
      %v670 = vpop.f32.mrb[0].mxu0
      %v671 = vadd.f32 %v372, %v670
      %v672 = vpop.f32.mrb[0].mxu0
      %v673 = vadd.f32 %v372, %v672
      %674 = vmatprep.mubr.bf16.mxu0 0
      %675 = vmatmul.mubr.bf16.gmra.mrb[0].mxu0 %v422
      %v676 = vpop.f32.mrb[0].mxu0
      %v677 = vadd.f32 %v377, %v676
      %v678 = vpop.f32.mrb[0].mxu0
      %v679 = vadd.f32 %v377, %v678
      %v680 = vpop.f32.mrb[0].mxu0
      %v681 = vadd.f32 %v382, %v680
      %v682 = vpop.f32.mrb[0].mxu0
      %v683 = vadd.f32 %v382, %v682
      %684 = vmatprep.mubr.bf16.mxu0 0
      %685 = vmatmul.mubr.bf16.gmra.mrb[0].mxu0 %v425
      %v686 = vpop.f32.mrb[0].mxu0
      %v687 = vadd.f32 %v387, %v686
      %v688 = vpop.f32.mrb[0].mxu0
      %v689 = vadd.f32 %v387, %v688
      %v690 = vpop.f32.mrb[0].mxu0
      %v691 = vadd.f32 %v392, %v690
      %v692 = vpop.f32.mrb[0].mxu0
      %v693 = vadd.f32 %v392, %v692
      %694 = vdwg.mxu0
      %695 = vmatprep.subr.bf16.mxu0 %v450
      %696 = vmatpush1.bf16.msra.mxu0 %v447
      %697 = vmatprep.subr.bf16.mxu0 0
      %698 = vmatpush1.bf16.msra.mxu0 0
      %699 = vmatprep.subr.bf16.mxu0 0
      %700 = vmatpush1.bf16.msra.mxu0 0
      %701 = vmatprep.subr.bf16.mxu0 0
      %702 = vmatpush1.bf16.msra.mxu0 0
      %703 = vmatprep.subr.bf16.mxu0 0
      %704 = vmatpush1.bf16.msra.mxu0 0
      %705 = vmatprep.subr.bf16.mxu0 0
      %706 = vmatpush1.bf16.msra.mxu0 0
      %707 = vmatprep.subr.bf16.mxu0 0
      %708 = vmatpush1.bf16.msra.mxu0 0
      %709 = vmatprep.subr.bf16.mxu0 0
      %710 = vmatpush1.bf16.msra.mxu0 0
      %711 = vmatprep.subr.bf16.mxu0 0
      %712 = vmatpush1.bf16.msra.mxu0 0
      %713 = vmatprep.subr.bf16.mxu0 0
      %714 = vmatpush1.bf16.msra.mxu0 0
      %715 = vmatprep.subr.bf16.mxu0 0
      %716 = vmatpush1.bf16.msra.mxu0 0
      %717 = vmatprep.subr.bf16.mxu0 0
      %718 = vmatpush1.bf16.msra.mxu0 0
      %719 = vmatprep.subr.bf16.mxu0 0
      %720 = vmatpush1.bf16.msra.mxu0 0
      %721 = vmatprep.subr.bf16.mxu0 0
      %722 = vmatpush1.bf16.msra.mxu0 0
      %723 = vmatprep.subr.bf16.mxu0 0
      %724 = vmatpush1.bf16.msra.mxu0 0
      %725 = vmatprep.subr.bf16.mxu0 0
      %726 = vmatpush1.bf16.msra.mxu0 0
      %727 = vmatprep.mubr.bf16.mxu0 0
      %728 = vmatmul.mubr.bf16.gmra.mrb[0].mxu0 %v416
      %v729 = vpop.f32.mrb[0].mxu0
      %v730 = vadd.f32 %v357, %v729
      %v731 = vpop.f32.mrb[0].mxu0
      %v732 = vadd.f32 %v357, %v731
      %v733 = vpop.f32.mrb[0].mxu0
      %v734 = vadd.f32 %v362, %v733
      %v735 = vpop.f32.mrb[0].mxu0
      %v736 = vadd.f32 %v362, %v735
      %737 = vmatprep.mubr.bf16.mxu0 0
      %738 = vmatmul.mubr.bf16.gmra.mrb[0].mxu0 %v419
      %v739 = vpop.f32.mrb[0].mxu0
      %v740 = vadd.f32 %v367, %v739
      %v741 = vpop.f32.mrb[0].mxu0
      %v742 = vadd.f32 %v367, %v741
      %v743 = vpop.f32.mrb[0].mxu0
      %v744 = vadd.f32 %v372, %v743
      %v745 = vpop.f32.mrb[0].mxu0
      %v746 = vadd.f32 %v372, %v745
      %747 = vmatprep.mubr.bf16.mxu0 0
      %748 = vmatmul.mubr.bf16.gmra.mrb[0].mxu0 %v422
      %v749 = vpop.f32.mrb[0].mxu0
      %v750 = vadd.f32 %v377, %v749
      %v751 = vpop.f32.mrb[0].mxu0
      %v752 = vadd.f32 %v377, %v751
      %v753 = vpop.f32.mrb[0].mxu0
      %v754 = vadd.f32 %v382, %v753
      %v755 = vpop.f32.mrb[0].mxu0
      %v756 = vadd.f32 %v382, %v755
      %757 = vmatprep.mubr.bf16.mxu0 0
      %758 = vmatmul.mubr.bf16.gmra.mrb[0].mxu0 %v425
      %v759 = vpop.f32.mrb[0].mxu0
      %v760 = vadd.f32 %v387, %v759
      %v761 = vpop.f32.mrb[0].mxu0
      %v762 = vadd.f32 %v387, %v761
      %v763 = vpop.f32.mrb[0].mxu0
      %v764 = vadd.f32 %v392, %v763
      %v765 = vpop.f32.mrb[0].mxu0
      %v766 = vadd.f32 %v392, %v765
      %767 = vdwg.mxu0
      %768 = vmatprep.subr.bf16.mxu0 %v456
      %769 = vmatpush1.bf16.msra.mxu0 %v453
      %770 = vmatprep.subr.bf16.mxu0 0
      %771 = vmatpush1.bf16.msra.mxu0 0
      %772 = vmatprep.subr.bf16.mxu0 0
      %773 = vmatpush1.bf16.msra.mxu0 0
      %774 = vmatprep.subr.bf16.mxu0 0
      %775 = vmatpush1.bf16.msra.mxu0 0
      %776 = vmatprep.subr.bf16.mxu0 0
      %777 = vmatpush1.bf16.msra.mxu0 0
      %778 = vmatprep.subr.bf16.mxu0 0
      %779 = vmatpush1.bf16.msra.mxu0 0
      %780 = vmatprep.subr.bf16.mxu0 0
      %781 = vmatpush1.bf16.msra.mxu0 0
      %782 = vmatprep.subr.bf16.mxu0 0
      %783 = vmatpush1.bf16.msra.mxu0 0
      %784 = vmatprep.subr.bf16.mxu0 0
      %785 = vmatpush1.bf16.msra.mxu0 0
      %786 = vmatprep.subr.bf16.mxu0 0
      %787 = vmatpush1.bf16.msra.mxu0 0
      %788 = vmatprep.subr.bf16.mxu0 0
      %789 = vmatpush1.bf16.msra.mxu0 0
      %790 = vmatprep.subr.bf16.mxu0 0
      %791 = vmatpush1.bf16.msra.mxu0 0
      %792 = vmatprep.subr.bf16.mxu0 0
      %793 = vmatpush1.bf16.msra.mxu0 0
      %794 = vmatprep.subr.bf16.mxu0 0
      %795 = vmatpush1.bf16.msra.mxu0 0
      %796 = vmatprep.subr.bf16.mxu0 0
      %797 = vmatpush1.bf16.msra.mxu0 0
      %798 = vmatprep.subr.bf16.mxu0 0
      %799 = vmatpush1.bf16.msra.mxu0 0
      %800 = vmatprep.mubr.bf16.mxu0 0
      %801 = vmatmul.mubr.bf16.gmra.mrb[0].mxu0 %v416
      %v802 = vpop.f32.mrb[0].mxu0
      %v803 = vadd.f32 %v357, %v802
      %v804 = vpop.f32.mrb[0].mxu0
      %v805 = vadd.f32 %v357, %v804
      %v806 = vpop.f32.mrb[0].mxu0
      %v807 = vadd.f32 %v362, %v806
      %v808 = vpop.f32.mrb[0].mxu0
      %v809 = vadd.f32 %v362, %v808
      %810 = vmatprep.mubr.bf16.mxu0 0
      %811 = vmatmul.mubr.bf16.gmra.mrb[0].mxu0 %v419
      %v812 = vpop.f32.mrb[0].mxu0
      %v813 = vadd.f32 %v367, %v812
      %v814 = vpop.f32.mrb[0].mxu0
      %v815 = vadd.f32 %v367, %v814
      %v816 = vpop.f32.mrb[0].mxu0
      %v817 = vadd.f32 %v372, %v816
      %v818 = vpop.f32.mrb[0].mxu0
      %v819 = vadd.f32 %v372, %v818
      %820 = vmatprep.mubr.bf16.mxu0 0
      %821 = vmatmul.mubr.bf16.gmra.mrb[0].mxu0 %v422
      %v822 = vpop.f32.mrb[0].mxu0
      %v823 = vadd.f32 %v377, %v822
      %v824 = vpop.f32.mrb[0].mxu0
      %v825 = vadd.f32 %v377, %v824
      %v826 = vpop.f32.mrb[0].mxu0
      %v827 = vadd.f32 %v382, %v826
      %v828 = vpop.f32.mrb[0].mxu0
      %v829 = vadd.f32 %v382, %v828
      %830 = vmatprep.mubr.bf16.mxu0 0
      %831 = vmatmul.mubr.bf16.gmra.mrb[0].mxu0 %v425
      %v832 = vpop.f32.mrb[0].mxu0
      %v833 = vadd.f32 %v387, %v832
      %v834 = vpop.f32.mrb[0].mxu0
      %v835 = vadd.f32 %v387, %v834
      %v836 = vpop.f32.mrb[0].mxu0
      %v837 = vadd.f32 %v392, %v836
      %v838 = vpop.f32.mrb[0].mxu0
      %v839 = vadd.f32 %v392, %v838
      %840 = vdwg.mxu0
      %841 = vmatprep.subr.bf16.mxu0 %v462
      %842 = vmatpush1.bf16.msra.mxu0 %v459
      %843 = vmatprep.subr.bf16.mxu0 0
      %844 = vmatpush1.bf16.msra.mxu0 0
      %845 = vmatprep.subr.bf16.mxu0 0
      %846 = vmatpush1.bf16.msra.mxu0 0
      %847 = vmatprep.subr.bf16.mxu0 0
      %848 = vmatpush1.bf16.msra.mxu0 0
      %849 = vmatprep.subr.bf16.mxu0 0
      %850 = vmatpush1.bf16.msra.mxu0 0
      %851 = vmatprep.subr.bf16.mxu0 0
      %852 = vmatpush1.bf16.msra.mxu0 0
      %853 = vmatprep.subr.bf16.mxu0 0
      %854 = vmatpush1.bf16.msra.mxu0 0
      %855 = vmatprep.subr.bf16.mxu0 0
      %856 = vmatpush1.bf16.msra.mxu0 0
      %857 = vmatprep.subr.bf16.mxu0 0
      %858 = vmatpush1.bf16.msra.mxu0 0
      %859 = vmatprep.subr.bf16.mxu0 0
      %860 = vmatpush1.bf16.msra.mxu0 0
      %861 = vmatprep.subr.bf16.mxu0 0
      %862 = vmatpush1.bf16.msra.mxu0 0
      %863 = vmatprep.subr.bf16.mxu0 0
      %864 = vmatpush1.bf16.msra.mxu0 0
      %865 = vmatprep.subr.bf16.mxu0 0
      %866 = vmatpush1.bf16.msra.mxu0 0
      %867 = vmatprep.subr.bf16.mxu0 0
      %868 = vmatpush1.bf16.msra.mxu0 0
      %869 = vmatprep.subr.bf16.mxu0 0
      %870 = vmatpush1.bf16.msra.mxu0 0
      %871 = vmatprep.subr.bf16.mxu0 0
      %872 = vmatpush1.bf16.msra.mxu0 0
      %873 = vmatprep.mubr.bf16.mxu0 0
      %874 = vmatmul.mubr.bf16.gmra.mrb[0].mxu0 %v416
      %v875 = vpop.f32.mrb[0].mxu0
      %v876 = vadd.f32 %v357, %v875
      %v877 = vpop.f32.mrb[0].mxu0
      %v878 = vadd.f32 %v357, %v877
      %v879 = vpop.f32.mrb[0].mxu0
      %v880 = vadd.f32 %v362, %v879
      %v881 = vpop.f32.mrb[0].mxu0
      %v882 = vadd.f32 %v362, %v881
      %883 = vmatprep.mubr.bf16.mxu0 0
      %884 = vmatmul.mubr.bf16.gmra.mrb[0].mxu0 %v419
      %v885 = vpop.f32.mrb[0].mxu0
      %v886 = vadd.f32 %v367, %v885
      %v887 = vpop.f32.mrb[0].mxu0
      %v888 = vadd.f32 %v367, %v887
      %v889 = vpop.f32.mrb[0].mxu0
      %v890 = vadd.f32 %v372, %v889
      %v891 = vpop.f32.mrb[0].mxu0
      %v892 = vadd.f32 %v372, %v891
      %893 = vmatprep.mubr.bf16.mxu0 0
      %894 = vmatmul.mubr.bf16.gmra.mrb[0].mxu0 %v422
      %v895 = vpop.f32.mrb[0].mxu0
      %v896 = vadd.f32 %v377, %v895
      %v897 = vpop.f32.mrb[0].mxu0
      %v898 = vadd.f32 %v377, %v897
      %v899 = vpop.f32.mrb[0].mxu0
      %v900 = vadd.f32 %v382, %v899
      %v901 = vpop.f32.mrb[0].mxu0
      %v902 = vadd.f32 %v382, %v901
      %903 = vmatprep.mubr.bf16.mxu0 0
      %904 = vmatmul.mubr.bf16.gmra.mrb[0].mxu0 %v425
      %v905 = vpop.f32.mrb[0].mxu0
      %v906 = vadd.f32 %v387, %v905
      %v907 = vpop.f32.mrb[0].mxu0
      %v908 = vadd.f32 %v387, %v907
      %v909 = vpop.f32.mrb[0].mxu0
      %v910 = vadd.f32 %v392, %v909
      %v911 = vpop.f32.mrb[0].mxu0
      %v912 = vadd.f32 %v392, %v911
      %913 = vdwg.mxu0
      %914 = vmatprep.subr.bf16.mxu0 %v468
      %915 = vmatpush1.bf16.msra.mxu0 %v465
      %916 = vmatprep.subr.bf16.mxu0 0
      %917 = vmatpush1.bf16.msra.mxu0 0
      %918 = vmatprep.subr.bf16.mxu0 0
      %919 = vmatpush1.bf16.msra.mxu0 0
      %920 = vmatprep.subr.bf16.mxu0 0
      %921 = vmatpush1.bf16.msra.mxu0 0
      %922 = vmatprep.subr.bf16.mxu0 0
      %923 = vmatpush1.bf16.msra.mxu0 0
      %924 = vmatprep.subr.bf16.mxu0 0
      %925 = vmatpush1.bf16.msra.mxu0 0
      %926 = vmatprep.subr.bf16.mxu0 0
      %927 = vmatpush1.bf16.msra.mxu0 0
      %928 = vmatprep.subr.bf16.mxu0 0
      %929 = vmatpush1.bf16.msra.mxu0 0
      %930 = vmatprep.subr.bf16.mxu0 0
      %931 = vmatpush1.bf16.msra.mxu0 0
      %932 = vmatprep.subr.bf16.mxu0 0
      %933 = vmatpush1.bf16.msra.mxu0 0
      %934 = vmatprep.subr.bf16.mxu0 0
      %935 = vmatpush1.bf16.msra.mxu0 0
      %936 = vmatprep.subr.bf16.mxu0 0
      %937 = vmatpush1.bf16.msra.mxu0 0
      %938 = vmatprep.subr.bf16.mxu0 0
      %939 = vmatpush1.bf16.msra.mxu0 0
      %940 = vmatprep.subr.bf16.mxu0 0
      %941 = vmatpush1.bf16.msra.mxu0 0
      %942 = vmatprep.subr.bf16.mxu0 0
      %943 = vmatpush1.bf16.msra.mxu0 0
      %944 = vmatprep.subr.bf16.mxu0 0
      %945 = vmatpush1.bf16.msra.mxu0 0
      %946 = vmatprep.mubr.bf16.mxu0 0
      %947 = vmatmul.mubr.bf16.gmra.mrb[0].mxu0 %v416
      %v948 = vpop.f32.mrb[0].mxu0
      %v949 = vadd.f32 %v357, %v948
      %v950 = vpop.f32.mrb[0].mxu0
      %v951 = vadd.f32 %v357, %v950
      %v952 = vpop.f32.mrb[0].mxu0
      %v953 = vadd.f32 %v362, %v952
      %v954 = vpop.f32.mrb[0].mxu0
      %v955 = vadd.f32 %v362, %v954
      %956 = vmatprep.mubr.bf16.mxu0 0
      %957 = vmatmul.mubr.bf16.gmra.mrb[0].mxu0 %v419
      %v958 = vpop.f32.mrb[0].mxu0
      %v959 = vadd.f32 %v367, %v958
      %v960 = vpop.f32.mrb[0].mxu0
      %v961 = vadd.f32 %v367, %v960
      %v962 = vpop.f32.mrb[0].mxu0
      %v963 = vadd.f32 %v372, %v962
      %v964 = vpop.f32.mrb[0].mxu0
      %v965 = vadd.f32 %v372, %v964
      %966 = vmatprep.mubr.bf16.mxu0 0
      %967 = vmatmul.mubr.bf16.gmra.mrb[0].mxu0 %v422
      %v968 = vpop.f32.mrb[0].mxu0
      %v969 = vadd.f32 %v377, %v968
      %v970 = vpop.f32.mrb[0].mxu0
      %v971 = vadd.f32 %v377, %v970
      %v972 = vpop.f32.mrb[0].mxu0
      %v973 = vadd.f32 %v382, %v972
      %v974 = vpop.f32.mrb[0].mxu0
      %v975 = vadd.f32 %v382, %v974
      %976 = vmatprep.mubr.bf16.mxu0 0
      %977 = vmatmul.mubr.bf16.gmra.mrb[0].mxu0 %v425
      %v978 = vpop.f32.mrb[0].mxu0
      %v979 = vadd.f32 %v387, %v978
      %v980 = vpop.f32.mrb[0].mxu0
      %v981 = vadd.f32 %v387, %v980
      %v982 = vpop.f32.mrb[0].mxu0
      %v983 = vadd.f32 %v392, %v982
      %v984 = vpop.f32.mrb[0].mxu0
      %v985 = vadd.f32 %v392, %v984
      %986 = vdwg.mxu0
      %987 = vmatprep.subr.bf16.mxu0 %v474
      %988 = vmatpush1.bf16.msra.mxu0 %v471
      %989 = vmatprep.subr.bf16.mxu0 0
      %990 = vmatpush1.bf16.msra.mxu0 0
      %991 = vmatprep.subr.bf16.mxu0 0
      %992 = vmatpush1.bf16.msra.mxu0 0
      %993 = vmatprep.subr.bf16.mxu0 0
      %994 = vmatpush1.bf16.msra.mxu0 0
      %995 = vmatprep.subr.bf16.mxu0 0
      %996 = vmatpush1.bf16.msra.mxu0 0
      %997 = vmatprep.subr.bf16.mxu0 0
      %998 = vmatpush1.bf16.msra.mxu0 0
      %999 = vmatprep.subr.bf16.mxu0 0
      %1000 = vmatpush1.bf16.msra.mxu0 0
      %1001 = vmatprep.subr.bf16.mxu0 0
      %1002 = vmatpush1.bf16.msra.mxu0 0
      %1003 = vmatprep.subr.bf16.mxu0 0
      %1004 = vmatpush1.bf16.msra.mxu0 0
      %1005 = vmatprep.subr.bf16.mxu0 0
      %1006 = vmatpush1.bf16.msra.mxu0 0
      %1007 = vmatprep.subr.bf16.mxu0 0
      %1008 = vmatpush1.bf16.msra.mxu0 0
      %1009 = vmatprep.subr.bf16.mxu0 0
      %1010 = vmatpush1.bf16.msra.mxu0 0
      %1011 = vmatprep.subr.bf16.mxu0 0
      %1012 = vmatpush1.bf16.msra.mxu0 0
      %1013 = vmatprep.subr.bf16.mxu0 0
      %1014 = vmatpush1.bf16.msra.mxu0 0
      %1015 = vmatprep.subr.bf16.mxu0 0
      %1016 = vmatpush1.bf16.msra.mxu0 0
      %1017 = vmatprep.subr.bf16.mxu0 0
      %1018 = vmatpush1.bf16.msra.mxu0 0
      %1019 = vmatprep.mubr.bf16.mxu0 0
      %1020 = vmatmul.mubr.bf16.gmra.mrb[0].mxu0 %v416
      %v1021 = vpop.f32.mrb[0].mxu0
      %v1022 = vadd.f32 %v357, %v1021
      %v1023 = vpop.f32.mrb[0].mxu0
      %v1024 = vadd.f32 %v357, %v1023
      %v1025 = vpop.f32.mrb[0].mxu0
      %v1026 = vadd.f32 %v362, %v1025
      %v1027 = vpop.f32.mrb[0].mxu0
      %v1028 = vadd.f32 %v362, %v1027
      %1029 = vmatprep.mubr.bf16.mxu0 0
      %1030 = vmatmul.mubr.bf16.gmra.mrb[0].mxu0 %v419
      %v1031 = vpop.f32.mrb[0].mxu0
      %v1032 = vadd.f32 %v367, %v1031
      %v1033 = vpop.f32.mrb[0].mxu0
      %v1034 = vadd.f32 %v367, %v1033
      %v1035 = vpop.f32.mrb[0].mxu0
      %v1036 = vadd.f32 %v372, %v1035
      %v1037 = vpop.f32.mrb[0].mxu0
      %v1038 = vadd.f32 %v372, %v1037
      %1039 = vmatprep.mubr.bf16.mxu0 0
      %1040 = vmatmul.mubr.bf16.gmra.mrb[0].mxu0 %v422
      %v1041 = vpop.f32.mrb[0].mxu0
      %v1042 = vadd.f32 %v377, %v1041
      %v1043 = vpop.f32.mrb[0].mxu0
      %v1044 = vadd.f32 %v377, %v1043
      %v1045 = vpop.f32.mrb[0].mxu0
      %v1046 = vadd.f32 %v382, %v1045
      %v1047 = vpop.f32.mrb[0].mxu0
      %v1048 = vadd.f32 %v382, %v1047
      %1049 = vmatprep.mubr.bf16.mxu0 0
      %1050 = vmatmul.mubr.bf16.gmra.mrb[0].mxu0 %v425
      %v1051 = vpop.f32.mrb[0].mxu0
      %v1052 = vadd.f32 %v387, %v1051
      %v1053 = vpop.f32.mrb[0].mxu0
      %v1054 = vadd.f32 %v387, %v1053
      %v1055 = vpop.f32.mrb[0].mxu0
      %v1056 = vadd.f32 %v392, %v1055
      %v1057 = vpop.f32.mrb[0].mxu0
      %v1058 = vadd.f32 %v392, %v1057
      %1059 = vdwg.mxu0
      %vm1060 = vcmp.ge.f32.partialorder %v511, 0.0
      %vm1061 = vcmp.ge.f32.partialorder %v513, 0.0
      %vm1062 = vcmp.ge.f32.partialorder %v584, 0.0
      %vm1063 = vcmp.ge.f32.partialorder %v586, 0.0
      %vm1064 = vcmp.ge.f32.partialorder %v657, 0.0
      %vm1065 = vcmp.ge.f32.partialorder %v659, 0.0
      %vm1066 = vcmp.ge.f32.partialorder %v730, 0.0
      %vm1067 = vcmp.ge.f32.partialorder %v732, 0.0
      %vm1068 = vcmp.ge.f32.partialorder %v803, 0.0
      %vm1069 = vcmp.ge.f32.partialorder %v805, 0.0
      %vm1070 = vcmp.ge.f32.partialorder %v876, 0.0
      %vm1071 = vcmp.ge.f32.partialorder %v878, 0.0
      %vm1072 = vcmp.ge.f32.partialorder %v949, 0.0
      %vm1073 = vcmp.ge.f32.partialorder %v951, 0.0
      %vm1074 = vcmp.ge.f32.partialorder %v1022, 0.0
      %vm1075 = vcmp.ge.f32.partialorder %v1024, 0.0
      %vm1076 = vcmp.ge.f32.partialorder %v515, 0.0
      %vm1077 = vcmp.ge.f32.partialorder %v517, 0.0
      %vm1078 = vcmp.ge.f32.partialorder %v588, 0.0
      %vm1079 = vcmp.ge.f32.partialorder %v590, 0.0
      %vm1080 = vcmp.ge.f32.partialorder %v661, 0.0
      %vm1081 = vcmp.ge.f32.partialorder %v663, 0.0
      %vm1082 = vcmp.ge.f32.partialorder %v734, 0.0
      %vm1083 = vcmp.ge.f32.partialorder %v736, 0.0
      %vm1084 = vcmp.ge.f32.partialorder %v807, 0.0
      %vm1085 = vcmp.ge.f32.partialorder %v809, 0.0
      %vm1086 = vcmp.ge.f32.partialorder %v880, 0.0
      %vm1087 = vcmp.ge.f32.partialorder %v882, 0.0
      %vm1088 = vcmp.ge.f32.partialorder %v953, 0.0
      %vm1089 = vcmp.ge.f32.partialorder %v955, 0.0
      %vm1090 = vcmp.ge.f32.partialorder %v1026, 0.0
      %vm1091 = vcmp.ge.f32.partialorder %v1028, 0.0
      %vm1092 = vcmp.ge.f32.partialorder %v521, 0.0
      %vm1093 = vcmp.ge.f32.partialorder %v523, 0.0
      %vm1094 = vcmp.ge.f32.partialorder %v594, 0.0
      %vm1095 = vcmp.ge.f32.partialorder %v596, 0.0
      %vm1096 = vcmp.ge.f32.partialorder %v667, 0.0
      %vm1097 = vcmp.ge.f32.partialorder %v669, 0.0
      %vm1098 = vcmp.ge.f32.partialorder %v740, 0.0
      %vm1099 = vcmp.ge.f32.partialorder %v742, 0.0
      %vm1100 = vcmp.ge.f32.partialorder %v813, 0.0
      %vm1101 = vcmp.ge.f32.partialorder %v815, 0.0
      %vm1102 = vcmp.ge.f32.partialorder %v886, 0.0
      %vm1103 = vcmp.ge.f32.partialorder %v888, 0.0
      %vm1104 = vcmp.ge.f32.partialorder %v959, 0.0
      %vm1105 = vcmp.ge.f32.partialorder %v961, 0.0
      %vm1106 = vcmp.ge.f32.partialorder %v1032, 0.0
      %vm1107 = vcmp.ge.f32.partialorder %v1034, 0.0
      %vm1108 = vcmp.ge.f32.partialorder %v525, 0.0
      %vm1109 = vcmp.ge.f32.partialorder %v527, 0.0
      %vm1110 = vcmp.ge.f32.partialorder %v598, 0.0
      %vm1111 = vcmp.ge.f32.partialorder %v600, 0.0
      %vm1112 = vcmp.ge.f32.partialorder %v671, 0.0
      %vm1113 = vcmp.ge.f32.partialorder %v673, 0.0
      %vm1114 = vcmp.ge.f32.partialorder %v744, 0.0
      %vm1115 = vcmp.ge.f32.partialorder %v746, 0.0
      %vm1116 = vcmp.ge.f32.partialorder %v817, 0.0
      %vm1117 = vcmp.ge.f32.partialorder %v819, 0.0
      %vm1118 = vcmp.ge.f32.partialorder %v890, 0.0
      %vm1119 = vcmp.ge.f32.partialorder %v892, 0.0
      %vm1120 = vcmp.ge.f32.partialorder %v963, 0.0
      %vm1121 = vcmp.ge.f32.partialorder %v965, 0.0
      %vm1122 = vcmp.ge.f32.partialorder %v1036, 0.0
      %vm1123 = vcmp.ge.f32.partialorder %v1038, 0.0
      %vm1124 = vcmp.ge.f32.partialorder %v531, 0.0
      %vm1125 = vcmp.ge.f32.partialorder %v533, 0.0
      %vm1126 = vcmp.ge.f32.partialorder %v604, 0.0
      %vm1127 = vcmp.ge.f32.partialorder %v606, 0.0
      %vm1128 = vcmp.ge.f32.partialorder %v677, 0.0
      %vm1129 = vcmp.ge.f32.partialorder %v679, 0.0
      %vm1130 = vcmp.ge.f32.partialorder %v750, 0.0
      %vm1131 = vcmp.ge.f32.partialorder %v752, 0.0
      %vm1132 = vcmp.ge.f32.partialorder %v823, 0.0
      %vm1133 = vcmp.ge.f32.partialorder %v825, 0.0
      %vm1134 = vcmp.ge.f32.partialorder %v896, 0.0
      %vm1135 = vcmp.ge.f32.partialorder %v898, 0.0
      %vm1136 = vcmp.ge.f32.partialorder %v969, 0.0
      %vm1137 = vcmp.ge.f32.partialorder %v971, 0.0
      %vm1138 = vcmp.ge.f32.partialorder %v1042, 0.0
      %vm1139 = vcmp.ge.f32.partialorder %v1044, 0.0
      %vm1140 = vcmp.ge.f32.partialorder %v535, 0.0
      %vm1141 = vcmp.ge.f32.partialorder %v537, 0.0
      %vm1142 = vcmp.ge.f32.partialorder %v608, 0.0
      %vm1143 = vcmp.ge.f32.partialorder %v610, 0.0
      %vm1144 = vcmp.ge.f32.partialorder %v681, 0.0
      %vm1145 = vcmp.ge.f32.partialorder %v683, 0.0
      %vm1146 = vcmp.ge.f32.partialorder %v754, 0.0
      %vm1147 = vcmp.ge.f32.partialorder %v756, 0.0
      %vm1148 = vcmp.ge.f32.partialorder %v827, 0.0
      %vm1149 = vcmp.ge.f32.partialorder %v829, 0.0
      %vm1150 = vcmp.ge.f32.partialorder %v900, 0.0
      %vm1151 = vcmp.ge.f32.partialorder %v902, 0.0
      %vm1152 = vcmp.ge.f32.partialorder %v973, 0.0
      %vm1153 = vcmp.ge.f32.partialorder %v975, 0.0
      %vm1154 = vcmp.ge.f32.partialorder %v1046, 0.0
      %vm1155 = vcmp.ge.f32.partialorder %v1048, 0.0
      %vm1156 = vcmp.ge.f32.partialorder %v541, 0.0
      %vm1157 = vcmp.ge.f32.partialorder %v543, 0.0
      %vm1158 = vcmp.ge.f32.partialorder %v614, 0.0
      %vm1159 = vcmp.ge.f32.partialorder %v616, 0.0
      %vm1160 = vcmp.ge.f32.partialorder %v687, 0.0
      %vm1161 = vcmp.ge.f32.partialorder %v689, 0.0
      %vm1162 = vcmp.ge.f32.partialorder %v760, 0.0
      %vm1163 = vcmp.ge.f32.partialorder %v762, 0.0
      %vm1164 = vcmp.ge.f32.partialorder %v833, 0.0
      %vm1165 = vcmp.ge.f32.partialorder %v835, 0.0
      %vm1166 = vcmp.ge.f32.partialorder %v906, 0.0
      %vm1167 = vcmp.ge.f32.partialorder %v908, 0.0
      %vm1168 = vcmp.ge.f32.partialorder %v979, 0.0
      %vm1169 = vcmp.ge.f32.partialorder %v981, 0.0
      %vm1170 = vcmp.ge.f32.partialorder %v1052, 0.0
      %vm1171 = vcmp.ge.f32.partialorder %v1054, 0.0
      %vm1172 = vcmp.ge.f32.partialorder %v545, 0.0
      %vm1173 = vcmp.ge.f32.partialorder %v547, 0.0
      %vm1174 = vcmp.ge.f32.partialorder %v618, 0.0
      %vm1175 = vcmp.ge.f32.partialorder %v620, 0.0
      %vm1176 = vcmp.ge.f32.partialorder %v691, 0.0
      %vm1177 = vcmp.ge.f32.partialorder %v693, 0.0
      %vm1178 = vcmp.ge.f32.partialorder %v764, 0.0
      %vm1179 = vcmp.ge.f32.partialorder %v766, 0.0
      %vm1180 = vcmp.ge.f32.partialorder %v837, 0.0
      %vm1181 = vcmp.ge.f32.partialorder %v839, 0.0
      %vm1182 = vcmp.ge.f32.partialorder %v910, 0.0
      %vm1183 = vcmp.ge.f32.partialorder %v912, 0.0
      %vm1184 = vcmp.ge.f32.partialorder %v983, 0.0
      %vm1185 = vcmp.ge.f32.partialorder %v985, 0.0
      %vm1186 = vcmp.ge.f32.partialorder %v1056, 0.0
      %vm1187 = vcmp.ge.f32.partialorder %v1058, 0.0
      %v1188 = vmul.f32 %v511, 0.2
      %v1189 = vmul.f32 %v513, 0.2
      %v1190 = vmul.f32 %v584, 0.2
      %v1191 = vmul.f32 %v586, 0.2
      %v1192 = vmul.f32 %v657, 0.2
      %v1193 = vmul.f32 %v659, 0.2
      %v1194 = vmul.f32 %v730, 0.2
      %v1195 = vmul.f32 %v732, 0.2
      %v1196 = vmul.f32 %v803, 0.2
      %v1197 = vmul.f32 %v805, 0.2
      %v1198 = vmul.f32 %v876, 0.2
      %v1199 = vmul.f32 %v878, 0.2
      %v1200 = vmul.f32 %v949, 0.2
      %v1201 = vmul.f32 %v951, 0.2
      %v1202 = vmul.f32 %v1022, 0.2
      %v1203 = vmul.f32 %v1024, 0.2
      %v1204 = vmul.f32 %v515, 0.2
      %v1205 = vmul.f32 %v517, 0.2
      %v1206 = vmul.f32 %v588, 0.2
      %v1207 = vmul.f32 %v590, 0.2
      %v1208 = vmul.f32 %v661, 0.2
      %v1209 = vmul.f32 %v663, 0.2
      %v1210 = vmul.f32 %v734, 0.2
      %v1211 = vmul.f32 %v736, 0.2
      %v1212 = vmul.f32 %v807, 0.2
      %v1213 = vmul.f32 %v809, 0.2
      %v1214 = vmul.f32 %v880, 0.2
      %v1215 = vmul.f32 %v882, 0.2
      %v1216 = vmul.f32 %v953, 0.2
      %v1217 = vmul.f32 %v955, 0.2
      %v1218 = vmul.f32 %v1026, 0.2
      %v1219 = vmul.f32 %v1028, 0.2
      %v1220 = vmul.f32 %v521, 0.2
      %v1221 = vmul.f32 %v523, 0.2
      %v1222 = vmul.f32 %v594, 0.2
      %v1223 = vmul.f32 %v596, 0.2
      %v1224 = vmul.f32 %v667, 0.2
      %v1225 = vmul.f32 %v669, 0.2
      %v1226 = vmul.f32 %v740, 0.2
      %v1227 = vmul.f32 %v742, 0.2
      %v1228 = vmul.f32 %v813, 0.2
      %v1229 = vmul.f32 %v815, 0.2
      %v1230 = vmul.f32 %v886, 0.2
      %v1231 = vmul.f32 %v888, 0.2
      %v1232 = vmul.f32 %v959, 0.2
      %v1233 = vmul.f32 %v961, 0.2
      %v1234 = vmul.f32 %v1032, 0.2
      %v1235 = vmul.f32 %v1034, 0.2
      %v1236 = vmul.f32 %v525, 0.2
      %v1237 = vmul.f32 %v527, 0.2
      %v1238 = vmul.f32 %v598, 0.2
      %v1239 = vmul.f32 %v600, 0.2
      %v1240 = vmul.f32 %v671, 0.2
      %v1241 = vmul.f32 %v673, 0.2
      %v1242 = vmul.f32 %v744, 0.2
      %v1243 = vmul.f32 %v746, 0.2
      %v1244 = vmul.f32 %v817, 0.2
      %v1245 = vmul.f32 %v819, 0.2
      %v1246 = vmul.f32 %v890, 0.2
      %v1247 = vmul.f32 %v892, 0.2
      %v1248 = vmul.f32 %v963, 0.2
      %v1249 = vmul.f32 %v965, 0.2
      %v1250 = vmul.f32 %v1036, 0.2
      %v1251 = vmul.f32 %v1038, 0.2
      %v1252 = vmul.f32 %v531, 0.2
      %v1253 = vmul.f32 %v533, 0.2
      %v1254 = vmul.f32 %v604, 0.2
      %v1255 = vmul.f32 %v606, 0.2
      %v1256 = vmul.f32 %v677, 0.2
      %v1257 = vmul.f32 %v679, 0.2
      %v1258 = vmul.f32 %v750, 0.2
      %v1259 = vmul.f32 %v752, 0.2
      %v1260 = vmul.f32 %v823, 0.2
      %v1261 = vmul.f32 %v825, 0.2
      %v1262 = vmul.f32 %v896, 0.2
      %v1263 = vmul.f32 %v898, 0.2
      %v1264 = vmul.f32 %v969, 0.2
      %v1265 = vmul.f32 %v971, 0.2
      %v1266 = vmul.f32 %v1042, 0.2
      %v1267 = vmul.f32 %v1044, 0.2
      %v1268 = vmul.f32 %v535, 0.2
      %v1269 = vmul.f32 %v537, 0.2
      %v1270 = vmul.f32 %v608, 0.2
      %v1271 = vmul.f32 %v610, 0.2
      %v1272 = vmul.f32 %v681, 0.2
      %v1273 = vmul.f32 %v683, 0.2
      %v1274 = vmul.f32 %v754, 0.2
      %v1275 = vmul.f32 %v756, 0.2
      %v1276 = vmul.f32 %v827, 0.2
      %v1277 = vmul.f32 %v829, 0.2
      %v1278 = vmul.f32 %v900, 0.2
      %v1279 = vmul.f32 %v902, 0.2
      %v1280 = vmul.f32 %v973, 0.2
      %v1281 = vmul.f32 %v975, 0.2
      %v1282 = vmul.f32 %v1046, 0.2
      %v1283 = vmul.f32 %v1048, 0.2
      %v1284 = vmul.f32 %v541, 0.2
      %v1285 = vmul.f32 %v543, 0.2
      %v1286 = vmul.f32 %v614, 0.2
      %v1287 = vmul.f32 %v616, 0.2
      %v1288 = vmul.f32 %v687, 0.2
      %v1289 = vmul.f32 %v689, 0.2
      %v1290 = vmul.f32 %v760, 0.2
      %v1291 = vmul.f32 %v762, 0.2
      %v1292 = vmul.f32 %v833, 0.2
      %v1293 = vmul.f32 %v835, 0.2
      %v1294 = vmul.f32 %v906, 0.2
      %v1295 = vmul.f32 %v908, 0.2
      %v1296 = vmul.f32 %v979, 0.2
      %v1297 = vmul.f32 %v981, 0.2
      %v1298 = vmul.f32 %v1052, 0.2
      %v1299 = vmul.f32 %v1054, 0.2
      %v1300 = vmul.f32 %v545, 0.2
      %v1301 = vmul.f32 %v547, 0.2
      %v1302 = vmul.f32 %v618, 0.2
      %v1303 = vmul.f32 %v620, 0.2
      %v1304 = vmul.f32 %v691, 0.2
      %v1305 = vmul.f32 %v693, 0.2
      %v1306 = vmul.f32 %v764, 0.2
      %v1307 = vmul.f32 %v766, 0.2
      %v1308 = vmul.f32 %v837, 0.2
      %v1309 = vmul.f32 %v839, 0.2
      %v1310 = vmul.f32 %v910, 0.2
      %v1311 = vmul.f32 %v912, 0.2
      %v1312 = vmul.f32 %v983, 0.2
      %v1313 = vmul.f32 %v985, 0.2
      %v1314 = vmul.f32 %v1056, 0.2
      %v1315 = vmul.f32 %v1058, 0.2
      %v1316 = vsel %vm1060, %v511, %v1188
      %v1317 = vsel %vm1061, %v513, %v1189
      %v1318 = vsel %vm1062, %v584, %v1190
      %v1319 = vsel %vm1063, %v586, %v1191
      %v1320 = vsel %vm1064, %v657, %v1192
      %v1321 = vsel %vm1065, %v659, %v1193
      %v1322 = vsel %vm1066, %v730, %v1194
      %v1323 = vsel %vm1067, %v732, %v1195
      %v1324 = vsel %vm1068, %v803, %v1196
      %v1325 = vsel %vm1069, %v805, %v1197
      %v1326 = vsel %vm1070, %v876, %v1198
      %v1327 = vsel %vm1071, %v878, %v1199
      %v1328 = vsel %vm1072, %v949, %v1200
      %v1329 = vsel %vm1073, %v951, %v1201
      %v1330 = vsel %vm1074, %v1022, %v1202
      %v1331 = vsel %vm1075, %v1024, %v1203
      %v1332 = vsel %vm1076, %v515, %v1204
      %v1333 = vsel %vm1077, %v517, %v1205
      %v1334 = vsel %vm1078, %v588, %v1206
      %v1335 = vsel %vm1079, %v590, %v1207
      %v1336 = vsel %vm1080, %v661, %v1208
      %v1337 = vsel %vm1081, %v663, %v1209
      %v1338 = vsel %vm1082, %v734, %v1210
      %v1339 = vsel %vm1083, %v736, %v1211
      %v1340 = vsel %vm1084, %v807, %v1212
      %v1341 = vsel %vm1085, %v809, %v1213
      %v1342 = vsel %vm1086, %v880, %v1214
      %v1343 = vsel %vm1087, %v882, %v1215
      %v1344 = vsel %vm1088, %v953, %v1216
      %v1345 = vsel %vm1089, %v955, %v1217
      %v1346 = vsel %vm1090, %v1026, %v1218
      %v1347 = vsel %vm1091, %v1028, %v1219
      %v1348 = vsel %vm1092, %v521, %v1220
      %v1349 = vsel %vm1093, %v523, %v1221
      %v1350 = vsel %vm1094, %v594, %v1222
      %v1351 = vsel %vm1095, %v596, %v1223
      %v1352 = vsel %vm1096, %v667, %v1224
      %v1353 = vsel %vm1097, %v669, %v1225
      %v1354 = vsel %vm1098, %v740, %v1226
      %v1355 = vsel %vm1099, %v742, %v1227
      %v1356 = vsel %vm1100, %v813, %v1228
      %v1357 = vsel %vm1101, %v815, %v1229
      %v1358 = vsel %vm1102, %v886, %v1230
      %v1359 = vsel %vm1103, %v888, %v1231
      %v1360 = vsel %vm1104, %v959, %v1232
      %v1361 = vsel %vm1105, %v961, %v1233
      %v1362 = vsel %vm1106, %v1032, %v1234
      %v1363 = vsel %vm1107, %v1034, %v1235
      %v1364 = vsel %vm1108, %v525, %v1236
      %v1365 = vsel %vm1109, %v527, %v1237
      %v1366 = vsel %vm1110, %v598, %v1238
      %v1367 = vsel %vm1111, %v600, %v1239
      %v1368 = vsel %vm1112, %v671, %v1240
      %v1369 = vsel %vm1113, %v673, %v1241
      %v1370 = vsel %vm1114, %v744, %v1242
      %v1371 = vsel %vm1115, %v746, %v1243
      %v1372 = vsel %vm1116, %v817, %v1244
      %v1373 = vsel %vm1117, %v819, %v1245
      %v1374 = vsel %vm1118, %v890, %v1246
      %v1375 = vsel %vm1119, %v892, %v1247
      %v1376 = vsel %vm1120, %v963, %v1248
      %v1377 = vsel %vm1121, %v965, %v1249
      %v1378 = vsel %vm1122, %v1036, %v1250
      %v1379 = vsel %vm1123, %v1038, %v1251
      %v1380 = vsel %vm1124, %v531, %v1252
      %v1381 = vsel %vm1125, %v533, %v1253
      %v1382 = vsel %vm1126, %v604, %v1254
      %v1383 = vsel %vm1127, %v606, %v1255
      %v1384 = vsel %vm1128, %v677, %v1256
      %v1385 = vsel %vm1129, %v679, %v1257
      %v1386 = vsel %vm1130, %v750, %v1258
      %v1387 = vsel %vm1131, %v752, %v1259
      %v1388 = vsel %vm1132, %v823, %v1260
      %v1389 = vsel %vm1133, %v825, %v1261
      %v1390 = vsel %vm1134, %v896, %v1262
      %v1391 = vsel %vm1135, %v898, %v1263
      %v1392 = vsel %vm1136, %v969, %v1264
      %v1393 = vsel %vm1137, %v971, %v1265
      %v1394 = vsel %vm1138, %v1042, %v1266
      %v1395 = vsel %vm1139, %v1044, %v1267
      %v1396 = vsel %vm1140, %v535, %v1268
      %v1397 = vsel %vm1141, %v537, %v1269
      %v1398 = vsel %vm1142, %v608, %v1270
      %v1399 = vsel %vm1143, %v610, %v1271
      %v1400 = vsel %vm1144, %v681, %v1272
      %v1401 = vsel %vm1145, %v683, %v1273
      %v1402 = vsel %vm1146, %v754, %v1274
      %v1403 = vsel %vm1147, %v756, %v1275
      %v1404 = vsel %vm1148, %v827, %v1276
      %v1405 = vsel %vm1149, %v829, %v1277
      %v1406 = vsel %vm1150, %v900, %v1278
      %v1407 = vsel %vm1151, %v902, %v1279
      %v1408 = vsel %vm1152, %v973, %v1280
      %v1409 = vsel %vm1153, %v975, %v1281
      %v1410 = vsel %vm1154, %v1046, %v1282
      %v1411 = vsel %vm1155, %v1048, %v1283
      %v1412 = vsel %vm1156, %v541, %v1284
      %v1413 = vsel %vm1157, %v543, %v1285
      %v1414 = vsel %vm1158, %v614, %v1286
      %v1415 = vsel %vm1159, %v616, %v1287
      %v1416 = vsel %vm1160, %v687, %v1288
      %v1417 = vsel %vm1161, %v689, %v1289
      %v1418 = vsel %vm1162, %v760, %v1290
      %v1419 = vsel %vm1163, %v762, %v1291
      %v1420 = vsel %vm1164, %v833, %v1292
      %v1421 = vsel %vm1165, %v835, %v1293
      %v1422 = vsel %vm1166, %v906, %v1294
      %v1423 = vsel %vm1167, %v908, %v1295
      %v1424 = vsel %vm1168, %v979, %v1296
      %v1425 = vsel %vm1169, %v981, %v1297
      %v1426 = vsel %vm1170, %v1052, %v1298
      %v1427 = vsel %vm1171, %v1054, %v1299
      %v1428 = vsel %vm1172, %v545, %v1300
      %v1429 = vsel %vm1173, %v547, %v1301
      %v1430 = vsel %vm1174, %v618, %v1302
      %v1431 = vsel %vm1175, %v620, %v1303
      %v1432 = vsel %vm1176, %v691, %v1304
      %v1433 = vsel %vm1177, %v693, %v1305
      %v1434 = vsel %vm1178, %v764, %v1306
      %v1435 = vsel %vm1179, %v766, %v1307
      %v1436 = vsel %vm1180, %v837, %v1308
      %v1437 = vsel %vm1181, %v839, %v1309
      %v1438 = vsel %vm1182, %v910, %v1310
      %v1439 = vsel %vm1183, %v912, %v1311
      %v1440 = vsel %vm1184, %v983, %v1312
      %v1441 = vsel %vm1185, %v985, %v1313
      %v1442 = vsel %vm1186, %v1056, %v1314
      %v1443 = vsel %vm1187, %v1058, %v1315
      %v1444 = vld [vmem:[%s3] sm:$0xf]
      %v1445 = vld [vmem:[%s3 + $0x4] sm:$0xf]
      %v1446 = vld [vmem:[%s3 + $0x8] sm:$0xf]
      %v1447 = vld [vmem:[%s3 + $0xc] sm:$0xf]
      %v1448 = vld [vmem:[%s3 + $0x10] sm:$0xf]
      %v1449 = vld [vmem:[%s3 + $0x14] sm:$0xf]
      %v1450 = vld [vmem:[%s3 + $0x18] sm:$0xf]
      %v1451 = vld [vmem:[%s3 + $0x1c] sm:$0xf]
      %v1452 = vld [vmem:[%s3 + $0x20] sm:$0xf]
      %v1453 = vld [vmem:[%s3 + $0x24] sm:$0xf]
      %v1454 = vld [vmem:[%s3 + $0x28] sm:$0xf]
      %v1455 = vld [vmem:[%s3 + $0x2c] sm:$0xf]
      %v1456 = vld [vmem:[%s3 + $0x30] sm:$0xf]
      %v1457 = vld [vmem:[%s3 + $0x34] sm:$0xf]
      %v1458 = vld [vmem:[%s3 + $0x38] sm:$0xf]
      %v1459 = vld [vmem:[%s3 + $0x3c] sm:$0xf]
      %v1460 = vpack.c.bf16 %v1332, %v1316
      %v1461 = vpack.c.bf16 %v1333, %v1317
      %v1462 = vpack.c.bf16 %v1334, %v1318
      %v1463 = vpack.c.bf16 %v1335, %v1319
      %v1464 = vpack.c.bf16 %v1336, %v1320
      %v1465 = vpack.c.bf16 %v1337, %v1321
      %v1466 = vpack.c.bf16 %v1338, %v1322
      %v1467 = vpack.c.bf16 %v1339, %v1323
      %v1468 = vpack.c.bf16 %v1340, %v1324
      %v1469 = vpack.c.bf16 %v1341, %v1325
      %v1470 = vpack.c.bf16 %v1342, %v1326
      %v1471 = vpack.c.bf16 %v1343, %v1327
      %v1472 = vpack.c.bf16 %v1344, %v1328
      %v1473 = vpack.c.bf16 %v1345, %v1329
      %v1474 = vpack.c.bf16 %v1346, %v1330
      %v1475 = vpack.c.bf16 %v1347, %v1331
      %v1476 = vpack.c.bf16 %v1364, %v1348
      %v1477 = vpack.c.bf16 %v1365, %v1349
      %v1478 = vpack.c.bf16 %v1366, %v1350
      %v1479 = vpack.c.bf16 %v1367, %v1351
      %v1480 = vpack.c.bf16 %v1368, %v1352
      %v1481 = vpack.c.bf16 %v1369, %v1353
      %v1482 = vpack.c.bf16 %v1370, %v1354
      %v1483 = vpack.c.bf16 %v1371, %v1355
      %v1484 = vpack.c.bf16 %v1372, %v1356
      %v1485 = vpack.c.bf16 %v1373, %v1357
      %v1486 = vpack.c.bf16 %v1374, %v1358
      %v1487 = vpack.c.bf16 %v1375, %v1359
      %v1488 = vpack.c.bf16 %v1376, %v1360
      %v1489 = vpack.c.bf16 %v1377, %v1361
      %v1490 = vpack.c.bf16 %v1378, %v1362
      %v1491 = vpack.c.bf16 %v1379, %v1363
      %v1492 = vpack.c.bf16 %v1396, %v1380
      %v1493 = vpack.c.bf16 %v1397, %v1381
      %v1494 = vpack.c.bf16 %v1398, %v1382
      %v1495 = vpack.c.bf16 %v1399, %v1383
      %v1496 = vpack.c.bf16 %v1400, %v1384
      %v1497 = vpack.c.bf16 %v1401, %v1385
      %v1498 = vpack.c.bf16 %v1402, %v1386
      %v1499 = vpack.c.bf16 %v1403, %v1387
      %v1500 = vpack.c.bf16 %v1404, %v1388
      %v1501 = vpack.c.bf16 %v1405, %v1389
      %v1502 = vpack.c.bf16 %v1406, %v1390
      %v1503 = vpack.c.bf16 %v1407, %v1391
      %v1504 = vpack.c.bf16 %v1408, %v1392
      %v1505 = vpack.c.bf16 %v1409, %v1393
      %v1506 = vpack.c.bf16 %v1410, %v1394
      %v1507 = vpack.c.bf16 %v1411, %v1395
      %v1508 = vpack.c.bf16 %v1428, %v1412
      %v1509 = vpack.c.bf16 %v1429, %v1413
      %v1510 = vpack.c.bf16 %v1430, %v1414
      %v1511 = vpack.c.bf16 %v1431, %v1415
      %v1512 = vpack.c.bf16 %v1432, %v1416
      %v1513 = vpack.c.bf16 %v1433, %v1417
      %v1514 = vpack.c.bf16 %v1434, %v1418
      %v1515 = vpack.c.bf16 %v1435, %v1419
      %v1516 = vpack.c.bf16 %v1436, %v1420
      %v1517 = vpack.c.bf16 %v1437, %v1421
      %v1518 = vpack.c.bf16 %v1438, %v1422
      %v1519 = vpack.c.bf16 %v1439, %v1423
      %v1520 = vpack.c.bf16 %v1440, %v1424
      %v1521 = vpack.c.bf16 %v1441, %v1425
      %v1522 = vpack.c.bf16 %v1442, %v1426
      %v1523 = vpack.c.bf16 %v1443, %v1427
      %v1524 = vld [vmem:[%s4] sm:$0xff]
      %v1525 = vld [vmem:[%s4 + $0x8] sm:$0xff]
      %v1526 = vld [vmem:[%s4 + $0x10] sm:$0xff]
      %v1527 = vld [vmem:[%s4 + $0x18] sm:$0xff]
      %v1528 = vld [vmem:[%s4 + $0x20] sm:$0xff]
      %v1529 = vld [vmem:[%s4 + $0x28] sm:$0xff]
      %v1530 = vld [vmem:[%s4 + $0x30] sm:$0xff]
      %v1531 = vld [vmem:[%s4 + $0x38] sm:$0xff]
      %v1532 = vld [vmem:[%s4 + $0x40] sm:$0xff]
      %v1533 = vld [vmem:[%s4 + $0x48] sm:$0xff]
      %v1534 = vld [vmem:[%s4 + $0x50] sm:$0xff]
      %v1535 = vld [vmem:[%s4 + $0x58] sm:$0xff]
      %v1536 = vld [vmem:[%s4 + $0x60] sm:$0xff]
      %v1537 = vld [vmem:[%s4 + $0x68] sm:$0xff]
      %v1538 = vld [vmem:[%s4 + $0x70] sm:$0xff]
      %v1539 = vld [vmem:[%s4 + $0x78] sm:$0xff]
      %1541 = vset.pattern.permute.xlu0 0
      %1542 = vperm.xlu0 %1541, %v1524
      %v1543 = vpop.permute.xlu0 %1542
      %1546 = vset.pattern.permute.xlu0 0
      %1547 = vperm.xlu0 %1546, %v1525
      %v1548 = vpop.permute.xlu0 %1547
      %1551 = vset.pattern.permute.xlu0 0
      %1552 = vperm.xlu0 %1551, %v1526
      %v1553 = vpop.permute.xlu0 %1552
      %1556 = vset.pattern.permute.xlu0 0
      %1557 = vperm.xlu0 %1556, %v1527
      %v1558 = vpop.permute.xlu0 %1557
      %1561 = vset.pattern.permute.xlu0 0
      %1562 = vperm.xlu0 %1561, %v1528
      %v1563 = vpop.permute.xlu0 %1562
      %1566 = vset.pattern.permute.xlu0 0
      %1567 = vperm.xlu0 %1566, %v1529
      %v1568 = vpop.permute.xlu0 %1567
      %1571 = vset.pattern.permute.xlu0 0
      %1572 = vperm.xlu0 %1571, %v1530
      %v1573 = vpop.permute.xlu0 %1572
      %1576 = vset.pattern.permute.xlu0 0
      %1577 = vperm.xlu0 %1576, %v1531
      %v1578 = vpop.permute.xlu0 %1577
      %1581 = vset.pattern.permute.xlu0 0
      %1582 = vperm.xlu0 %1581, %v1532
      %v1583 = vpop.permute.xlu0 %1582
      %1586 = vset.pattern.permute.xlu0 0
      %1587 = vperm.xlu0 %1586, %v1533
      %v1588 = vpop.permute.xlu0 %1587
      %1591 = vset.pattern.permute.xlu0 0
      %1592 = vperm.xlu0 %1591, %v1534
      %v1593 = vpop.permute.xlu0 %1592
      %1596 = vset.pattern.permute.xlu0 0
      %1597 = vperm.xlu0 %1596, %v1535
      %v1598 = vpop.permute.xlu0 %1597
      %1601 = vset.pattern.permute.xlu0 0
      %1602 = vperm.xlu0 %1601, %v1536
      %v1603 = vpop.permute.xlu0 %1602
      %1606 = vset.pattern.permute.xlu0 0
      %1607 = vperm.xlu0 %1606, %v1537
      %v1608 = vpop.permute.xlu0 %1607
      %1611 = vset.pattern.permute.xlu0 0
      %1612 = vperm.xlu0 %1611, %v1538
      %v1613 = vpop.permute.xlu0 %1612
      %1616 = vset.pattern.permute.xlu0 0
      %1617 = vperm.xlu0 %1616, %v1539
      %v1618 = vpop.permute.xlu0 %1617
      %v1636 = vunpack.c.l.b16 %v1444
      %v1637 = vunpack.c.l.b16 %v1445
      %v1638 = vunpack.c.l.b16 %v1446
      %v1639 = vunpack.c.l.b16 %v1447
      %v1640 = vunpack.c.l.b16 %v1448
      %v1641 = vunpack.c.l.b16 %v1449
      %v1642 = vunpack.c.l.b16 %v1450
      %v1643 = vunpack.c.l.b16 %v1451
      %v1644 = vunpack.c.l.b16 %v1452
      %v1645 = vunpack.c.l.b16 %v1453
      %v1646 = vunpack.c.l.b16 %v1454
      %v1647 = vunpack.c.l.b16 %v1455
      %v1648 = vunpack.c.l.b16 %v1456
      %v1649 = vunpack.c.l.b16 %v1457
      %v1650 = vunpack.c.l.b16 %v1458
      %v1651 = vunpack.c.l.b16 %v1459
      %v1652 = vpack.c.b16 %v1637, %v1636
      %v1653 = vpack.c.b16 %v1639, %v1638
      %v1654 = vpack.c.b16 %v1641, %v1640
      %v1655 = vpack.c.b16 %v1643, %v1642
      %v1656 = vpack.c.b16 %v1645, %v1644
      %v1657 = vpack.c.b16 %v1647, %v1646
      %v1658 = vpack.c.b16 %v1649, %v1648
      %v1659 = vpack.c.b16 %v1651, %v1650
      %vm1660 = vcmask 523264
      %v1662 = vsel %vm1660, %v1652, 0
      %v1665 = vsel %vm1660, %v1653, 0
      %v1668 = vsel %vm1660, %v1654, 0
      %v1671 = vsel %vm1660, %v1655, 0
      %v1674 = vsel %vm1660, %v1656, 0
      %v1677 = vsel %vm1660, %v1657, 0
      %v1680 = vsel %vm1660, %v1658, 0
      %v1683 = vsel %vm1660, %v1659, 0
      %1685 = vmatprep.subr.bf16.mxu0 %v1461
      %1686 = vmatpush1.bf16.msra.mxu0 %v1460
      %1687 = vmatprep.subr.bf16.mxu0 %v1477
      %1688 = vmatpush1.bf16.msra.mxu0 %v1476
      %1689 = vmatprep.subr.bf16.mxu0 %v1493
      %1690 = vmatpush1.bf16.msra.mxu0 %v1492
      %1691 = vmatprep.subr.bf16.mxu0 %v1509
      %1692 = vmatpush1.bf16.msra.mxu0 %v1508
      %1693 = vmatprep.subr.bf16.mxu0 0
      %1694 = vmatpush1.bf16.msra.mxu0 0
      %1695 = vmatprep.subr.bf16.mxu0 0
      %1696 = vmatpush1.bf16.msra.mxu0 0
      %1697 = vmatprep.subr.bf16.mxu0 0
      %1698 = vmatpush1.bf16.msra.mxu0 0
      %1699 = vmatprep.subr.bf16.mxu0 0
      %1700 = vmatpush1.bf16.msra.mxu0 0
      %1701 = vmatprep.subr.bf16.mxu0 0
      %1702 = vmatpush1.bf16.msra.mxu0 0
      %1703 = vmatprep.subr.bf16.mxu0 0
      %1704 = vmatpush1.bf16.msra.mxu0 0
      %1705 = vmatprep.subr.bf16.mxu0 0
      %1706 = vmatpush1.bf16.msra.mxu0 0
      %1707 = vmatprep.subr.bf16.mxu0 0
      %1708 = vmatpush1.bf16.msra.mxu0 0
      %1709 = vmatprep.subr.bf16.mxu0 0
      %1710 = vmatpush1.bf16.msra.mxu0 0
      %1711 = vmatprep.subr.bf16.mxu0 0
      %1712 = vmatpush1.bf16.msra.mxu0 0
      %1713 = vmatprep.subr.bf16.mxu0 0
      %1714 = vmatpush1.bf16.msra.mxu0 0
      %1715 = vmatprep.subr.bf16.mxu0 0
      %1716 = vmatpush1.bf16.msra.mxu0 0
      %1717 = vmatprep.mubr.bf16.mxu0 0
      %1718 = vmatmul.mubr.bf16.gmra.mrb[0].mxu0 %v1662
      %v1719 = vpop.f32.mrb[0].mxu0
      %v1720 = vadd.f32 %v1543, %v1719
      %v1721 = vpop.f32.mrb[0].mxu0
      %v1722 = vadd.f32 %v1543, %v1721
      %v1723 = vpop.f32.mrb[0].mxu0
      %v1724 = vadd.f32 %v1548, %v1723
      %v1725 = vpop.f32.mrb[0].mxu0
      %v1726 = vadd.f32 %v1548, %v1725
      %1727 = vmatprep.mubr.bf16.mxu0 0
      %1728 = vmatmul.mubr.bf16.gmra.mrb[0].mxu0 %v1665
      %v1729 = vpop.f32.mrb[0].mxu0
      %v1730 = vadd.f32 %v1553, %v1729
      %v1731 = vpop.f32.mrb[0].mxu0
      %v1732 = vadd.f32 %v1553, %v1731
      %v1733 = vpop.f32.mrb[0].mxu0
      %v1734 = vadd.f32 %v1558, %v1733
      %v1735 = vpop.f32.mrb[0].mxu0
      %v1736 = vadd.f32 %v1558, %v1735
      %1737 = vmatprep.mubr.bf16.mxu0 0
      %1738 = vmatmul.mubr.bf16.gmra.mrb[0].mxu0 %v1668
      %v1739 = vpop.f32.mrb[0].mxu0
      %v1740 = vadd.f32 %v1563, %v1739
      %v1741 = vpop.f32.mrb[0].mxu0
      %v1742 = vadd.f32 %v1563, %v1741
      %v1743 = vpop.f32.mrb[0].mxu0
      %v1744 = vadd.f32 %v1568, %v1743
      %v1745 = vpop.f32.mrb[0].mxu0
      %v1746 = vadd.f32 %v1568, %v1745
      %1747 = vmatprep.mubr.bf16.mxu0 0
      %1748 = vmatmul.mubr.bf16.gmra.mrb[0].mxu0 %v1671
      %v1749 = vpop.f32.mrb[0].mxu0
      %v1750 = vadd.f32 %v1573, %v1749
      %v1751 = vpop.f32.mrb[0].mxu0
      %v1752 = vadd.f32 %v1573, %v1751
      %v1753 = vpop.f32.mrb[0].mxu0
      %v1754 = vadd.f32 %v1578, %v1753
      %v1755 = vpop.f32.mrb[0].mxu0
      %v1756 = vadd.f32 %v1578, %v1755
      %1757 = vmatprep.mubr.bf16.mxu0 0
      %1758 = vmatmul.mubr.bf16.gmra.mrb[0].mxu0 %v1674
      %v1759 = vpop.f32.mrb[0].mxu0
      %v1760 = vadd.f32 %v1583, %v1759
      %v1761 = vpop.f32.mrb[0].mxu0
      %v1762 = vadd.f32 %v1583, %v1761
      %v1763 = vpop.f32.mrb[0].mxu0
      %v1764 = vadd.f32 %v1588, %v1763
      %v1765 = vpop.f32.mrb[0].mxu0
      %v1766 = vadd.f32 %v1588, %v1765
      %1767 = vmatprep.mubr.bf16.mxu0 0
      %1768 = vmatmul.mubr.bf16.gmra.mrb[0].mxu0 %v1677
      %v1769 = vpop.f32.mrb[0].mxu0
      %v1770 = vadd.f32 %v1593, %v1769
      %v1771 = vpop.f32.mrb[0].mxu0
      %v1772 = vadd.f32 %v1593, %v1771
      %v1773 = vpop.f32.mrb[0].mxu0
      %v1774 = vadd.f32 %v1598, %v1773
      %v1775 = vpop.f32.mrb[0].mxu0
      %v1776 = vadd.f32 %v1598, %v1775
      %1777 = vmatprep.mubr.bf16.mxu0 0
      %1778 = vmatmul.mubr.bf16.gmra.mrb[0].mxu0 %v1680
      %v1779 = vpop.f32.mrb[0].mxu0
      %v1780 = vadd.f32 %v1603, %v1779
      %v1781 = vpop.f32.mrb[0].mxu0
      %v1782 = vadd.f32 %v1603, %v1781
      %v1783 = vpop.f32.mrb[0].mxu0
      %v1784 = vadd.f32 %v1608, %v1783
      %v1785 = vpop.f32.mrb[0].mxu0
      %v1786 = vadd.f32 %v1608, %v1785
      %1787 = vmatprep.mubr.bf16.mxu0 0
      %1788 = vmatmul.mubr.bf16.gmra.mrb[0].mxu0 %v1683
      %v1789 = vpop.f32.mrb[0].mxu0
      %v1790 = vadd.f32 %v1613, %v1789
      %v1791 = vpop.f32.mrb[0].mxu0
      %v1792 = vadd.f32 %v1613, %v1791
      %v1793 = vpop.f32.mrb[0].mxu0
      %v1794 = vadd.f32 %v1618, %v1793
      %v1795 = vpop.f32.mrb[0].mxu0
      %v1796 = vadd.f32 %v1618, %v1795
      %1797 = vdwg.mxu0
      %1798 = vmatprep.subr.bf16.mxu0 %v1463
      %1799 = vmatpush1.bf16.msra.mxu0 %v1462
      %1800 = vmatprep.subr.bf16.mxu0 %v1479
      %1801 = vmatpush1.bf16.msra.mxu0 %v1478
      %1802 = vmatprep.subr.bf16.mxu0 %v1495
      %1803 = vmatpush1.bf16.msra.mxu0 %v1494
      %1804 = vmatprep.subr.bf16.mxu0 %v1511
      %1805 = vmatpush1.bf16.msra.mxu0 %v1510
      %1806 = vmatprep.subr.bf16.mxu0 0
      %1807 = vmatpush1.bf16.msra.mxu0 0
      %1808 = vmatprep.subr.bf16.mxu0 0
      %1809 = vmatpush1.bf16.msra.mxu0 0
      %1810 = vmatprep.subr.bf16.mxu0 0
      %1811 = vmatpush1.bf16.msra.mxu0 0
      %1812 = vmatprep.subr.bf16.mxu0 0
      %1813 = vmatpush1.bf16.msra.mxu0 0
      %1814 = vmatprep.subr.bf16.mxu0 0
      %1815 = vmatpush1.bf16.msra.mxu0 0
      %1816 = vmatprep.subr.bf16.mxu0 0
      %1817 = vmatpush1.bf16.msra.mxu0 0
      %1818 = vmatprep.subr.bf16.mxu0 0
      %1819 = vmatpush1.bf16.msra.mxu0 0
      %1820 = vmatprep.subr.bf16.mxu0 0
      %1821 = vmatpush1.bf16.msra.mxu0 0
      %1822 = vmatprep.subr.bf16.mxu0 0
      %1823 = vmatpush1.bf16.msra.mxu0 0
      %1824 = vmatprep.subr.bf16.mxu0 0
      %1825 = vmatpush1.bf16.msra.mxu0 0
      %1826 = vmatprep.subr.bf16.mxu0 0
      %1827 = vmatpush1.bf16.msra.mxu0 0
      %1828 = vmatprep.subr.bf16.mxu0 0
      %1829 = vmatpush1.bf16.msra.mxu0 0
      %1830 = vmatprep.mubr.bf16.mxu0 0
      %1831 = vmatmul.mubr.bf16.gmra.mrb[0].mxu0 %v1662
      %v1832 = vpop.f32.mrb[0].mxu0
      %v1833 = vadd.f32 %v1543, %v1832
      %v1834 = vpop.f32.mrb[0].mxu0
      %v1835 = vadd.f32 %v1543, %v1834
      %v1836 = vpop.f32.mrb[0].mxu0
      %v1837 = vadd.f32 %v1548, %v1836
      %v1838 = vpop.f32.mrb[0].mxu0
      %v1839 = vadd.f32 %v1548, %v1838
      %1840 = vmatprep.mubr.bf16.mxu0 0
      %1841 = vmatmul.mubr.bf16.gmra.mrb[0].mxu0 %v1665
      %v1842 = vpop.f32.mrb[0].mxu0
      %v1843 = vadd.f32 %v1553, %v1842
      %v1844 = vpop.f32.mrb[0].mxu0
      %v1845 = vadd.f32 %v1553, %v1844
      %v1846 = vpop.f32.mrb[0].mxu0
      %v1847 = vadd.f32 %v1558, %v1846
      %v1848 = vpop.f32.mrb[0].mxu0
      %v1849 = vadd.f32 %v1558, %v1848
      %1850 = vmatprep.mubr.bf16.mxu0 0
      %1851 = vmatmul.mubr.bf16.gmra.mrb[0].mxu0 %v1668
      %v1852 = vpop.f32.mrb[0].mxu0
      %v1853 = vadd.f32 %v1563, %v1852
      %v1854 = vpop.f32.mrb[0].mxu0
      %v1855 = vadd.f32 %v1563, %v1854
      %v1856 = vpop.f32.mrb[0].mxu0
      %v1857 = vadd.f32 %v1568, %v1856
      %v1858 = vpop.f32.mrb[0].mxu0
      %v1859 = vadd.f32 %v1568, %v1858
      %1860 = vmatprep.mubr.bf16.mxu0 0
      %1861 = vmatmul.mubr.bf16.gmra.mrb[0].mxu0 %v1671
      %v1862 = vpop.f32.mrb[0].mxu0
      %v1863 = vadd.f32 %v1573, %v1862
      %v1864 = vpop.f32.mrb[0].mxu0
      %v1865 = vadd.f32 %v1573, %v1864
      %v1866 = vpop.f32.mrb[0].mxu0
      %v1867 = vadd.f32 %v1578, %v1866
      %v1868 = vpop.f32.mrb[0].mxu0
      %v1869 = vadd.f32 %v1578, %v1868
      %1870 = vmatprep.mubr.bf16.mxu0 0
      %1871 = vmatmul.mubr.bf16.gmra.mrb[0].mxu0 %v1674
      %v1872 = vpop.f32.mrb[0].mxu0
      %v1873 = vadd.f32 %v1583, %v1872
      %v1874 = vpop.f32.mrb[0].mxu0
      %v1875 = vadd.f32 %v1583, %v1874
      %v1876 = vpop.f32.mrb[0].mxu0
      %v1877 = vadd.f32 %v1588, %v1876
      %v1878 = vpop.f32.mrb[0].mxu0
      %v1879 = vadd.f32 %v1588, %v1878
      %1880 = vmatprep.mubr.bf16.mxu0 0
      %1881 = vmatmul.mubr.bf16.gmra.mrb[0].mxu0 %v1677
      %v1882 = vpop.f32.mrb[0].mxu0
      %v1883 = vadd.f32 %v1593, %v1882
      %v1884 = vpop.f32.mrb[0].mxu0
      %v1885 = vadd.f32 %v1593, %v1884
      %v1886 = vpop.f32.mrb[0].mxu0
      %v1887 = vadd.f32 %v1598, %v1886
      %v1888 = vpop.f32.mrb[0].mxu0
      %v1889 = vadd.f32 %v1598, %v1888
      %1890 = vmatprep.mubr.bf16.mxu0 0
      %1891 = vmatmul.mubr.bf16.gmra.mrb[0].mxu0 %v1680
      %v1892 = vpop.f32.mrb[0].mxu0
      %v1893 = vadd.f32 %v1603, %v1892
      %v1894 = vpop.f32.mrb[0].mxu0
      %v1895 = vadd.f32 %v1603, %v1894
      %v1896 = vpop.f32.mrb[0].mxu0
      %v1897 = vadd.f32 %v1608, %v1896
      %v1898 = vpop.f32.mrb[0].mxu0
      %v1899 = vadd.f32 %v1608, %v1898
      %1900 = vmatprep.mubr.bf16.mxu0 0
      %1901 = vmatmul.mubr.bf16.gmra.mrb[0].mxu0 %v1683
      %v1902 = vpop.f32.mrb[0].mxu0
      %v1903 = vadd.f32 %v1613, %v1902
      %v1904 = vpop.f32.mrb[0].mxu0
      %v1905 = vadd.f32 %v1613, %v1904
      %v1906 = vpop.f32.mrb[0].mxu0
      %v1907 = vadd.f32 %v1618, %v1906
      %v1908 = vpop.f32.mrb[0].mxu0
      %v1909 = vadd.f32 %v1618, %v1908
      %1910 = vdwg.mxu0
      %1911 = vmatprep.subr.bf16.mxu0 %v1465
      %1912 = vmatpush1.bf16.msra.mxu0 %v1464
      %1913 = vmatprep.subr.bf16.mxu0 %v1481
      %1914 = vmatpush1.bf16.msra.mxu0 %v1480
      %1915 = vmatprep.subr.bf16.mxu0 %v1497
      %1916 = vmatpush1.bf16.msra.mxu0 %v1496
      %1917 = vmatprep.subr.bf16.mxu0 %v1513
      %1918 = vmatpush1.bf16.msra.mxu0 %v1512
      %1919 = vmatprep.subr.bf16.mxu0 0
      %1920 = vmatpush1.bf16.msra.mxu0 0
      %1921 = vmatprep.subr.bf16.mxu0 0
      %1922 = vmatpush1.bf16.msra.mxu0 0
      %1923 = vmatprep.subr.bf16.mxu0 0
      %1924 = vmatpush1.bf16.msra.mxu0 0
      %1925 = vmatprep.subr.bf16.mxu0 0
      %1926 = vmatpush1.bf16.msra.mxu0 0
      %1927 = vmatprep.subr.bf16.mxu0 0
      %1928 = vmatpush1.bf16.msra.mxu0 0
      %1929 = vmatprep.subr.bf16.mxu0 0
      %1930 = vmatpush1.bf16.msra.mxu0 0
      %1931 = vmatprep.subr.bf16.mxu0 0
      %1932 = vmatpush1.bf16.msra.mxu0 0
      %1933 = vmatprep.subr.bf16.mxu0 0
      %1934 = vmatpush1.bf16.msra.mxu0 0
      %1935 = vmatprep.subr.bf16.mxu0 0
      %1936 = vmatpush1.bf16.msra.mxu0 0
      %1937 = vmatprep.subr.bf16.mxu0 0
      %1938 = vmatpush1.bf16.msra.mxu0 0
      %1939 = vmatprep.subr.bf16.mxu0 0
      %1940 = vmatpush1.bf16.msra.mxu0 0
      %1941 = vmatprep.subr.bf16.mxu0 0
      %1942 = vmatpush1.bf16.msra.mxu0 0
      %1943 = vmatprep.mubr.bf16.mxu0 0
      %1944 = vmatmul.mubr.bf16.gmra.mrb[0].mxu0 %v1662
      %v1945 = vpop.f32.mrb[0].mxu0
      %v1946 = vadd.f32 %v1543, %v1945
      %v1947 = vpop.f32.mrb[0].mxu0
      %v1948 = vadd.f32 %v1543, %v1947
      %v1949 = vpop.f32.mrb[0].mxu0
      %v1950 = vadd.f32 %v1548, %v1949
      %v1951 = vpop.f32.mrb[0].mxu0
      %v1952 = vadd.f32 %v1548, %v1951
      %1953 = vmatprep.mubr.bf16.mxu0 0
      %1954 = vmatmul.mubr.bf16.gmra.mrb[0].mxu0 %v1665
      %v1955 = vpop.f32.mrb[0].mxu0
      %v1956 = vadd.f32 %v1553, %v1955
      %v1957 = vpop.f32.mrb[0].mxu0
      %v1958 = vadd.f32 %v1553, %v1957
      %v1959 = vpop.f32.mrb[0].mxu0
      %v1960 = vadd.f32 %v1558, %v1959
      %v1961 = vpop.f32.mrb[0].mxu0
      %v1962 = vadd.f32 %v1558, %v1961
      %1963 = vmatprep.mubr.bf16.mxu0 0
      %1964 = vmatmul.mubr.bf16.gmra.mrb[0].mxu0 %v1668
      %v1965 = vpop.f32.mrb[0].mxu0
      %v1966 = vadd.f32 %v1563, %v1965
      %v1967 = vpop.f32.mrb[0].mxu0
      %v1968 = vadd.f32 %v1563, %v1967
      %v1969 = vpop.f32.mrb[0].mxu0
      %v1970 = vadd.f32 %v1568, %v1969
      %v1971 = vpop.f32.mrb[0].mxu0
      %v1972 = vadd.f32 %v1568, %v1971
      %1973 = vmatprep.mubr.bf16.mxu0 0
      %1974 = vmatmul.mubr.bf16.gmra.mrb[0].mxu0 %v1671
      %v1975 = vpop.f32.mrb[0].mxu0
      %v1976 = vadd.f32 %v1573, %v1975
      %v1977 = vpop.f32.mrb[0].mxu0
      %v1978 = vadd.f32 %v1573, %v1977
      %v1979 = vpop.f32.mrb[0].mxu0
      %v1980 = vadd.f32 %v1578, %v1979
      %v1981 = vpop.f32.mrb[0].mxu0
      %v1982 = vadd.f32 %v1578, %v1981
      %1983 = vmatprep.mubr.bf16.mxu0 0
      %1984 = vmatmul.mubr.bf16.gmra.mrb[0].mxu0 %v1674
      %v1985 = vpop.f32.mrb[0].mxu0
      %v1986 = vadd.f32 %v1583, %v1985
      %v1987 = vpop.f32.mrb[0].mxu0
      %v1988 = vadd.f32 %v1583, %v1987
      %v1989 = vpop.f32.mrb[0].mxu0
      %v1990 = vadd.f32 %v1588, %v1989
      %v1991 = vpop.f32.mrb[0].mxu0
      %v1992 = vadd.f32 %v1588, %v1991
      %1993 = vmatprep.mubr.bf16.mxu0 0
      %1994 = vmatmul.mubr.bf16.gmra.mrb[0].mxu0 %v1677
      %v1995 = vpop.f32.mrb[0].mxu0
      %v1996 = vadd.f32 %v1593, %v1995
      %v1997 = vpop.f32.mrb[0].mxu0
      %v1998 = vadd.f32 %v1593, %v1997
      %v1999 = vpop.f32.mrb[0].mxu0
      %v2000 = vadd.f32 %v1598, %v1999
      %v2001 = vpop.f32.mrb[0].mxu0
      %v2002 = vadd.f32 %v1598, %v2001
      %2003 = vmatprep.mubr.bf16.mxu0 0
      %2004 = vmatmul.mubr.bf16.gmra.mrb[0].mxu0 %v1680
      %v2005 = vpop.f32.mrb[0].mxu0
      %v2006 = vadd.f32 %v1603, %v2005
      %v2007 = vpop.f32.mrb[0].mxu0
      %v2008 = vadd.f32 %v1603, %v2007
      %v2009 = vpop.f32.mrb[0].mxu0
      %v2010 = vadd.f32 %v1608, %v2009
      %v2011 = vpop.f32.mrb[0].mxu0
      %v2012 = vadd.f32 %v1608, %v2011
      %2013 = vmatprep.mubr.bf16.mxu0 0
      %2014 = vmatmul.mubr.bf16.gmra.mrb[0].mxu0 %v1683
      %v2015 = vpop.f32.mrb[0].mxu0
      %v2016 = vadd.f32 %v1613, %v2015
      %v2017 = vpop.f32.mrb[0].mxu0
      %v2018 = vadd.f32 %v1613, %v2017
      %v2019 = vpop.f32.mrb[0].mxu0
      %v2020 = vadd.f32 %v1618, %v2019
      %v2021 = vpop.f32.mrb[0].mxu0
      %v2022 = vadd.f32 %v1618, %v2021
      %2023 = vdwg.mxu0
      %2024 = vmatprep.subr.bf16.mxu0 %v1467
      %2025 = vmatpush1.bf16.msra.mxu0 %v1466
      %2026 = vmatprep.subr.bf16.mxu0 %v1483
      %2027 = vmatpush1.bf16.msra.mxu0 %v1482
      %2028 = vmatprep.subr.bf16.mxu0 %v1499
      %2029 = vmatpush1.bf16.msra.mxu0 %v1498
      %2030 = vmatprep.subr.bf16.mxu0 %v1515
      %2031 = vmatpush1.bf16.msra.mxu0 %v1514
      %2032 = vmatprep.subr.bf16.mxu0 0
      %2033 = vmatpush1.bf16.msra.mxu0 0
      %2034 = vmatprep.subr.bf16.mxu0 0
      %2035 = vmatpush1.bf16.msra.mxu0 0
      %2036 = vmatprep.subr.bf16.mxu0 0
      %2037 = vmatpush1.bf16.msra.mxu0 0
      %2038 = vmatprep.subr.bf16.mxu0 0
      %2039 = vmatpush1.bf16.msra.mxu0 0
      %2040 = vmatprep.subr.bf16.mxu0 0
      %2041 = vmatpush1.bf16.msra.mxu0 0
      %2042 = vmatprep.subr.bf16.mxu0 0
      %2043 = vmatpush1.bf16.msra.mxu0 0
      %2044 = vmatprep.subr.bf16.mxu0 0
      %2045 = vmatpush1.bf16.msra.mxu0 0
      %2046 = vmatprep.subr.bf16.mxu0 0
      %2047 = vmatpush1.bf16.msra.mxu0 0
      %2048 = vmatprep.subr.bf16.mxu0 0
      %2049 = vmatpush1.bf16.msra.mxu0 0
      %2050 = vmatprep.subr.bf16.mxu0 0
      %2051 = vmatpush1.bf16.msra.mxu0 0
      %2052 = vmatprep.subr.bf16.mxu0 0
      %2053 = vmatpush1.bf16.msra.mxu0 0
      %2054 = vmatprep.subr.bf16.mxu0 0
      %2055 = vmatpush1.bf16.msra.mxu0 0
      %2056 = vmatprep.mubr.bf16.mxu0 0
      %2057 = vmatmul.mubr.bf16.gmra.mrb[0].mxu0 %v1662
      %v2058 = vpop.f32.mrb[0].mxu0
      %v2059 = vadd.f32 %v1543, %v2058
      %v2060 = vpop.f32.mrb[0].mxu0
      %v2061 = vadd.f32 %v1543, %v2060
      %v2062 = vpop.f32.mrb[0].mxu0
      %v2063 = vadd.f32 %v1548, %v2062
      %v2064 = vpop.f32.mrb[0].mxu0
      %v2065 = vadd.f32 %v1548, %v2064
      %2066 = vmatprep.mubr.bf16.mxu0 0
      %2067 = vmatmul.mubr.bf16.gmra.mrb[0].mxu0 %v1665
      %v2068 = vpop.f32.mrb[0].mxu0
      %v2069 = vadd.f32 %v1553, %v2068
      %v2070 = vpop.f32.mrb[0].mxu0
      %v2071 = vadd.f32 %v1553, %v2070
      %v2072 = vpop.f32.mrb[0].mxu0
      %v2073 = vadd.f32 %v1558, %v2072
      %v2074 = vpop.f32.mrb[0].mxu0
      %v2075 = vadd.f32 %v1558, %v2074
      %2076 = vmatprep.mubr.bf16.mxu0 0
      %2077 = vmatmul.mubr.bf16.gmra.mrb[0].mxu0 %v1668
      %v2078 = vpop.f32.mrb[0].mxu0
      %v2079 = vadd.f32 %v1563, %v2078
      %v2080 = vpop.f32.mrb[0].mxu0
      %v2081 = vadd.f32 %v1563, %v2080
      %v2082 = vpop.f32.mrb[0].mxu0
      %v2083 = vadd.f32 %v1568, %v2082
      %v2084 = vpop.f32.mrb[0].mxu0
      %v2085 = vadd.f32 %v1568, %v2084
      %2086 = vmatprep.mubr.bf16.mxu0 0
      %2087 = vmatmul.mubr.bf16.gmra.mrb[0].mxu0 %v1671
      %v2088 = vpop.f32.mrb[0].mxu0
      %v2089 = vadd.f32 %v1573, %v2088
      %v2090 = vpop.f32.mrb[0].mxu0
      %v2091 = vadd.f32 %v1573, %v2090
      %v2092 = vpop.f32.mrb[0].mxu0
      %v2093 = vadd.f32 %v1578, %v2092
      %v2094 = vpop.f32.mrb[0].mxu0
      %v2095 = vadd.f32 %v1578, %v2094
      %2096 = vmatprep.mubr.bf16.mxu0 0
      %2097 = vmatmul.mubr.bf16.gmra.mrb[0].mxu0 %v1674
      %v2098 = vpop.f32.mrb[0].mxu0
      %v2099 = vadd.f32 %v1583, %v2098
      %v2100 = vpop.f32.mrb[0].mxu0
      %v2101 = vadd.f32 %v1583, %v2100
      %v2102 = vpop.f32.mrb[0].mxu0
      %v2103 = vadd.f32 %v1588, %v2102
      %v2104 = vpop.f32.mrb[0].mxu0
      %v2105 = vadd.f32 %v1588, %v2104
      %2106 = vmatprep.mubr.bf16.mxu0 0
      %2107 = vmatmul.mubr.bf16.gmra.mrb[0].mxu0 %v1677
      %v2108 = vpop.f32.mrb[0].mxu0
      %v2109 = vadd.f32 %v1593, %v2108
      %v2110 = vpop.f32.mrb[0].mxu0
      %v2111 = vadd.f32 %v1593, %v2110
      %v2112 = vpop.f32.mrb[0].mxu0
      %v2113 = vadd.f32 %v1598, %v2112
      %v2114 = vpop.f32.mrb[0].mxu0
      %v2115 = vadd.f32 %v1598, %v2114
      %2116 = vmatprep.mubr.bf16.mxu0 0
      %2117 = vmatmul.mubr.bf16.gmra.mrb[0].mxu0 %v1680
      %v2118 = vpop.f32.mrb[0].mxu0
      %v2119 = vadd.f32 %v1603, %v2118
      %v2120 = vpop.f32.mrb[0].mxu0
      %v2121 = vadd.f32 %v1603, %v2120
      %v2122 = vpop.f32.mrb[0].mxu0
      %v2123 = vadd.f32 %v1608, %v2122
      %v2124 = vpop.f32.mrb[0].mxu0
      %v2125 = vadd.f32 %v1608, %v2124
      %2126 = vmatprep.mubr.bf16.mxu0 0
      %2127 = vmatmul.mubr.bf16.gmra.mrb[0].mxu0 %v1683
      %v2128 = vpop.f32.mrb[0].mxu0
      %v2129 = vadd.f32 %v1613, %v2128
      %v2130 = vpop.f32.mrb[0].mxu0
      %v2131 = vadd.f32 %v1613, %v2130
      %v2132 = vpop.f32.mrb[0].mxu0
      %v2133 = vadd.f32 %v1618, %v2132
      %v2134 = vpop.f32.mrb[0].mxu0
      %v2135 = vadd.f32 %v1618, %v2134
      %2136 = vdwg.mxu0
      %2137 = vmatprep.subr.bf16.mxu0 %v1469
      %2138 = vmatpush1.bf16.msra.mxu0 %v1468
      %2139 = vmatprep.subr.bf16.mxu0 %v1485
      %2140 = vmatpush1.bf16.msra.mxu0 %v1484
      %2141 = vmatprep.subr.bf16.mxu0 %v1501
      %2142 = vmatpush1.bf16.msra.mxu0 %v1500
      %2143 = vmatprep.subr.bf16.mxu0 %v1517
      %2144 = vmatpush1.bf16.msra.mxu0 %v1516
      %2145 = vmatprep.subr.bf16.mxu0 0
      %2146 = vmatpush1.bf16.msra.mxu0 0
      %2147 = vmatprep.subr.bf16.mxu0 0
      %2148 = vmatpush1.bf16.msra.mxu0 0
      %2149 = vmatprep.subr.bf16.mxu0 0
      %2150 = vmatpush1.bf16.msra.mxu0 0
      %2151 = vmatprep.subr.bf16.mxu0 0
      %2152 = vmatpush1.bf16.msra.mxu0 0
      %2153 = vmatprep.subr.bf16.mxu0 0
      %2154 = vmatpush1.bf16.msra.mxu0 0
      %2155 = vmatprep.subr.bf16.mxu0 0
      %2156 = vmatpush1.bf16.msra.mxu0 0
      %2157 = vmatprep.subr.bf16.mxu0 0
      %2158 = vmatpush1.bf16.msra.mxu0 0
      %2159 = vmatprep.subr.bf16.mxu0 0
      %2160 = vmatpush1.bf16.msra.mxu0 0
      %2161 = vmatprep.subr.bf16.mxu0 0
      %2162 = vmatpush1.bf16.msra.mxu0 0
      %2163 = vmatprep.subr.bf16.mxu0 0
      %2164 = vmatpush1.bf16.msra.mxu0 0
      %2165 = vmatprep.subr.bf16.mxu0 0
      %2166 = vmatpush1.bf16.msra.mxu0 0
      %2167 = vmatprep.subr.bf16.mxu0 0
      %2168 = vmatpush1.bf16.msra.mxu0 0
      %2169 = vmatprep.mubr.bf16.mxu0 0
      %2170 = vmatmul.mubr.bf16.gmra.mrb[0].mxu0 %v1662
      %v2171 = vpop.f32.mrb[0].mxu0
      %v2172 = vadd.f32 %v1543, %v2171
      %v2173 = vpop.f32.mrb[0].mxu0
      %v2174 = vadd.f32 %v1543, %v2173
      %v2175 = vpop.f32.mrb[0].mxu0
      %v2176 = vadd.f32 %v1548, %v2175
      %v2177 = vpop.f32.mrb[0].mxu0
      %v2178 = vadd.f32 %v1548, %v2177
      %2179 = vmatprep.mubr.bf16.mxu0 0
      %2180 = vmatmul.mubr.bf16.gmra.mrb[0].mxu0 %v1665
      %v2181 = vpop.f32.mrb[0].mxu0
      %v2182 = vadd.f32 %v1553, %v2181
      %v2183 = vpop.f32.mrb[0].mxu0
      %v2184 = vadd.f32 %v1553, %v2183
      %v2185 = vpop.f32.mrb[0].mxu0
      %v2186 = vadd.f32 %v1558, %v2185
      %v2187 = vpop.f32.mrb[0].mxu0
      %v2188 = vadd.f32 %v1558, %v2187
      %2189 = vmatprep.mubr.bf16.mxu0 0
      %2190 = vmatmul.mubr.bf16.gmra.mrb[0].mxu0 %v1668
      %v2191 = vpop.f32.mrb[0].mxu0
      %v2192 = vadd.f32 %v1563, %v2191
      %v2193 = vpop.f32.mrb[0].mxu0
      %v2194 = vadd.f32 %v1563, %v2193
      %v2195 = vpop.f32.mrb[0].mxu0
      %v2196 = vadd.f32 %v1568, %v2195
      %v2197 = vpop.f32.mrb[0].mxu0
      %v2198 = vadd.f32 %v1568, %v2197
      %2199 = vmatprep.mubr.bf16.mxu0 0
      %2200 = vmatmul.mubr.bf16.gmra.mrb[0].mxu0 %v1671
      %v2201 = vpop.f32.mrb[0].mxu0
      %v2202 = vadd.f32 %v1573, %v2201
      %v2203 = vpop.f32.mrb[0].mxu0
      %v2204 = vadd.f32 %v1573, %v2203
      %v2205 = vpop.f32.mrb[0].mxu0
      %v2206 = vadd.f32 %v1578, %v2205
      %v2207 = vpop.f32.mrb[0].mxu0
      %v2208 = vadd.f32 %v1578, %v2207
      %2209 = vmatprep.mubr.bf16.mxu0 0
      %2210 = vmatmul.mubr.bf16.gmra.mrb[0].mxu0 %v1674
      %v2211 = vpop.f32.mrb[0].mxu0
      %v2212 = vadd.f32 %v1583, %v2211
      %v2213 = vpop.f32.mrb[0].mxu0
      %v2214 = vadd.f32 %v1583, %v2213
      %v2215 = vpop.f32.mrb[0].mxu0
      %v2216 = vadd.f32 %v1588, %v2215
      %v2217 = vpop.f32.mrb[0].mxu0
      %v2218 = vadd.f32 %v1588, %v2217
      %2219 = vmatprep.mubr.bf16.mxu0 0
      %2220 = vmatmul.mubr.bf16.gmra.mrb[0].mxu0 %v1677
      %v2221 = vpop.f32.mrb[0].mxu0
      %v2222 = vadd.f32 %v1593, %v2221
      %v2223 = vpop.f32.mrb[0].mxu0
      %v2224 = vadd.f32 %v1593, %v2223
      %v2225 = vpop.f32.mrb[0].mxu0
      %v2226 = vadd.f32 %v1598, %v2225
      %v2227 = vpop.f32.mrb[0].mxu0
      %v2228 = vadd.f32 %v1598, %v2227
      %2229 = vmatprep.mubr.bf16.mxu0 0
      %2230 = vmatmul.mubr.bf16.gmra.mrb[0].mxu0 %v1680
      %v2231 = vpop.f32.mrb[0].mxu0
      %v2232 = vadd.f32 %v1603, %v2231
      %v2233 = vpop.f32.mrb[0].mxu0
      %v2234 = vadd.f32 %v1603, %v2233
      %v2235 = vpop.f32.mrb[0].mxu0
      %v2236 = vadd.f32 %v1608, %v2235
      %v2237 = vpop.f32.mrb[0].mxu0
      %v2238 = vadd.f32 %v1608, %v2237
      %2239 = vmatprep.mubr.bf16.mxu0 0
      %2240 = vmatmul.mubr.bf16.gmra.mrb[0].mxu0 %v1683
      %v2241 = vpop.f32.mrb[0].mxu0
      %v2242 = vadd.f32 %v1613, %v2241
      %v2243 = vpop.f32.mrb[0].mxu0
      %v2244 = vadd.f32 %v1613, %v2243
      %v2245 = vpop.f32.mrb[0].mxu0
      %v2246 = vadd.f32 %v1618, %v2245
      %v2247 = vpop.f32.mrb[0].mxu0
      %v2248 = vadd.f32 %v1618, %v2247
      %2249 = vdwg.mxu0
      %2250 = vmatprep.subr.bf16.mxu0 %v1471
      %2251 = vmatpush1.bf16.msra.mxu0 %v1470
      %2252 = vmatprep.subr.bf16.mxu0 %v1487
      %2253 = vmatpush1.bf16.msra.mxu0 %v1486
      %2254 = vmatprep.subr.bf16.mxu0 %v1503
      %2255 = vmatpush1.bf16.msra.mxu0 %v1502
      %2256 = vmatprep.subr.bf16.mxu0 %v1519
      %2257 = vmatpush1.bf16.msra.mxu0 %v1518
      %2258 = vmatprep.subr.bf16.mxu0 0
      %2259 = vmatpush1.bf16.msra.mxu0 0
      %2260 = vmatprep.subr.bf16.mxu0 0
      %2261 = vmatpush1.bf16.msra.mxu0 0
      %2262 = vmatprep.subr.bf16.mxu0 0
      %2263 = vmatpush1.bf16.msra.mxu0 0
      %2264 = vmatprep.subr.bf16.mxu0 0
      %2265 = vmatpush1.bf16.msra.mxu0 0
      %2266 = vmatprep.subr.bf16.mxu0 0
      %2267 = vmatpush1.bf16.msra.mxu0 0
      %2268 = vmatprep.subr.bf16.mxu0 0
      %2269 = vmatpush1.bf16.msra.mxu0 0
      %2270 = vmatprep.subr.bf16.mxu0 0
      %2271 = vmatpush1.bf16.msra.mxu0 0
      %2272 = vmatprep.subr.bf16.mxu0 0
      %2273 = vmatpush1.bf16.msra.mxu0 0
      %2274 = vmatprep.subr.bf16.mxu0 0
      %2275 = vmatpush1.bf16.msra.mxu0 0
      %2276 = vmatprep.subr.bf16.mxu0 0
      %2277 = vmatpush1.bf16.msra.mxu0 0
      %2278 = vmatprep.subr.bf16.mxu0 0
      %2279 = vmatpush1.bf16.msra.mxu0 0
      %2280 = vmatprep.subr.bf16.mxu0 0
      %2281 = vmatpush1.bf16.msra.mxu0 0
      %2282 = vmatprep.mubr.bf16.mxu0 0
      %2283 = vmatmul.mubr.bf16.gmra.mrb[0].mxu0 %v1662
      %v2284 = vpop.f32.mrb[0].mxu0
      %v2285 = vadd.f32 %v1543, %v2284
      %v2286 = vpop.f32.mrb[0].mxu0
      %v2287 = vadd.f32 %v1543, %v2286
      %v2288 = vpop.f32.mrb[0].mxu0
      %v2289 = vadd.f32 %v1548, %v2288
      %v2290 = vpop.f32.mrb[0].mxu0
      %v2291 = vadd.f32 %v1548, %v2290
      %2292 = vmatprep.mubr.bf16.mxu0 0
      %2293 = vmatmul.mubr.bf16.gmra.mrb[0].mxu0 %v1665
      %v2294 = vpop.f32.mrb[0].mxu0
      %v2295 = vadd.f32 %v1553, %v2294
      %v2296 = vpop.f32.mrb[0].mxu0
      %v2297 = vadd.f32 %v1553, %v2296
      %v2298 = vpop.f32.mrb[0].mxu0
      %v2299 = vadd.f32 %v1558, %v2298
      %v2300 = vpop.f32.mrb[0].mxu0
      %v2301 = vadd.f32 %v1558, %v2300
      %2302 = vmatprep.mubr.bf16.mxu0 0
      %2303 = vmatmul.mubr.bf16.gmra.mrb[0].mxu0 %v1668
      %v2304 = vpop.f32.mrb[0].mxu0
      %v2305 = vadd.f32 %v1563, %v2304
      %v2306 = vpop.f32.mrb[0].mxu0
      %v2307 = vadd.f32 %v1563, %v2306
      %v2308 = vpop.f32.mrb[0].mxu0
      %v2309 = vadd.f32 %v1568, %v2308
      %v2310 = vpop.f32.mrb[0].mxu0
      %v2311 = vadd.f32 %v1568, %v2310
      %2312 = vmatprep.mubr.bf16.mxu0 0
      %2313 = vmatmul.mubr.bf16.gmra.mrb[0].mxu0 %v1671
      %v2314 = vpop.f32.mrb[0].mxu0
      %v2315 = vadd.f32 %v1573, %v2314
      %v2316 = vpop.f32.mrb[0].mxu0
      %v2317 = vadd.f32 %v1573, %v2316
      %v2318 = vpop.f32.mrb[0].mxu0
      %v2319 = vadd.f32 %v1578, %v2318
      %v2320 = vpop.f32.mrb[0].mxu0
      %v2321 = vadd.f32 %v1578, %v2320
      %2322 = vmatprep.mubr.bf16.mxu0 0
      %2323 = vmatmul.mubr.bf16.gmra.mrb[0].mxu0 %v1674
      %v2324 = vpop.f32.mrb[0].mxu0
      %v2325 = vadd.f32 %v1583, %v2324
      %v2326 = vpop.f32.mrb[0].mxu0
      %v2327 = vadd.f32 %v1583, %v2326
      %v2328 = vpop.f32.mrb[0].mxu0
      %v2329 = vadd.f32 %v1588, %v2328
      %v2330 = vpop.f32.mrb[0].mxu0
      %v2331 = vadd.f32 %v1588, %v2330
      %2332 = vmatprep.mubr.bf16.mxu0 0
      %2333 = vmatmul.mubr.bf16.gmra.mrb[0].mxu0 %v1677
      %v2334 = vpop.f32.mrb[0].mxu0
      %v2335 = vadd.f32 %v1593, %v2334
      %v2336 = vpop.f32.mrb[0].mxu0
      %v2337 = vadd.f32 %v1593, %v2336
      %v2338 = vpop.f32.mrb[0].mxu0
      %v2339 = vadd.f32 %v1598, %v2338
      %v2340 = vpop.f32.mrb[0].mxu0
      %v2341 = vadd.f32 %v1598, %v2340
      %2342 = vmatprep.mubr.bf16.mxu0 0
      %2343 = vmatmul.mubr.bf16.gmra.mrb[0].mxu0 %v1680
      %v2344 = vpop.f32.mrb[0].mxu0
      %v2345 = vadd.f32 %v1603, %v2344
      %v2346 = vpop.f32.mrb[0].mxu0
      %v2347 = vadd.f32 %v1603, %v2346
      %v2348 = vpop.f32.mrb[0].mxu0
      %v2349 = vadd.f32 %v1608, %v2348
      %v2350 = vpop.f32.mrb[0].mxu0
      %v2351 = vadd.f32 %v1608, %v2350
      %2352 = vmatprep.mubr.bf16.mxu0 0
      %2353 = vmatmul.mubr.bf16.gmra.mrb[0].mxu0 %v1683
      %v2354 = vpop.f32.mrb[0].mxu0
      %v2355 = vadd.f32 %v1613, %v2354
      %v2356 = vpop.f32.mrb[0].mxu0
      %v2357 = vadd.f32 %v1613, %v2356
      %v2358 = vpop.f32.mrb[0].mxu0
      %v2359 = vadd.f32 %v1618, %v2358
      %v2360 = vpop.f32.mrb[0].mxu0
      %v2361 = vadd.f32 %v1618, %v2360
      %2362 = vdwg.mxu0
      %2363 = vmatprep.subr.bf16.mxu0 %v1473
      %2364 = vmatpush1.bf16.msra.mxu0 %v1472
      %2365 = vmatprep.subr.bf16.mxu0 %v1489
      %2366 = vmatpush1.bf16.msra.mxu0 %v1488
      %2367 = vmatprep.subr.bf16.mxu0 %v1505
      %2368 = vmatpush1.bf16.msra.mxu0 %v1504
      %2369 = vmatprep.subr.bf16.mxu0 %v1521
      %2370 = vmatpush1.bf16.msra.mxu0 %v1520
      %2371 = vmatprep.subr.bf16.mxu0 0
      %2372 = vmatpush1.bf16.msra.mxu0 0
      %2373 = vmatprep.subr.bf16.mxu0 0
      %2374 = vmatpush1.bf16.msra.mxu0 0
      %2375 = vmatprep.subr.bf16.mxu0 0
      %2376 = vmatpush1.bf16.msra.mxu0 0
      %2377 = vmatprep.subr.bf16.mxu0 0
      %2378 = vmatpush1.bf16.msra.mxu0 0
      %2379 = vmatprep.subr.bf16.mxu0 0
      %2380 = vmatpush1.bf16.msra.mxu0 0
      %2381 = vmatprep.subr.bf16.mxu0 0
      %2382 = vmatpush1.bf16.msra.mxu0 0
      %2383 = vmatprep.subr.bf16.mxu0 0
      %2384 = vmatpush1.bf16.msra.mxu0 0
      %2385 = vmatprep.subr.bf16.mxu0 0
      %2386 = vmatpush1.bf16.msra.mxu0 0
      %2387 = vmatprep.subr.bf16.mxu0 0
      %2388 = vmatpush1.bf16.msra.mxu0 0
      %2389 = vmatprep.subr.bf16.mxu0 0
      %2390 = vmatpush1.bf16.msra.mxu0 0
      %2391 = vmatprep.subr.bf16.mxu0 0
      %2392 = vmatpush1.bf16.msra.mxu0 0
      %2393 = vmatprep.subr.bf16.mxu0 0
      %2394 = vmatpush1.bf16.msra.mxu0 0
      %2395 = vmatprep.mubr.bf16.mxu0 0
      %2396 = vmatmul.mubr.bf16.gmra.mrb[0].mxu0 %v1662
      %v2397 = vpop.f32.mrb[0].mxu0
      %v2398 = vadd.f32 %v1543, %v2397
      %v2399 = vpop.f32.mrb[0].mxu0
      %v2400 = vadd.f32 %v1543, %v2399
      %v2401 = vpop.f32.mrb[0].mxu0
      %v2402 = vadd.f32 %v1548, %v2401
      %v2403 = vpop.f32.mrb[0].mxu0
      %v2404 = vadd.f32 %v1548, %v2403
      %2405 = vmatprep.mubr.bf16.mxu0 0
      %2406 = vmatmul.mubr.bf16.gmra.mrb[0].mxu0 %v1665
      %v2407 = vpop.f32.mrb[0].mxu0
      %v2408 = vadd.f32 %v1553, %v2407
      %v2409 = vpop.f32.mrb[0].mxu0
      %v2410 = vadd.f32 %v1553, %v2409
      %v2411 = vpop.f32.mrb[0].mxu0
      %v2412 = vadd.f32 %v1558, %v2411
      %v2413 = vpop.f32.mrb[0].mxu0
      %v2414 = vadd.f32 %v1558, %v2413
      %2415 = vmatprep.mubr.bf16.mxu0 0
      %2416 = vmatmul.mubr.bf16.gmra.mrb[0].mxu0 %v1668
      %v2417 = vpop.f32.mrb[0].mxu0
      %v2418 = vadd.f32 %v1563, %v2417
      %v2419 = vpop.f32.mrb[0].mxu0
      %v2420 = vadd.f32 %v1563, %v2419
      %v2421 = vpop.f32.mrb[0].mxu0
      %v2422 = vadd.f32 %v1568, %v2421
      %v2423 = vpop.f32.mrb[0].mxu0
      %v2424 = vadd.f32 %v1568, %v2423
      %2425 = vmatprep.mubr.bf16.mxu0 0
      %2426 = vmatmul.mubr.bf16.gmra.mrb[0].mxu0 %v1671
      %v2427 = vpop.f32.mrb[0].mxu0
      %v2428 = vadd.f32 %v1573, %v2427
      %v2429 = vpop.f32.mrb[0].mxu0
      %v2430 = vadd.f32 %v1573, %v2429
      %v2431 = vpop.f32.mrb[0].mxu0
      %v2432 = vadd.f32 %v1578, %v2431
      %v2433 = vpop.f32.mrb[0].mxu0
      %v2434 = vadd.f32 %v1578, %v2433
      %2435 = vmatprep.mubr.bf16.mxu0 0
      %2436 = vmatmul.mubr.bf16.gmra.mrb[0].mxu0 %v1674
      %v2437 = vpop.f32.mrb[0].mxu0
      %v2438 = vadd.f32 %v1583, %v2437
      %v2439 = vpop.f32.mrb[0].mxu0
      %v2440 = vadd.f32 %v1583, %v2439
      %v2441 = vpop.f32.mrb[0].mxu0
      %v2442 = vadd.f32 %v1588, %v2441
      %v2443 = vpop.f32.mrb[0].mxu0
      %v2444 = vadd.f32 %v1588, %v2443
      %2445 = vmatprep.mubr.bf16.mxu0 0
      %2446 = vmatmul.mubr.bf16.gmra.mrb[0].mxu0 %v1677
      %v2447 = vpop.f32.mrb[0].mxu0
      %v2448 = vadd.f32 %v1593, %v2447
      %v2449 = vpop.f32.mrb[0].mxu0
      %v2450 = vadd.f32 %v1593, %v2449
      %v2451 = vpop.f32.mrb[0].mxu0
      %v2452 = vadd.f32 %v1598, %v2451
      %v2453 = vpop.f32.mrb[0].mxu0
      %v2454 = vadd.f32 %v1598, %v2453
      %2455 = vmatprep.mubr.bf16.mxu0 0
      %2456 = vmatmul.mubr.bf16.gmra.mrb[0].mxu0 %v1680
      %v2457 = vpop.f32.mrb[0].mxu0
      %v2458 = vadd.f32 %v1603, %v2457
      %v2459 = vpop.f32.mrb[0].mxu0
      %v2460 = vadd.f32 %v1603, %v2459
      %v2461 = vpop.f32.mrb[0].mxu0
      %v2462 = vadd.f32 %v1608, %v2461
      %v2463 = vpop.f32.mrb[0].mxu0
      %v2464 = vadd.f32 %v1608, %v2463
      %2465 = vmatprep.mubr.bf16.mxu0 0
      %2466 = vmatmul.mubr.bf16.gmra.mrb[0].mxu0 %v1683
      %v2467 = vpop.f32.mrb[0].mxu0
      %v2468 = vadd.f32 %v1613, %v2467
      %v2469 = vpop.f32.mrb[0].mxu0
      %v2470 = vadd.f32 %v1613, %v2469
      %v2471 = vpop.f32.mrb[0].mxu0
      %v2472 = vadd.f32 %v1618, %v2471
      %v2473 = vpop.f32.mrb[0].mxu0
      %v2474 = vadd.f32 %v1618, %v2473
      %2475 = vdwg.mxu0
      %2476 = vmatprep.subr.bf16.mxu0 %v1475
      %2477 = vmatpush1.bf16.msra.mxu0 %v1474
      %2478 = vmatprep.subr.bf16.mxu0 %v1491
      %2479 = vmatpush1.bf16.msra.mxu0 %v1490
      %2480 = vmatprep.subr.bf16.mxu0 %v1507
      %2481 = vmatpush1.bf16.msra.mxu0 %v1506
      %2482 = vmatprep.subr.bf16.mxu0 %v1523
      %2483 = vmatpush1.bf16.msra.mxu0 %v1522
      %2484 = vmatprep.subr.bf16.mxu0 0
      %2485 = vmatpush1.bf16.msra.mxu0 0
      %2486 = vmatprep.subr.bf16.mxu0 0
      %2487 = vmatpush1.bf16.msra.mxu0 0
      %2488 = vmatprep.subr.bf16.mxu0 0
      %2489 = vmatpush1.bf16.msra.mxu0 0
      %2490 = vmatprep.subr.bf16.mxu0 0
      %2491 = vmatpush1.bf16.msra.mxu0 0
      %2492 = vmatprep.subr.bf16.mxu0 0
      %2493 = vmatpush1.bf16.msra.mxu0 0
      %2494 = vmatprep.subr.bf16.mxu0 0
      %2495 = vmatpush1.bf16.msra.mxu0 0
      %2496 = vmatprep.subr.bf16.mxu0 0
      %2497 = vmatpush1.bf16.msra.mxu0 0
      %2498 = vmatprep.subr.bf16.mxu0 0
      %2499 = vmatpush1.bf16.msra.mxu0 0
      %2500 = vmatprep.subr.bf16.mxu0 0
      %2501 = vmatpush1.bf16.msra.mxu0 0
      %2502 = vmatprep.subr.bf16.mxu0 0
      %2503 = vmatpush1.bf16.msra.mxu0 0
      %2504 = vmatprep.subr.bf16.mxu0 0
      %2505 = vmatpush1.bf16.msra.mxu0 0
      %2506 = vmatprep.subr.bf16.mxu0 0
      %2507 = vmatpush1.bf16.msra.mxu0 0
      %2508 = vmatprep.mubr.bf16.mxu0 0
      %2509 = vmatmul.mubr.bf16.gmra.mrb[0].mxu0 %v1662
      %v2510 = vpop.f32.mrb[0].mxu0
      %v2511 = vadd.f32 %v1543, %v2510
      %v2512 = vpop.f32.mrb[0].mxu0
      %v2513 = vadd.f32 %v1543, %v2512
      %v2514 = vpop.f32.mrb[0].mxu0
      %v2515 = vadd.f32 %v1548, %v2514
      %v2516 = vpop.f32.mrb[0].mxu0
      %v2517 = vadd.f32 %v1548, %v2516
      %2518 = vmatprep.mubr.bf16.mxu0 0
      %2519 = vmatmul.mubr.bf16.gmra.mrb[0].mxu0 %v1665
      %v2520 = vpop.f32.mrb[0].mxu0
      %v2521 = vadd.f32 %v1553, %v2520
      %v2522 = vpop.f32.mrb[0].mxu0
      %v2523 = vadd.f32 %v1553, %v2522
      %v2524 = vpop.f32.mrb[0].mxu0
      %v2525 = vadd.f32 %v1558, %v2524
      %v2526 = vpop.f32.mrb[0].mxu0
      %v2527 = vadd.f32 %v1558, %v2526
      %2528 = vmatprep.mubr.bf16.mxu0 0
      %2529 = vmatmul.mubr.bf16.gmra.mrb[0].mxu0 %v1668
      %v2530 = vpop.f32.mrb[0].mxu0
      %v2531 = vadd.f32 %v1563, %v2530
      %v2532 = vpop.f32.mrb[0].mxu0
      %v2533 = vadd.f32 %v1563, %v2532
      %v2534 = vpop.f32.mrb[0].mxu0
      %v2535 = vadd.f32 %v1568, %v2534
      %v2536 = vpop.f32.mrb[0].mxu0
      %v2537 = vadd.f32 %v1568, %v2536
      %2538 = vmatprep.mubr.bf16.mxu0 0
      %2539 = vmatmul.mubr.bf16.gmra.mrb[0].mxu0 %v1671
      %v2540 = vpop.f32.mrb[0].mxu0
      %v2541 = vadd.f32 %v1573, %v2540
      %v2542 = vpop.f32.mrb[0].mxu0
      %v2543 = vadd.f32 %v1573, %v2542
      %v2544 = vpop.f32.mrb[0].mxu0
      %v2545 = vadd.f32 %v1578, %v2544
      %v2546 = vpop.f32.mrb[0].mxu0
      %v2547 = vadd.f32 %v1578, %v2546
      %2548 = vmatprep.mubr.bf16.mxu0 0
      %2549 = vmatmul.mubr.bf16.gmra.mrb[0].mxu0 %v1674
      %v2550 = vpop.f32.mrb[0].mxu0
      %v2551 = vadd.f32 %v1583, %v2550
      %v2552 = vpop.f32.mrb[0].mxu0
      %v2553 = vadd.f32 %v1583, %v2552
      %v2554 = vpop.f32.mrb[0].mxu0
      %v2555 = vadd.f32 %v1588, %v2554
      %v2556 = vpop.f32.mrb[0].mxu0
      %v2557 = vadd.f32 %v1588, %v2556
      %2558 = vmatprep.mubr.bf16.mxu0 0
      %2559 = vmatmul.mubr.bf16.gmra.mrb[0].mxu0 %v1677
      %v2560 = vpop.f32.mrb[0].mxu0
      %v2561 = vadd.f32 %v1593, %v2560
      %v2562 = vpop.f32.mrb[0].mxu0
      %v2563 = vadd.f32 %v1593, %v2562
      %v2564 = vpop.f32.mrb[0].mxu0
      %v2565 = vadd.f32 %v1598, %v2564
      %v2566 = vpop.f32.mrb[0].mxu0
      %v2567 = vadd.f32 %v1598, %v2566
      %2568 = vmatprep.mubr.bf16.mxu0 0
      %2569 = vmatmul.mubr.bf16.gmra.mrb[0].mxu0 %v1680
      %v2570 = vpop.f32.mrb[0].mxu0
      %v2571 = vadd.f32 %v1603, %v2570
      %v2572 = vpop.f32.mrb[0].mxu0
      %v2573 = vadd.f32 %v1603, %v2572
      %v2574 = vpop.f32.mrb[0].mxu0
      %v2575 = vadd.f32 %v1608, %v2574
      %v2576 = vpop.f32.mrb[0].mxu0
      %v2577 = vadd.f32 %v1608, %v2576
      %2578 = vmatprep.mubr.bf16.mxu0 0
      %2579 = vmatmul.mubr.bf16.gmra.mrb[0].mxu0 %v1683
      %v2580 = vpop.f32.mrb[0].mxu0
      %v2581 = vadd.f32 %v1613, %v2580
      %v2582 = vpop.f32.mrb[0].mxu0
      %v2583 = vadd.f32 %v1613, %v2582
      %v2584 = vpop.f32.mrb[0].mxu0
      %v2585 = vadd.f32 %v1618, %v2584
      %v2586 = vpop.f32.mrb[0].mxu0
      %v2587 = vadd.f32 %v1618, %v2586
      %2588 = vdwg.mxu0
      %vm2589 = vcmp.ge.f32.partialorder %v1720, 0.0
      %vm2590 = vcmp.ge.f32.partialorder %v1722, 0.0
      %vm2591 = vcmp.ge.f32.partialorder %v1833, 0.0
      %vm2592 = vcmp.ge.f32.partialorder %v1835, 0.0
      %vm2593 = vcmp.ge.f32.partialorder %v1946, 0.0
      %vm2594 = vcmp.ge.f32.partialorder %v1948, 0.0
      %vm2595 = vcmp.ge.f32.partialorder %v2059, 0.0
      %vm2596 = vcmp.ge.f32.partialorder %v2061, 0.0
      %vm2597 = vcmp.ge.f32.partialorder %v2172, 0.0
      %vm2598 = vcmp.ge.f32.partialorder %v2174, 0.0
      %vm2599 = vcmp.ge.f32.partialorder %v2285, 0.0
      %vm2600 = vcmp.ge.f32.partialorder %v2287, 0.0
      %vm2601 = vcmp.ge.f32.partialorder %v2398, 0.0
      %vm2602 = vcmp.ge.f32.partialorder %v2400, 0.0
      %vm2603 = vcmp.ge.f32.partialorder %v2511, 0.0
      %vm2604 = vcmp.ge.f32.partialorder %v2513, 0.0
      %vm2605 = vcmp.ge.f32.partialorder %v1724, 0.0
      %vm2606 = vcmp.ge.f32.partialorder %v1726, 0.0
      %vm2607 = vcmp.ge.f32.partialorder %v1837, 0.0
      %vm2608 = vcmp.ge.f32.partialorder %v1839, 0.0
      %vm2609 = vcmp.ge.f32.partialorder %v1950, 0.0
      %vm2610 = vcmp.ge.f32.partialorder %v1952, 0.0
      %vm2611 = vcmp.ge.f32.partialorder %v2063, 0.0
      %vm2612 = vcmp.ge.f32.partialorder %v2065, 0.0
      %vm2613 = vcmp.ge.f32.partialorder %v2176, 0.0
      %vm2614 = vcmp.ge.f32.partialorder %v2178, 0.0
      %vm2615 = vcmp.ge.f32.partialorder %v2289, 0.0
      %vm2616 = vcmp.ge.f32.partialorder %v2291, 0.0
      %vm2617 = vcmp.ge.f32.partialorder %v2402, 0.0
      %vm2618 = vcmp.ge.f32.partialorder %v2404, 0.0
      %vm2619 = vcmp.ge.f32.partialorder %v2515, 0.0
      %vm2620 = vcmp.ge.f32.partialorder %v2517, 0.0
      %vm2621 = vcmp.ge.f32.partialorder %v1730, 0.0
      %vm2622 = vcmp.ge.f32.partialorder %v1732, 0.0
      %vm2623 = vcmp.ge.f32.partialorder %v1843, 0.0
      %vm2624 = vcmp.ge.f32.partialorder %v1845, 0.0
      %vm2625 = vcmp.ge.f32.partialorder %v1956, 0.0
      %vm2626 = vcmp.ge.f32.partialorder %v1958, 0.0
      %vm2627 = vcmp.ge.f32.partialorder %v2069, 0.0
      %vm2628 = vcmp.ge.f32.partialorder %v2071, 0.0
      %vm2629 = vcmp.ge.f32.partialorder %v2182, 0.0
      %vm2630 = vcmp.ge.f32.partialorder %v2184, 0.0
      %vm2631 = vcmp.ge.f32.partialorder %v2295, 0.0
      %vm2632 = vcmp.ge.f32.partialorder %v2297, 0.0
      %vm2633 = vcmp.ge.f32.partialorder %v2408, 0.0
      %vm2634 = vcmp.ge.f32.partialorder %v2410, 0.0
      %vm2635 = vcmp.ge.f32.partialorder %v2521, 0.0
      %vm2636 = vcmp.ge.f32.partialorder %v2523, 0.0
      %vm2637 = vcmp.ge.f32.partialorder %v1734, 0.0
      %vm2638 = vcmp.ge.f32.partialorder %v1736, 0.0
      %vm2639 = vcmp.ge.f32.partialorder %v1847, 0.0
      %vm2640 = vcmp.ge.f32.partialorder %v1849, 0.0
      %vm2641 = vcmp.ge.f32.partialorder %v1960, 0.0
      %vm2642 = vcmp.ge.f32.partialorder %v1962, 0.0
      %vm2643 = vcmp.ge.f32.partialorder %v2073, 0.0
      %vm2644 = vcmp.ge.f32.partialorder %v2075, 0.0
      %vm2645 = vcmp.ge.f32.partialorder %v2186, 0.0
      %vm2646 = vcmp.ge.f32.partialorder %v2188, 0.0
      %vm2647 = vcmp.ge.f32.partialorder %v2299, 0.0
      %vm2648 = vcmp.ge.f32.partialorder %v2301, 0.0
      %vm2649 = vcmp.ge.f32.partialorder %v2412, 0.0
      %vm2650 = vcmp.ge.f32.partialorder %v2414, 0.0
      %vm2651 = vcmp.ge.f32.partialorder %v2525, 0.0
      %vm2652 = vcmp.ge.f32.partialorder %v2527, 0.0
      %vm2653 = vcmp.ge.f32.partialorder %v1740, 0.0
      %vm2654 = vcmp.ge.f32.partialorder %v1742, 0.0
      %vm2655 = vcmp.ge.f32.partialorder %v1853, 0.0
      %vm2656 = vcmp.ge.f32.partialorder %v1855, 0.0
      %vm2657 = vcmp.ge.f32.partialorder %v1966, 0.0
      %vm2658 = vcmp.ge.f32.partialorder %v1968, 0.0
      %vm2659 = vcmp.ge.f32.partialorder %v2079, 0.0
      %vm2660 = vcmp.ge.f32.partialorder %v2081, 0.0
      %vm2661 = vcmp.ge.f32.partialorder %v2192, 0.0
      %vm2662 = vcmp.ge.f32.partialorder %v2194, 0.0
      %vm2663 = vcmp.ge.f32.partialorder %v2305, 0.0
      %vm2664 = vcmp.ge.f32.partialorder %v2307, 0.0
      %vm2665 = vcmp.ge.f32.partialorder %v2418, 0.0
      %vm2666 = vcmp.ge.f32.partialorder %v2420, 0.0
      %vm2667 = vcmp.ge.f32.partialorder %v2531, 0.0
      %vm2668 = vcmp.ge.f32.partialorder %v2533, 0.0
      %vm2669 = vcmp.ge.f32.partialorder %v1744, 0.0
      %vm2670 = vcmp.ge.f32.partialorder %v1746, 0.0
      %vm2671 = vcmp.ge.f32.partialorder %v1857, 0.0
      %vm2672 = vcmp.ge.f32.partialorder %v1859, 0.0
      %vm2673 = vcmp.ge.f32.partialorder %v1970, 0.0
      %vm2674 = vcmp.ge.f32.partialorder %v1972, 0.0
      %vm2675 = vcmp.ge.f32.partialorder %v2083, 0.0
      %vm2676 = vcmp.ge.f32.partialorder %v2085, 0.0
      %vm2677 = vcmp.ge.f32.partialorder %v2196, 0.0
      %vm2678 = vcmp.ge.f32.partialorder %v2198, 0.0
      %vm2679 = vcmp.ge.f32.partialorder %v2309, 0.0
      %vm2680 = vcmp.ge.f32.partialorder %v2311, 0.0
      %vm2681 = vcmp.ge.f32.partialorder %v2422, 0.0
      %vm2682 = vcmp.ge.f32.partialorder %v2424, 0.0
      %vm2683 = vcmp.ge.f32.partialorder %v2535, 0.0
      %vm2684 = vcmp.ge.f32.partialorder %v2537, 0.0
      %vm2685 = vcmp.ge.f32.partialorder %v1750, 0.0
      %vm2686 = vcmp.ge.f32.partialorder %v1752, 0.0
      %vm2687 = vcmp.ge.f32.partialorder %v1863, 0.0
      %vm2688 = vcmp.ge.f32.partialorder %v1865, 0.0
      %vm2689 = vcmp.ge.f32.partialorder %v1976, 0.0
      %vm2690 = vcmp.ge.f32.partialorder %v1978, 0.0
      %vm2691 = vcmp.ge.f32.partialorder %v2089, 0.0
      %vm2692 = vcmp.ge.f32.partialorder %v2091, 0.0
      %vm2693 = vcmp.ge.f32.partialorder %v2202, 0.0
      %vm2694 = vcmp.ge.f32.partialorder %v2204, 0.0
      %vm2695 = vcmp.ge.f32.partialorder %v2315, 0.0
      %vm2696 = vcmp.ge.f32.partialorder %v2317, 0.0
      %vm2697 = vcmp.ge.f32.partialorder %v2428, 0.0
      %vm2698 = vcmp.ge.f32.partialorder %v2430, 0.0
      %vm2699 = vcmp.ge.f32.partialorder %v2541, 0.0
      %vm2700 = vcmp.ge.f32.partialorder %v2543, 0.0
      %vm2701 = vcmp.ge.f32.partialorder %v1754, 0.0
      %vm2702 = vcmp.ge.f32.partialorder %v1756, 0.0
      %vm2703 = vcmp.ge.f32.partialorder %v1867, 0.0
      %vm2704 = vcmp.ge.f32.partialorder %v1869, 0.0
      %vm2705 = vcmp.ge.f32.partialorder %v1980, 0.0
      %vm2706 = vcmp.ge.f32.partialorder %v1982, 0.0
      %vm2707 = vcmp.ge.f32.partialorder %v2093, 0.0
      %vm2708 = vcmp.ge.f32.partialorder %v2095, 0.0
      %vm2709 = vcmp.ge.f32.partialorder %v2206, 0.0
      %vm2710 = vcmp.ge.f32.partialorder %v2208, 0.0
      %vm2711 = vcmp.ge.f32.partialorder %v2319, 0.0
      %vm2712 = vcmp.ge.f32.partialorder %v2321, 0.0
      %vm2713 = vcmp.ge.f32.partialorder %v2432, 0.0
      %vm2714 = vcmp.ge.f32.partialorder %v2434, 0.0
      %vm2715 = vcmp.ge.f32.partialorder %v2545, 0.0
      %vm2716 = vcmp.ge.f32.partialorder %v2547, 0.0
      %vm2717 = vcmp.ge.f32.partialorder %v1760, 0.0
      %vm2718 = vcmp.ge.f32.partialorder %v1762, 0.0
      %vm2719 = vcmp.ge.f32.partialorder %v1873, 0.0
      %vm2720 = vcmp.ge.f32.partialorder %v1875, 0.0
      %vm2721 = vcmp.ge.f32.partialorder %v1986, 0.0
      %vm2722 = vcmp.ge.f32.partialorder %v1988, 0.0
      %vm2723 = vcmp.ge.f32.partialorder %v2099, 0.0
      %vm2724 = vcmp.ge.f32.partialorder %v2101, 0.0
      %vm2725 = vcmp.ge.f32.partialorder %v2212, 0.0
      %vm2726 = vcmp.ge.f32.partialorder %v2214, 0.0
      %vm2727 = vcmp.ge.f32.partialorder %v2325, 0.0
      %vm2728 = vcmp.ge.f32.partialorder %v2327, 0.0
      %vm2729 = vcmp.ge.f32.partialorder %v2438, 0.0
      %vm2730 = vcmp.ge.f32.partialorder %v2440, 0.0
      %vm2731 = vcmp.ge.f32.partialorder %v2551, 0.0
      %vm2732 = vcmp.ge.f32.partialorder %v2553, 0.0
      %vm2733 = vcmp.ge.f32.partialorder %v1764, 0.0
      %vm2734 = vcmp.ge.f32.partialorder %v1766, 0.0
      %vm2735 = vcmp.ge.f32.partialorder %v1877, 0.0
      %vm2736 = vcmp.ge.f32.partialorder %v1879, 0.0
      %vm2737 = vcmp.ge.f32.partialorder %v1990, 0.0
      %vm2738 = vcmp.ge.f32.partialorder %v1992, 0.0
      %vm2739 = vcmp.ge.f32.partialorder %v2103, 0.0
      %vm2740 = vcmp.ge.f32.partialorder %v2105, 0.0
      %vm2741 = vcmp.ge.f32.partialorder %v2216, 0.0
      %vm2742 = vcmp.ge.f32.partialorder %v2218, 0.0
      %vm2743 = vcmp.ge.f32.partialorder %v2329, 0.0
      %vm2744 = vcmp.ge.f32.partialorder %v2331, 0.0
      %vm2745 = vcmp.ge.f32.partialorder %v2442, 0.0
      %vm2746 = vcmp.ge.f32.partialorder %v2444, 0.0
      %vm2747 = vcmp.ge.f32.partialorder %v2555, 0.0
      %vm2748 = vcmp.ge.f32.partialorder %v2557, 0.0
      %vm2749 = vcmp.ge.f32.partialorder %v1770, 0.0
      %vm2750 = vcmp.ge.f32.partialorder %v1772, 0.0
      %vm2751 = vcmp.ge.f32.partialorder %v1883, 0.0
      %vm2752 = vcmp.ge.f32.partialorder %v1885, 0.0
      %vm2753 = vcmp.ge.f32.partialorder %v1996, 0.0
      %vm2754 = vcmp.ge.f32.partialorder %v1998, 0.0
      %vm2755 = vcmp.ge.f32.partialorder %v2109, 0.0
      %vm2756 = vcmp.ge.f32.partialorder %v2111, 0.0
      %vm2757 = vcmp.ge.f32.partialorder %v2222, 0.0
      %vm2758 = vcmp.ge.f32.partialorder %v2224, 0.0
      %vm2759 = vcmp.ge.f32.partialorder %v2335, 0.0
      %vm2760 = vcmp.ge.f32.partialorder %v2337, 0.0
      %vm2761 = vcmp.ge.f32.partialorder %v2448, 0.0
      %vm2762 = vcmp.ge.f32.partialorder %v2450, 0.0
      %vm2763 = vcmp.ge.f32.partialorder %v2561, 0.0
      %vm2764 = vcmp.ge.f32.partialorder %v2563, 0.0
      %vm2765 = vcmp.ge.f32.partialorder %v1774, 0.0
      %vm2766 = vcmp.ge.f32.partialorder %v1776, 0.0
      %vm2767 = vcmp.ge.f32.partialorder %v1887, 0.0
      %vm2768 = vcmp.ge.f32.partialorder %v1889, 0.0
      %vm2769 = vcmp.ge.f32.partialorder %v2000, 0.0
      %vm2770 = vcmp.ge.f32.partialorder %v2002, 0.0
      %vm2771 = vcmp.ge.f32.partialorder %v2113, 0.0
      %vm2772 = vcmp.ge.f32.partialorder %v2115, 0.0
      %vm2773 = vcmp.ge.f32.partialorder %v2226, 0.0
      %vm2774 = vcmp.ge.f32.partialorder %v2228, 0.0
      %vm2775 = vcmp.ge.f32.partialorder %v2339, 0.0
      %vm2776 = vcmp.ge.f32.partialorder %v2341, 0.0
      %vm2777 = vcmp.ge.f32.partialorder %v2452, 0.0
      %vm2778 = vcmp.ge.f32.partialorder %v2454, 0.0
      %vm2779 = vcmp.ge.f32.partialorder %v2565, 0.0
      %vm2780 = vcmp.ge.f32.partialorder %v2567, 0.0
      %vm2781 = vcmp.ge.f32.partialorder %v1780, 0.0
      %vm2782 = vcmp.ge.f32.partialorder %v1782, 0.0
      %vm2783 = vcmp.ge.f32.partialorder %v1893, 0.0
      %vm2784 = vcmp.ge.f32.partialorder %v1895, 0.0
      %vm2785 = vcmp.ge.f32.partialorder %v2006, 0.0
      %vm2786 = vcmp.ge.f32.partialorder %v2008, 0.0
      %vm2787 = vcmp.ge.f32.partialorder %v2119, 0.0
      %vm2788 = vcmp.ge.f32.partialorder %v2121, 0.0
      %vm2789 = vcmp.ge.f32.partialorder %v2232, 0.0
      %vm2790 = vcmp.ge.f32.partialorder %v2234, 0.0
      %vm2791 = vcmp.ge.f32.partialorder %v2345, 0.0
      %vm2792 = vcmp.ge.f32.partialorder %v2347, 0.0
      %vm2793 = vcmp.ge.f32.partialorder %v2458, 0.0
      %vm2794 = vcmp.ge.f32.partialorder %v2460, 0.0
      %vm2795 = vcmp.ge.f32.partialorder %v2571, 0.0
      %vm2796 = vcmp.ge.f32.partialorder %v2573, 0.0
      %vm2797 = vcmp.ge.f32.partialorder %v1784, 0.0
      %vm2798 = vcmp.ge.f32.partialorder %v1786, 0.0
      %vm2799 = vcmp.ge.f32.partialorder %v1897, 0.0
      %vm2800 = vcmp.ge.f32.partialorder %v1899, 0.0
      %vm2801 = vcmp.ge.f32.partialorder %v2010, 0.0
      %vm2802 = vcmp.ge.f32.partialorder %v2012, 0.0
      %vm2803 = vcmp.ge.f32.partialorder %v2123, 0.0
      %vm2804 = vcmp.ge.f32.partialorder %v2125, 0.0
      %vm2805 = vcmp.ge.f32.partialorder %v2236, 0.0
      %vm2806 = vcmp.ge.f32.partialorder %v2238, 0.0
      %vm2807 = vcmp.ge.f32.partialorder %v2349, 0.0
      %vm2808 = vcmp.ge.f32.partialorder %v2351, 0.0
      %vm2809 = vcmp.ge.f32.partialorder %v2462, 0.0
      %vm2810 = vcmp.ge.f32.partialorder %v2464, 0.0
      %vm2811 = vcmp.ge.f32.partialorder %v2575, 0.0
      %vm2812 = vcmp.ge.f32.partialorder %v2577, 0.0
      %vm2813 = vcmp.ge.f32.partialorder %v1790, 0.0
      %vm2814 = vcmp.ge.f32.partialorder %v1792, 0.0
      %vm2815 = vcmp.ge.f32.partialorder %v1903, 0.0
      %vm2816 = vcmp.ge.f32.partialorder %v1905, 0.0
      %vm2817 = vcmp.ge.f32.partialorder %v2016, 0.0
      %vm2818 = vcmp.ge.f32.partialorder %v2018, 0.0
      %vm2819 = vcmp.ge.f32.partialorder %v2129, 0.0
      %vm2820 = vcmp.ge.f32.partialorder %v2131, 0.0
      %vm2821 = vcmp.ge.f32.partialorder %v2242, 0.0
      %vm2822 = vcmp.ge.f32.partialorder %v2244, 0.0
      %vm2823 = vcmp.ge.f32.partialorder %v2355, 0.0
      %vm2824 = vcmp.ge.f32.partialorder %v2357, 0.0
      %vm2825 = vcmp.ge.f32.partialorder %v2468, 0.0
      %vm2826 = vcmp.ge.f32.partialorder %v2470, 0.0
      %vm2827 = vcmp.ge.f32.partialorder %v2581, 0.0
      %vm2828 = vcmp.ge.f32.partialorder %v2583, 0.0
      %vm2829 = vcmp.ge.f32.partialorder %v1794, 0.0
      %vm2830 = vcmp.ge.f32.partialorder %v1796, 0.0
      %vm2831 = vcmp.ge.f32.partialorder %v1907, 0.0
      %vm2832 = vcmp.ge.f32.partialorder %v1909, 0.0
      %vm2833 = vcmp.ge.f32.partialorder %v2020, 0.0
      %vm2834 = vcmp.ge.f32.partialorder %v2022, 0.0
      %vm2835 = vcmp.ge.f32.partialorder %v2133, 0.0
      %vm2836 = vcmp.ge.f32.partialorder %v2135, 0.0
      %vm2837 = vcmp.ge.f32.partialorder %v2246, 0.0
      %vm2838 = vcmp.ge.f32.partialorder %v2248, 0.0
      %vm2839 = vcmp.ge.f32.partialorder %v2359, 0.0
      %vm2840 = vcmp.ge.f32.partialorder %v2361, 0.0
      %vm2841 = vcmp.ge.f32.partialorder %v2472, 0.0
      %vm2842 = vcmp.ge.f32.partialorder %v2474, 0.0
      %vm2843 = vcmp.ge.f32.partialorder %v2585, 0.0
      %vm2844 = vcmp.ge.f32.partialorder %v2587, 0.0
      %v2845 = vmul.f32 %v1720, 0.2
      %v2846 = vmul.f32 %v1722, 0.2
      %v2847 = vmul.f32 %v1833, 0.2
      %v2848 = vmul.f32 %v1835, 0.2
      %v2849 = vmul.f32 %v1946, 0.2
      %v2850 = vmul.f32 %v1948, 0.2
      %v2851 = vmul.f32 %v2059, 0.2
      %v2852 = vmul.f32 %v2061, 0.2
      %v2853 = vmul.f32 %v2172, 0.2
      %v2854 = vmul.f32 %v2174, 0.2
      %v2855 = vmul.f32 %v2285, 0.2
      %v2856 = vmul.f32 %v2287, 0.2
      %v2857 = vmul.f32 %v2398, 0.2
      %v2858 = vmul.f32 %v2400, 0.2
      %v2859 = vmul.f32 %v2511, 0.2
      %v2860 = vmul.f32 %v2513, 0.2
      %v2861 = vmul.f32 %v1724, 0.2
      %v2862 = vmul.f32 %v1726, 0.2
      %v2863 = vmul.f32 %v1837, 0.2
      %v2864 = vmul.f32 %v1839, 0.2
      %v2865 = vmul.f32 %v1950, 0.2
      %v2866 = vmul.f32 %v1952, 0.2
      %v2867 = vmul.f32 %v2063, 0.2
      %v2868 = vmul.f32 %v2065, 0.2
      %v2869 = vmul.f32 %v2176, 0.2
      %v2870 = vmul.f32 %v2178, 0.2
      %v2871 = vmul.f32 %v2289, 0.2
      %v2872 = vmul.f32 %v2291, 0.2
      %v2873 = vmul.f32 %v2402, 0.2
      %v2874 = vmul.f32 %v2404, 0.2
      %v2875 = vmul.f32 %v2515, 0.2
      %v2876 = vmul.f32 %v2517, 0.2
      %v2877 = vmul.f32 %v1730, 0.2
      %v2878 = vmul.f32 %v1732, 0.2
      %v2879 = vmul.f32 %v1843, 0.2
      %v2880 = vmul.f32 %v1845, 0.2
      %v2881 = vmul.f32 %v1956, 0.2
      %v2882 = vmul.f32 %v1958, 0.2
      %v2883 = vmul.f32 %v2069, 0.2
      %v2884 = vmul.f32 %v2071, 0.2
      %v2885 = vmul.f32 %v2182, 0.2
      %v2886 = vmul.f32 %v2184, 0.2
      %v2887 = vmul.f32 %v2295, 0.2
      %v2888 = vmul.f32 %v2297, 0.2
      %v2889 = vmul.f32 %v2408, 0.2
      %v2890 = vmul.f32 %v2410, 0.2
      %v2891 = vmul.f32 %v2521, 0.2
      %v2892 = vmul.f32 %v2523, 0.2
      %v2893 = vmul.f32 %v1734, 0.2
      %v2894 = vmul.f32 %v1736, 0.2
      %v2895 = vmul.f32 %v1847, 0.2
      %v2896 = vmul.f32 %v1849, 0.2
      %v2897 = vmul.f32 %v1960, 0.2
      %v2898 = vmul.f32 %v1962, 0.2
      %v2899 = vmul.f32 %v2073, 0.2
      %v2900 = vmul.f32 %v2075, 0.2
      %v2901 = vmul.f32 %v2186, 0.2
      %v2902 = vmul.f32 %v2188, 0.2
      %v2903 = vmul.f32 %v2299, 0.2
      %v2904 = vmul.f32 %v2301, 0.2
      %v2905 = vmul.f32 %v2412, 0.2
      %v2906 = vmul.f32 %v2414, 0.2
      %v2907 = vmul.f32 %v2525, 0.2
      %v2908 = vmul.f32 %v2527, 0.2
      %v2909 = vmul.f32 %v1740, 0.2
      %v2910 = vmul.f32 %v1742, 0.2
      %v2911 = vmul.f32 %v1853, 0.2
      %v2912 = vmul.f32 %v1855, 0.2
      %v2913 = vmul.f32 %v1966, 0.2
      %v2914 = vmul.f32 %v1968, 0.2
      %v2915 = vmul.f32 %v2079, 0.2
      %v2916 = vmul.f32 %v2081, 0.2
      %v2917 = vmul.f32 %v2192, 0.2
      %v2918 = vmul.f32 %v2194, 0.2
      %v2919 = vmul.f32 %v2305, 0.2
      %v2920 = vmul.f32 %v2307, 0.2
      %v2921 = vmul.f32 %v2418, 0.2
      %v2922 = vmul.f32 %v2420, 0.2
      %v2923 = vmul.f32 %v2531, 0.2
      %v2924 = vmul.f32 %v2533, 0.2
      %v2925 = vmul.f32 %v1744, 0.2
      %v2926 = vmul.f32 %v1746, 0.2
      %v2927 = vmul.f32 %v1857, 0.2
      %v2928 = vmul.f32 %v1859, 0.2
      %v2929 = vmul.f32 %v1970, 0.2
      %v2930 = vmul.f32 %v1972, 0.2
      %v2931 = vmul.f32 %v2083, 0.2
      %v2932 = vmul.f32 %v2085, 0.2
      %v2933 = vmul.f32 %v2196, 0.2
      %v2934 = vmul.f32 %v2198, 0.2
      %v2935 = vmul.f32 %v2309, 0.2
      %v2936 = vmul.f32 %v2311, 0.2
      %v2937 = vmul.f32 %v2422, 0.2
      %v2938 = vmul.f32 %v2424, 0.2
      %v2939 = vmul.f32 %v2535, 0.2
      %v2940 = vmul.f32 %v2537, 0.2
      %v2941 = vmul.f32 %v1750, 0.2
      %v2942 = vmul.f32 %v1752, 0.2
      %v2943 = vmul.f32 %v1863, 0.2
      %v2944 = vmul.f32 %v1865, 0.2
      %v2945 = vmul.f32 %v1976, 0.2
      %v2946 = vmul.f32 %v1978, 0.2
      %v2947 = vmul.f32 %v2089, 0.2
      %v2948 = vmul.f32 %v2091, 0.2
      %v2949 = vmul.f32 %v2202, 0.2
      %v2950 = vmul.f32 %v2204, 0.2
      %v2951 = vmul.f32 %v2315, 0.2
      %v2952 = vmul.f32 %v2317, 0.2
      %v2953 = vmul.f32 %v2428, 0.2
      %v2954 = vmul.f32 %v2430, 0.2
      %v2955 = vmul.f32 %v2541, 0.2
      %v2956 = vmul.f32 %v2543, 0.2
      %v2957 = vmul.f32 %v1754, 0.2
      %v2958 = vmul.f32 %v1756, 0.2
      %v2959 = vmul.f32 %v1867, 0.2
      %v2960 = vmul.f32 %v1869, 0.2
      %v2961 = vmul.f32 %v1980, 0.2
      %v2962 = vmul.f32 %v1982, 0.2
      %v2963 = vmul.f32 %v2093, 0.2
      %v2964 = vmul.f32 %v2095, 0.2
      %v2965 = vmul.f32 %v2206, 0.2
      %v2966 = vmul.f32 %v2208, 0.2
      %v2967 = vmul.f32 %v2319, 0.2
      %v2968 = vmul.f32 %v2321, 0.2
      %v2969 = vmul.f32 %v2432, 0.2
      %v2970 = vmul.f32 %v2434, 0.2
      %v2971 = vmul.f32 %v2545, 0.2
      %v2972 = vmul.f32 %v2547, 0.2
      %v2973 = vmul.f32 %v1760, 0.2
      %v2974 = vmul.f32 %v1762, 0.2
      %v2975 = vmul.f32 %v1873, 0.2
      %v2976 = vmul.f32 %v1875, 0.2
      %v2977 = vmul.f32 %v1986, 0.2
      %v2978 = vmul.f32 %v1988, 0.2
      %v2979 = vmul.f32 %v2099, 0.2
      %v2980 = vmul.f32 %v2101, 0.2
      %v2981 = vmul.f32 %v2212, 0.2
      %v2982 = vmul.f32 %v2214, 0.2
      %v2983 = vmul.f32 %v2325, 0.2
      %v2984 = vmul.f32 %v2327, 0.2
      %v2985 = vmul.f32 %v2438, 0.2
      %v2986 = vmul.f32 %v2440, 0.2
      %v2987 = vmul.f32 %v2551, 0.2
      %v2988 = vmul.f32 %v2553, 0.2
      %v2989 = vmul.f32 %v1764, 0.2
      %v2990 = vmul.f32 %v1766, 0.2
      %v2991 = vmul.f32 %v1877, 0.2
      %v2992 = vmul.f32 %v1879, 0.2
      %v2993 = vmul.f32 %v1990, 0.2
      %v2994 = vmul.f32 %v1992, 0.2
      %v2995 = vmul.f32 %v2103, 0.2
      %v2996 = vmul.f32 %v2105, 0.2
      %v2997 = vmul.f32 %v2216, 0.2
      %v2998 = vmul.f32 %v2218, 0.2
      %v2999 = vmul.f32 %v2329, 0.2
      %v3000 = vmul.f32 %v2331, 0.2
      %v3001 = vmul.f32 %v2442, 0.2
      %v3002 = vmul.f32 %v2444, 0.2
      %v3003 = vmul.f32 %v2555, 0.2
      %v3004 = vmul.f32 %v2557, 0.2
      %v3005 = vmul.f32 %v1770, 0.2
      %v3006 = vmul.f32 %v1772, 0.2
      %v3007 = vmul.f32 %v1883, 0.2
      %v3008 = vmul.f32 %v1885, 0.2
      %v3009 = vmul.f32 %v1996, 0.2
      %v3010 = vmul.f32 %v1998, 0.2
      %v3011 = vmul.f32 %v2109, 0.2
      %v3012 = vmul.f32 %v2111, 0.2
      %v3013 = vmul.f32 %v2222, 0.2
      %v3014 = vmul.f32 %v2224, 0.2
      %v3015 = vmul.f32 %v2335, 0.2
      %v3016 = vmul.f32 %v2337, 0.2
      %v3017 = vmul.f32 %v2448, 0.2
      %v3018 = vmul.f32 %v2450, 0.2
      %v3019 = vmul.f32 %v2561, 0.2
      %v3020 = vmul.f32 %v2563, 0.2
      %v3021 = vmul.f32 %v1774, 0.2
      %v3022 = vmul.f32 %v1776, 0.2
      %v3023 = vmul.f32 %v1887, 0.2
      %v3024 = vmul.f32 %v1889, 0.2
      %v3025 = vmul.f32 %v2000, 0.2
      %v3026 = vmul.f32 %v2002, 0.2
      %v3027 = vmul.f32 %v2113, 0.2
      %v3028 = vmul.f32 %v2115, 0.2
      %v3029 = vmul.f32 %v2226, 0.2
      %v3030 = vmul.f32 %v2228, 0.2
      %v3031 = vmul.f32 %v2339, 0.2
      %v3032 = vmul.f32 %v2341, 0.2
      %v3033 = vmul.f32 %v2452, 0.2
      %v3034 = vmul.f32 %v2454, 0.2
      %v3035 = vmul.f32 %v2565, 0.2
      %v3036 = vmul.f32 %v2567, 0.2
      %v3037 = vmul.f32 %v1780, 0.2
      %v3038 = vmul.f32 %v1782, 0.2
      %v3039 = vmul.f32 %v1893, 0.2
      %v3040 = vmul.f32 %v1895, 0.2
      %v3041 = vmul.f32 %v2006, 0.2
      %v3042 = vmul.f32 %v2008, 0.2
      %v3043 = vmul.f32 %v2119, 0.2
      %v3044 = vmul.f32 %v2121, 0.2
      %v3045 = vmul.f32 %v2232, 0.2
      %v3046 = vmul.f32 %v2234, 0.2
      %v3047 = vmul.f32 %v2345, 0.2
      %v3048 = vmul.f32 %v2347, 0.2
      %v3049 = vmul.f32 %v2458, 0.2
      %v3050 = vmul.f32 %v2460, 0.2
      %v3051 = vmul.f32 %v2571, 0.2
      %v3052 = vmul.f32 %v2573, 0.2
      %v3053 = vmul.f32 %v1784, 0.2
      %v3054 = vmul.f32 %v1786, 0.2
      %v3055 = vmul.f32 %v1897, 0.2
      %v3056 = vmul.f32 %v1899, 0.2
      %v3057 = vmul.f32 %v2010, 0.2
      %v3058 = vmul.f32 %v2012, 0.2
      %v3059 = vmul.f32 %v2123, 0.2
      %v3060 = vmul.f32 %v2125, 0.2
      %v3061 = vmul.f32 %v2236, 0.2
      %v3062 = vmul.f32 %v2238, 0.2
      %v3063 = vmul.f32 %v2349, 0.2
      %v3064 = vmul.f32 %v2351, 0.2
      %v3065 = vmul.f32 %v2462, 0.2
      %v3066 = vmul.f32 %v2464, 0.2
      %v3067 = vmul.f32 %v2575, 0.2
      %v3068 = vmul.f32 %v2577, 0.2
      %v3069 = vmul.f32 %v1790, 0.2
      %v3070 = vmul.f32 %v1792, 0.2
      %v3071 = vmul.f32 %v1903, 0.2
      %v3072 = vmul.f32 %v1905, 0.2
      %v3073 = vmul.f32 %v2016, 0.2
      %v3074 = vmul.f32 %v2018, 0.2
      %v3075 = vmul.f32 %v2129, 0.2
      %v3076 = vmul.f32 %v2131, 0.2
      %v3077 = vmul.f32 %v2242, 0.2
      %v3078 = vmul.f32 %v2244, 0.2
      %v3079 = vmul.f32 %v2355, 0.2
      %v3080 = vmul.f32 %v2357, 0.2
      %v3081 = vmul.f32 %v2468, 0.2
      %v3082 = vmul.f32 %v2470, 0.2
      %v3083 = vmul.f32 %v2581, 0.2
      %v3084 = vmul.f32 %v2583, 0.2
      %v3085 = vmul.f32 %v1794, 0.2
      %v3086 = vmul.f32 %v1796, 0.2
      %v3087 = vmul.f32 %v1907, 0.2
      %v3088 = vmul.f32 %v1909, 0.2
      %v3089 = vmul.f32 %v2020, 0.2
      %v3090 = vmul.f32 %v2022, 0.2
      %v3091 = vmul.f32 %v2133, 0.2
      %v3092 = vmul.f32 %v2135, 0.2
      %v3093 = vmul.f32 %v2246, 0.2
      %v3094 = vmul.f32 %v2248, 0.2
      %v3095 = vmul.f32 %v2359, 0.2
      %v3096 = vmul.f32 %v2361, 0.2
      %v3097 = vmul.f32 %v2472, 0.2
      %v3098 = vmul.f32 %v2474, 0.2
      %v3099 = vmul.f32 %v2585, 0.2
      %v3100 = vmul.f32 %v2587, 0.2
      %v3101 = vsel %vm2589, %v1720, %v2845
      %v3102 = vsel %vm2590, %v1722, %v2846
      %v3103 = vsel %vm2591, %v1833, %v2847
      %v3104 = vsel %vm2592, %v1835, %v2848
      %v3105 = vsel %vm2593, %v1946, %v2849
      %v3106 = vsel %vm2594, %v1948, %v2850
      %v3107 = vsel %vm2595, %v2059, %v2851
      %v3108 = vsel %vm2596, %v2061, %v2852
      %v3109 = vsel %vm2597, %v2172, %v2853
      %v3110 = vsel %vm2598, %v2174, %v2854
      %v3111 = vsel %vm2599, %v2285, %v2855
      %v3112 = vsel %vm2600, %v2287, %v2856
      %v3113 = vsel %vm2601, %v2398, %v2857
      %v3114 = vsel %vm2602, %v2400, %v2858
      %v3115 = vsel %vm2603, %v2511, %v2859
      %v3116 = vsel %vm2604, %v2513, %v2860
      %v3117 = vsel %vm2605, %v1724, %v2861
      %v3118 = vsel %vm2606, %v1726, %v2862
      %v3119 = vsel %vm2607, %v1837, %v2863
      %v3120 = vsel %vm2608, %v1839, %v2864
      %v3121 = vsel %vm2609, %v1950, %v2865
      %v3122 = vsel %vm2610, %v1952, %v2866
      %v3123 = vsel %vm2611, %v2063, %v2867
      %v3124 = vsel %vm2612, %v2065, %v2868
      %v3125 = vsel %vm2613, %v2176, %v2869
      %v3126 = vsel %vm2614, %v2178, %v2870
      %v3127 = vsel %vm2615, %v2289, %v2871
      %v3128 = vsel %vm2616, %v2291, %v2872
      %v3129 = vsel %vm2617, %v2402, %v2873
      %v3130 = vsel %vm2618, %v2404, %v2874
      %v3131 = vsel %vm2619, %v2515, %v2875
      %v3132 = vsel %vm2620, %v2517, %v2876
      %v3133 = vsel %vm2621, %v1730, %v2877
      %v3134 = vsel %vm2622, %v1732, %v2878
      %v3135 = vsel %vm2623, %v1843, %v2879
      %v3136 = vsel %vm2624, %v1845, %v2880
      %v3137 = vsel %vm2625, %v1956, %v2881
      %v3138 = vsel %vm2626, %v1958, %v2882
      %v3139 = vsel %vm2627, %v2069, %v2883
      %v3140 = vsel %vm2628, %v2071, %v2884
      %v3141 = vsel %vm2629, %v2182, %v2885
      %v3142 = vsel %vm2630, %v2184, %v2886
      %v3143 = vsel %vm2631, %v2295, %v2887
      %v3144 = vsel %vm2632, %v2297, %v2888
      %v3145 = vsel %vm2633, %v2408, %v2889
      %v3146 = vsel %vm2634, %v2410, %v2890
      %v3147 = vsel %vm2635, %v2521, %v2891
      %v3148 = vsel %vm2636, %v2523, %v2892
      %v3149 = vsel %vm2637, %v1734, %v2893
      %v3150 = vsel %vm2638, %v1736, %v2894
      %v3151 = vsel %vm2639, %v1847, %v2895
      %v3152 = vsel %vm2640, %v1849, %v2896
      %v3153 = vsel %vm2641, %v1960, %v2897
      %v3154 = vsel %vm2642, %v1962, %v2898
      %v3155 = vsel %vm2643, %v2073, %v2899
      %v3156 = vsel %vm2644, %v2075, %v2900
      %v3157 = vsel %vm2645, %v2186, %v2901
      %v3158 = vsel %vm2646, %v2188, %v2902
      %v3159 = vsel %vm2647, %v2299, %v2903
      %v3160 = vsel %vm2648, %v2301, %v2904
      %v3161 = vsel %vm2649, %v2412, %v2905
      %v3162 = vsel %vm2650, %v2414, %v2906
      %v3163 = vsel %vm2651, %v2525, %v2907
      %v3164 = vsel %vm2652, %v2527, %v2908
      %v3165 = vsel %vm2653, %v1740, %v2909
      %v3166 = vsel %vm2654, %v1742, %v2910
      %v3167 = vsel %vm2655, %v1853, %v2911
      %v3168 = vsel %vm2656, %v1855, %v2912
      %v3169 = vsel %vm2657, %v1966, %v2913
      %v3170 = vsel %vm2658, %v1968, %v2914
      %v3171 = vsel %vm2659, %v2079, %v2915
      %v3172 = vsel %vm2660, %v2081, %v2916
      %v3173 = vsel %vm2661, %v2192, %v2917
      %v3174 = vsel %vm2662, %v2194, %v2918
      %v3175 = vsel %vm2663, %v2305, %v2919
      %v3176 = vsel %vm2664, %v2307, %v2920
      %v3177 = vsel %vm2665, %v2418, %v2921
      %v3178 = vsel %vm2666, %v2420, %v2922
      %v3179 = vsel %vm2667, %v2531, %v2923
      %v3180 = vsel %vm2668, %v2533, %v2924
      %v3181 = vsel %vm2669, %v1744, %v2925
      %v3182 = vsel %vm2670, %v1746, %v2926
      %v3183 = vsel %vm2671, %v1857, %v2927
      %v3184 = vsel %vm2672, %v1859, %v2928
      %v3185 = vsel %vm2673, %v1970, %v2929
      %v3186 = vsel %vm2674, %v1972, %v2930
      %v3187 = vsel %vm2675, %v2083, %v2931
      %v3188 = vsel %vm2676, %v2085, %v2932
      %v3189 = vsel %vm2677, %v2196, %v2933
      %v3190 = vsel %vm2678, %v2198, %v2934
      %v3191 = vsel %vm2679, %v2309, %v2935
      %v3192 = vsel %vm2680, %v2311, %v2936
      %v3193 = vsel %vm2681, %v2422, %v2937
      %v3194 = vsel %vm2682, %v2424, %v2938
      %v3195 = vsel %vm2683, %v2535, %v2939
      %v3196 = vsel %vm2684, %v2537, %v2940
      %v3197 = vsel %vm2685, %v1750, %v2941
      %v3198 = vsel %vm2686, %v1752, %v2942
      %v3199 = vsel %vm2687, %v1863, %v2943
      %v3200 = vsel %vm2688, %v1865, %v2944
      %v3201 = vsel %vm2689, %v1976, %v2945
      %v3202 = vsel %vm2690, %v1978, %v2946
      %v3203 = vsel %vm2691, %v2089, %v2947
      %v3204 = vsel %vm2692, %v2091, %v2948
      %v3205 = vsel %vm2693, %v2202, %v2949
      %v3206 = vsel %vm2694, %v2204, %v2950
      %v3207 = vsel %vm2695, %v2315, %v2951
      %v3208 = vsel %vm2696, %v2317, %v2952
      %v3209 = vsel %vm2697, %v2428, %v2953
      %v3210 = vsel %vm2698, %v2430, %v2954
      %v3211 = vsel %vm2699, %v2541, %v2955
      %v3212 = vsel %vm2700, %v2543, %v2956
      %v3213 = vsel %vm2701, %v1754, %v2957
      %v3214 = vsel %vm2702, %v1756, %v2958
      %v3215 = vsel %vm2703, %v1867, %v2959
      %v3216 = vsel %vm2704, %v1869, %v2960
      %v3217 = vsel %vm2705, %v1980, %v2961
      %v3218 = vsel %vm2706, %v1982, %v2962
      %v3219 = vsel %vm2707, %v2093, %v2963
      %v3220 = vsel %vm2708, %v2095, %v2964
      %v3221 = vsel %vm2709, %v2206, %v2965
      %v3222 = vsel %vm2710, %v2208, %v2966
      %v3223 = vsel %vm2711, %v2319, %v2967
      %v3224 = vsel %vm2712, %v2321, %v2968
      %v3225 = vsel %vm2713, %v2432, %v2969
      %v3226 = vsel %vm2714, %v2434, %v2970
      %v3227 = vsel %vm2715, %v2545, %v2971
      %v3228 = vsel %vm2716, %v2547, %v2972
      %v3229 = vsel %vm2717, %v1760, %v2973
      %v3230 = vsel %vm2718, %v1762, %v2974
      %v3231 = vsel %vm2719, %v1873, %v2975
      %v3232 = vsel %vm2720, %v1875, %v2976
      %v3233 = vsel %vm2721, %v1986, %v2977
      %v3234 = vsel %vm2722, %v1988, %v2978
      %v3235 = vsel %vm2723, %v2099, %v2979
      %v3236 = vsel %vm2724, %v2101, %v2980
      %v3237 = vsel %vm2725, %v2212, %v2981
      %v3238 = vsel %vm2726, %v2214, %v2982
      %v3239 = vsel %vm2727, %v2325, %v2983
      %v3240 = vsel %vm2728, %v2327, %v2984
      %v3241 = vsel %vm2729, %v2438, %v2985
      %v3242 = vsel %vm2730, %v2440, %v2986
      %v3243 = vsel %vm2731, %v2551, %v2987
      %v3244 = vsel %vm2732, %v2553, %v2988
      %v3245 = vsel %vm2733, %v1764, %v2989
      %v3246 = vsel %vm2734, %v1766, %v2990
      %v3247 = vsel %vm2735, %v1877, %v2991
      %v3248 = vsel %vm2736, %v1879, %v2992
      %v3249 = vsel %vm2737, %v1990, %v2993
      %v3250 = vsel %vm2738, %v1992, %v2994
      %v3251 = vsel %vm2739, %v2103, %v2995
      %v3252 = vsel %vm2740, %v2105, %v2996
      %v3253 = vsel %vm2741, %v2216, %v2997
      %v3254 = vsel %vm2742, %v2218, %v2998
      %v3255 = vsel %vm2743, %v2329, %v2999
      %v3256 = vsel %vm2744, %v2331, %v3000
      %v3257 = vsel %vm2745, %v2442, %v3001
      %v3258 = vsel %vm2746, %v2444, %v3002
      %v3259 = vsel %vm2747, %v2555, %v3003
      %v3260 = vsel %vm2748, %v2557, %v3004
      %v3261 = vsel %vm2749, %v1770, %v3005
      %v3262 = vsel %vm2750, %v1772, %v3006
      %v3263 = vsel %vm2751, %v1883, %v3007
      %v3264 = vsel %vm2752, %v1885, %v3008
      %v3265 = vsel %vm2753, %v1996, %v3009
      %v3266 = vsel %vm2754, %v1998, %v3010
      %v3267 = vsel %vm2755, %v2109, %v3011
      %v3268 = vsel %vm2756, %v2111, %v3012
      %v3269 = vsel %vm2757, %v2222, %v3013
      %v3270 = vsel %vm2758, %v2224, %v3014
      %v3271 = vsel %vm2759, %v2335, %v3015
      %v3272 = vsel %vm2760, %v2337, %v3016
      %v3273 = vsel %vm2761, %v2448, %v3017
      %v3274 = vsel %vm2762, %v2450, %v3018
      %v3275 = vsel %vm2763, %v2561, %v3019
      %v3276 = vsel %vm2764, %v2563, %v3020
      %v3277 = vsel %vm2765, %v1774, %v3021
      %v3278 = vsel %vm2766, %v1776, %v3022
      %v3279 = vsel %vm2767, %v1887, %v3023
      %v3280 = vsel %vm2768, %v1889, %v3024
      %v3281 = vsel %vm2769, %v2000, %v3025
      %v3282 = vsel %vm2770, %v2002, %v3026
      %v3283 = vsel %vm2771, %v2113, %v3027
      %v3284 = vsel %vm2772, %v2115, %v3028
      %v3285 = vsel %vm2773, %v2226, %v3029
      %v3286 = vsel %vm2774, %v2228, %v3030
      %v3287 = vsel %vm2775, %v2339, %v3031
      %v3288 = vsel %vm2776, %v2341, %v3032
      %v3289 = vsel %vm2777, %v2452, %v3033
      %v3290 = vsel %vm2778, %v2454, %v3034
      %v3291 = vsel %vm2779, %v2565, %v3035
      %v3292 = vsel %vm2780, %v2567, %v3036
      %v3293 = vsel %vm2781, %v1780, %v3037
      %v3294 = vsel %vm2782, %v1782, %v3038
      %v3295 = vsel %vm2783, %v1893, %v3039
      %v3296 = vsel %vm2784, %v1895, %v3040
      %v3297 = vsel %vm2785, %v2006, %v3041
      %v3298 = vsel %vm2786, %v2008, %v3042
      %v3299 = vsel %vm2787, %v2119, %v3043
      %v3300 = vsel %vm2788, %v2121, %v3044
      %v3301 = vsel %vm2789, %v2232, %v3045
      %v3302 = vsel %vm2790, %v2234, %v3046
      %v3303 = vsel %vm2791, %v2345, %v3047
      %v3304 = vsel %vm2792, %v2347, %v3048
      %v3305 = vsel %vm2793, %v2458, %v3049
      %v3306 = vsel %vm2794, %v2460, %v3050
      %v3307 = vsel %vm2795, %v2571, %v3051
      %v3308 = vsel %vm2796, %v2573, %v3052
      %v3309 = vsel %vm2797, %v1784, %v3053
      %v3310 = vsel %vm2798, %v1786, %v3054
      %v3311 = vsel %vm2799, %v1897, %v3055
      %v3312 = vsel %vm2800, %v1899, %v3056
      %v3313 = vsel %vm2801, %v2010, %v3057
      %v3314 = vsel %vm2802, %v2012, %v3058
      %v3315 = vsel %vm2803, %v2123, %v3059
      %v3316 = vsel %vm2804, %v2125, %v3060
      %v3317 = vsel %vm2805, %v2236, %v3061
      %v3318 = vsel %vm2806, %v2238, %v3062
      %v3319 = vsel %vm2807, %v2349, %v3063
      %v3320 = vsel %vm2808, %v2351, %v3064
      %v3321 = vsel %vm2809, %v2462, %v3065
      %v3322 = vsel %vm2810, %v2464, %v3066
      %v3323 = vsel %vm2811, %v2575, %v3067
      %v3324 = vsel %vm2812, %v2577, %v3068
      %v3325 = vsel %vm2813, %v1790, %v3069
      %v3326 = vsel %vm2814, %v1792, %v3070
      %v3327 = vsel %vm2815, %v1903, %v3071
      %v3328 = vsel %vm2816, %v1905, %v3072
      %v3329 = vsel %vm2817, %v2016, %v3073
      %v3330 = vsel %vm2818, %v2018, %v3074
      %v3331 = vsel %vm2819, %v2129, %v3075
      %v3332 = vsel %vm2820, %v2131, %v3076
      %v3333 = vsel %vm2821, %v2242, %v3077
      %v3334 = vsel %vm2822, %v2244, %v3078
      %v3335 = vsel %vm2823, %v2355, %v3079
      %v3336 = vsel %vm2824, %v2357, %v3080
      %v3337 = vsel %vm2825, %v2468, %v3081
      %v3338 = vsel %vm2826, %v2470, %v3082
      %v3339 = vsel %vm2827, %v2581, %v3083
      %v3340 = vsel %vm2828, %v2583, %v3084
      %v3341 = vsel %vm2829, %v1794, %v3085
      %v3342 = vsel %vm2830, %v1796, %v3086
      %v3343 = vsel %vm2831, %v1907, %v3087
      %v3344 = vsel %vm2832, %v1909, %v3088
      %v3345 = vsel %vm2833, %v2020, %v3089
      %v3346 = vsel %vm2834, %v2022, %v3090
      %v3347 = vsel %vm2835, %v2133, %v3091
      %v3348 = vsel %vm2836, %v2135, %v3092
      %v3349 = vsel %vm2837, %v2246, %v3093
      %v3350 = vsel %vm2838, %v2248, %v3094
      %v3351 = vsel %vm2839, %v2359, %v3095
      %v3352 = vsel %vm2840, %v2361, %v3096
      %v3353 = vsel %vm2841, %v2472, %v3097
      %v3354 = vsel %vm2842, %v2474, %v3098
      %v3355 = vsel %vm2843, %v2585, %v3099
      %v3356 = vsel %vm2844, %v2587, %v3100
      %v3357 = vld [vmem:[%s5] sm:$0x1]
      %v3358 = vpack.c.bf16 %v3117, %v3101
      %v3359 = vpack.c.bf16 %v3118, %v3102
      %v3360 = vpack.c.bf16 %v3119, %v3103
      %v3361 = vpack.c.bf16 %v3120, %v3104
      %v3362 = vpack.c.bf16 %v3121, %v3105
      %v3363 = vpack.c.bf16 %v3122, %v3106
      %v3364 = vpack.c.bf16 %v3123, %v3107
      %v3365 = vpack.c.bf16 %v3124, %v3108
      %v3366 = vpack.c.bf16 %v3125, %v3109
      %v3367 = vpack.c.bf16 %v3126, %v3110
      %v3368 = vpack.c.bf16 %v3127, %v3111
      %v3369 = vpack.c.bf16 %v3128, %v3112
      %v3370 = vpack.c.bf16 %v3129, %v3113
      %v3371 = vpack.c.bf16 %v3130, %v3114
      %v3372 = vpack.c.bf16 %v3131, %v3115
      %v3373 = vpack.c.bf16 %v3132, %v3116
      %v3374 = vpack.c.bf16 %v3149, %v3133
      %v3375 = vpack.c.bf16 %v3150, %v3134
      %v3376 = vpack.c.bf16 %v3151, %v3135
      %v3377 = vpack.c.bf16 %v3152, %v3136
      %v3378 = vpack.c.bf16 %v3153, %v3137
      %v3379 = vpack.c.bf16 %v3154, %v3138
      %v3380 = vpack.c.bf16 %v3155, %v3139
      %v3381 = vpack.c.bf16 %v3156, %v3140
      %v3382 = vpack.c.bf16 %v3157, %v3141
      %v3383 = vpack.c.bf16 %v3158, %v3142
      %v3384 = vpack.c.bf16 %v3159, %v3143
      %v3385 = vpack.c.bf16 %v3160, %v3144
      %v3386 = vpack.c.bf16 %v3161, %v3145
      %v3387 = vpack.c.bf16 %v3162, %v3146
      %v3388 = vpack.c.bf16 %v3163, %v3147
      %v3389 = vpack.c.bf16 %v3164, %v3148
      %v3390 = vpack.c.bf16 %v3181, %v3165
      %v3391 = vpack.c.bf16 %v3182, %v3166
      %v3392 = vpack.c.bf16 %v3183, %v3167
      %v3393 = vpack.c.bf16 %v3184, %v3168
      %v3394 = vpack.c.bf16 %v3185, %v3169
      %v3395 = vpack.c.bf16 %v3186, %v3170
      %v3396 = vpack.c.bf16 %v3187, %v3171
      %v3397 = vpack.c.bf16 %v3188, %v3172
      %v3398 = vpack.c.bf16 %v3189, %v3173
      %v3399 = vpack.c.bf16 %v3190, %v3174
      %v3400 = vpack.c.bf16 %v3191, %v3175
      %v3401 = vpack.c.bf16 %v3192, %v3176
      %v3402 = vpack.c.bf16 %v3193, %v3177
      %v3403 = vpack.c.bf16 %v3194, %v3178
      %v3404 = vpack.c.bf16 %v3195, %v3179
      %v3405 = vpack.c.bf16 %v3196, %v3180
      %v3406 = vpack.c.bf16 %v3213, %v3197
      %v3407 = vpack.c.bf16 %v3214, %v3198
      %v3408 = vpack.c.bf16 %v3215, %v3199
      %v3409 = vpack.c.bf16 %v3216, %v3200
      %v3410 = vpack.c.bf16 %v3217, %v3201
      %v3411 = vpack.c.bf16 %v3218, %v3202
      %v3412 = vpack.c.bf16 %v3219, %v3203
      %v3413 = vpack.c.bf16 %v3220, %v3204
      %v3414 = vpack.c.bf16 %v3221, %v3205
      %v3415 = vpack.c.bf16 %v3222, %v3206
      %v3416 = vpack.c.bf16 %v3223, %v3207
      %v3417 = vpack.c.bf16 %v3224, %v3208
      %v3418 = vpack.c.bf16 %v3225, %v3209
      %v3419 = vpack.c.bf16 %v3226, %v3210
      %v3420 = vpack.c.bf16 %v3227, %v3211
      %v3421 = vpack.c.bf16 %v3228, %v3212
      %v3422 = vpack.c.bf16 %v3245, %v3229
      %v3423 = vpack.c.bf16 %v3246, %v3230
      %v3424 = vpack.c.bf16 %v3247, %v3231
      %v3425 = vpack.c.bf16 %v3248, %v3232
      %v3426 = vpack.c.bf16 %v3249, %v3233
      %v3427 = vpack.c.bf16 %v3250, %v3234
      %v3428 = vpack.c.bf16 %v3251, %v3235
      %v3429 = vpack.c.bf16 %v3252, %v3236
      %v3430 = vpack.c.bf16 %v3253, %v3237
      %v3431 = vpack.c.bf16 %v3254, %v3238
      %v3432 = vpack.c.bf16 %v3255, %v3239
      %v3433 = vpack.c.bf16 %v3256, %v3240
      %v3434 = vpack.c.bf16 %v3257, %v3241
      %v3435 = vpack.c.bf16 %v3258, %v3242
      %v3436 = vpack.c.bf16 %v3259, %v3243
      %v3437 = vpack.c.bf16 %v3260, %v3244
      %v3438 = vpack.c.bf16 %v3277, %v3261
      %v3439 = vpack.c.bf16 %v3278, %v3262
      %v3440 = vpack.c.bf16 %v3279, %v3263
      %v3441 = vpack.c.bf16 %v3280, %v3264
      %v3442 = vpack.c.bf16 %v3281, %v3265
      %v3443 = vpack.c.bf16 %v3282, %v3266
      %v3444 = vpack.c.bf16 %v3283, %v3267
      %v3445 = vpack.c.bf16 %v3284, %v3268
      %v3446 = vpack.c.bf16 %v3285, %v3269
      %v3447 = vpack.c.bf16 %v3286, %v3270
      %v3448 = vpack.c.bf16 %v3287, %v3271
      %v3449 = vpack.c.bf16 %v3288, %v3272
      %v3450 = vpack.c.bf16 %v3289, %v3273
      %v3451 = vpack.c.bf16 %v3290, %v3274
      %v3452 = vpack.c.bf16 %v3291, %v3275
      %v3453 = vpack.c.bf16 %v3292, %v3276
      %v3454 = vpack.c.bf16 %v3309, %v3293
      %v3455 = vpack.c.bf16 %v3310, %v3294
      %v3456 = vpack.c.bf16 %v3311, %v3295
      %v3457 = vpack.c.bf16 %v3312, %v3296
      %v3458 = vpack.c.bf16 %v3313, %v3297
      %v3459 = vpack.c.bf16 %v3314, %v3298
      %v3460 = vpack.c.bf16 %v3315, %v3299
      %v3461 = vpack.c.bf16 %v3316, %v3300
      %v3462 = vpack.c.bf16 %v3317, %v3301
      %v3463 = vpack.c.bf16 %v3318, %v3302
      %v3464 = vpack.c.bf16 %v3319, %v3303
      %v3465 = vpack.c.bf16 %v3320, %v3304
      %v3466 = vpack.c.bf16 %v3321, %v3305
      %v3467 = vpack.c.bf16 %v3322, %v3306
      %v3468 = vpack.c.bf16 %v3323, %v3307
      %v3469 = vpack.c.bf16 %v3324, %v3308
      %v3470 = vpack.c.bf16 %v3341, %v3325
      %v3471 = vpack.c.bf16 %v3342, %v3326
      %v3472 = vpack.c.bf16 %v3343, %v3327
      %v3473 = vpack.c.bf16 %v3344, %v3328
      %v3474 = vpack.c.bf16 %v3345, %v3329
      %v3475 = vpack.c.bf16 %v3346, %v3330
      %v3476 = vpack.c.bf16 %v3347, %v3331
      %v3477 = vpack.c.bf16 %v3348, %v3332
      %v3478 = vpack.c.bf16 %v3349, %v3333
      %v3479 = vpack.c.bf16 %v3350, %v3334
      %v3480 = vpack.c.bf16 %v3351, %v3335
      %v3481 = vpack.c.bf16 %v3352, %v3336
      %v3482 = vpack.c.bf16 %v3353, %v3337
      %v3483 = vpack.c.bf16 %v3354, %v3338
      %v3484 = vpack.c.bf16 %v3355, %v3339
      %v3485 = vpack.c.bf16 %v3356, %v3340
      %3486 = vmatprep.subr.bf16.mxu0 %v3359
      %3487 = vmatpush1.bf16.msra.mxu0 %v3358
      %3488 = vmatprep.subr.bf16.mxu0 %v3375
      %3489 = vmatpush1.bf16.msra.mxu0 %v3374
      %3490 = vmatprep.subr.bf16.mxu0 %v3391
      %3491 = vmatpush1.bf16.msra.mxu0 %v3390
      %3492 = vmatprep.subr.bf16.mxu0 %v3407
      %3493 = vmatpush1.bf16.msra.mxu0 %v3406
      %3494 = vmatprep.subr.bf16.mxu0 %v3423
      %3495 = vmatpush1.bf16.msra.mxu0 %v3422
      %3496 = vmatprep.subr.bf16.mxu0 %v3439
      %3497 = vmatpush1.bf16.msra.mxu0 %v3438
      %3498 = vmatprep.subr.bf16.mxu0 %v3455
      %3499 = vmatpush1.bf16.msra.mxu0 %v3454
      %3500 = vmatprep.subr.bf16.mxu0 %v3471
      %3501 = vmatpush1.bf16.msra.mxu0 %v3470
      %3502 = vmatprep.subr.bf16.mxu0 0
      %3503 = vmatpush1.bf16.msra.mxu0 0
      %3504 = vmatprep.subr.bf16.mxu0 0
      %3505 = vmatpush1.bf16.msra.mxu0 0
      %3506 = vmatprep.subr.bf16.mxu0 0
      %3507 = vmatpush1.bf16.msra.mxu0 0
      %3508 = vmatprep.subr.bf16.mxu0 0
      %3509 = vmatpush1.bf16.msra.mxu0 0
      %3510 = vmatprep.subr.bf16.mxu0 0
      %3511 = vmatpush1.bf16.msra.mxu0 0
      %3512 = vmatprep.subr.bf16.mxu0 0
      %3513 = vmatpush1.bf16.msra.mxu0 0
      %3514 = vmatprep.subr.bf16.mxu0 0
      %3515 = vmatpush1.bf16.msra.mxu0 0
      %3516 = vmatprep.subr.bf16.mxu0 0
      %3517 = vmatpush1.bf16.msra.mxu0 0
      %3518 = vmatprep.mubr.bf16.mxu0 0
      %3519 = vmatmul.mubr.bf16.gmra.mrb[0].mxu0 %v3357
      %v3520 = vpop.f32.mrb[0].mxu0
      %v3521 = vadd.f32 0.0, %v3520
      %v3522 = vpop.f32.mrb[0].mxu0
      %v3523 = vadd.f32 0.0, %v3522
      %v3524 = vpop.f32.mrb[0].mxu0
      %v3525 = vpop.f32.mrb[0].mxu0
      %3526 = vdwg.mxu0
      %3527 = vmatprep.subr.bf16.mxu0 %v3361
      %3528 = vmatpush1.bf16.msra.mxu0 %v3360
      %3529 = vmatprep.subr.bf16.mxu0 %v3377
      %3530 = vmatpush1.bf16.msra.mxu0 %v3376
      %3531 = vmatprep.subr.bf16.mxu0 %v3393
      %3532 = vmatpush1.bf16.msra.mxu0 %v3392
      %3533 = vmatprep.subr.bf16.mxu0 %v3409
      %3534 = vmatpush1.bf16.msra.mxu0 %v3408
      %3535 = vmatprep.subr.bf16.mxu0 %v3425
      %3536 = vmatpush1.bf16.msra.mxu0 %v3424
      %3537 = vmatprep.subr.bf16.mxu0 %v3441
      %3538 = vmatpush1.bf16.msra.mxu0 %v3440
      %3539 = vmatprep.subr.bf16.mxu0 %v3457
      %3540 = vmatpush1.bf16.msra.mxu0 %v3456
      %3541 = vmatprep.subr.bf16.mxu0 %v3473
      %3542 = vmatpush1.bf16.msra.mxu0 %v3472
      %3543 = vmatprep.subr.bf16.mxu0 0
      %3544 = vmatpush1.bf16.msra.mxu0 0
      %3545 = vmatprep.subr.bf16.mxu0 0
      %3546 = vmatpush1.bf16.msra.mxu0 0
      %3547 = vmatprep.subr.bf16.mxu0 0
      %3548 = vmatpush1.bf16.msra.mxu0 0
      %3549 = vmatprep.subr.bf16.mxu0 0
      %3550 = vmatpush1.bf16.msra.mxu0 0
      %3551 = vmatprep.subr.bf16.mxu0 0
      %3552 = vmatpush1.bf16.msra.mxu0 0
      %3553 = vmatprep.subr.bf16.mxu0 0
      %3554 = vmatpush1.bf16.msra.mxu0 0
      %3555 = vmatprep.subr.bf16.mxu0 0
      %3556 = vmatpush1.bf16.msra.mxu0 0
      %3557 = vmatprep.subr.bf16.mxu0 0
      %3558 = vmatpush1.bf16.msra.mxu0 0
      %3559 = vmatprep.mubr.bf16.mxu0 0
      %3560 = vmatmul.mubr.bf16.gmra.mrb[0].mxu0 %v3357
      %v3561 = vpop.f32.mrb[0].mxu0
      %v3562 = vadd.f32 0.0, %v3561
      %v3563 = vpop.f32.mrb[0].mxu0
      %v3564 = vadd.f32 0.0, %v3563
      %v3565 = vpop.f32.mrb[0].mxu0
      %v3566 = vpop.f32.mrb[0].mxu0
      %3567 = vdwg.mxu0
      %3568 = vmatprep.subr.bf16.mxu0 %v3363
      %3569 = vmatpush1.bf16.msra.mxu0 %v3362
      %3570 = vmatprep.subr.bf16.mxu0 %v3379
      %3571 = vmatpush1.bf16.msra.mxu0 %v3378
      %3572 = vmatprep.subr.bf16.mxu0 %v3395
      %3573 = vmatpush1.bf16.msra.mxu0 %v3394
      %3574 = vmatprep.subr.bf16.mxu0 %v3411
      %3575 = vmatpush1.bf16.msra.mxu0 %v3410
      %3576 = vmatprep.subr.bf16.mxu0 %v3427
      %3577 = vmatpush1.bf16.msra.mxu0 %v3426
      %3578 = vmatprep.subr.bf16.mxu0 %v3443
      %3579 = vmatpush1.bf16.msra.mxu0 %v3442
      %3580 = vmatprep.subr.bf16.mxu0 %v3459
      %3581 = vmatpush1.bf16.msra.mxu0 %v3458
      %3582 = vmatprep.subr.bf16.mxu0 %v3475
      %3583 = vmatpush1.bf16.msra.mxu0 %v3474
      %3584 = vmatprep.subr.bf16.mxu0 0
      %3585 = vmatpush1.bf16.msra.mxu0 0
      %3586 = vmatprep.subr.bf16.mxu0 0
      %3587 = vmatpush1.bf16.msra.mxu0 0
      %3588 = vmatprep.subr.bf16.mxu0 0
      %3589 = vmatpush1.bf16.msra.mxu0 0
      %3590 = vmatprep.subr.bf16.mxu0 0
      %3591 = vmatpush1.bf16.msra.mxu0 0
      %3592 = vmatprep.subr.bf16.mxu0 0
      %3593 = vmatpush1.bf16.msra.mxu0 0
      %3594 = vmatprep.subr.bf16.mxu0 0
      %3595 = vmatpush1.bf16.msra.mxu0 0
      %3596 = vmatprep.subr.bf16.mxu0 0
      %3597 = vmatpush1.bf16.msra.mxu0 0
      %3598 = vmatprep.subr.bf16.mxu0 0
      %3599 = vmatpush1.bf16.msra.mxu0 0
      %3600 = vmatprep.mubr.bf16.mxu0 0
      %3601 = vmatmul.mubr.bf16.gmra.mrb[0].mxu0 %v3357
      %v3602 = vpop.f32.mrb[0].mxu0
      %v3603 = vadd.f32 0.0, %v3602
      %v3604 = vpop.f32.mrb[0].mxu0
      %v3605 = vadd.f32 0.0, %v3604
      %v3606 = vpop.f32.mrb[0].mxu0
      %v3607 = vpop.f32.mrb[0].mxu0
      %3608 = vdwg.mxu0
      %3609 = vmatprep.subr.bf16.mxu0 %v3365
      %3610 = vmatpush1.bf16.msra.mxu0 %v3364
      %3611 = vmatprep.subr.bf16.mxu0 %v3381
      %3612 = vmatpush1.bf16.msra.mxu0 %v3380
      %3613 = vmatprep.subr.bf16.mxu0 %v3397
      %3614 = vmatpush1.bf16.msra.mxu0 %v3396
      %3615 = vmatprep.subr.bf16.mxu0 %v3413
      %3616 = vmatpush1.bf16.msra.mxu0 %v3412
      %3617 = vmatprep.subr.bf16.mxu0 %v3429
      %3618 = vmatpush1.bf16.msra.mxu0 %v3428
      %3619 = vmatprep.subr.bf16.mxu0 %v3445
      %3620 = vmatpush1.bf16.msra.mxu0 %v3444
      %3621 = vmatprep.subr.bf16.mxu0 %v3461
      %3622 = vmatpush1.bf16.msra.mxu0 %v3460
      %3623 = vmatprep.subr.bf16.mxu0 %v3477
      %3624 = vmatpush1.bf16.msra.mxu0 %v3476
      %3625 = vmatprep.subr.bf16.mxu0 0
      %3626 = vmatpush1.bf16.msra.mxu0 0
      %3627 = vmatprep.subr.bf16.mxu0 0
      %3628 = vmatpush1.bf16.msra.mxu0 0
      %3629 = vmatprep.subr.bf16.mxu0 0
      %3630 = vmatpush1.bf16.msra.mxu0 0
      %3631 = vmatprep.subr.bf16.mxu0 0
      %3632 = vmatpush1.bf16.msra.mxu0 0
      %3633 = vmatprep.subr.bf16.mxu0 0
      %3634 = vmatpush1.bf16.msra.mxu0 0
      %3635 = vmatprep.subr.bf16.mxu0 0
      %3636 = vmatpush1.bf16.msra.mxu0 0
      %3637 = vmatprep.subr.bf16.mxu0 0
      %3638 = vmatpush1.bf16.msra.mxu0 0
      %3639 = vmatprep.subr.bf16.mxu0 0
      %3640 = vmatpush1.bf16.msra.mxu0 0
      %3641 = vmatprep.mubr.bf16.mxu0 0
      %3642 = vmatmul.mubr.bf16.gmra.mrb[0].mxu0 %v3357
      %v3643 = vpop.f32.mrb[0].mxu0
      %v3644 = vadd.f32 0.0, %v3643
      %v3645 = vpop.f32.mrb[0].mxu0
      %v3646 = vadd.f32 0.0, %v3645
      %v3647 = vpop.f32.mrb[0].mxu0
      %v3648 = vpop.f32.mrb[0].mxu0
      %3649 = vdwg.mxu0
      %3650 = vmatprep.subr.bf16.mxu0 %v3367
      %3651 = vmatpush1.bf16.msra.mxu0 %v3366
      %3652 = vmatprep.subr.bf16.mxu0 %v3383
      %3653 = vmatpush1.bf16.msra.mxu0 %v3382
      %3654 = vmatprep.subr.bf16.mxu0 %v3399
      %3655 = vmatpush1.bf16.msra.mxu0 %v3398
      %3656 = vmatprep.subr.bf16.mxu0 %v3415
      %3657 = vmatpush1.bf16.msra.mxu0 %v3414
      %3658 = vmatprep.subr.bf16.mxu0 %v3431
      %3659 = vmatpush1.bf16.msra.mxu0 %v3430
      %3660 = vmatprep.subr.bf16.mxu0 %v3447
      %3661 = vmatpush1.bf16.msra.mxu0 %v3446
      %3662 = vmatprep.subr.bf16.mxu0 %v3463
      %3663 = vmatpush1.bf16.msra.mxu0 %v3462
      %3664 = vmatprep.subr.bf16.mxu0 %v3479
      %3665 = vmatpush1.bf16.msra.mxu0 %v3478
      %3666 = vmatprep.subr.bf16.mxu0 0
      %3667 = vmatpush1.bf16.msra.mxu0 0
      %3668 = vmatprep.subr.bf16.mxu0 0
      %3669 = vmatpush1.bf16.msra.mxu0 0
      %3670 = vmatprep.subr.bf16.mxu0 0
      %3671 = vmatpush1.bf16.msra.mxu0 0
      %3672 = vmatprep.subr.bf16.mxu0 0
      %3673 = vmatpush1.bf16.msra.mxu0 0
      %3674 = vmatprep.subr.bf16.mxu0 0
      %3675 = vmatpush1.bf16.msra.mxu0 0
      %3676 = vmatprep.subr.bf16.mxu0 0
      %3677 = vmatpush1.bf16.msra.mxu0 0
      %3678 = vmatprep.subr.bf16.mxu0 0
      %3679 = vmatpush1.bf16.msra.mxu0 0
      %3680 = vmatprep.subr.bf16.mxu0 0
      %3681 = vmatpush1.bf16.msra.mxu0 0
      %3682 = vmatprep.mubr.bf16.mxu0 0
      %3683 = vmatmul.mubr.bf16.gmra.mrb[0].mxu0 %v3357
      %v3684 = vpop.f32.mrb[0].mxu0
      %v3685 = vadd.f32 0.0, %v3684
      %v3686 = vpop.f32.mrb[0].mxu0
      %v3687 = vadd.f32 0.0, %v3686
      %v3688 = vpop.f32.mrb[0].mxu0
      %v3689 = vpop.f32.mrb[0].mxu0
      %3690 = vdwg.mxu0
      %3691 = vmatprep.subr.bf16.mxu0 %v3369
      %3692 = vmatpush1.bf16.msra.mxu0 %v3368
      %3693 = vmatprep.subr.bf16.mxu0 %v3385
      %3694 = vmatpush1.bf16.msra.mxu0 %v3384
      %3695 = vmatprep.subr.bf16.mxu0 %v3401
      %3696 = vmatpush1.bf16.msra.mxu0 %v3400
      %3697 = vmatprep.subr.bf16.mxu0 %v3417
      %3698 = vmatpush1.bf16.msra.mxu0 %v3416
      %3699 = vmatprep.subr.bf16.mxu0 %v3433
      %3700 = vmatpush1.bf16.msra.mxu0 %v3432
      %3701 = vmatprep.subr.bf16.mxu0 %v3449
      %3702 = vmatpush1.bf16.msra.mxu0 %v3448
      %3703 = vmatprep.subr.bf16.mxu0 %v3465
      %3704 = vmatpush1.bf16.msra.mxu0 %v3464
      %3705 = vmatprep.subr.bf16.mxu0 %v3481
      %3706 = vmatpush1.bf16.msra.mxu0 %v3480
      %3707 = vmatprep.subr.bf16.mxu0 0
      %3708 = vmatpush1.bf16.msra.mxu0 0
      %3709 = vmatprep.subr.bf16.mxu0 0
      %3710 = vmatpush1.bf16.msra.mxu0 0
      %3711 = vmatprep.subr.bf16.mxu0 0
      %3712 = vmatpush1.bf16.msra.mxu0 0
      %3713 = vmatprep.subr.bf16.mxu0 0
      %3714 = vmatpush1.bf16.msra.mxu0 0
      %3715 = vmatprep.subr.bf16.mxu0 0
      %3716 = vmatpush1.bf16.msra.mxu0 0
      %3717 = vmatprep.subr.bf16.mxu0 0
      %3718 = vmatpush1.bf16.msra.mxu0 0
      %3719 = vmatprep.subr.bf16.mxu0 0
      %3720 = vmatpush1.bf16.msra.mxu0 0
      %3721 = vmatprep.subr.bf16.mxu0 0
      %3722 = vmatpush1.bf16.msra.mxu0 0
      %3723 = vmatprep.mubr.bf16.mxu0 0
      %3724 = vmatmul.mubr.bf16.gmra.mrb[0].mxu0 %v3357
      %v3725 = vpop.f32.mrb[0].mxu0
      %v3726 = vadd.f32 0.0, %v3725
      %v3727 = vpop.f32.mrb[0].mxu0
      %v3728 = vadd.f32 0.0, %v3727
      %v3729 = vpop.f32.mrb[0].mxu0
      %v3730 = vpop.f32.mrb[0].mxu0
      %3731 = vdwg.mxu0
      %3732 = vmatprep.subr.bf16.mxu0 %v3371
      %3733 = vmatpush1.bf16.msra.mxu0 %v3370
      %3734 = vmatprep.subr.bf16.mxu0 %v3387
      %3735 = vmatpush1.bf16.msra.mxu0 %v3386
      %3736 = vmatprep.subr.bf16.mxu0 %v3403
      %3737 = vmatpush1.bf16.msra.mxu0 %v3402
      %3738 = vmatprep.subr.bf16.mxu0 %v3419
      %3739 = vmatpush1.bf16.msra.mxu0 %v3418
      %3740 = vmatprep.subr.bf16.mxu0 %v3435
      %3741 = vmatpush1.bf16.msra.mxu0 %v3434
      %3742 = vmatprep.subr.bf16.mxu0 %v3451
      %3743 = vmatpush1.bf16.msra.mxu0 %v3450
      %3744 = vmatprep.subr.bf16.mxu0 %v3467
      %3745 = vmatpush1.bf16.msra.mxu0 %v3466
      %3746 = vmatprep.subr.bf16.mxu0 %v3483
      %3747 = vmatpush1.bf16.msra.mxu0 %v3482
      %3748 = vmatprep.subr.bf16.mxu0 0
      %3749 = vmatpush1.bf16.msra.mxu0 0
      %3750 = vmatprep.subr.bf16.mxu0 0
      %3751 = vmatpush1.bf16.msra.mxu0 0
      %3752 = vmatprep.subr.bf16.mxu0 0
      %3753 = vmatpush1.bf16.msra.mxu0 0
      %3754 = vmatprep.subr.bf16.mxu0 0
      %3755 = vmatpush1.bf16.msra.mxu0 0
      %3756 = vmatprep.subr.bf16.mxu0 0
      %3757 = vmatpush1.bf16.msra.mxu0 0
      %3758 = vmatprep.subr.bf16.mxu0 0
      %3759 = vmatpush1.bf16.msra.mxu0 0
      %3760 = vmatprep.subr.bf16.mxu0 0
      %3761 = vmatpush1.bf16.msra.mxu0 0
      %3762 = vmatprep.subr.bf16.mxu0 0
      %3763 = vmatpush1.bf16.msra.mxu0 0
      %3764 = vmatprep.mubr.bf16.mxu0 0
      %3765 = vmatmul.mubr.bf16.gmra.mrb[0].mxu0 %v3357
      %v3766 = vpop.f32.mrb[0].mxu0
      %v3767 = vadd.f32 0.0, %v3766
      %v3768 = vpop.f32.mrb[0].mxu0
      %v3769 = vadd.f32 0.0, %v3768
      %v3770 = vpop.f32.mrb[0].mxu0
      %v3771 = vpop.f32.mrb[0].mxu0
      %3772 = vdwg.mxu0
      %3773 = vmatprep.subr.bf16.mxu0 %v3373
      %3774 = vmatpush1.bf16.msra.mxu0 %v3372
      %3775 = vmatprep.subr.bf16.mxu0 %v3389
      %3776 = vmatpush1.bf16.msra.mxu0 %v3388
      %3777 = vmatprep.subr.bf16.mxu0 %v3405
      %3778 = vmatpush1.bf16.msra.mxu0 %v3404
      %3779 = vmatprep.subr.bf16.mxu0 %v3421
      %3780 = vmatpush1.bf16.msra.mxu0 %v3420
      %3781 = vmatprep.subr.bf16.mxu0 %v3437
      %3782 = vmatpush1.bf16.msra.mxu0 %v3436
      %3783 = vmatprep.subr.bf16.mxu0 %v3453
      %3784 = vmatpush1.bf16.msra.mxu0 %v3452
      %3785 = vmatprep.subr.bf16.mxu0 %v3469
      %3786 = vmatpush1.bf16.msra.mxu0 %v3468
      %3787 = vmatprep.subr.bf16.mxu0 %v3485
      %3788 = vmatpush1.bf16.msra.mxu0 %v3484
      %3789 = vmatprep.subr.bf16.mxu0 0
      %3790 = vmatpush1.bf16.msra.mxu0 0
      %3791 = vmatprep.subr.bf16.mxu0 0
      %3792 = vmatpush1.bf16.msra.mxu0 0
      %3793 = vmatprep.subr.bf16.mxu0 0
      %3794 = vmatpush1.bf16.msra.mxu0 0
      %3795 = vmatprep.subr.bf16.mxu0 0
      %3796 = vmatpush1.bf16.msra.mxu0 0
      %3797 = vmatprep.subr.bf16.mxu0 0
      %3798 = vmatpush1.bf16.msra.mxu0 0
      %3799 = vmatprep.subr.bf16.mxu0 0
      %3800 = vmatpush1.bf16.msra.mxu0 0
      %3801 = vmatprep.subr.bf16.mxu0 0
      %3802 = vmatpush1.bf16.msra.mxu0 0
      %3803 = vmatprep.subr.bf16.mxu0 0
      %3804 = vmatpush1.bf16.msra.mxu0 0
      %3805 = vmatprep.mubr.bf16.mxu0 0
      %3806 = vmatmul.mubr.bf16.gmra.mrb[0].mxu0 %v3357
      %v3807 = vpop.f32.mrb[0].mxu0
      %v3808 = vadd.f32 0.0, %v3807
      %v3809 = vpop.f32.mrb[0].mxu0
      %v3810 = vadd.f32 0.0, %v3809
      %v3811 = vpop.f32.mrb[0].mxu0
      %v3812 = vpop.f32.mrb[0].mxu0
      %3813 = vdwg.mxu0
      %v3830 = vcombine.low %v3521, %v3523
      %v3831 = vcombine.low %v3562, %v3564
      %v3832 = vcombine.low %v3603, %v3605
      %v3833 = vcombine.low %v3644, %v3646
      %v3835 = vunpack.c.l.s4 1966171168
      %v3836 = vunpack.c.0.s8 %v3835
      %v3837 = vlaneseq
      %v3838 = vshrl.u32 %v3837, 7
      %v3839 = vsub.s32 %v3836, %v3838
      %v3840 = vrot.slane %v3830, %v3839
      %v3842 = vunpack.c.l.s4 1966171168
      %v3843 = vunpack.c.0.s8 %v3842
      %v3844 = vlaneseq
      %v3845 = vshrl.u32 %v3844, 7
      %v3846 = vsub.s32 %v3843, %v3845
      %v3847 = vrot.slane %v3831, %v3846
      %v3849 = vunpack.c.l.s4 1966171168
      %v3850 = vunpack.c.0.s8 %v3849
      %v3851 = vlaneseq
      %v3852 = vshrl.u32 %v3851, 7
      %v3853 = vsub.s32 %v3850, %v3852
      %v3854 = vrot.slane %v3832, %v3853
      %v3856 = vunpack.c.l.s4 1966171168
      %v3857 = vunpack.c.0.s8 %v3856
      %v3858 = vlaneseq
      %v3859 = vshrl.u32 %v3858, 7
      %v3860 = vsub.s32 %v3857, %v3859
      %v3861 = vrot.slane %v3833, %v3860
      %v3862 = vcombine.low %v3840, %v3847
      %v3863 = vcombine.low %v3854, %v3861
      %v3865 = vunpack.c.l.s4 1966171168
      %v3866 = vunpack.c.0.s8 %v3865
      %v3867 = vlaneseq
      %v3868 = vshrl.u32 %v3867, 7
      %v3869 = vsub.s32 %v3866, %v3868
      %v3870 = vrot.slane %v3862, %v3869
      %v3872 = vunpack.c.l.s4 1966171168
      %v3873 = vunpack.c.0.s8 %v3872
      %v3874 = vlaneseq
      %v3875 = vshrl.u32 %v3874, 7
      %v3876 = vsub.s32 %v3873, %v3875
      %v3877 = vrot.slane %v3863, %v3876
      %v3878 = vcombine.low %v3870, %v3877
      %v3879 = vcombine.low %v3685, %v3687
      %v3880 = vcombine.low %v3726, %v3728
      %v3881 = vcombine.low %v3767, %v3769
      %v3882 = vcombine.low %v3808, %v3810
      %v3884 = vunpack.c.l.s4 1966171168
      %v3885 = vunpack.c.0.s8 %v3884
      %v3886 = vlaneseq
      %v3887 = vshrl.u32 %v3886, 7
      %v3888 = vsub.s32 %v3885, %v3887
      %v3889 = vrot.slane %v3879, %v3888
      %v3891 = vunpack.c.l.s4 1966171168
      %v3892 = vunpack.c.0.s8 %v3891
      %v3893 = vlaneseq
      %v3894 = vshrl.u32 %v3893, 7
      %v3895 = vsub.s32 %v3892, %v3894
      %v3896 = vrot.slane %v3880, %v3895
      %v3898 = vunpack.c.l.s4 1966171168
      %v3899 = vunpack.c.0.s8 %v3898
      %v3900 = vlaneseq
      %v3901 = vshrl.u32 %v3900, 7
      %v3902 = vsub.s32 %v3899, %v3901
      %v3903 = vrot.slane %v3881, %v3902
      %v3905 = vunpack.c.l.s4 1966171168
      %v3906 = vunpack.c.0.s8 %v3905
      %v3907 = vlaneseq
      %v3908 = vshrl.u32 %v3907, 7
      %v3909 = vsub.s32 %v3906, %v3908
      %v3910 = vrot.slane %v3882, %v3909
      %v3911 = vcombine.low %v3889, %v3896
      %v3912 = vcombine.low %v3903, %v3910
      %v3914 = vunpack.c.l.s4 1966171168
      %v3915 = vunpack.c.0.s8 %v3914
      %v3916 = vlaneseq
      %v3917 = vshrl.u32 %v3916, 7
      %v3918 = vsub.s32 %v3915, %v3917
      %v3919 = vrot.slane %v3911, %v3918
      %v3921 = vunpack.c.l.s4 1966171168
      %v3922 = vunpack.c.0.s8 %v3921
      %v3923 = vlaneseq
      %v3924 = vshrl.u32 %v3923, 7
      %v3925 = vsub.s32 %v3922, %v3924
      %v3926 = vrot.slane %v3912, %v3925
      %v3927 = vcombine.low %v3919, %v3926
      %3930 = vst [vmem:[%s287] sm:$0xff] %v3878
      %3931 = vst [vmem:[%s287 + $0x8] sm:$0xff] %v3927
      %s3932 = smul.u32 16, %s22
      %p3933 = scmp.lt.s32.totalorder %s21, 1
      %s3934 = scalar_select %p3933, %s21, 1
      %p3935 = scmp.lt.s32.totalorder %s3932, 31
      %s3936 = scalar_select %p3935, %s3932, 31
      %s3937 = smul.addr %s3934, 32
      %s3938 = sadd.s32 %s3936, %s3937
      %s3939 = scalar_lea.vmem %s6, %s3938
      // Predicated region
      $region45: #{pixel_discriminator_forward.3} parent=43 // pred_check
        %p3940 = pneg %p182
      $region46: #{pixel_discriminator_forward.3} parent=43 // pred_check_branch
        %3942 = sbr.rel (%p3940) target = $region48
      $region47: #{pixel_discriminator_forward.3} parent=43 // pred_region
        %s3943 = smul.u32 16, %s22
      $region48: #{pixel_discriminator_forward.3} parent=43 // pred_fallthru
        _
    $region44: #{pixel_discriminator_forward.3} parent=5 // pred_fallthru
      _
    %p3944 = scmp.le.s32.totalorder 2, %s12
    // Predicated region
    $region49: #{pixel_discriminator_forward.3} parent=5 // pred_check
      %p3945 = pneg %p3944
    $region50: #{pixel_discriminator_forward.3} parent=5 // pred_check_branch
      %3947 = sbr.rel (%p3945) target = $region52
    $region51: #{pixel_discriminator_forward.3} parent=5 // pred_region
      %s3948 = ssub.s32 %s12, 2
      // Predicated region
      $region53: #{pixel_discriminator_forward.3} parent=51 // pred_check
        %p3949 = pneg %p188
      $region54: #{pixel_discriminator_forward.3} parent=51 // pred_check_branch
        %3951 = sbr.rel (%p3949) target = $region56
      $region55: #{pixel_discriminator_forward.3} parent=51 // pred_region
        %s3952 = smul.u32 16, %s24
        %p3953 = scmp.lt.s32.totalorder %s23, 1
        %s3954 = scalar_select %p3953, %s23, 1
        %p3955 = scmp.lt.s32.totalorder %s3952, 31
        %s3956 = scalar_select %p3955, %s3952, 31
        %s3957 = smul.addr %s3954, 32
        %s3958 = sadd.s32 %s3956, %s3957
        %s3959 = scalar_lea.vmem %s6, %s3958
      $region56: #{pixel_discriminator_forward.3} parent=51 // pred_fallthru
        _
    $region52: #{pixel_discriminator_forward.3} parent=5 // pred_fallthru
      _
  $region6: #{pixel_discriminator_forward.3} parent=0 // loop_footer
    %s16 = sadd.s32 1, %s12
  $region7: #{pixel_discriminator_forward.3} parent=0 // loop_footer_branch
    %11 = sbr.rel target = $region3
  $region8: #{pixel_discriminator_forward.3} parent=0 // loop_exit
    _

</llo_original>
